<compile_context>
chip_gen: v7x
topology: tpu7x:2x2x1
jax: 0.10.0
libtpu: 0.0.40
codegen_flags: <defaults>
</compile_context>

<pallas_src>
import functools

import jax
import jax.numpy as jnp
from jax.experimental import pallas as pl
from jax.experimental.pallas import tpu as pltpu

IN_FEATURES = 3 * 32 * 32   # 3072
HIDDEN = 8192
FC3_PAD = 128               # lane-dense padding for the (8192, num_classes) layer

# Per-layer tile sizes (weights are pre-tiled in HBM to match these).
FC1_TN, FC1_TK = 2048, IN_FEATURES   # grid (4, 1), 6 MiB int8 weight blocks
FC2_TN, FC2_TK = 2048, 4096          # grid (4, 2), 8 MiB int8 weight blocks
FC3_TN, FC3_TK = FC3_PAD, 2048       # grid (1, 4), 256 KiB int8 weight blocks


# ----------------------------------------------------------------------------- #
# Kernel: one Linear layer, y = maybe_dropout(maybe_relu((x @ Wq) * scale + b))
# Output block is resident across the K (reduction) grid axis and doubles as the
# f32 accumulator.
# ----------------------------------------------------------------------------- #
def _linear_kernel(*refs, apply_relu, has_dropout):
    if has_dropout:
        x_ref, w_ref, s_ref, b_ref, m_ref, o_ref = refs
    else:
        x_ref, w_ref, s_ref, b_ref, o_ref = refs
        m_ref = None

    k = pl.program_id(1)

    @pl.when(k == 0)
    def _():
        o_ref[...] = jnp.zeros_like(o_ref)

    # int8 -> bf16 cast on the VPU (hidden under the dominant weight DMA),
    # bf16 x bf16 -> f32 accumulation on the MXU.
    o_ref[...] += jnp.dot(x_ref[...].astype(jnp.bfloat16),
                          w_ref[...].astype(jnp.bfloat16),
                          preferred_element_type=jnp.float32)

    @pl.when(k == pl.num_programs(1) - 1)
    def _():
        y = o_ref[...] * s_ref[...] + b_ref[...]   # per-output-channel dequant + bias
        if apply_relu:
            y = jnp.maximum(y, 0.0)
        if has_dropout:
            y = y * m_ref[...]                     # mask already scaled by 1/(1-p)
        o_ref[...] = y


def linear_pallas(x, wq, scale, b, mask=None, *, apply_relu,
                  vmem_limit_bytes=48 * 1024 * 1024):
    """y = maybe_dropout(maybe_relu((x @ dequant(wq)) + b)).

    x:     (B, K) float32 activations
    wq:    (N//tn, K//tk, tk, tn) int8 pre-tiled weights (each block contiguous)
    scale: (1, N) float32 per-output-channel dequant scale
    b:     (1, N) float32 bias
    mask:  optional (B, N) float32 pre-scaled dropout mask
    """
    B, K = x.shape
    nj, nk, tk, tn = wq.shape
    N = nj * tn
    assert nk * tk == K
    assert scale.shape == (1, N) and b.shape == (1, N)

    has_dropout = mask is not None
    kernel = functools.partial(_linear_kernel, apply_relu=apply_relu,
                               has_dropout=has_dropout)

    in_specs = [
        pl.BlockSpec((B, tk), lambda j, k: (0, k)),                 # activations (tiny)
        pl.BlockSpec((None, None, tk, tn), lambda j, k: (j, k, 0, 0)),  # contiguous int8 block
        pl.BlockSpec((1, tn), lambda j, k: (0, j)),                 # per-channel scale
        pl.BlockSpec((1, tn), lambda j, k: (0, j)),                 # bias
    ]
    inputs = [x, wq, scale, b]
    if has_dropout:
        in_specs.append(pl.BlockSpec((B, tn), lambda j, k: (0, j)))
        inputs.append(mask)

    return pl.pallas_call(
        kernel,
        out_shape=jax.ShapeDtypeStruct((B, N), jnp.float32),
        grid=(nj, nk),
        in_specs=in_specs,
        out_specs=pl.BlockSpec((B, tn), lambda j, k: (0, j)),
        compiler_params=pltpu.CompilerParams(
            dimension_semantics=("parallel", "arbitrary"),
            vmem_limit_bytes=vmem_limit_bytes),
    )(*inputs)


# ----------------------------------------------------------------------------- #
# Parameters: init (nn.Linear default), per-channel int8 quantization, pre-tiling
# ----------------------------------------------------------------------------- #
def _quantize_pretile(w, b, tn, tk):
    """w: (K, N) f32 -> (pretiled int8 (N//tn, K//tk, tk, tn), scale (1,N), bias (1,N))."""
    K, N = w.shape
    assert K % tk == 0 and N % tn == 0
    amax = jnp.max(jnp.abs(w), axis=0, keepdims=True)          # (1, N)
    scale = (jnp.maximum(amax, 1e-8) / 127.0).astype(jnp.float32)
    q = jnp.clip(jnp.round(w / scale), -127, 127).astype(jnp.int8)
    # Pre-tile so each streamed (tk, tn) block is contiguous in HBM.
    qt = q.reshape(K // tk, tk, N // tn, tn).transpose(2, 0, 1, 3)
    return qt, scale, b.reshape(1, N).astype(jnp.float32)


def init_params(key, num_classes=10):
    """nn.Linear default init U(-1/sqrt(fan_in), 1/sqrt(fan_in)), then int8-quantized."""
    layer_cfg = [
        (IN_FEATURES, HIDDEN, FC1_TN, FC1_TK, 0),
        (HIDDEN, HIDDEN, FC2_TN, FC2_TK, 0),
        (HIDDEN, num_classes, FC3_TN, FC3_TK, FC3_PAD - num_classes),
    ]
    params = {}
    for i, (fan_in, fan_out, tn, tk, pad) in enumerate(layer_cfg, start=1):
        key, kw, kb = jax.random.split(key, 3)
        bound = 1.0 / jnp.sqrt(float(fan_in))
        w = jax.random.uniform(kw, (fan_in, fan_out), jnp.float32, -bound, bound)
        b = jax.random.uniform(kb, (fan_out,), jnp.float32, -bound, bound)
        if pad:  # lane-dense padding for fc3; padded columns are exactly zero
            w = jnp.pad(w, ((0, 0), (0, pad)))
            b = jnp.pad(b, (0, pad))
        wq, s, b2 = _quantize_pretile(w, b, tn, tk)
        params[f"wq{i}"] = wq
        params[f"s{i}"] = s
        params[f"b{i}"] = b2
    return params


def make_dropout_masks(rng_key, batch, dropout_rate):
    """Pre-scaled Bernoulli keep masks matching nn.Dropout training semantics."""
    k1, k2 = jax.random.split(rng_key)
    keep = 1.0 - dropout_rate
    m1 = jax.random.bernoulli(k1, keep, (batch, HIDDEN)).astype(jnp.float32) / keep
    m2 = jax.random.bernoulli(k2, keep, (batch, HIDDEN)).astype(jnp.float32) / keep
    return m1, m2


# ----------------------------------------------------------------------------- #
# Forward
# ----------------------------------------------------------------------------- #
def regular_dropout_forward(x, params, *, dropout_rate=0.5, training=True,
                            rng_key=None, num_classes=10):
    B = x.shape[0]
    h = x.reshape(B, -1).astype(jnp.float32)     # x.view(x.size(0), -1)

    if training and dropout_rate > 0.0:
        assert rng_key is not None
        m1, m2 = make_dropout_masks(rng_key, B, dropout_rate)
    else:
        m1 = m2 = None

    h1 = linear_pallas(h, params["wq1"], params["s1"], params["b1"], m1,
                       apply_relu=True)
    h2 = linear_pallas(h1, params["wq2"], params["s2"], params["b2"], m2,
                       apply_relu=True)
    out = linear_pallas(h2, params["wq3"], params["s3"], params["b3"], None,
                        apply_relu=False)
    return out[:, :num_classes]


# ----------------------------------------------------------------------------- #
# Pure-JAX references (same quantized weights / bf16 activations, f32 accumulation)
# ----------------------------------------------------------------------------- #
def _ref_linear(h, wq, scale, b):
    nj, nk, tk, tn = wq.shape
    w2d = wq.transpose(1, 2, 0, 3).reshape(nk * tk, nj * tn).astype(jnp.bfloat16)
    acc = jnp.dot(h.astype(jnp.bfloat16), w2d, preferred_element_type=jnp.float32)
    return acc * scale + b


def _reference_forward(x, params, m1, m2, num_classes):
    B = x.shape[0]
    h = x.reshape(B, -1).astype(jnp.float32)
    h = jnp.maximum(_ref_linear(h, params["wq1"], params["s1"], params["b1"]), 0.0)
    if m1 is not None:
        h = h * m1
    h = jnp.maximum(_ref_linear(h, params["wq2"], params["s2"], params["b2"]), 0.0)
    if m2 is not None:
        h = h * m2
    out = _ref_linear(h, params["wq3"], params["s3"], params["b3"])
    return out[:, :num_classes]


if __name__ == "__main__":
    key = jax.random.PRNGKey(0)
    key, kp, kx, kd = jax.random.split(key, 4)

    num_classes = 10
    params = init_params(kp, num_classes=num_classes)

    batch = 2
    x = jax.random.normal(kx, (batch, 3, 32, 32), jnp.float32)  # NCHW like PyTorch

    # Eval mode (dropout = identity).
    out_eval = regular_dropout_forward(x, params, dropout_rate=0.5,
                                       training=False, num_classes=num_classes)
    out_eval = jax.block_until_ready(out_eval)
    ref_eval = _reference_forward(x, params, None, None, num_classes)
    assert out_eval.shape == (batch, num_classes)
    assert jnp.allclose(out_eval, ref_eval, atol=1e-2, rtol=1e-2), "eval mismatch"

    # Training mode: dropout masks generated on host, fused multiply in-kernel.
    out_train = regular_dropout_forward(x, params, dropout_rate=0.5,
                                        training=True, rng_key=kd,
                                        num_classes=num_classes)
    out_train = jax.block_until_ready(out_train)
    m1, m2 = make_dropout_masks(kd, batch, 0.5)
    ref_train = _reference_forward(x, params, m1, m2, num_classes)
    assert out_train.shape == (batch, num_classes)
    assert jnp.allclose(out_train, ref_train, atol=1e-2, rtol=1e-2), "train mismatch"

    print("KERNEL_OK")
</pallas_src>

<mosaic_0001>
module attributes {stable_mosaic.version = 11 : i64} {
  func.func @_linear_kernel(%arg0: i32, %arg1: i32, %arg2: memref<2x3072xf32, #tpu.memory_space<vmem>>, %arg3: memref<1x1x3072x2048xi8, #tpu.memory_space<vmem>>, %arg4: memref<1x2048xf32, #tpu.memory_space<vmem>>, %arg5: memref<1x2048xf32, #tpu.memory_space<vmem>>, %arg6: memref<2x2048xf32, #tpu.memory_space<vmem>>) attributes {dimension_semantics = [#tpu.dimension_semantics<parallel>, #tpu.dimension_semantics<arbitrary>], iteration_bounds = array<i64: 4, 1>, scalar_prefetch = 0 : i64, scratch_operands = 0 : i64, tpu.core_type = #tpu.core_type<tc>, window_params = [{transform_indices = @transform_0, window_bounds = array<i64: 2, 3072>}, {transform_indices = @transform_1, window_bounds = array<i64: 1, 1, 3072, 2048>}, {transform_indices = @transform_2, window_bounds = array<i64: 1, 2048>}, {transform_indices = @transform_3, window_bounds = array<i64: 1, 2048>}, {transform_indices = @transform_4, window_bounds = array<i64: 2, 2048>}]} {
    %c0_i32 = arith.constant 0 : i32
    %0 = arith.cmpi eq, %arg1, %c0_i32 : i32
    %1 = arith.extui %0 : i1 to i32
    %c0_i32_0 = arith.constant 0 : i32
    %2 = arith.cmpi ne, %1, %c0_i32_0 : i32
    scf.if %2 {
      %cst_12 = arith.constant 0.000000e+00 : f32
      %15 = vector.broadcast %cst_12 : f32 to vector<2x2048xf32>
      %c0_13 = arith.constant 0 : index
      %c0_14 = arith.constant 0 : index
      %16 = vector.load %arg6[%c0_13, %c0_14] : memref<2x2048xf32, #tpu.memory_space<vmem>>, vector<2x2048xf32>
      tpu.vector_store %arg6[%c0_13, %c0_14], %15 {strides = array<i32>} : memref<2x2048xf32, #tpu.memory_space<vmem>>, vector<2x2048xf32>,
    } else {
    }
    %c0 = arith.constant 0 : index
    %c0_1 = arith.constant 0 : index
    %3 = vector.load %arg6[%c0, %c0_1] : memref<2x2048xf32, #tpu.memory_space<vmem>>, vector<2x2048xf32>
    %c0_2 = arith.constant 0 : index
    %c0_3 = arith.constant 0 : index
    %4 = vector.load %arg2[%c0_2, %c0_3] : memref<2x3072xf32, #tpu.memory_space<vmem>>, vector<2x3072xf32>
    %5 = arith.truncf %4 : vector<2x3072xf32> to vector<2x3072xbf16>
    %c0_4 = arith.constant 0 : index
    %c0_5 = arith.constant 0 : index
    %c0_6 = arith.constant 0 : index
    %c0_7 = arith.constant 0 : index
    %6 = vector.load %arg3[%c0_4, %c0_5, %c0_6, %c0_7] : memref<1x1x3072x2048xi8, #tpu.memory_space<vmem>>, vector<1x1x3072x2048xi8>
    %7 = vector.shape_cast %6 : vector<1x1x3072x2048xi8> to vector<3072x2048xi8>
    %8 = arith.sitofp %7 : vector<3072x2048xi8> to vector<3072x2048xbf16>
    %cst = arith.constant dense<0.000000e+00> : vector<2x2048xf32>
    %9 = tpu.matmul %5, %8, %cst {dimension_numbers = #tpu.dot_dimension_numbers<[1], [0], [0], [1], [0, 0, 1, 1], [], []>} : vector<2x3072xbf16>, vector<3072x2048xbf16>, vector<2x2048xf32> -> vector<2x2048xf32>
    %10 = arith.addf %3, %9 : vector<2x2048xf32>
    %c0_8 = arith.constant 0 : index
    %c0_9 = arith.constant 0 : index
    %11 = vector.load %arg6[%c0_8, %c0_9] : memref<2x2048xf32, #tpu.memory_space<vmem>>, vector<2x2048xf32>
    tpu.vector_store %arg6[%c0_8, %c0_9], %10 {strides = array<i32>} : memref<2x2048xf32, #tpu.memory_space<vmem>>, vector<2x2048xf32>,
    %c0_i32_10 = arith.constant 0 : i32
    %12 = arith.cmpi eq, %arg1, %c0_i32_10 : i32
    %13 = arith.extui %12 : i1 to i32
    %c0_i32_11 = arith.constant 0 : i32
    %14 = arith.cmpi ne, %13, %c0_i32_11 : i32
    scf.if %14 {
      %c0_12 = arith.constant 0 : index
      %c0_13 = arith.constant 0 : index
      %15 = vector.load %arg6[%c0_12, %c0_13] : memref<2x2048xf32, #tpu.memory_space<vmem>>, vector<2x2048xf32>
      %c0_14 = arith.constant 0 : index
      %c0_15 = arith.constant 0 : index
      %16 = vector.load %arg4[%c0_14, %c0_15] : memref<1x2048xf32, #tpu.memory_space<vmem>>, vector<1x2048xf32>
      %17 = vector.broadcast %16 : vector<1x2048xf32> to vector<2x2048xf32>
      %18 = arith.mulf %15, %17 : vector<2x2048xf32>
      %c0_16 = arith.constant 0 : index
      %c0_17 = arith.constant 0 : index
      %19 = vector.load %arg5[%c0_16, %c0_17] : memref<1x2048xf32, #tpu.memory_space<vmem>>, vector<1x2048xf32>
      %20 = vector.broadcast %19 : vector<1x2048xf32> to vector<2x2048xf32>
      %21 = arith.addf %18, %20 : vector<2x2048xf32>
      %cst_18 = arith.constant 0.000000e+00 : f32
      %22 = vector.broadcast %cst_18 : f32 to vector<2x2048xf32>
      %23 = arith.maximumf %21, %22 : vector<2x2048xf32>
      %c0_19 = arith.constant 0 : index
      %c0_20 = arith.constant 0 : index
      %24 = vector.load %arg6[%c0_19, %c0_20] : memref<2x2048xf32, #tpu.memory_space<vmem>>, vector<2x2048xf32>
      tpu.vector_store %arg6[%c0_19, %c0_20], %23 {strides = array<i32>} : memref<2x2048xf32, #tpu.memory_space<vmem>>, vector<2x2048xf32>,
    } else {
    }
    return
  }
  func.func @transform_0(%arg0: i32, %arg1: i32) -> (i32, i32) {
    %c0_i32 = arith.constant 0 : i32
    %c0_i32_0 = arith.constant 0 : i32
    return %c0_i32, %arg1 : i32, i32
  }
  func.func @transform_1(%arg0: i32, %arg1: i32) -> (i32, i32, i32, i32) {
    %c0_i32 = arith.constant 0 : i32
    %c0_i32_0 = arith.constant 0 : i32
    %c0_i32_1 = arith.constant 0 : i32
    return %arg0, %arg1, %c0_i32, %c0_i32_0 : i32, i32, i32, i32
  }
  func.func @transform_2(%arg0: i32, %arg1: i32) -> (i32, i32) {
    %c0_i32 = arith.constant 0 : i32
    %c0_i32_0 = arith.constant 0 : i32
    return %c0_i32, %arg0 : i32, i32
  }
  func.func @transform_3(%arg0: i32, %arg1: i32) -> (i32, i32) {
    %c0_i32 = arith.constant 0 : i32
    %c0_i32_0 = arith.constant 0 : i32
    return %c0_i32, %arg0 : i32, i32
  }
  func.func @transform_4(%arg0: i32, %arg1: i32) -> (i32, i32) {
    %c0_i32 = arith.constant 0 : i32
    %c0_i32_0 = arith.constant 0 : i32
    return %c0_i32, %arg0 : i32, i32
  }
}

</mosaic_0001>

<llo_original>
// kernel: tpu_custom_call.1
$region0: #{tpu_custom_call.1}
  #allocation0 [shape = 'u32[]', space=smem, size = 0x4, offset = 0x4, fixed_abs, tag = 'smem constant byte address 0x4 - core index']
  #allocation1 [shape = 'u32[144,128]{1,0:T(1,128)}', space=vmem, size = 0x12000, scoped, tag = 'internal scratch']
  %s0 = inlined_call_operand.hbm [shape: f32[2,3072], index: 0, kind: input, shape index: {}]
  %s1 = inlined_call_operand.hbm [shape: s8[4,1,3072,2048], index: 1, kind: input, shape index: {}]
  %s2 = inlined_call_operand.hbm [shape: f32[1,8192], index: 2, kind: input, shape index: {}]
  %s3 = inlined_call_operand.hbm [shape: f32[1,8192], index: 3, kind: input, shape index: {}]
  %s4 = inlined_call_operand.hbm [shape: f32[2,8192], index: 4, kind: output, shape index: {}]
  %s5 = sld [smem:[#allocation0]]
  $region73: #{tpu_custom_call.1} parent=0
    _
  %s7 = ssub.s32 1, %s5
  %s8 = scalar_select 0, %s7, %s5
  $region1: #{tpu_custom_call.1} parent=0
    #allocation2 [shape = 'u8[24576]{0}', space=vmem, size = 0x6000, scoped, tag = 'input window, operand 0, single buffered']
    #allocation3 [shape = 's32[2]{0}', space=sflag, size = 0x8, scoped, tag = 'scoped memory for tpu_custom_call.1']
    #allocation4 [shape = 's32[2]{0}', space=sflag, size = 0x8, scoped, tag = 'scoped memory for tpu_custom_call.1']
    #allocation5 [shape = 'u8[12582912]{0}', space=vmem, size = 0xc00000, scoped, tag = 'input window, operand 1']
    #allocation6 [shape = 's32[2]{0}', space=sflag, size = 0x8, scoped, tag = 'scoped memory for tpu_custom_call.1']
    #allocation7 [shape = 'u8[16384]{0}', space=vmem, size = 0x4000, scoped, tag = 'input window, operand 2']
    #allocation8 [shape = 'u8[16384]{0}', space=vmem, size = 0x4000, scoped, tag = 'input window, operand 3']
    #allocation9 [shape = 's32[2]{0}', space=sflag, size = 0x8, scoped, tag = 'scoped memory for tpu_custom_call.1']
    #allocation10 [shape = 'u8[32768]{0}', space=vmem, size = 0x8000, scoped, tag = 'output window, operand 0']
    %9 = vsyncpa [#allocation3], 0
    %10 = vsyncpa [#allocation6], 0
    %s11 = scalar_lea.sflag [#allocation6], 1
    %12 = vsyncpa %s11, 0
    %13 = vsyncpa [#allocation9], 0
    %s14 = scalar_lea.sflag [#allocation9], 1
    %15 = vsyncpa %s14, 0
    %16 = vsyncpa [#allocation4], 0
    %s17 = scalar_lea.sflag [#allocation4], 1
    %18 = vsyncpa %s17, 0
    loop: start=0, step=1, limit=6
    $region2: #{tpu_custom_call.1} parent=1 // loop_pre_header
      _
    $region3: #{tpu_custom_call.1} parent=1 // loop_header
      %s20 = sphi 0, %s24
      %p21 = scmp.ge.s32.totalorder %s20, 6
      %s27 = sphi 0, %s39
      %s28 = sphi 0, %s35
      %s29 = sphi 0, %s27
      %s30 = sphi 0, %s28
      %s31 = sphi 0, %s29
      %s32 = sphi 0, %s30
      %s42 = sphi 0, %s44
      %s45 = sphi 0, %s42
      %s46 = sphi 0, %s45
      %s62 = sphi 0, %s46
      %s70 = sphi 0, %s72
      %s73 = sphi 0, %s70
      %s74 = sphi 0, %s73
      %s90 = sphi 0, %s74
      %s96 = sphi 0, %s98
      %s99 = sphi 0, %s96
      %s100 = sphi 0, %s99
      %s116 = sphi 0, %s100
      %s122 = sphi 0, %s124
      %s125 = sphi 0, %s122
      %s126 = sphi 0, %s125
      %s142 = sphi 0, %s126
      %s148 = sphi 0, %s150
      %s151 = sphi 0, %s148
      %s152 = sphi 0, %s151
      %s168 = sphi 0, %s152
    $region4: #{tpu_custom_call.1} parent=1 // loop_header_branch
      %23 = sbr.rel (%p21) target = $region8
    $region5: #{tpu_custom_call.1} parent=1 // loop_body
      %s25 = ssub.s32 %s20, 1
      %s26 = ssub.s32 %s20, 2
      %s33 = sadd.s32 1, %s28
      %p34 = scmp.ge.s32.totalorder %s33, 1
      %s35 = scalar_select %p34, 0, %s33
      %s36 = sadd.s32 1, %s27
      %s37 = scalar_select %p34, %s36, %s27
      %p38 = scmp.ge.s32.totalorder %s37, 4
      %s39 = scalar_select %p38, 0, %s37
      %s40 = ssub.s32 %s28, %s35
      %p41 = scmp.eq.s32.totalorder %s40, 0
      %s43 = sadd.s32 %s42, 1
      %s44 = scalar_select %p41, %s42, %s43
      %p47 = pneg %p41
      %p48 = scmp.eq.s32.totalorder %s20, 3
      %p49 = por %p47, %p48
      %p50 = scmp.ne.s32.totalorder %s42, %s45
      %p51 = scmp.eq.s32.totalorder %s20, 0
      %p52 = por %p50, %p51
      %p53 = scmp.ne.s32.totalorder %s42, %s45
      %p54 = scmp.eq.s32.totalorder %s25, 3
      %p55 = por %p53, %p54
      %p56 = scmp.ne.s32.totalorder %s45, %s46
      %p57 = scmp.eq.s32.totalorder %s25, 0
      %p58 = por %p56, %p57
      %p59 = scmp.ne.s32.totalorder %s45, %s46
      %p60 = scmp.eq.s32.totalorder %s26, 3
      %p61 = por %p59, %p60
      %p63 = scmp.ne.s32.totalorder %s46, %s62
      %p64 = scmp.eq.s32.totalorder %s26, 0
      %p65 = por %p63, %p64
      %s66 = ssub.s32 %s27, %s39
      %s67 = ssub.s32 %s28, %s35
      %s68 = sor.u32 %s66, %s67
      %p69 = scmp.eq.s32.totalorder %s68, 0
      %s71 = sadd.s32 %s70, 1
      %s72 = scalar_select %p69, %s70, %s71
      %p75 = pneg %p69
      %p76 = scmp.eq.s32.totalorder %s20, 3
      %p77 = por %p75, %p76
      %p78 = scmp.ne.s32.totalorder %s70, %s73
      %p79 = scmp.eq.s32.totalorder %s20, 0
      %p80 = por %p78, %p79
      %p81 = scmp.ne.s32.totalorder %s70, %s73
      %p82 = scmp.eq.s32.totalorder %s25, 3
      %p83 = por %p81, %p82
      %p84 = scmp.ne.s32.totalorder %s73, %s74
      %p85 = scmp.eq.s32.totalorder %s25, 0
      %p86 = por %p84, %p85
      %p87 = scmp.ne.s32.totalorder %s73, %s74
      %p88 = scmp.eq.s32.totalorder %s26, 3
      %p89 = por %p87, %p88
      %p91 = scmp.ne.s32.totalorder %s74, %s90
      %p92 = scmp.eq.s32.totalorder %s26, 0
      %p93 = por %p91, %p92
      %s94 = ssub.s32 %s27, %s39
      %p95 = scmp.eq.s32.totalorder %s94, 0
      %s97 = sadd.s32 %s96, 1
      %s98 = scalar_select %p95, %s96, %s97
      %p101 = pneg %p95
      %p102 = scmp.eq.s32.totalorder %s20, 3
      %p103 = por %p101, %p102
      %p104 = scmp.ne.s32.totalorder %s96, %s99
      %p105 = scmp.eq.s32.totalorder %s20, 0
      %p106 = por %p104, %p105
      %p107 = scmp.ne.s32.totalorder %s96, %s99
      %p108 = scmp.eq.s32.totalorder %s25, 3
      %p109 = por %p107, %p108
      %p110 = scmp.ne.s32.totalorder %s99, %s100
      %p111 = scmp.eq.s32.totalorder %s25, 0
      %p112 = por %p110, %p111
      %p113 = scmp.ne.s32.totalorder %s99, %s100
      %p114 = scmp.eq.s32.totalorder %s26, 3
      %p115 = por %p113, %p114
      %p117 = scmp.ne.s32.totalorder %s100, %s116
      %p118 = scmp.eq.s32.totalorder %s26, 0
      %p119 = por %p117, %p118
      %s120 = ssub.s32 %s27, %s39
      %p121 = scmp.eq.s32.totalorder %s120, 0
      %s123 = sadd.s32 %s122, 1
      %s124 = scalar_select %p121, %s122, %s123
      %p127 = pneg %p121
      %p128 = scmp.eq.s32.totalorder %s20, 3
      %p129 = por %p127, %p128
      %p130 = scmp.ne.s32.totalorder %s122, %s125
      %p131 = scmp.eq.s32.totalorder %s20, 0
      %p132 = por %p130, %p131
      %p133 = scmp.ne.s32.totalorder %s122, %s125
      %p134 = scmp.eq.s32.totalorder %s25, 3
      %p135 = por %p133, %p134
      %p136 = scmp.ne.s32.totalorder %s125, %s126
      %p137 = scmp.eq.s32.totalorder %s25, 0
      %p138 = por %p136, %p137
      %p139 = scmp.ne.s32.totalorder %s125, %s126
      %p140 = scmp.eq.s32.totalorder %s26, 3
      %p141 = por %p139, %p140
      %p143 = scmp.ne.s32.totalorder %s126, %s142
      %p144 = scmp.eq.s32.totalorder %s26, 0
      %p145 = por %p143, %p144
      %s146 = ssub.s32 %s27, %s39
      %p147 = scmp.eq.s32.totalorder %s146, 0
      %s149 = sadd.s32 %s148, 1
      %s150 = scalar_select %p147, %s148, %s149
      %p153 = pneg %p147
      %p154 = scmp.eq.s32.totalorder %s20, 3
      %p155 = por %p153, %p154
      %p156 = scmp.ne.s32.totalorder %s148, %s151
      %p157 = scmp.eq.s32.totalorder %s20, 0
      %p158 = por %p156, %p157
      %p159 = scmp.ne.s32.totalorder %s148, %s151
      %p160 = scmp.eq.s32.totalorder %s25, 3
      %p161 = por %p159, %p160
      %p162 = scmp.ne.s32.totalorder %s151, %s152
      %p163 = scmp.eq.s32.totalorder %s25, 0
      %p164 = por %p162, %p163
      %p165 = scmp.ne.s32.totalorder %s151, %s152
      %p166 = scmp.eq.s32.totalorder %s26, 3
      %p167 = por %p165, %p166
      %p169 = scmp.ne.s32.totalorder %s152, %s168
      %p170 = scmp.eq.s32.totalorder %s26, 0
      %p171 = por %p169, %p170
      %p172 = scmp.le.s32.totalorder 1, %s20
      %p173 = scmp.lt.s32.totalorder %s20, 5
      %p174 = pnand %p172, %p173
      %p175 = pneg %p174
      // Predicated region
      $region9: #{tpu_custom_call.1} parent=5 // pred_check
        _
      $region10: #{tpu_custom_call.1} parent=5 // pred_check_branch
        %177 = sbr.rel (%p174) target = $region12
      $region11: #{tpu_custom_call.1} parent=5 // pred_region
        %s178 = ssub.s32 %s20, 1
        // Predicated region
        $region13: #{tpu_custom_call.1} parent=11 // pred_check
          %p179 = pneg %p58
        $region14: #{tpu_custom_call.1} parent=11 // pred_check_branch
          %181 = sbr.rel (%p179) target = $region16
        $region15: #{tpu_custom_call.1} parent=11 // pred_region
          %s182 = smul.u32 24, %s30
          %s184 = ssub.s32 768, 768
          %185 = vsyncadd [#allocation3], %s184
          %s186 = smul.addr %s182, 32
          %s187 = scalar_lea.hbm %s0, %s186
          %s189 = sshll.u32 [#allocation2], 4
          %s190 = int_to_ptr.vmem [resolvable:$true] %s189
          %192 = dma.hbm_to_vmem [thread:$0]  %s187, 768, %s190, [#allocation3]
        $region16: #{tpu_custom_call.1} parent=11 // pred_fallthru
          _
      $region12: #{tpu_custom_call.1} parent=5 // pred_fallthru
        _
      %p193 = scmp.lt.s32.totalorder %s20, 4
      // Predicated region
      $region17: #{tpu_custom_call.1} parent=5 // pred_check
        %p194 = pneg %p193
      $region18: #{tpu_custom_call.1} parent=5 // pred_check_branch
        %196 = sbr.rel (%p194) target = $region20
      $region19: #{tpu_custom_call.1} parent=5 // pred_region
        // Predicated region
        $region21: #{tpu_custom_call.1} parent=19 // pred_check
          %p197 = pneg %p80
        $region22: #{tpu_custom_call.1} parent=19 // pred_check_branch
          %199 = sbr.rel (%p197) target = $region24
        $region23: #{tpu_custom_call.1} parent=19 // pred_region
          %s200 = sand.u32 %s20, 1
          %s201 = scalar_lea.sflag [#allocation6], %s200
          %s202 = sand.u32 %s70, 1
          %s203 = smul.addr %s202, 12288
          %s204 = scalar_lea.vmem [#allocation5], %s203
          %s206 = ssub.s32 196608, 196608
          %207 = vsyncadd %s201, %s206
          %s208 = smul.addr %s28, 1536
          %s209 = smul.addr %s27, 1536
          %s210 = sadd.s32 %s208, %s209
          %s211 = smul.addr %s210, 128
          %s212 = scalar_lea.hbm %s1, %s211
          %s213 = sshll.u32 %s204, 4
          %s214 = int_to_ptr.vmem [resolvable:$true] %s213
          %219 = dma.hbm_to_vmem [thread:$0]  %s212, 196608, %s214, %s201, 2048, 2048, 128
        $region24: #{tpu_custom_call.1} parent=19 // pred_fallthru
          _
        // Predicated region
        $region25: #{tpu_custom_call.1} parent=19 // pred_check
          %p220 = pneg %p106
        $region26: #{tpu_custom_call.1} parent=19 // pred_check_branch
          %222 = sbr.rel (%p220) target = $region28
        $region27: #{tpu_custom_call.1} parent=19 // pred_region
          %s223 = sand.u32 %s20, 1
          %s224 = scalar_lea.sflag [#allocation6], %s223
          %s225 = sand.u32 %s96, 1
          %s226 = smul.addr %s225, 16
          %s227 = scalar_lea.vmem [#allocation7], %s226
          %s228 = smul.u32 16, %s27
          %s230 = ssub.s32 256, 256
          %231 = vsyncadd %s224, %s230
          %s232 = smul.addr %s228, 16
          %s233 = scalar_lea.hbm %s2, %s232
          %s235 = sshll.u32 %s227, 4
          %s236 = int_to_ptr.vmem [resolvable:$true] %s235
          %238 = dma.hbm_to_vmem [thread:$0]  %s233, 256, %s236, %s224
        $region28: #{tpu_custom_call.1} parent=19 // pred_fallthru
          _
        // Predicated region
        $region29: #{tpu_custom_call.1} parent=19 // pred_check
          %p239 = pneg %p132
        $region30: #{tpu_custom_call.1} parent=19 // pred_check_branch
          %241 = sbr.rel (%p239) target = $region32
        $region31: #{tpu_custom_call.1} parent=19 // pred_region
          %s242 = sand.u32 %s122, 1
          %s243 = scalar_lea.sflag [#allocation9], %s242
          %s244 = sand.u32 %s122, 1
          %s245 = smul.addr %s244, 16
          %s246 = scalar_lea.vmem [#allocation8], %s245
          %s247 = smul.u32 16, %s27
          %s249 = ssub.s32 256, 256
          %250 = vsyncadd %s243, %s249
          %s251 = smul.addr %s247, 16
          %s252 = scalar_lea.hbm %s3, %s251
          %s254 = sshll.u32 %s246, 4
          %s255 = int_to_ptr.vmem [resolvable:$true] %s254
          %257 = dma.hbm_to_vmem [thread:$0]  %s252, 256, %s255, %s243
        $region32: #{tpu_custom_call.1} parent=19 // pred_fallthru
          _
      $region20: #{tpu_custom_call.1} parent=5 // pred_fallthru
        _
      %p258 = scmp.le.s32.totalorder 1, %s20
      %p259 = scmp.lt.s32.totalorder %s20, 5
      %p260 = pnand %p258, %p259
      %p261 = pneg %p260
      // Predicated region
      $region33: #{tpu_custom_call.1} parent=5 // pred_check
        _
      $region34: #{tpu_custom_call.1} parent=5 // pred_check_branch
        %263 = sbr.rel (%p260) target = $region36
      $region35: #{tpu_custom_call.1} parent=5 // pred_region
        %s264 = ssub.s32 %s20, 1
        // Predicated region
        $region37: #{tpu_custom_call.1} parent=35 // pred_check
          %p265 = pneg %p58
        $region38: #{tpu_custom_call.1} parent=35 // pred_check_branch
          %267 = sbr.rel (%p265) target = $region40
        $region39: #{tpu_custom_call.1} parent=35 // pred_region
          %268 = dma.done [#allocation3], 768
        $region40: #{tpu_custom_call.1} parent=35 // pred_fallthru
          _
        %s269 = sand.u32 %s25, 1
        %s270 = scalar_lea.sflag [#allocation6], %s269
        %s271 = sand.u32 %s73, 1
        %s272 = smul.addr %s271, 12288
        %s273 = scalar_lea.vmem [#allocation5], %s272
        // Predicated region
        $region41: #{tpu_custom_call.1} parent=35 // pred_check
          %p274 = pneg %p86
        $region42: #{tpu_custom_call.1} parent=35 // pred_check_branch
          %276 = sbr.rel (%p274) target = $region44
        $region43: #{tpu_custom_call.1} parent=35 // pred_region
          %277 = dma.done %s270, 196608
        $region44: #{tpu_custom_call.1} parent=35 // pred_fallthru
          _
        %s278 = sand.u32 %s25, 1
        %s279 = scalar_lea.sflag [#allocation6], %s278
        %s280 = sand.u32 %s99, 1
        %s281 = smul.addr %s280, 16
        %s282 = scalar_lea.vmem [#allocation7], %s281
        // Predicated region
        $region45: #{tpu_custom_call.1} parent=35 // pred_check
          %p283 = pneg %p112
        $region46: #{tpu_custom_call.1} parent=35 // pred_check_branch
          %285 = sbr.rel (%p283) target = $region48
        $region47: #{tpu_custom_call.1} parent=35 // pred_region
          %286 = dma.done %s279, 256
        $region48: #{tpu_custom_call.1} parent=35 // pred_fallthru
          _
        %s287 = sand.u32 %s125, 1
        %s288 = scalar_lea.sflag [#allocation9], %s287
        %s289 = sand.u32 %s125, 1
        %s290 = smul.addr %s289, 16
        %s291 = scalar_lea.vmem [#allocation8], %s290
        // Predicated region
        $region49: #{tpu_custom_call.1} parent=35 // pred_check
          %p292 = pneg %p138
        $region50: #{tpu_custom_call.1} parent=35 // pred_check_branch
          %294 = sbr.rel (%p292) target = $region52
        $region51: #{tpu_custom_call.1} parent=35 // pred_region
          %295 = dma.done %s288, 256
        $region52: #{tpu_custom_call.1} parent=35 // pred_fallthru
          _
        %p296 = pneg %p58
        %p297 = pneg %p55
        %s298 = sand.u32 %s25, 1
        %s299 = scalar_lea.sflag [#allocation6], %s298
        %s300 = sand.u32 %s73, 1
        %s301 = smul.addr %s300, 12288
        %s302 = scalar_lea.vmem [#allocation5], %s301
        %p303 = pneg %p86
        %p304 = pneg %p83
        %s305 = sand.u32 %s25, 1
        %s306 = scalar_lea.sflag [#allocation6], %s305
        %s307 = sand.u32 %s99, 1
        %s308 = smul.addr %s307, 16
        %s309 = scalar_lea.vmem [#allocation7], %s308
        %p310 = pneg %p112
        %p311 = pneg %p109
        %s312 = sand.u32 %s125, 1
        %s313 = scalar_lea.sflag [#allocation9], %s312
        %s314 = sand.u32 %s125, 1
        %s315 = smul.addr %s314, 16
        %s316 = scalar_lea.vmem [#allocation8], %s315
        %p317 = pneg %p138
        %p318 = pneg %p135
        %p319 = pneg %p164
        %p320 = pneg %p161
        %s321 = sand.u32 %s151, 1
        %s322 = scalar_lea.sflag [#allocation4], %s321
        %s323 = sand.u32 %s151, 1
        %s324 = smul.addr %s323, 32
        %s325 = scalar_lea.vmem [#allocation10], %s324
        %s326 = smul.u32 24, %s30
        %s327 = smul.u32 16, %s29
        %s328 = smul.u32 16, %s29
        %s329 = smul.u32 16, %s29
        %p330 = scmp.eq.s32.totalorder %s30, 0
        // Predicated region
        $region53: #{tpu_custom_call.1} parent=35 // pred_check
          %p331 = pneg %p330
        $region54: #{tpu_custom_call.1} parent=35 // pred_check_branch
          %333 = sbr.rel (%p331) target = $region56
        $region55: #{tpu_custom_call.1} parent=35 // pred_region
          %334 = vst [vmem:[%s325] sm:$0xff] 0.0
          %335 = vst [vmem:[%s325 + $0x8] sm:$0xff] 0.0
          %336 = vst [vmem:[%s325 + $0x10] sm:$0xff] 0.0
          %337 = vst [vmem:[%s325 + $0x18] sm:$0xff] 0.0
        $region56: #{tpu_custom_call.1} parent=35 // pred_fallthru
          _
        %v338 = vld [vmem:[%s325] sm:$0xff]
        %v339 = vld [vmem:[%s325 + $0x8] sm:$0xff]
        %v340 = vld [vmem:[%s325 + $0x10] sm:$0xff]
        %v341 = vld [vmem:[%s325 + $0x18] sm:$0xff]
        %v342 = vld [vmem:[#allocation2] sm:$0xff]
        %v343 = vld [vmem:[#allocation2 + $0x8] sm:$0xff]
        %v344 = vld [vmem:[#allocation2 + $0x10] sm:$0xff]
        %v345 = vld [vmem:[#allocation2 + $0x18] sm:$0xff]
        %v346 = vld [vmem:[#allocation2 + $0x20] sm:$0xff]
        %v347 = vld [vmem:[#allocation2 + $0x28] sm:$0xff]
        %v354 = vcombine.high %v342, %v342
        %v356 = vunpack.c.l.s4 1983009808
        %v357 = vunpack.c.0.s8 %v356
        %v358 = vlaneseq
        %v359 = vshrl.u32 %v358, 7
        %v360 = vsub.s32 %v357, %v359
        %v361 = vrot.slane %v342, %v360
        %v363 = vunpack.c.l.s4 1983009808
        %v364 = vunpack.c.0.s8 %v363
        %v365 = vlaneseq
        %v366 = vshrl.u32 %v365, 7
        %v367 = vsub.s32 %v364, %v366
        %v368 = vrot.slane %v354, %v367
        %v369 = vcombine.high %v361, %v361
        %v370 = vcombine.high %v368, %v368
        %v371 = vcombine.high %v343, %v343
        %v373 = vunpack.c.l.s4 1983009808
        %v374 = vunpack.c.0.s8 %v373
        %v375 = vlaneseq
        %v376 = vshrl.u32 %v375, 7
        %v377 = vsub.s32 %v374, %v376
        %v378 = vrot.slane %v343, %v377
        %v380 = vunpack.c.l.s4 1983009808
        %v381 = vunpack.c.0.s8 %v380
        %v382 = vlaneseq
        %v383 = vshrl.u32 %v382, 7
        %v384 = vsub.s32 %v381, %v383
        %v385 = vrot.slane %v371, %v384
        %v386 = vcombine.high %v378, %v378
        %v387 = vcombine.high %v385, %v385
        %v388 = vcombine.high %v344, %v344
        %v390 = vunpack.c.l.s4 1983009808
        %v391 = vunpack.c.0.s8 %v390
        %v392 = vlaneseq
        %v393 = vshrl.u32 %v392, 7
        %v394 = vsub.s32 %v391, %v393
        %v395 = vrot.slane %v344, %v394
        %v397 = vunpack.c.l.s4 1983009808
        %v398 = vunpack.c.0.s8 %v397
        %v399 = vlaneseq
        %v400 = vshrl.u32 %v399, 7
        %v401 = vsub.s32 %v398, %v400
        %v402 = vrot.slane %v388, %v401
        %v403 = vcombine.high %v395, %v395
        %v404 = vcombine.high %v402, %v402
        %v405 = vcombine.high %v345, %v345
        %v407 = vunpack.c.l.s4 1983009808
        %v408 = vunpack.c.0.s8 %v407
        %v409 = vlaneseq
        %v410 = vshrl.u32 %v409, 7
        %v411 = vsub.s32 %v408, %v410
        %v412 = vrot.slane %v345, %v411
        %v414 = vunpack.c.l.s4 1983009808
        %v415 = vunpack.c.0.s8 %v414
        %v416 = vlaneseq
        %v417 = vshrl.u32 %v416, 7
        %v418 = vsub.s32 %v415, %v417
        %v419 = vrot.slane %v405, %v418
        %v420 = vcombine.high %v412, %v412
        %v421 = vcombine.high %v419, %v419
        %v422 = vcombine.high %v346, %v346
        %v424 = vunpack.c.l.s4 1983009808
        %v425 = vunpack.c.0.s8 %v424
        %v426 = vlaneseq
        %v427 = vshrl.u32 %v426, 7
        %v428 = vsub.s32 %v425, %v427
        %v429 = vrot.slane %v346, %v428
        %v431 = vunpack.c.l.s4 1983009808
        %v432 = vunpack.c.0.s8 %v431
        %v433 = vlaneseq
        %v434 = vshrl.u32 %v433, 7
        %v435 = vsub.s32 %v432, %v434
        %v436 = vrot.slane %v422, %v435
        %v437 = vcombine.high %v429, %v429
        %v438 = vcombine.high %v436, %v436
        %v439 = vcombine.high %v347, %v347
        %v441 = vunpack.c.l.s4 1983009808
        %v442 = vunpack.c.0.s8 %v441
        %v443 = vlaneseq
        %v444 = vshrl.u32 %v443, 7
        %v445 = vsub.s32 %v442, %v444
        %v446 = vrot.slane %v347, %v445
        %v448 = vunpack.c.l.s4 1983009808
        %v449 = vunpack.c.0.s8 %v448
        %v450 = vlaneseq
        %v451 = vshrl.u32 %v450, 7
        %v452 = vsub.s32 %v449, %v451
        %v453 = vrot.slane %v439, %v452
        %v454 = vcombine.high %v446, %v446
        %v455 = vcombine.high %v453, %v453
        %v480 = vpack.c.bf16 %v361, %v361
        %v481 = vpack.c.bf16 %v369, %v369
        %v482 = vpack.c.bf16 %v368, %v368
        %v483 = vpack.c.bf16 %v370, %v370
        %v484 = vpack.c.bf16 %v378, %v378
        %v485 = vpack.c.bf16 %v386, %v386
        %v486 = vpack.c.bf16 %v385, %v385
        %v487 = vpack.c.bf16 %v387, %v387
        %v488 = vpack.c.bf16 %v395, %v395
        %v489 = vpack.c.bf16 %v403, %v403
        %v490 = vpack.c.bf16 %v402, %v402
        %v491 = vpack.c.bf16 %v404, %v404
        %v492 = vpack.c.bf16 %v412, %v412
        %v493 = vpack.c.bf16 %v420, %v420
        %v494 = vpack.c.bf16 %v419, %v419
        %v495 = vpack.c.bf16 %v421, %v421
        %v496 = vpack.c.bf16 %v429, %v429
        %v497 = vpack.c.bf16 %v437, %v437
        %v498 = vpack.c.bf16 %v436, %v436
        %v499 = vpack.c.bf16 %v438, %v438
        %v500 = vpack.c.bf16 %v446, %v446
        %v501 = vpack.c.bf16 %v454, %v454
        %v502 = vpack.c.bf16 %v453, %v453
        %v503 = vpack.c.bf16 %v455, %v455
        %v504 = vld [vmem:[%s273] sm:$0xff]
        %v505 = vld [vmem:[%s273 + $0x8] sm:$0xff]
        %v506 = vld [vmem:[%s273 + $0x10] sm:$0xff]
        %v507 = vld [vmem:[%s273 + $0x18] sm:$0xff]
        %v508 = vld [vmem:[%s273 + $0x20] sm:$0xff]
        %v509 = vld [vmem:[%s273 + $0x28] sm:$0xff]
        %v510 = vld [vmem:[%s273 + $0x30] sm:$0xff]
        %v511 = vld [vmem:[%s273 + $0x38] sm:$0xff]
        %v512 = vld [vmem:[%s273 + $0x40] sm:$0xff]
        %v513 = vld [vmem:[%s273 + $0x48] sm:$0xff]
        %v514 = vld [vmem:[%s273 + $0x50] sm:$0xff]
        %v515 = vld [vmem:[%s273 + $0x58] sm:$0xff]
        %v516 = vld [vmem:[%s273 + $0x60] sm:$0xff]
        %v517 = vld [vmem:[%s273 + $0x68] sm:$0xff]
        %v518 = vld [vmem:[%s273 + $0x70] sm:$0xff]
        %v519 = vld [vmem:[%s273 + $0x78] sm:$0xff]
        %v520 = vld [vmem:[%s273 + $0x80] sm:$0xff]
        %v521 = vld [vmem:[%s273 + $0x88] sm:$0xff]
        %v522 = vld [vmem:[%s273 + $0x90] sm:$0xff]
        %v523 = vld [vmem:[%s273 + $0x98] sm:$0xff]
        %v524 = vld [vmem:[%s273 + $0xa0] sm:$0xff]
        %v525 = vld [vmem:[%s273 + $0xa8] sm:$0xff]
        %v526 = vld [vmem:[%s273 + $0xb0] sm:$0xff]
        %v527 = vld [vmem:[%s273 + $0xb8] sm:$0xff]
        %v528 = vld [vmem:[%s273 + $0xc0] sm:$0xff]
        %v529 = vld [vmem:[%s273 + $0xc8] sm:$0xff]
        %v530 = vld [vmem:[%s273 + $0xd0] sm:$0xff]
        %v531 = vld [vmem:[%s273 + $0xd8] sm:$0xff]
        %v532 = vld [vmem:[%s273 + $0xe0] sm:$0xff]
        %v533 = vld [vmem:[%s273 + $0xe8] sm:$0xff]
        %v534 = vld [vmem:[%s273 + $0xf0] sm:$0xff]
        %v535 = vld [vmem:[%s273 + $0xf8] sm:$0xff]
        %v536 = vld [vmem:[%s273 + $0x100] sm:$0xff]
        %v537 = vld [vmem:[%s273 + $0x108] sm:$0xff]
        %v538 = vld [vmem:[%s273 + $0x110] sm:$0xff]
        %v539 = vld [vmem:[%s273 + $0x118] sm:$0xff]
        %v540 = vld [vmem:[%s273 + $0x120] sm:$0xff]
        %v541 = vld [vmem:[%s273 + $0x128] sm:$0xff]
        %v542 = vld [vmem:[%s273 + $0x130] sm:$0xff]
        %v543 = vld [vmem:[%s273 + $0x138] sm:$0xff]
        %v544 = vld [vmem:[%s273 + $0x140] sm:$0xff]
        %v545 = vld [vmem:[%s273 + $0x148] sm:$0xff]
        %v546 = vld [vmem:[%s273 + $0x150] sm:$0xff]
        %v547 = vld [vmem:[%s273 + $0x158] sm:$0xff]
        %v548 = vld [vmem:[%s273 + $0x160] sm:$0xff]
        %v549 = vld [vmem:[%s273 + $0x168] sm:$0xff]
        %v550 = vld [vmem:[%s273 + $0x170] sm:$0xff]
        %v551 = vld [vmem:[%s273 + $0x178] sm:$0xff]
        %v552 = vld [vmem:[%s273 + $0x180] sm:$0xff]
        %v553 = vld [vmem:[%s273 + $0x188] sm:$0xff]
        %v554 = vld [vmem:[%s273 + $0x190] sm:$0xff]
        %v555 = vld [vmem:[%s273 + $0x198] sm:$0xff]
        %v556 = vld [vmem:[%s273 + $0x1a0] sm:$0xff]
        %v557 = vld [vmem:[%s273 + $0x1a8] sm:$0xff]
        %v558 = vld [vmem:[%s273 + $0x1b0] sm:$0xff]
        %v559 = vld [vmem:[%s273 + $0x1b8] sm:$0xff]
        %v560 = vld [vmem:[%s273 + $0x1c0] sm:$0xff]
        %v561 = vld [vmem:[%s273 + $0x1c8] sm:$0xff]
        %v562 = vld [vmem:[%s273 + $0x1d0] sm:$0xff]
        %v563 = vld [vmem:[%s273 + $0x1d8] sm:$0xff]
        %v564 = vld [vmem:[%s273 + $0x1e0] sm:$0xff]
        %v565 = vld [vmem:[%s273 + $0x1e8] sm:$0xff]
        %v566 = vld [vmem:[%s273 + $0x1f0] sm:$0xff]
        %v567 = vld [vmem:[%s273 + $0x1f8] sm:$0xff]
        %v568 = vld [vmem:[%s273 + $0x200] sm:$0xff]
        %v569 = vld [vmem:[%s273 + $0x208] sm:$0xff]
        %v570 = vld [vmem:[%s273 + $0x210] sm:$0xff]
        %v571 = vld [vmem:[%s273 + $0x218] sm:$0xff]
        %v572 = vld [vmem:[%s273 + $0x220] sm:$0xff]
        %v573 = vld [vmem:[%s273 + $0x228] sm:$0xff]
        %v574 = vld [vmem:[%s273 + $0x230] sm:$0xff]
        %v575 = vld [vmem:[%s273 + $0x238] sm:$0xff]
        %v576 = vld [vmem:[%s273 + $0x240] sm:$0xff]
        %v577 = vld [vmem:[%s273 + $0x248] sm:$0xff]
        %v578 = vld [vmem:[%s273 + $0x250] sm:$0xff]
        %v579 = vld [vmem:[%s273 + $0x258] sm:$0xff]
        %v580 = vld [vmem:[%s273 + $0x260] sm:$0xff]
        %v581 = vld [vmem:[%s273 + $0x268] sm:$0xff]
        %v582 = vld [vmem:[%s273 + $0x270] sm:$0xff]
        %v583 = vld [vmem:[%s273 + $0x278] sm:$0xff]
        %v584 = vld [vmem:[%s273 + $0x280] sm:$0xff]
        %v585 = vld [vmem:[%s273 + $0x288] sm:$0xff]
        %v586 = vld [vmem:[%s273 + $0x290] sm:$0xff]
        %v587 = vld [vmem:[%s273 + $0x298] sm:$0xff]
        %v588 = vld [vmem:[%s273 + $0x2a0] sm:$0xff]
        %v589 = vld [vmem:[%s273 + $0x2a8] sm:$0xff]
        %v590 = vld [vmem:[%s273 + $0x2b0] sm:$0xff]
        %v591 = vld [vmem:[%s273 + $0x2b8] sm:$0xff]
        %v592 = vld [vmem:[%s273 + $0x2c0] sm:$0xff]
        %v593 = vld [vmem:[%s273 + $0x2c8] sm:$0xff]
        %v594 = vld [vmem:[%s273 + $0x2d0] sm:$0xff]
        %v595 = vld [vmem:[%s273 + $0x2d8] sm:$0xff]
        %v596 = vld [vmem:[%s273 + $0x2e0] sm:$0xff]
        %v597 = vld [vmem:[%s273 + $0x2e8] sm:$0xff]
        %v598 = vld [vmem:[%s273 + $0x2f0] sm:$0xff]
        %v599 = vld [vmem:[%s273 + $0x2f8] sm:$0xff]
        %v600 = vld [vmem:[%s273 + $0x300] sm:$0xff]
        %v601 = vld [vmem:[%s273 + $0x308] sm:$0xff]
        %v602 = vld [vmem:[%s273 + $0x310] sm:$0xff]
        %v603 = vld [vmem:[%s273 + $0x318] sm:$0xff]
        %v604 = vld [vmem:[%s273 + $0x320] sm:$0xff]
        %v605 = vld [vmem:[%s273 + $0x328] sm:$0xff]
        %v606 = vld [vmem:[%s273 + $0x330] sm:$0xff]
        %v607 = vld [vmem:[%s273 + $0x338] sm:$0xff]
        %v608 = vld [vmem:[%s273 + $0x340] sm:$0xff]
        %v609 = vld [vmem:[%s273 + $0x348] sm:$0xff]
        %v610 = vld [vmem:[%s273 + $0x350] sm:$0xff]
        %v611 = vld [vmem:[%s273 + $0x358] sm:$0xff]
        %v612 = vld [vmem:[%s273 + $0x360] sm:$0xff]
        %v613 = vld [vmem:[%s273 + $0x368] sm:$0xff]
        %v614 = vld [vmem:[%s273 + $0x370] sm:$0xff]
        %v615 = vld [vmem:[%s273 + $0x378] sm:$0xff]
        %v616 = vld [vmem:[%s273 + $0x380] sm:$0xff]
        %v617 = vld [vmem:[%s273 + $0x388] sm:$0xff]
        %v618 = vld [vmem:[%s273 + $0x390] sm:$0xff]
        %v619 = vld [vmem:[%s273 + $0x398] sm:$0xff]
        %v620 = vld [vmem:[%s273 + $0x3a0] sm:$0xff]
        %v621 = vld [vmem:[%s273 + $0x3a8] sm:$0xff]
        %v622 = vld [vmem:[%s273 + $0x3b0] sm:$0xff]
        %v623 = vld [vmem:[%s273 + $0x3b8] sm:$0xff]
        %v624 = vld [vmem:[%s273 + $0x3c0] sm:$0xff]
        %v625 = vld [vmem:[%s273 + $0x3c8] sm:$0xff]
        %v626 = vld [vmem:[%s273 + $0x3d0] sm:$0xff]
        %v627 = vld [vmem:[%s273 + $0x3d8] sm:$0xff]
        %v628 = vld [vmem:[%s273 + $0x3e0] sm:$0xff]
        %v629 = vld [vmem:[%s273 + $0x3e8] sm:$0xff]
        %v630 = vld [vmem:[%s273 + $0x3f0] sm:$0xff]
        %v631 = vld [vmem:[%s273 + $0x3f8] sm:$0xff]
        %v632 = vld [vmem:[%s273 + $0x400] sm:$0xff]
        %v633 = vld [vmem:[%s273 + $0x408] sm:$0xff]
        %v634 = vld [vmem:[%s273 + $0x410] sm:$0xff]
        %v635 = vld [vmem:[%s273 + $0x418] sm:$0xff]
        %v636 = vld [vmem:[%s273 + $0x420] sm:$0xff]
        %v637 = vld [vmem:[%s273 + $0x428] sm:$0xff]
        %v638 = vld [vmem:[%s273 + $0x430] sm:$0xff]
        %v639 = vld [vmem:[%s273 + $0x438] sm:$0xff]
        %v640 = vld [vmem:[%s273 + $0x440] sm:$0xff]
        %v641 = vld [vmem:[%s273 + $0x448] sm:$0xff]
        %v642 = vld [vmem:[%s273 + $0x450] sm:$0xff]
        %v643 = vld [vmem:[%s273 + $0x458] sm:$0xff]
        %v644 = vld [vmem:[%s273 + $0x460] sm:$0xff]
        %v645 = vld [vmem:[%s273 + $0x468] sm:$0xff]
        %v646 = vld [vmem:[%s273 + $0x470] sm:$0xff]
        %v647 = vld [vmem:[%s273 + $0x478] sm:$0xff]
        %v648 = vld [vmem:[%s273 + $0x480] sm:$0xff]
        %v649 = vld [vmem:[%s273 + $0x488] sm:$0xff]
        %v650 = vld [vmem:[%s273 + $0x490] sm:$0xff]
        %v651 = vld [vmem:[%s273 + $0x498] sm:$0xff]
        %v652 = vld [vmem:[%s273 + $0x4a0] sm:$0xff]
        %v653 = vld [vmem:[%s273 + $0x4a8] sm:$0xff]
        %v654 = vld [vmem:[%s273 + $0x4b0] sm:$0xff]
        %v655 = vld [vmem:[%s273 + $0x4b8] sm:$0xff]
        %v656 = vld [vmem:[%s273 + $0x4c0] sm:$0xff]
        %v657 = vld [vmem:[%s273 + $0x4c8] sm:$0xff]
        %v658 = vld [vmem:[%s273 + $0x4d0] sm:$0xff]
        %v659 = vld [vmem:[%s273 + $0x4d8] sm:$0xff]
        %v660 = vld [vmem:[%s273 + $0x4e0] sm:$0xff]
        %v661 = vld [vmem:[%s273 + $0x4e8] sm:$0xff]
        %v662 = vld [vmem:[%s273 + $0x4f0] sm:$0xff]
        %v663 = vld [vmem:[%s273 + $0x4f8] sm:$0xff]
        %v664 = vld [vmem:[%s273 + $0x500] sm:$0xff]
        %v665 = vld [vmem:[%s273 + $0x508] sm:$0xff]
        %v666 = vld [vmem:[%s273 + $0x510] sm:$0xff]
        %v667 = vld [vmem:[%s273 + $0x518] sm:$0xff]
        %v668 = vld [vmem:[%s273 + $0x520] sm:$0xff]
        %v669 = vld [vmem:[%s273 + $0x528] sm:$0xff]
        %v670 = vld [vmem:[%s273 + $0x530] sm:$0xff]
        %v671 = vld [vmem:[%s273 + $0x538] sm:$0xff]
        %v672 = vld [vmem:[%s273 + $0x540] sm:$0xff]
        %v673 = vld [vmem:[%s273 + $0x548] sm:$0xff]
        %v674 = vld [vmem:[%s273 + $0x550] sm:$0xff]
        %v675 = vld [vmem:[%s273 + $0x558] sm:$0xff]
        %v676 = vld [vmem:[%s273 + $0x560] sm:$0xff]
        %v677 = vld [vmem:[%s273 + $0x568] sm:$0xff]
        %v678 = vld [vmem:[%s273 + $0x570] sm:$0xff]
        %v679 = vld [vmem:[%s273 + $0x578] sm:$0xff]
        %v680 = vld [vmem:[%s273 + $0x580] sm:$0xff]
        %v681 = vld [vmem:[%s273 + $0x588] sm:$0xff]
        %v682 = vld [vmem:[%s273 + $0x590] sm:$0xff]
        %v683 = vld [vmem:[%s273 + $0x598] sm:$0xff]
        %v684 = vld [vmem:[%s273 + $0x5a0] sm:$0xff]
        %v685 = vld [vmem:[%s273 + $0x5a8] sm:$0xff]
        %v686 = vld [vmem:[%s273 + $0x5b0] sm:$0xff]
        %v687 = vld [vmem:[%s273 + $0x5b8] sm:$0xff]
        %v688 = vld [vmem:[%s273 + $0x5c0] sm:$0xff]
        %v689 = vld [vmem:[%s273 + $0x5c8] sm:$0xff]
        %v690 = vld [vmem:[%s273 + $0x5d0] sm:$0xff]
        %v691 = vld [vmem:[%s273 + $0x5d8] sm:$0xff]
        %v692 = vld [vmem:[%s273 + $0x5e0] sm:$0xff]
        %v693 = vld [vmem:[%s273 + $0x5e8] sm:$0xff]
        %v694 = vld [vmem:[%s273 + $0x5f0] sm:$0xff]
        %v695 = vld [vmem:[%s273 + $0x5f8] sm:$0xff]
        %v696 = vld [vmem:[%s273 + $0x600] sm:$0xff]
        %v697 = vld [vmem:[%s273 + $0x608] sm:$0xff]
        %v698 = vld [vmem:[%s273 + $0x610] sm:$0xff]
        %v699 = vld [vmem:[%s273 + $0x618] sm:$0xff]
        %v700 = vld [vmem:[%s273 + $0x620] sm:$0xff]
        %v701 = vld [vmem:[%s273 + $0x628] sm:$0xff]
        %v702 = vld [vmem:[%s273 + $0x630] sm:$0xff]
        %v703 = vld [vmem:[%s273 + $0x638] sm:$0xff]
        %v704 = vld [vmem:[%s273 + $0x640] sm:$0xff]
        %v705 = vld [vmem:[%s273 + $0x648] sm:$0xff]
        %v706 = vld [vmem:[%s273 + $0x650] sm:$0xff]
        %v707 = vld [vmem:[%s273 + $0x658] sm:$0xff]
        %v708 = vld [vmem:[%s273 + $0x660] sm:$0xff]
        %v709 = vld [vmem:[%s273 + $0x668] sm:$0xff]
        %v710 = vld [vmem:[%s273 + $0x670] sm:$0xff]
        %v711 = vld [vmem:[%s273 + $0x678] sm:$0xff]
        %v712 = vld [vmem:[%s273 + $0x680] sm:$0xff]
        %v713 = vld [vmem:[%s273 + $0x688] sm:$0xff]
        %v714 = vld [vmem:[%s273 + $0x690] sm:$0xff]
        %v715 = vld [vmem:[%s273 + $0x698] sm:$0xff]
        %v716 = vld [vmem:[%s273 + $0x6a0] sm:$0xff]
        %v717 = vld [vmem:[%s273 + $0x6a8] sm:$0xff]
        %v718 = vld [vmem:[%s273 + $0x6b0] sm:$0xff]
        %v719 = vld [vmem:[%s273 + $0x6b8] sm:$0xff]
        %v720 = vld [vmem:[%s273 + $0x6c0] sm:$0xff]
        %v721 = vld [vmem:[%s273 + $0x6c8] sm:$0xff]
        %v722 = vld [vmem:[%s273 + $0x6d0] sm:$0xff]
        %v723 = vld [vmem:[%s273 + $0x6d8] sm:$0xff]
        %v724 = vld [vmem:[%s273 + $0x6e0] sm:$0xff]
        %v725 = vld [vmem:[%s273 + $0x6e8] sm:$0xff]
        %v726 = vld [vmem:[%s273 + $0x6f0] sm:$0xff]
        %v727 = vld [vmem:[%s273 + $0x6f8] sm:$0xff]
        %v728 = vld [vmem:[%s273 + $0x700] sm:$0xff]
        %v729 = vld [vmem:[%s273 + $0x708] sm:$0xff]
        %v730 = vld [vmem:[%s273 + $0x710] sm:$0xff]
        %v731 = vld [vmem:[%s273 + $0x718] sm:$0xff]
        %v732 = vld [vmem:[%s273 + $0x720] sm:$0xff]
        %v733 = vld [vmem:[%s273 + $0x728] sm:$0xff]
        %v734 = vld [vmem:[%s273 + $0x730] sm:$0xff]
        %v735 = vld [vmem:[%s273 + $0x738] sm:$0xff]
        %v736 = vld [vmem:[%s273 + $0x740] sm:$0xff]
        %v737 = vld [vmem:[%s273 + $0x748] sm:$0xff]
        %v738 = vld [vmem:[%s273 + $0x750] sm:$0xff]
        %v739 = vld [vmem:[%s273 + $0x758] sm:$0xff]
        %v740 = vld [vmem:[%s273 + $0x760] sm:$0xff]
        %v741 = vld [vmem:[%s273 + $0x768] sm:$0xff]
        %v742 = vld [vmem:[%s273 + $0x770] sm:$0xff]
        %v743 = vld [vmem:[%s273 + $0x778] sm:$0xff]
        %v744 = vld [vmem:[%s273 + $0x780] sm:$0xff]
        %v745 = vld [vmem:[%s273 + $0x788] sm:$0xff]
        %v746 = vld [vmem:[%s273 + $0x790] sm:$0xff]
        %v747 = vld [vmem:[%s273 + $0x798] sm:$0xff]
        %v748 = vld [vmem:[%s273 + $0x7a0] sm:$0xff]
        %v749 = vld [vmem:[%s273 + $0x7a8] sm:$0xff]
        %v750 = vld [vmem:[%s273 + $0x7b0] sm:$0xff]
        %v751 = vld [vmem:[%s273 + $0x7b8] sm:$0xff]
        %v752 = vld [vmem:[%s273 + $0x7c0] sm:$0xff]
        %v753 = vld [vmem:[%s273 + $0x7c8] sm:$0xff]
        %v754 = vld [vmem:[%s273 + $0x7d0] sm:$0xff]
        %v755 = vld [vmem:[%s273 + $0x7d8] sm:$0xff]
        %v756 = vld [vmem:[%s273 + $0x7e0] sm:$0xff]
        %v757 = vld [vmem:[%s273 + $0x7e8] sm:$0xff]
        %v758 = vld [vmem:[%s273 + $0x7f0] sm:$0xff]
        %v759 = vld [vmem:[%s273 + $0x7f8] sm:$0xff]
        %v760 = vld [vmem:[%s273 + $0x800] sm:$0xff]
        %v761 = vld [vmem:[%s273 + $0x808] sm:$0xff]
        %v762 = vld [vmem:[%s273 + $0x810] sm:$0xff]
        %v763 = vld [vmem:[%s273 + $0x818] sm:$0xff]
        %v764 = vld [vmem:[%s273 + $0x820] sm:$0xff]
        %v765 = vld [vmem:[%s273 + $0x828] sm:$0xff]
        %v766 = vld [vmem:[%s273 + $0x830] sm:$0xff]
        %v767 = vld [vmem:[%s273 + $0x838] sm:$0xff]
        %v768 = vld [vmem:[%s273 + $0x840] sm:$0xff]
        %v769 = vld [vmem:[%s273 + $0x848] sm:$0xff]
        %v770 = vld [vmem:[%s273 + $0x850] sm:$0xff]
        %v771 = vld [vmem:[%s273 + $0x858] sm:$0xff]
        %v772 = vld [vmem:[%s273 + $0x860] sm:$0xff]
        %v773 = vld [vmem:[%s273 + $0x868] sm:$0xff]
        %v774 = vld [vmem:[%s273 + $0x870] sm:$0xff]
        %v775 = vld [vmem:[%s273 + $0x878] sm:$0xff]
        %v776 = vld [vmem:[%s273 + $0x880] sm:$0xff]
        %v777 = vld [vmem:[%s273 + $0x888] sm:$0xff]
        %v778 = vld [vmem:[%s273 + $0x890] sm:$0xff]
        %v779 = vld [vmem:[%s273 + $0x898] sm:$0xff]
        %v780 = vld [vmem:[%s273 + $0x8a0] sm:$0xff]
        %v781 = vld [vmem:[%s273 + $0x8a8] sm:$0xff]
        %v782 = vld [vmem:[%s273 + $0x8b0] sm:$0xff]
        %v783 = vld [vmem:[%s273 + $0x8b8] sm:$0xff]
        %v784 = vld [vmem:[%s273 + $0x8c0] sm:$0xff]
        %v785 = vld [vmem:[%s273 + $0x8c8] sm:$0xff]
        %v786 = vld [vmem:[%s273 + $0x8d0] sm:$0xff]
        %v787 = vld [vmem:[%s273 + $0x8d8] sm:$0xff]
        %v788 = vld [vmem:[%s273 + $0x8e0] sm:$0xff]
        %v789 = vld [vmem:[%s273 + $0x8e8] sm:$0xff]
        %v790 = vld [vmem:[%s273 + $0x8f0] sm:$0xff]
        %v791 = vld [vmem:[%s273 + $0x8f8] sm:$0xff]
        %v792 = vld [vmem:[%s273 + $0x900] sm:$0xff]
        %v793 = vld [vmem:[%s273 + $0x908] sm:$0xff]
        %v794 = vld [vmem:[%s273 + $0x910] sm:$0xff]
        %v795 = vld [vmem:[%s273 + $0x918] sm:$0xff]
        %v796 = vld [vmem:[%s273 + $0x920] sm:$0xff]
        %v797 = vld [vmem:[%s273 + $0x928] sm:$0xff]
        %v798 = vld [vmem:[%s273 + $0x930] sm:$0xff]
        %v799 = vld [vmem:[%s273 + $0x938] sm:$0xff]
        %v800 = vld [vmem:[%s273 + $0x940] sm:$0xff]
        %v801 = vld [vmem:[%s273 + $0x948] sm:$0xff]
        %v802 = vld [vmem:[%s273 + $0x950] sm:$0xff]
        %v803 = vld [vmem:[%s273 + $0x958] sm:$0xff]
        %v804 = vld [vmem:[%s273 + $0x960] sm:$0xff]
        %v805 = vld [vmem:[%s273 + $0x968] sm:$0xff]
        %v806 = vld [vmem:[%s273 + $0x970] sm:$0xff]
        %v807 = vld [vmem:[%s273 + $0x978] sm:$0xff]
        %v808 = vld [vmem:[%s273 + $0x980] sm:$0xff]
        %v809 = vld [vmem:[%s273 + $0x988] sm:$0xff]
        %v810 = vld [vmem:[%s273 + $0x990] sm:$0xff]
        %v811 = vld [vmem:[%s273 + $0x998] sm:$0xff]
        %v812 = vld [vmem:[%s273 + $0x9a0] sm:$0xff]
        %v813 = vld [vmem:[%s273 + $0x9a8] sm:$0xff]
        %v814 = vld [vmem:[%s273 + $0x9b0] sm:$0xff]
        %v815 = vld [vmem:[%s273 + $0x9b8] sm:$0xff]
        %v816 = vld [vmem:[%s273 + $0x9c0] sm:$0xff]
        %v817 = vld [vmem:[%s273 + $0x9c8] sm:$0xff]
        %v818 = vld [vmem:[%s273 + $0x9d0] sm:$0xff]
        %v819 = vld [vmem:[%s273 + $0x9d8] sm:$0xff]
        %v820 = vld [vmem:[%s273 + $0x9e0] sm:$0xff]
        %v821 = vld [vmem:[%s273 + $0x9e8] sm:$0xff]
        %v822 = vld [vmem:[%s273 + $0x9f0] sm:$0xff]
        %v823 = vld [vmem:[%s273 + $0x9f8] sm:$0xff]
        %v824 = vld [vmem:[%s273 + $0xa00] sm:$0xff]
        %v825 = vld [vmem:[%s273 + $0xa08] sm:$0xff]
        %v826 = vld [vmem:[%s273 + $0xa10] sm:$0xff]
        %v827 = vld [vmem:[%s273 + $0xa18] sm:$0xff]
        %v828 = vld [vmem:[%s273 + $0xa20] sm:$0xff]
        %v829 = vld [vmem:[%s273 + $0xa28] sm:$0xff]
        %v830 = vld [vmem:[%s273 + $0xa30] sm:$0xff]
        %v831 = vld [vmem:[%s273 + $0xa38] sm:$0xff]
        %v832 = vld [vmem:[%s273 + $0xa40] sm:$0xff]
        %v833 = vld [vmem:[%s273 + $0xa48] sm:$0xff]
        %v834 = vld [vmem:[%s273 + $0xa50] sm:$0xff]
        %v835 = vld [vmem:[%s273 + $0xa58] sm:$0xff]
        %v836 = vld [vmem:[%s273 + $0xa60] sm:$0xff]
        %v837 = vld [vmem:[%s273 + $0xa68] sm:$0xff]
        %v838 = vld [vmem:[%s273 + $0xa70] sm:$0xff]
        %v839 = vld [vmem:[%s273 + $0xa78] sm:$0xff]
        %v840 = vld [vmem:[%s273 + $0xa80] sm:$0xff]
        %v841 = vld [vmem:[%s273 + $0xa88] sm:$0xff]
        %v842 = vld [vmem:[%s273 + $0xa90] sm:$0xff]
        %v843 = vld [vmem:[%s273 + $0xa98] sm:$0xff]
        %v844 = vld [vmem:[%s273 + $0xaa0] sm:$0xff]
        %v845 = vld [vmem:[%s273 + $0xaa8] sm:$0xff]
        %v846 = vld [vmem:[%s273 + $0xab0] sm:$0xff]
        %v847 = vld [vmem:[%s273 + $0xab8] sm:$0xff]
        %v848 = vld [vmem:[%s273 + $0xac0] sm:$0xff]
        %v849 = vld [vmem:[%s273 + $0xac8] sm:$0xff]
        %v850 = vld [vmem:[%s273 + $0xad0] sm:$0xff]
        %v851 = vld [vmem:[%s273 + $0xad8] sm:$0xff]
        %v852 = vld [vmem:[%s273 + $0xae0] sm:$0xff]
        %v853 = vld [vmem:[%s273 + $0xae8] sm:$0xff]
        %v854 = vld [vmem:[%s273 + $0xaf0] sm:$0xff]
        %v855 = vld [vmem:[%s273 + $0xaf8] sm:$0xff]
        %v856 = vld [vmem:[%s273 + $0xb00] sm:$0xff]
        %v857 = vld [vmem:[%s273 + $0xb08] sm:$0xff]
        %v858 = vld [vmem:[%s273 + $0xb10] sm:$0xff]
        %v859 = vld [vmem:[%s273 + $0xb18] sm:$0xff]
        %v860 = vld [vmem:[%s273 + $0xb20] sm:$0xff]
        %v861 = vld [vmem:[%s273 + $0xb28] sm:$0xff]
        %v862 = vld [vmem:[%s273 + $0xb30] sm:$0xff]
        %v863 = vld [vmem:[%s273 + $0xb38] sm:$0xff]
        %v864 = vld [vmem:[%s273 + $0xb40] sm:$0xff]
        %v865 = vld [vmem:[%s273 + $0xb48] sm:$0xff]
        %v866 = vld [vmem:[%s273 + $0xb50] sm:$0xff]
        %v867 = vld [vmem:[%s273 + $0xb58] sm:$0xff]
        %v868 = vld [vmem:[%s273 + $0xb60] sm:$0xff]
        %v869 = vld [vmem:[%s273 + $0xb68] sm:$0xff]
        %v870 = vld [vmem:[%s273 + $0xb70] sm:$0xff]
        %v871 = vld [vmem:[%s273 + $0xb78] sm:$0xff]
        %v872 = vld [vmem:[%s273 + $0xb80] sm:$0xff]
        %v873 = vld [vmem:[%s273 + $0xb88] sm:$0xff]
        %v874 = vld [vmem:[%s273 + $0xb90] sm:$0xff]
        %v875 = vld [vmem:[%s273 + $0xb98] sm:$0xff]
        %v876 = vld [vmem:[%s273 + $0xba0] sm:$0xff]
        %v877 = vld [vmem:[%s273 + $0xba8] sm:$0xff]
        %v878 = vld [vmem:[%s273 + $0xbb0] sm:$0xff]
        %v879 = vld [vmem:[%s273 + $0xbb8] sm:$0xff]
        %v880 = vld [vmem:[%s273 + $0xbc0] sm:$0xff]
        %v881 = vld [vmem:[%s273 + $0xbc8] sm:$0xff]
        %v882 = vld [vmem:[%s273 + $0xbd0] sm:$0xff]
        %v883 = vld [vmem:[%s273 + $0xbd8] sm:$0xff]
        %v884 = vld [vmem:[%s273 + $0xbe0] sm:$0xff]
        %v885 = vld [vmem:[%s273 + $0xbe8] sm:$0xff]
        %v886 = vld [vmem:[%s273 + $0xbf0] sm:$0xff]
        %v887 = vld [vmem:[%s273 + $0xbf8] sm:$0xff]
        %v888 = vld [vmem:[%s273 + $0xc00] sm:$0xff]
        %v889 = vld [vmem:[%s273 + $0xc08] sm:$0xff]
        %v890 = vld [vmem:[%s273 + $0xc10] sm:$0xff]
        %v891 = vld [vmem:[%s273 + $0xc18] sm:$0xff]
        %v892 = vld [vmem:[%s273 + $0xc20] sm:$0xff]
        %v893 = vld [vmem:[%s273 + $0xc28] sm:$0xff]
        %v894 = vld [vmem:[%s273 + $0xc30] sm:$0xff]
        %v895 = vld [vmem:[%s273 + $0xc38] sm:$0xff]
        %v896 = vld [vmem:[%s273 + $0xc40] sm:$0xff]
        %v897 = vld [vmem:[%s273 + $0xc48] sm:$0xff]
        %v898 = vld [vmem:[%s273 + $0xc50] sm:$0xff]
        %v899 = vld [vmem:[%s273 + $0xc58] sm:$0xff]
        %v900 = vld [vmem:[%s273 + $0xc60] sm:$0xff]
        %v901 = vld [vmem:[%s273 + $0xc68] sm:$0xff]
        %v902 = vld [vmem:[%s273 + $0xc70] sm:$0xff]
        %v903 = vld [vmem:[%s273 + $0xc78] sm:$0xff]
        %v904 = vld [vmem:[%s273 + $0xc80] sm:$0xff]
        %v905 = vld [vmem:[%s273 + $0xc88] sm:$0xff]
        %v906 = vld [vmem:[%s273 + $0xc90] sm:$0xff]
        %v907 = vld [vmem:[%s273 + $0xc98] sm:$0xff]
        %v908 = vld [vmem:[%s273 + $0xca0] sm:$0xff]
        %v909 = vld [vmem:[%s273 + $0xca8] sm:$0xff]
        %v910 = vld [vmem:[%s273 + $0xcb0] sm:$0xff]
        %v911 = vld [vmem:[%s273 + $0xcb8] sm:$0xff]
        %v912 = vld [vmem:[%s273 + $0xcc0] sm:$0xff]
        %v913 = vld [vmem:[%s273 + $0xcc8] sm:$0xff]
        %v914 = vld [vmem:[%s273 + $0xcd0] sm:$0xff]
        %v915 = vld [vmem:[%s273 + $0xcd8] sm:$0xff]
        %v916 = vld [vmem:[%s273 + $0xce0] sm:$0xff]
        %v917 = vld [vmem:[%s273 + $0xce8] sm:$0xff]
        %v918 = vld [vmem:[%s273 + $0xcf0] sm:$0xff]
        %v919 = vld [vmem:[%s273 + $0xcf8] sm:$0xff]
        %v920 = vld [vmem:[%s273 + $0xd00] sm:$0xff]
        %v921 = vld [vmem:[%s273 + $0xd08] sm:$0xff]
        %v922 = vld [vmem:[%s273 + $0xd10] sm:$0xff]
        %v923 = vld [vmem:[%s273 + $0xd18] sm:$0xff]
        %v924 = vld [vmem:[%s273 + $0xd20] sm:$0xff]
        %v925 = vld [vmem:[%s273 + $0xd28] sm:$0xff]
        %v926 = vld [vmem:[%s273 + $0xd30] sm:$0xff]
        %v927 = vld [vmem:[%s273 + $0xd38] sm:$0xff]
        %v928 = vld [vmem:[%s273 + $0xd40] sm:$0xff]
        %v929 = vld [vmem:[%s273 + $0xd48] sm:$0xff]
        %v930 = vld [vmem:[%s273 + $0xd50] sm:$0xff]
        %v931 = vld [vmem:[%s273 + $0xd58] sm:$0xff]
        %v932 = vld [vmem:[%s273 + $0xd60] sm:$0xff]
        %v933 = vld [vmem:[%s273 + $0xd68] sm:$0xff]
        %v934 = vld [vmem:[%s273 + $0xd70] sm:$0xff]
        %v935 = vld [vmem:[%s273 + $0xd78] sm:$0xff]
        %v936 = vld [vmem:[%s273 + $0xd80] sm:$0xff]
        %v937 = vld [vmem:[%s273 + $0xd88] sm:$0xff]
        %v938 = vld [vmem:[%s273 + $0xd90] sm:$0xff]
        %v939 = vld [vmem:[%s273 + $0xd98] sm:$0xff]
        %v940 = vld [vmem:[%s273 + $0xda0] sm:$0xff]
        %v941 = vld [vmem:[%s273 + $0xda8] sm:$0xff]
        %v942 = vld [vmem:[%s273 + $0xdb0] sm:$0xff]
        %v943 = vld [vmem:[%s273 + $0xdb8] sm:$0xff]
        %v944 = vld [vmem:[%s273 + $0xdc0] sm:$0xff]
        %v945 = vld [vmem:[%s273 + $0xdc8] sm:$0xff]
        %v946 = vld [vmem:[%s273 + $0xdd0] sm:$0xff]
        %v947 = vld [vmem:[%s273 + $0xdd8] sm:$0xff]
        %v948 = vld [vmem:[%s273 + $0xde0] sm:$0xff]
        %v949 = vld [vmem:[%s273 + $0xde8] sm:$0xff]
        %v950 = vld [vmem:[%s273 + $0xdf0] sm:$0xff]
        %v951 = vld [vmem:[%s273 + $0xdf8] sm:$0xff]
        %v952 = vld [vmem:[%s273 + $0xe00] sm:$0xff]
        %v953 = vld [vmem:[%s273 + $0xe08] sm:$0xff]
        %v954 = vld [vmem:[%s273 + $0xe10] sm:$0xff]
        %v955 = vld [vmem:[%s273 + $0xe18] sm:$0xff]
        %v956 = vld [vmem:[%s273 + $0xe20] sm:$0xff]
        %v957 = vld [vmem:[%s273 + $0xe28] sm:$0xff]
        %v958 = vld [vmem:[%s273 + $0xe30] sm:$0xff]
        %v959 = vld [vmem:[%s273 + $0xe38] sm:$0xff]
        %v960 = vld [vmem:[%s273 + $0xe40] sm:$0xff]
        %v961 = vld [vmem:[%s273 + $0xe48] sm:$0xff]
        %v962 = vld [vmem:[%s273 + $0xe50] sm:$0xff]
        %v963 = vld [vmem:[%s273 + $0xe58] sm:$0xff]
        %v964 = vld [vmem:[%s273 + $0xe60] sm:$0xff]
        %v965 = vld [vmem:[%s273 + $0xe68] sm:$0xff]
        %v966 = vld [vmem:[%s273 + $0xe70] sm:$0xff]
        %v967 = vld [vmem:[%s273 + $0xe78] sm:$0xff]
        %v968 = vld [vmem:[%s273 + $0xe80] sm:$0xff]
        %v969 = vld [vmem:[%s273 + $0xe88] sm:$0xff]
        %v970 = vld [vmem:[%s273 + $0xe90] sm:$0xff]
        %v971 = vld [vmem:[%s273 + $0xe98] sm:$0xff]
        %v972 = vld [vmem:[%s273 + $0xea0] sm:$0xff]
        %v973 = vld [vmem:[%s273 + $0xea8] sm:$0xff]
        %v974 = vld [vmem:[%s273 + $0xeb0] sm:$0xff]
        %v975 = vld [vmem:[%s273 + $0xeb8] sm:$0xff]
        %v976 = vld [vmem:[%s273 + $0xec0] sm:$0xff]
        %v977 = vld [vmem:[%s273 + $0xec8] sm:$0xff]
        %v978 = vld [vmem:[%s273 + $0xed0] sm:$0xff]
        %v979 = vld [vmem:[%s273 + $0xed8] sm:$0xff]
        %v980 = vld [vmem:[%s273 + $0xee0] sm:$0xff]
        %v981 = vld [vmem:[%s273 + $0xee8] sm:$0xff]
        %v982 = vld [vmem:[%s273 + $0xef0] sm:$0xff]
        %v983 = vld [vmem:[%s273 + $0xef8] sm:$0xff]
        %v984 = vld [vmem:[%s273 + $0xf00] sm:$0xff]
        %v985 = vld [vmem:[%s273 + $0xf08] sm:$0xff]
        %v986 = vld [vmem:[%s273 + $0xf10] sm:$0xff]
        %v987 = vld [vmem:[%s273 + $0xf18] sm:$0xff]
        %v988 = vld [vmem:[%s273 + $0xf20] sm:$0xff]
        %v989 = vld [vmem:[%s273 + $0xf28] sm:$0xff]
        %v990 = vld [vmem:[%s273 + $0xf30] sm:$0xff]
        %v991 = vld [vmem:[%s273 + $0xf38] sm:$0xff]
        %v992 = vld [vmem:[%s273 + $0xf40] sm:$0xff]
        %v993 = vld [vmem:[%s273 + $0xf48] sm:$0xff]
        %v994 = vld [vmem:[%s273 + $0xf50] sm:$0xff]
        %v995 = vld [vmem:[%s273 + $0xf58] sm:$0xff]
        %v996 = vld [vmem:[%s273 + $0xf60] sm:$0xff]
        %v997 = vld [vmem:[%s273 + $0xf68] sm:$0xff]
        %v998 = vld [vmem:[%s273 + $0xf70] sm:$0xff]
        %v999 = vld [vmem:[%s273 + $0xf78] sm:$0xff]
        %v1000 = vld [vmem:[%s273 + $0xf80] sm:$0xff]
        %v1001 = vld [vmem:[%s273 + $0xf88] sm:$0xff]
        %v1002 = vld [vmem:[%s273 + $0xf90] sm:$0xff]
        %v1003 = vld [vmem:[%s273 + $0xf98] sm:$0xff]
        %v1004 = vld [vmem:[%s273 + $0xfa0] sm:$0xff]
        %v1005 = vld [vmem:[%s273 + $0xfa8] sm:$0xff]
        %v1006 = vld [vmem:[%s273 + $0xfb0] sm:$0xff]
        %v1007 = vld [vmem:[%s273 + $0xfb8] sm:$0xff]
        %v1008 = vld [vmem:[%s273 + $0xfc0] sm:$0xff]
        %v1009 = vld [vmem:[%s273 + $0xfc8] sm:$0xff]
        %v1010 = vld [vmem:[%s273 + $0xfd0] sm:$0xff]
        %v1011 = vld [vmem:[%s273 + $0xfd8] sm:$0xff]
        %v1012 = vld [vmem:[%s273 + $0xfe0] sm:$0xff]
        %v1013 = vld [vmem:[%s273 + $0xfe8] sm:$0xff]
        %v1014 = vld [vmem:[%s273 + $0xff0] sm:$0xff]
        %v1015 = vld [vmem:[%s273 + $0xff8] sm:$0xff]
        %v1016 = vld [vmem:[%s273 + $0x1000] sm:$0xff]
        %v1017 = vld [vmem:[%s273 + $0x1008] sm:$0xff]
        %v1018 = vld [vmem:[%s273 + $0x1010] sm:$0xff]
        %v1019 = vld [vmem:[%s273 + $0x1018] sm:$0xff]
        %v1020 = vld [vmem:[%s273 + $0x1020] sm:$0xff]
        %v1021 = vld [vmem:[%s273 + $0x1028] sm:$0xff]
        %v1022 = vld [vmem:[%s273 + $0x1030] sm:$0xff]
        %v1023 = vld [vmem:[%s273 + $0x1038] sm:$0xff]
        %v1024 = vld [vmem:[%s273 + $0x1040] sm:$0xff]
        %v1025 = vld [vmem:[%s273 + $0x1048] sm:$0xff]
        %v1026 = vld [vmem:[%s273 + $0x1050] sm:$0xff]
        %v1027 = vld [vmem:[%s273 + $0x1058] sm:$0xff]
        %v1028 = vld [vmem:[%s273 + $0x1060] sm:$0xff]
        %v1029 = vld [vmem:[%s273 + $0x1068] sm:$0xff]
        %v1030 = vld [vmem:[%s273 + $0x1070] sm:$0xff]
        %v1031 = vld [vmem:[%s273 + $0x1078] sm:$0xff]
        %v1032 = vld [vmem:[%s273 + $0x1080] sm:$0xff]
        %v1033 = vld [vmem:[%s273 + $0x1088] sm:$0xff]
        %v1034 = vld [vmem:[%s273 + $0x1090] sm:$0xff]
        %v1035 = vld [vmem:[%s273 + $0x1098] sm:$0xff]
        %v1036 = vld [vmem:[%s273 + $0x10a0] sm:$0xff]
        %v1037 = vld [vmem:[%s273 + $0x10a8] sm:$0xff]
        %v1038 = vld [vmem:[%s273 + $0x10b0] sm:$0xff]
        %v1039 = vld [vmem:[%s273 + $0x10b8] sm:$0xff]
        %v1040 = vld [vmem:[%s273 + $0x10c0] sm:$0xff]
        %v1041 = vld [vmem:[%s273 + $0x10c8] sm:$0xff]
        %v1042 = vld [vmem:[%s273 + $0x10d0] sm:$0xff]
        %v1043 = vld [vmem:[%s273 + $0x10d8] sm:$0xff]
        %v1044 = vld [vmem:[%s273 + $0x10e0] sm:$0xff]
        %v1045 = vld [vmem:[%s273 + $0x10e8] sm:$0xff]
        %v1046 = vld [vmem:[%s273 + $0x10f0] sm:$0xff]
        %v1047 = vld [vmem:[%s273 + $0x10f8] sm:$0xff]
        %v1048 = vld [vmem:[%s273 + $0x1100] sm:$0xff]
        %v1049 = vld [vmem:[%s273 + $0x1108] sm:$0xff]
        %v1050 = vld [vmem:[%s273 + $0x1110] sm:$0xff]
        %v1051 = vld [vmem:[%s273 + $0x1118] sm:$0xff]
        %v1052 = vld [vmem:[%s273 + $0x1120] sm:$0xff]
        %v1053 = vld [vmem:[%s273 + $0x1128] sm:$0xff]
        %v1054 = vld [vmem:[%s273 + $0x1130] sm:$0xff]
        %v1055 = vld [vmem:[%s273 + $0x1138] sm:$0xff]
        %v1056 = vld [vmem:[%s273 + $0x1140] sm:$0xff]
        %v1057 = vld [vmem:[%s273 + $0x1148] sm:$0xff]
        %v1058 = vld [vmem:[%s273 + $0x1150] sm:$0xff]
        %v1059 = vld [vmem:[%s273 + $0x1158] sm:$0xff]
        %v1060 = vld [vmem:[%s273 + $0x1160] sm:$0xff]
        %v1061 = vld [vmem:[%s273 + $0x1168] sm:$0xff]
        %v1062 = vld [vmem:[%s273 + $0x1170] sm:$0xff]
        %v1063 = vld [vmem:[%s273 + $0x1178] sm:$0xff]
        %v1064 = vld [vmem:[%s273 + $0x1180] sm:$0xff]
        %v1065 = vld [vmem:[%s273 + $0x1188] sm:$0xff]
        %v1066 = vld [vmem:[%s273 + $0x1190] sm:$0xff]
        %v1067 = vld [vmem:[%s273 + $0x1198] sm:$0xff]
        %v1068 = vld [vmem:[%s273 + $0x11a0] sm:$0xff]
        %v1069 = vld [vmem:[%s273 + $0x11a8] sm:$0xff]
        %v1070 = vld [vmem:[%s273 + $0x11b0] sm:$0xff]
        %v1071 = vld [vmem:[%s273 + $0x11b8] sm:$0xff]
        %v1072 = vld [vmem:[%s273 + $0x11c0] sm:$0xff]
        %v1073 = vld [vmem:[%s273 + $0x11c8] sm:$0xff]
        %v1074 = vld [vmem:[%s273 + $0x11d0] sm:$0xff]
        %v1075 = vld [vmem:[%s273 + $0x11d8] sm:$0xff]
        %v1076 = vld [vmem:[%s273 + $0x11e0] sm:$0xff]
        %v1077 = vld [vmem:[%s273 + $0x11e8] sm:$0xff]
        %v1078 = vld [vmem:[%s273 + $0x11f0] sm:$0xff]
        %v1079 = vld [vmem:[%s273 + $0x11f8] sm:$0xff]
        %v1080 = vld [vmem:[%s273 + $0x1200] sm:$0xff]
        %v1081 = vld [vmem:[%s273 + $0x1208] sm:$0xff]
        %v1082 = vld [vmem:[%s273 + $0x1210] sm:$0xff]
        %v1083 = vld [vmem:[%s273 + $0x1218] sm:$0xff]
        %v1084 = vld [vmem:[%s273 + $0x1220] sm:$0xff]
        %v1085 = vld [vmem:[%s273 + $0x1228] sm:$0xff]
        %v1086 = vld [vmem:[%s273 + $0x1230] sm:$0xff]
        %v1087 = vld [vmem:[%s273 + $0x1238] sm:$0xff]
        %v1088 = vld [vmem:[%s273 + $0x1240] sm:$0xff]
        %v1089 = vld [vmem:[%s273 + $0x1248] sm:$0xff]
        %v1090 = vld [vmem:[%s273 + $0x1250] sm:$0xff]
        %v1091 = vld [vmem:[%s273 + $0x1258] sm:$0xff]
        %v1092 = vld [vmem:[%s273 + $0x1260] sm:$0xff]
        %v1093 = vld [vmem:[%s273 + $0x1268] sm:$0xff]
        %v1094 = vld [vmem:[%s273 + $0x1270] sm:$0xff]
        %v1095 = vld [vmem:[%s273 + $0x1278] sm:$0xff]
        %v1096 = vld [vmem:[%s273 + $0x1280] sm:$0xff]
        %v1097 = vld [vmem:[%s273 + $0x1288] sm:$0xff]
        %v1098 = vld [vmem:[%s273 + $0x1290] sm:$0xff]
        %v1099 = vld [vmem:[%s273 + $0x1298] sm:$0xff]
        %v1100 = vld [vmem:[%s273 + $0x12a0] sm:$0xff]
        %v1101 = vld [vmem:[%s273 + $0x12a8] sm:$0xff]
        %v1102 = vld [vmem:[%s273 + $0x12b0] sm:$0xff]
        %v1103 = vld [vmem:[%s273 + $0x12b8] sm:$0xff]
        %v1104 = vld [vmem:[%s273 + $0x12c0] sm:$0xff]
        %v1105 = vld [vmem:[%s273 + $0x12c8] sm:$0xff]
        %v1106 = vld [vmem:[%s273 + $0x12d0] sm:$0xff]
        %v1107 = vld [vmem:[%s273 + $0x12d8] sm:$0xff]
        %v1108 = vld [vmem:[%s273 + $0x12e0] sm:$0xff]
        %v1109 = vld [vmem:[%s273 + $0x12e8] sm:$0xff]
        %v1110 = vld [vmem:[%s273 + $0x12f0] sm:$0xff]
        %v1111 = vld [vmem:[%s273 + $0x12f8] sm:$0xff]
        %v1112 = vld [vmem:[%s273 + $0x1300] sm:$0xff]
        %v1113 = vld [vmem:[%s273 + $0x1308] sm:$0xff]
        %v1114 = vld [vmem:[%s273 + $0x1310] sm:$0xff]
        %v1115 = vld [vmem:[%s273 + $0x1318] sm:$0xff]
        %v1116 = vld [vmem:[%s273 + $0x1320] sm:$0xff]
        %v1117 = vld [vmem:[%s273 + $0x1328] sm:$0xff]
        %v1118 = vld [vmem:[%s273 + $0x1330] sm:$0xff]
        %v1119 = vld [vmem:[%s273 + $0x1338] sm:$0xff]
        %v1120 = vld [vmem:[%s273 + $0x1340] sm:$0xff]
        %v1121 = vld [vmem:[%s273 + $0x1348] sm:$0xff]
        %v1122 = vld [vmem:[%s273 + $0x1350] sm:$0xff]
        %v1123 = vld [vmem:[%s273 + $0x1358] sm:$0xff]
        %v1124 = vld [vmem:[%s273 + $0x1360] sm:$0xff]
        %v1125 = vld [vmem:[%s273 + $0x1368] sm:$0xff]
        %v1126 = vld [vmem:[%s273 + $0x1370] sm:$0xff]
        %v1127 = vld [vmem:[%s273 + $0x1378] sm:$0xff]
        %v1128 = vld [vmem:[%s273 + $0x1380] sm:$0xff]
        %v1129 = vld [vmem:[%s273 + $0x1388] sm:$0xff]
        %v1130 = vld [vmem:[%s273 + $0x1390] sm:$0xff]
        %v1131 = vld [vmem:[%s273 + $0x1398] sm:$0xff]
        %v1132 = vld [vmem:[%s273 + $0x13a0] sm:$0xff]
        %v1133 = vld [vmem:[%s273 + $0x13a8] sm:$0xff]
        %v1134 = vld [vmem:[%s273 + $0x13b0] sm:$0xff]
        %v1135 = vld [vmem:[%s273 + $0x13b8] sm:$0xff]
        %v1136 = vld [vmem:[%s273 + $0x13c0] sm:$0xff]
        %v1137 = vld [vmem:[%s273 + $0x13c8] sm:$0xff]
        %v1138 = vld [vmem:[%s273 + $0x13d0] sm:$0xff]
        %v1139 = vld [vmem:[%s273 + $0x13d8] sm:$0xff]
        %v1140 = vld [vmem:[%s273 + $0x13e0] sm:$0xff]
        %v1141 = vld [vmem:[%s273 + $0x13e8] sm:$0xff]
        %v1142 = vld [vmem:[%s273 + $0x13f0] sm:$0xff]
        %v1143 = vld [vmem:[%s273 + $0x13f8] sm:$0xff]
        %v1144 = vld [vmem:[%s273 + $0x1400] sm:$0xff]
        %v1145 = vld [vmem:[%s273 + $0x1408] sm:$0xff]
        %v1146 = vld [vmem:[%s273 + $0x1410] sm:$0xff]
        %v1147 = vld [vmem:[%s273 + $0x1418] sm:$0xff]
        %v1148 = vld [vmem:[%s273 + $0x1420] sm:$0xff]
        %v1149 = vld [vmem:[%s273 + $0x1428] sm:$0xff]
        %v1150 = vld [vmem:[%s273 + $0x1430] sm:$0xff]
        %v1151 = vld [vmem:[%s273 + $0x1438] sm:$0xff]
        %v1152 = vld [vmem:[%s273 + $0x1440] sm:$0xff]
        %v1153 = vld [vmem:[%s273 + $0x1448] sm:$0xff]
        %v1154 = vld [vmem:[%s273 + $0x1450] sm:$0xff]
        %v1155 = vld [vmem:[%s273 + $0x1458] sm:$0xff]
        %v1156 = vld [vmem:[%s273 + $0x1460] sm:$0xff]
        %v1157 = vld [vmem:[%s273 + $0x1468] sm:$0xff]
        %v1158 = vld [vmem:[%s273 + $0x1470] sm:$0xff]
        %v1159 = vld [vmem:[%s273 + $0x1478] sm:$0xff]
        %v1160 = vld [vmem:[%s273 + $0x1480] sm:$0xff]
        %v1161 = vld [vmem:[%s273 + $0x1488] sm:$0xff]
        %v1162 = vld [vmem:[%s273 + $0x1490] sm:$0xff]
        %v1163 = vld [vmem:[%s273 + $0x1498] sm:$0xff]
        %v1164 = vld [vmem:[%s273 + $0x14a0] sm:$0xff]
        %v1165 = vld [vmem:[%s273 + $0x14a8] sm:$0xff]
        %v1166 = vld [vmem:[%s273 + $0x14b0] sm:$0xff]
        %v1167 = vld [vmem:[%s273 + $0x14b8] sm:$0xff]
        %v1168 = vld [vmem:[%s273 + $0x14c0] sm:$0xff]
        %v1169 = vld [vmem:[%s273 + $0x14c8] sm:$0xff]
        %v1170 = vld [vmem:[%s273 + $0x14d0] sm:$0xff]
        %v1171 = vld [vmem:[%s273 + $0x14d8] sm:$0xff]
        %v1172 = vld [vmem:[%s273 + $0x14e0] sm:$0xff]
        %v1173 = vld [vmem:[%s273 + $0x14e8] sm:$0xff]
        %v1174 = vld [vmem:[%s273 + $0x14f0] sm:$0xff]
        %v1175 = vld [vmem:[%s273 + $0x14f8] sm:$0xff]
        %v1176 = vld [vmem:[%s273 + $0x1500] sm:$0xff]
        %v1177 = vld [vmem:[%s273 + $0x1508] sm:$0xff]
        %v1178 = vld [vmem:[%s273 + $0x1510] sm:$0xff]
        %v1179 = vld [vmem:[%s273 + $0x1518] sm:$0xff]
        %v1180 = vld [vmem:[%s273 + $0x1520] sm:$0xff]
        %v1181 = vld [vmem:[%s273 + $0x1528] sm:$0xff]
        %v1182 = vld [vmem:[%s273 + $0x1530] sm:$0xff]
        %v1183 = vld [vmem:[%s273 + $0x1538] sm:$0xff]
        %v1184 = vld [vmem:[%s273 + $0x1540] sm:$0xff]
        %v1185 = vld [vmem:[%s273 + $0x1548] sm:$0xff]
        %v1186 = vld [vmem:[%s273 + $0x1550] sm:$0xff]
        %v1187 = vld [vmem:[%s273 + $0x1558] sm:$0xff]
        %v1188 = vld [vmem:[%s273 + $0x1560] sm:$0xff]
        %v1189 = vld [vmem:[%s273 + $0x1568] sm:$0xff]
        %v1190 = vld [vmem:[%s273 + $0x1570] sm:$0xff]
        %v1191 = vld [vmem:[%s273 + $0x1578] sm:$0xff]
        %v1192 = vld [vmem:[%s273 + $0x1580] sm:$0xff]
        %v1193 = vld [vmem:[%s273 + $0x1588] sm:$0xff]
        %v1194 = vld [vmem:[%s273 + $0x1590] sm:$0xff]
        %v1195 = vld [vmem:[%s273 + $0x1598] sm:$0xff]
        %v1196 = vld [vmem:[%s273 + $0x15a0] sm:$0xff]
        %v1197 = vld [vmem:[%s273 + $0x15a8] sm:$0xff]
        %v1198 = vld [vmem:[%s273 + $0x15b0] sm:$0xff]
        %v1199 = vld [vmem:[%s273 + $0x15b8] sm:$0xff]
        %v1200 = vld [vmem:[%s273 + $0x15c0] sm:$0xff]
        %v1201 = vld [vmem:[%s273 + $0x15c8] sm:$0xff]
        %v1202 = vld [vmem:[%s273 + $0x15d0] sm:$0xff]
        %v1203 = vld [vmem:[%s273 + $0x15d8] sm:$0xff]
        %v1204 = vld [vmem:[%s273 + $0x15e0] sm:$0xff]
        %v1205 = vld [vmem:[%s273 + $0x15e8] sm:$0xff]
        %v1206 = vld [vmem:[%s273 + $0x15f0] sm:$0xff]
        %v1207 = vld [vmem:[%s273 + $0x15f8] sm:$0xff]
        %v1208 = vld [vmem:[%s273 + $0x1600] sm:$0xff]
        %v1209 = vld [vmem:[%s273 + $0x1608] sm:$0xff]
        %v1210 = vld [vmem:[%s273 + $0x1610] sm:$0xff]
        %v1211 = vld [vmem:[%s273 + $0x1618] sm:$0xff]
        %v1212 = vld [vmem:[%s273 + $0x1620] sm:$0xff]
        %v1213 = vld [vmem:[%s273 + $0x1628] sm:$0xff]
        %v1214 = vld [vmem:[%s273 + $0x1630] sm:$0xff]
        %v1215 = vld [vmem:[%s273 + $0x1638] sm:$0xff]
        %v1216 = vld [vmem:[%s273 + $0x1640] sm:$0xff]
        %v1217 = vld [vmem:[%s273 + $0x1648] sm:$0xff]
        %v1218 = vld [vmem:[%s273 + $0x1650] sm:$0xff]
        %v1219 = vld [vmem:[%s273 + $0x1658] sm:$0xff]
        %v1220 = vld [vmem:[%s273 + $0x1660] sm:$0xff]
        %v1221 = vld [vmem:[%s273 + $0x1668] sm:$0xff]
        %v1222 = vld [vmem:[%s273 + $0x1670] sm:$0xff]
        %v1223 = vld [vmem:[%s273 + $0x1678] sm:$0xff]
        %v1224 = vld [vmem:[%s273 + $0x1680] sm:$0xff]
        %v1225 = vld [vmem:[%s273 + $0x1688] sm:$0xff]
        %v1226 = vld [vmem:[%s273 + $0x1690] sm:$0xff]
        %v1227 = vld [vmem:[%s273 + $0x1698] sm:$0xff]
        %v1228 = vld [vmem:[%s273 + $0x16a0] sm:$0xff]
        %v1229 = vld [vmem:[%s273 + $0x16a8] sm:$0xff]
        %v1230 = vld [vmem:[%s273 + $0x16b0] sm:$0xff]
        %v1231 = vld [vmem:[%s273 + $0x16b8] sm:$0xff]
        %v1232 = vld [vmem:[%s273 + $0x16c0] sm:$0xff]
        %v1233 = vld [vmem:[%s273 + $0x16c8] sm:$0xff]
        %v1234 = vld [vmem:[%s273 + $0x16d0] sm:$0xff]
        %v1235 = vld [vmem:[%s273 + $0x16d8] sm:$0xff]
        %v1236 = vld [vmem:[%s273 + $0x16e0] sm:$0xff]
        %v1237 = vld [vmem:[%s273 + $0x16e8] sm:$0xff]
        %v1238 = vld [vmem:[%s273 + $0x16f0] sm:$0xff]
        %v1239 = vld [vmem:[%s273 + $0x16f8] sm:$0xff]
        %v1240 = vld [vmem:[%s273 + $0x1700] sm:$0xff]
        %v1241 = vld [vmem:[%s273 + $0x1708] sm:$0xff]
        %v1242 = vld [vmem:[%s273 + $0x1710] sm:$0xff]
        %v1243 = vld [vmem:[%s273 + $0x1718] sm:$0xff]
        %v1244 = vld [vmem:[%s273 + $0x1720] sm:$0xff]
        %v1245 = vld [vmem:[%s273 + $0x1728] sm:$0xff]
        %v1246 = vld [vmem:[%s273 + $0x1730] sm:$0xff]
        %v1247 = vld [vmem:[%s273 + $0x1738] sm:$0xff]
        %v1248 = vld [vmem:[%s273 + $0x1740] sm:$0xff]
        %v1249 = vld [vmem:[%s273 + $0x1748] sm:$0xff]
        %v1250 = vld [vmem:[%s273 + $0x1750] sm:$0xff]
        %v1251 = vld [vmem:[%s273 + $0x1758] sm:$0xff]
        %v1252 = vld [vmem:[%s273 + $0x1760] sm:$0xff]
        %v1253 = vld [vmem:[%s273 + $0x1768] sm:$0xff]
        %v1254 = vld [vmem:[%s273 + $0x1770] sm:$0xff]
        %v1255 = vld [vmem:[%s273 + $0x1778] sm:$0xff]
        %v1256 = vld [vmem:[%s273 + $0x1780] sm:$0xff]
        %v1257 = vld [vmem:[%s273 + $0x1788] sm:$0xff]
        %v1258 = vld [vmem:[%s273 + $0x1790] sm:$0xff]
        %v1259 = vld [vmem:[%s273 + $0x1798] sm:$0xff]
        %v1260 = vld [vmem:[%s273 + $0x17a0] sm:$0xff]
        %v1261 = vld [vmem:[%s273 + $0x17a8] sm:$0xff]
        %v1262 = vld [vmem:[%s273 + $0x17b0] sm:$0xff]
        %v1263 = vld [vmem:[%s273 + $0x17b8] sm:$0xff]
        %v1264 = vld [vmem:[%s273 + $0x17c0] sm:$0xff]
        %v1265 = vld [vmem:[%s273 + $0x17c8] sm:$0xff]
        %v1266 = vld [vmem:[%s273 + $0x17d0] sm:$0xff]
        %v1267 = vld [vmem:[%s273 + $0x17d8] sm:$0xff]
        %v1268 = vld [vmem:[%s273 + $0x17e0] sm:$0xff]
        %v1269 = vld [vmem:[%s273 + $0x17e8] sm:$0xff]
        %v1270 = vld [vmem:[%s273 + $0x17f0] sm:$0xff]
        %v1271 = vld [vmem:[%s273 + $0x17f8] sm:$0xff]
        %v1272 = vld [vmem:[%s273 + $0x1800] sm:$0xff]
        %v1273 = vld [vmem:[%s273 + $0x1808] sm:$0xff]
        %v1274 = vld [vmem:[%s273 + $0x1810] sm:$0xff]
        %v1275 = vld [vmem:[%s273 + $0x1818] sm:$0xff]
        %v1276 = vld [vmem:[%s273 + $0x1820] sm:$0xff]
        %v1277 = vld [vmem:[%s273 + $0x1828] sm:$0xff]
        %v1278 = vld [vmem:[%s273 + $0x1830] sm:$0xff]
        %v1279 = vld [vmem:[%s273 + $0x1838] sm:$0xff]
        %v1280 = vld [vmem:[%s273 + $0x1840] sm:$0xff]
        %v1281 = vld [vmem:[%s273 + $0x1848] sm:$0xff]
        %v1282 = vld [vmem:[%s273 + $0x1850] sm:$0xff]
        %v1283 = vld [vmem:[%s273 + $0x1858] sm:$0xff]
        %v1284 = vld [vmem:[%s273 + $0x1860] sm:$0xff]
        %v1285 = vld [vmem:[%s273 + $0x1868] sm:$0xff]
        %v1286 = vld [vmem:[%s273 + $0x1870] sm:$0xff]
        %v1287 = vld [vmem:[%s273 + $0x1878] sm:$0xff]
        %v1288 = vld [vmem:[%s273 + $0x1880] sm:$0xff]
        %v1289 = vld [vmem:[%s273 + $0x1888] sm:$0xff]
        %v1290 = vld [vmem:[%s273 + $0x1890] sm:$0xff]
        %v1291 = vld [vmem:[%s273 + $0x1898] sm:$0xff]
        %v1292 = vld [vmem:[%s273 + $0x18a0] sm:$0xff]
        %v1293 = vld [vmem:[%s273 + $0x18a8] sm:$0xff]
        %v1294 = vld [vmem:[%s273 + $0x18b0] sm:$0xff]
        %v1295 = vld [vmem:[%s273 + $0x18b8] sm:$0xff]
        %v1296 = vld [vmem:[%s273 + $0x18c0] sm:$0xff]
        %v1297 = vld [vmem:[%s273 + $0x18c8] sm:$0xff]
        %v1298 = vld [vmem:[%s273 + $0x18d0] sm:$0xff]
        %v1299 = vld [vmem:[%s273 + $0x18d8] sm:$0xff]
        %v1300 = vld [vmem:[%s273 + $0x18e0] sm:$0xff]
        %v1301 = vld [vmem:[%s273 + $0x18e8] sm:$0xff]
        %v1302 = vld [vmem:[%s273 + $0x18f0] sm:$0xff]
        %v1303 = vld [vmem:[%s273 + $0x18f8] sm:$0xff]
        %v1304 = vld [vmem:[%s273 + $0x1900] sm:$0xff]
        %v1305 = vld [vmem:[%s273 + $0x1908] sm:$0xff]
        %v1306 = vld [vmem:[%s273 + $0x1910] sm:$0xff]
        %v1307 = vld [vmem:[%s273 + $0x1918] sm:$0xff]
        %v1308 = vld [vmem:[%s273 + $0x1920] sm:$0xff]
        %v1309 = vld [vmem:[%s273 + $0x1928] sm:$0xff]
        %v1310 = vld [vmem:[%s273 + $0x1930] sm:$0xff]
        %v1311 = vld [vmem:[%s273 + $0x1938] sm:$0xff]
        %v1312 = vld [vmem:[%s273 + $0x1940] sm:$0xff]
        %v1313 = vld [vmem:[%s273 + $0x1948] sm:$0xff]
        %v1314 = vld [vmem:[%s273 + $0x1950] sm:$0xff]
        %v1315 = vld [vmem:[%s273 + $0x1958] sm:$0xff]
        %v1316 = vld [vmem:[%s273 + $0x1960] sm:$0xff]
        %v1317 = vld [vmem:[%s273 + $0x1968] sm:$0xff]
        %v1318 = vld [vmem:[%s273 + $0x1970] sm:$0xff]
        %v1319 = vld [vmem:[%s273 + $0x1978] sm:$0xff]
        %v1320 = vld [vmem:[%s273 + $0x1980] sm:$0xff]
        %v1321 = vld [vmem:[%s273 + $0x1988] sm:$0xff]
        %v1322 = vld [vmem:[%s273 + $0x1990] sm:$0xff]
        %v1323 = vld [vmem:[%s273 + $0x1998] sm:$0xff]
        %v1324 = vld [vmem:[%s273 + $0x19a0] sm:$0xff]
        %v1325 = vld [vmem:[%s273 + $0x19a8] sm:$0xff]
        %v1326 = vld [vmem:[%s273 + $0x19b0] sm:$0xff]
        %v1327 = vld [vmem:[%s273 + $0x19b8] sm:$0xff]
        %v1328 = vld [vmem:[%s273 + $0x19c0] sm:$0xff]
        %v1329 = vld [vmem:[%s273 + $0x19c8] sm:$0xff]
        %v1330 = vld [vmem:[%s273 + $0x19d0] sm:$0xff]
        %v1331 = vld [vmem:[%s273 + $0x19d8] sm:$0xff]
        %v1332 = vld [vmem:[%s273 + $0x19e0] sm:$0xff]
        %v1333 = vld [vmem:[%s273 + $0x19e8] sm:$0xff]
        %v1334 = vld [vmem:[%s273 + $0x19f0] sm:$0xff]
        %v1335 = vld [vmem:[%s273 + $0x19f8] sm:$0xff]
        %v1336 = vld [vmem:[%s273 + $0x1a00] sm:$0xff]
        %v1337 = vld [vmem:[%s273 + $0x1a08] sm:$0xff]
        %v1338 = vld [vmem:[%s273 + $0x1a10] sm:$0xff]
        %v1339 = vld [vmem:[%s273 + $0x1a18] sm:$0xff]
        %v1340 = vld [vmem:[%s273 + $0x1a20] sm:$0xff]
        %v1341 = vld [vmem:[%s273 + $0x1a28] sm:$0xff]
        %v1342 = vld [vmem:[%s273 + $0x1a30] sm:$0xff]
        %v1343 = vld [vmem:[%s273 + $0x1a38] sm:$0xff]
        %v1344 = vld [vmem:[%s273 + $0x1a40] sm:$0xff]
        %v1345 = vld [vmem:[%s273 + $0x1a48] sm:$0xff]
        %v1346 = vld [vmem:[%s273 + $0x1a50] sm:$0xff]
        %v1347 = vld [vmem:[%s273 + $0x1a58] sm:$0xff]
        %v1348 = vld [vmem:[%s273 + $0x1a60] sm:$0xff]
        %v1349 = vld [vmem:[%s273 + $0x1a68] sm:$0xff]
        %v1350 = vld [vmem:[%s273 + $0x1a70] sm:$0xff]
        %v1351 = vld [vmem:[%s273 + $0x1a78] sm:$0xff]
        %v1352 = vld [vmem:[%s273 + $0x1a80] sm:$0xff]
        %v1353 = vld [vmem:[%s273 + $0x1a88] sm:$0xff]
        %v1354 = vld [vmem:[%s273 + $0x1a90] sm:$0xff]
        %v1355 = vld [vmem:[%s273 + $0x1a98] sm:$0xff]
        %v1356 = vld [vmem:[%s273 + $0x1aa0] sm:$0xff]
        %v1357 = vld [vmem:[%s273 + $0x1aa8] sm:$0xff]
        %v1358 = vld [vmem:[%s273 + $0x1ab0] sm:$0xff]
        %v1359 = vld [vmem:[%s273 + $0x1ab8] sm:$0xff]
        %v1360 = vld [vmem:[%s273 + $0x1ac0] sm:$0xff]
        %v1361 = vld [vmem:[%s273 + $0x1ac8] sm:$0xff]
        %v1362 = vld [vmem:[%s273 + $0x1ad0] sm:$0xff]
        %v1363 = vld [vmem:[%s273 + $0x1ad8] sm:$0xff]
        %v1364 = vld [vmem:[%s273 + $0x1ae0] sm:$0xff]
        %v1365 = vld [vmem:[%s273 + $0x1ae8] sm:$0xff]
        %v1366 = vld [vmem:[%s273 + $0x1af0] sm:$0xff]
        %v1367 = vld [vmem:[%s273 + $0x1af8] sm:$0xff]
        %v1368 = vld [vmem:[%s273 + $0x1b00] sm:$0xff]
        %v1369 = vld [vmem:[%s273 + $0x1b08] sm:$0xff]
        %v1370 = vld [vmem:[%s273 + $0x1b10] sm:$0xff]
        %v1371 = vld [vmem:[%s273 + $0x1b18] sm:$0xff]
        %v1372 = vld [vmem:[%s273 + $0x1b20] sm:$0xff]
        %v1373 = vld [vmem:[%s273 + $0x1b28] sm:$0xff]
        %v1374 = vld [vmem:[%s273 + $0x1b30] sm:$0xff]
        %v1375 = vld [vmem:[%s273 + $0x1b38] sm:$0xff]
        %v1376 = vld [vmem:[%s273 + $0x1b40] sm:$0xff]
        %v1377 = vld [vmem:[%s273 + $0x1b48] sm:$0xff]
        %v1378 = vld [vmem:[%s273 + $0x1b50] sm:$0xff]
        %v1379 = vld [vmem:[%s273 + $0x1b58] sm:$0xff]
        %v1380 = vld [vmem:[%s273 + $0x1b60] sm:$0xff]
        %v1381 = vld [vmem:[%s273 + $0x1b68] sm:$0xff]
        %v1382 = vld [vmem:[%s273 + $0x1b70] sm:$0xff]
        %v1383 = vld [vmem:[%s273 + $0x1b78] sm:$0xff]
        %v1384 = vld [vmem:[%s273 + $0x1b80] sm:$0xff]
        %v1385 = vld [vmem:[%s273 + $0x1b88] sm:$0xff]
        %v1386 = vld [vmem:[%s273 + $0x1b90] sm:$0xff]
        %v1387 = vld [vmem:[%s273 + $0x1b98] sm:$0xff]
        %v1388 = vld [vmem:[%s273 + $0x1ba0] sm:$0xff]
        %v1389 = vld [vmem:[%s273 + $0x1ba8] sm:$0xff]
        %v1390 = vld [vmem:[%s273 + $0x1bb0] sm:$0xff]
        %v1391 = vld [vmem:[%s273 + $0x1bb8] sm:$0xff]
        %v1392 = vld [vmem:[%s273 + $0x1bc0] sm:$0xff]
        %v1393 = vld [vmem:[%s273 + $0x1bc8] sm:$0xff]
        %v1394 = vld [vmem:[%s273 + $0x1bd0] sm:$0xff]
        %v1395 = vld [vmem:[%s273 + $0x1bd8] sm:$0xff]
        %v1396 = vld [vmem:[%s273 + $0x1be0] sm:$0xff]
        %v1397 = vld [vmem:[%s273 + $0x1be8] sm:$0xff]
        %v1398 = vld [vmem:[%s273 + $0x1bf0] sm:$0xff]
        %v1399 = vld [vmem:[%s273 + $0x1bf8] sm:$0xff]
        %v1400 = vld [vmem:[%s273 + $0x1c00] sm:$0xff]
        %v1401 = vld [vmem:[%s273 + $0x1c08] sm:$0xff]
        %v1402 = vld [vmem:[%s273 + $0x1c10] sm:$0xff]
        %v1403 = vld [vmem:[%s273 + $0x1c18] sm:$0xff]
        %v1404 = vld [vmem:[%s273 + $0x1c20] sm:$0xff]
        %v1405 = vld [vmem:[%s273 + $0x1c28] sm:$0xff]
        %v1406 = vld [vmem:[%s273 + $0x1c30] sm:$0xff]
        %v1407 = vld [vmem:[%s273 + $0x1c38] sm:$0xff]
        %v1408 = vld [vmem:[%s273 + $0x1c40] sm:$0xff]
        %v1409 = vld [vmem:[%s273 + $0x1c48] sm:$0xff]
        %v1410 = vld [vmem:[%s273 + $0x1c50] sm:$0xff]
        %v1411 = vld [vmem:[%s273 + $0x1c58] sm:$0xff]
        %v1412 = vld [vmem:[%s273 + $0x1c60] sm:$0xff]
        %v1413 = vld [vmem:[%s273 + $0x1c68] sm:$0xff]
        %v1414 = vld [vmem:[%s273 + $0x1c70] sm:$0xff]
        %v1415 = vld [vmem:[%s273 + $0x1c78] sm:$0xff]
        %v1416 = vld [vmem:[%s273 + $0x1c80] sm:$0xff]
        %v1417 = vld [vmem:[%s273 + $0x1c88] sm:$0xff]
        %v1418 = vld [vmem:[%s273 + $0x1c90] sm:$0xff]
        %v1419 = vld [vmem:[%s273 + $0x1c98] sm:$0xff]
        %v1420 = vld [vmem:[%s273 + $0x1ca0] sm:$0xff]
        %v1421 = vld [vmem:[%s273 + $0x1ca8] sm:$0xff]
        %v1422 = vld [vmem:[%s273 + $0x1cb0] sm:$0xff]
        %v1423 = vld [vmem:[%s273 + $0x1cb8] sm:$0xff]
        %v1424 = vld [vmem:[%s273 + $0x1cc0] sm:$0xff]
        %v1425 = vld [vmem:[%s273 + $0x1cc8] sm:$0xff]
        %v1426 = vld [vmem:[%s273 + $0x1cd0] sm:$0xff]
        %v1427 = vld [vmem:[%s273 + $0x1cd8] sm:$0xff]
        %v1428 = vld [vmem:[%s273 + $0x1ce0] sm:$0xff]
        %v1429 = vld [vmem:[%s273 + $0x1ce8] sm:$0xff]
        %v1430 = vld [vmem:[%s273 + $0x1cf0] sm:$0xff]
        %v1431 = vld [vmem:[%s273 + $0x1cf8] sm:$0xff]
        %v1432 = vld [vmem:[%s273 + $0x1d00] sm:$0xff]
        %v1433 = vld [vmem:[%s273 + $0x1d08] sm:$0xff]
        %v1434 = vld [vmem:[%s273 + $0x1d10] sm:$0xff]
        %v1435 = vld [vmem:[%s273 + $0x1d18] sm:$0xff]
        %v1436 = vld [vmem:[%s273 + $0x1d20] sm:$0xff]
        %v1437 = vld [vmem:[%s273 + $0x1d28] sm:$0xff]
        %v1438 = vld [vmem:[%s273 + $0x1d30] sm:$0xff]
        %v1439 = vld [vmem:[%s273 + $0x1d38] sm:$0xff]
        %v1440 = vld [vmem:[%s273 + $0x1d40] sm:$0xff]
        %v1441 = vld [vmem:[%s273 + $0x1d48] sm:$0xff]
        %v1442 = vld [vmem:[%s273 + $0x1d50] sm:$0xff]
        %v1443 = vld [vmem:[%s273 + $0x1d58] sm:$0xff]
        %v1444 = vld [vmem:[%s273 + $0x1d60] sm:$0xff]
        %v1445 = vld [vmem:[%s273 + $0x1d68] sm:$0xff]
        %v1446 = vld [vmem:[%s273 + $0x1d70] sm:$0xff]
        %v1447 = vld [vmem:[%s273 + $0x1d78] sm:$0xff]
        %v1448 = vld [vmem:[%s273 + $0x1d80] sm:$0xff]
        %v1449 = vld [vmem:[%s273 + $0x1d88] sm:$0xff]
        %v1450 = vld [vmem:[%s273 + $0x1d90] sm:$0xff]
        %v1451 = vld [vmem:[%s273 + $0x1d98] sm:$0xff]
        %v1452 = vld [vmem:[%s273 + $0x1da0] sm:$0xff]
        %v1453 = vld [vmem:[%s273 + $0x1da8] sm:$0xff]
        %v1454 = vld [vmem:[%s273 + $0x1db0] sm:$0xff]
        %v1455 = vld [vmem:[%s273 + $0x1db8] sm:$0xff]
        %v1456 = vld [vmem:[%s273 + $0x1dc0] sm:$0xff]
        %v1457 = vld [vmem:[%s273 + $0x1dc8] sm:$0xff]
        %v1458 = vld [vmem:[%s273 + $0x1dd0] sm:$0xff]
        %v1459 = vld [vmem:[%s273 + $0x1dd8] sm:$0xff]
        %v1460 = vld [vmem:[%s273 + $0x1de0] sm:$0xff]
        %v1461 = vld [vmem:[%s273 + $0x1de8] sm:$0xff]
        %v1462 = vld [vmem:[%s273 + $0x1df0] sm:$0xff]
        %v1463 = vld [vmem:[%s273 + $0x1df8] sm:$0xff]
        %v1464 = vld [vmem:[%s273 + $0x1e00] sm:$0xff]
        %v1465 = vld [vmem:[%s273 + $0x1e08] sm:$0xff]
        %v1466 = vld [vmem:[%s273 + $0x1e10] sm:$0xff]
        %v1467 = vld [vmem:[%s273 + $0x1e18] sm:$0xff]
        %v1468 = vld [vmem:[%s273 + $0x1e20] sm:$0xff]
        %v1469 = vld [vmem:[%s273 + $0x1e28] sm:$0xff]
        %v1470 = vld [vmem:[%s273 + $0x1e30] sm:$0xff]
        %v1471 = vld [vmem:[%s273 + $0x1e38] sm:$0xff]
        %v1472 = vld [vmem:[%s273 + $0x1e40] sm:$0xff]
        %v1473 = vld [vmem:[%s273 + $0x1e48] sm:$0xff]
        %v1474 = vld [vmem:[%s273 + $0x1e50] sm:$0xff]
        %v1475 = vld [vmem:[%s273 + $0x1e58] sm:$0xff]
        %v1476 = vld [vmem:[%s273 + $0x1e60] sm:$0xff]
        %v1477 = vld [vmem:[%s273 + $0x1e68] sm:$0xff]
        %v1478 = vld [vmem:[%s273 + $0x1e70] sm:$0xff]
        %v1479 = vld [vmem:[%s273 + $0x1e78] sm:$0xff]
        %v1480 = vld [vmem:[%s273 + $0x1e80] sm:$0xff]
        %v1481 = vld [vmem:[%s273 + $0x1e88] sm:$0xff]
        %v1482 = vld [vmem:[%s273 + $0x1e90] sm:$0xff]
        %v1483 = vld [vmem:[%s273 + $0x1e98] sm:$0xff]
        %v1484 = vld [vmem:[%s273 + $0x1ea0] sm:$0xff]
        %v1485 = vld [vmem:[%s273 + $0x1ea8] sm:$0xff]
        %v1486 = vld [vmem:[%s273 + $0x1eb0] sm:$0xff]
        %v1487 = vld [vmem:[%s273 + $0x1eb8] sm:$0xff]
        %v1488 = vld [vmem:[%s273 + $0x1ec0] sm:$0xff]
        %v1489 = vld [vmem:[%s273 + $0x1ec8] sm:$0xff]
        %v1490 = vld [vmem:[%s273 + $0x1ed0] sm:$0xff]
        %v1491 = vld [vmem:[%s273 + $0x1ed8] sm:$0xff]
        %v1492 = vld [vmem:[%s273 + $0x1ee0] sm:$0xff]
        %v1493 = vld [vmem:[%s273 + $0x1ee8] sm:$0xff]
        %v1494 = vld [vmem:[%s273 + $0x1ef0] sm:$0xff]
        %v1495 = vld [vmem:[%s273 + $0x1ef8] sm:$0xff]
        %v1496 = vld [vmem:[%s273 + $0x1f00] sm:$0xff]
        %v1497 = vld [vmem:[%s273 + $0x1f08] sm:$0xff]
        %v1498 = vld [vmem:[%s273 + $0x1f10] sm:$0xff]
        %v1499 = vld [vmem:[%s273 + $0x1f18] sm:$0xff]
        %v1500 = vld [vmem:[%s273 + $0x1f20] sm:$0xff]
        %v1501 = vld [vmem:[%s273 + $0x1f28] sm:$0xff]
        %v1502 = vld [vmem:[%s273 + $0x1f30] sm:$0xff]
        %v1503 = vld [vmem:[%s273 + $0x1f38] sm:$0xff]
        %v1504 = vld [vmem:[%s273 + $0x1f40] sm:$0xff]
        %v1505 = vld [vmem:[%s273 + $0x1f48] sm:$0xff]
        %v1506 = vld [vmem:[%s273 + $0x1f50] sm:$0xff]
        %v1507 = vld [vmem:[%s273 + $0x1f58] sm:$0xff]
        %v1508 = vld [vmem:[%s273 + $0x1f60] sm:$0xff]
        %v1509 = vld [vmem:[%s273 + $0x1f68] sm:$0xff]
        %v1510 = vld [vmem:[%s273 + $0x1f70] sm:$0xff]
        %v1511 = vld [vmem:[%s273 + $0x1f78] sm:$0xff]
        %v1512 = vld [vmem:[%s273 + $0x1f80] sm:$0xff]
        %v1513 = vld [vmem:[%s273 + $0x1f88] sm:$0xff]
        %v1514 = vld [vmem:[%s273 + $0x1f90] sm:$0xff]
        %v1515 = vld [vmem:[%s273 + $0x1f98] sm:$0xff]
        %v1516 = vld [vmem:[%s273 + $0x1fa0] sm:$0xff]
        %v1517 = vld [vmem:[%s273 + $0x1fa8] sm:$0xff]
        %v1518 = vld [vmem:[%s273 + $0x1fb0] sm:$0xff]
        %v1519 = vld [vmem:[%s273 + $0x1fb8] sm:$0xff]
        %v1520 = vld [vmem:[%s273 + $0x1fc0] sm:$0xff]
        %v1521 = vld [vmem:[%s273 + $0x1fc8] sm:$0xff]
        %v1522 = vld [vmem:[%s273 + $0x1fd0] sm:$0xff]
        %v1523 = vld [vmem:[%s273 + $0x1fd8] sm:$0xff]
        %v1524 = vld [vmem:[%s273 + $0x1fe0] sm:$0xff]
        %v1525 = vld [vmem:[%s273 + $0x1fe8] sm:$0xff]
        %v1526 = vld [vmem:[%s273 + $0x1ff0] sm:$0xff]
        %v1527 = vld [vmem:[%s273 + $0x1ff8] sm:$0xff]
        %v1528 = vld [vmem:[%s273 + $0x2000] sm:$0xff]
        %v1529 = vld [vmem:[%s273 + $0x2008] sm:$0xff]
        %v1530 = vld [vmem:[%s273 + $0x2010] sm:$0xff]
        %v1531 = vld [vmem:[%s273 + $0x2018] sm:$0xff]
        %v1532 = vld [vmem:[%s273 + $0x2020] sm:$0xff]
        %v1533 = vld [vmem:[%s273 + $0x2028] sm:$0xff]
        %v1534 = vld [vmem:[%s273 + $0x2030] sm:$0xff]
        %v1535 = vld [vmem:[%s273 + $0x2038] sm:$0xff]
        %v1536 = vld [vmem:[%s273 + $0x2040] sm:$0xff]
        %v1537 = vld [vmem:[%s273 + $0x2048] sm:$0xff]
        %v1538 = vld [vmem:[%s273 + $0x2050] sm:$0xff]
        %v1539 = vld [vmem:[%s273 + $0x2058] sm:$0xff]
        %v1540 = vld [vmem:[%s273 + $0x2060] sm:$0xff]
        %v1541 = vld [vmem:[%s273 + $0x2068] sm:$0xff]
        %v1542 = vld [vmem:[%s273 + $0x2070] sm:$0xff]
        %v1543 = vld [vmem:[%s273 + $0x2078] sm:$0xff]
        %v1544 = vld [vmem:[%s273 + $0x2080] sm:$0xff]
        %v1545 = vld [vmem:[%s273 + $0x2088] sm:$0xff]
        %v1546 = vld [vmem:[%s273 + $0x2090] sm:$0xff]
        %v1547 = vld [vmem:[%s273 + $0x2098] sm:$0xff]
        %v1548 = vld [vmem:[%s273 + $0x20a0] sm:$0xff]
        %v1549 = vld [vmem:[%s273 + $0x20a8] sm:$0xff]
        %v1550 = vld [vmem:[%s273 + $0x20b0] sm:$0xff]
        %v1551 = vld [vmem:[%s273 + $0x20b8] sm:$0xff]
        %v1552 = vld [vmem:[%s273 + $0x20c0] sm:$0xff]
        %v1553 = vld [vmem:[%s273 + $0x20c8] sm:$0xff]
        %v1554 = vld [vmem:[%s273 + $0x20d0] sm:$0xff]
        %v1555 = vld [vmem:[%s273 + $0x20d8] sm:$0xff]
        %v1556 = vld [vmem:[%s273 + $0x20e0] sm:$0xff]
        %v1557 = vld [vmem:[%s273 + $0x20e8] sm:$0xff]
        %v1558 = vld [vmem:[%s273 + $0x20f0] sm:$0xff]
        %v1559 = vld [vmem:[%s273 + $0x20f8] sm:$0xff]
        %v1560 = vld [vmem:[%s273 + $0x2100] sm:$0xff]
        %v1561 = vld [vmem:[%s273 + $0x2108] sm:$0xff]
        %v1562 = vld [vmem:[%s273 + $0x2110] sm:$0xff]
        %v1563 = vld [vmem:[%s273 + $0x2118] sm:$0xff]
        %v1564 = vld [vmem:[%s273 + $0x2120] sm:$0xff]
        %v1565 = vld [vmem:[%s273 + $0x2128] sm:$0xff]
        %v1566 = vld [vmem:[%s273 + $0x2130] sm:$0xff]
        %v1567 = vld [vmem:[%s273 + $0x2138] sm:$0xff]
        %v1568 = vld [vmem:[%s273 + $0x2140] sm:$0xff]
        %v1569 = vld [vmem:[%s273 + $0x2148] sm:$0xff]
        %v1570 = vld [vmem:[%s273 + $0x2150] sm:$0xff]
        %v1571 = vld [vmem:[%s273 + $0x2158] sm:$0xff]
        %v1572 = vld [vmem:[%s273 + $0x2160] sm:$0xff]
        %v1573 = vld [vmem:[%s273 + $0x2168] sm:$0xff]
        %v1574 = vld [vmem:[%s273 + $0x2170] sm:$0xff]
        %v1575 = vld [vmem:[%s273 + $0x2178] sm:$0xff]
        %v1576 = vld [vmem:[%s273 + $0x2180] sm:$0xff]
        %v1577 = vld [vmem:[%s273 + $0x2188] sm:$0xff]
        %v1578 = vld [vmem:[%s273 + $0x2190] sm:$0xff]
        %v1579 = vld [vmem:[%s273 + $0x2198] sm:$0xff]
        %v1580 = vld [vmem:[%s273 + $0x21a0] sm:$0xff]
        %v1581 = vld [vmem:[%s273 + $0x21a8] sm:$0xff]
        %v1582 = vld [vmem:[%s273 + $0x21b0] sm:$0xff]
        %v1583 = vld [vmem:[%s273 + $0x21b8] sm:$0xff]
        %v1584 = vld [vmem:[%s273 + $0x21c0] sm:$0xff]
        %v1585 = vld [vmem:[%s273 + $0x21c8] sm:$0xff]
        %v1586 = vld [vmem:[%s273 + $0x21d0] sm:$0xff]
        %v1587 = vld [vmem:[%s273 + $0x21d8] sm:$0xff]
        %v1588 = vld [vmem:[%s273 + $0x21e0] sm:$0xff]
        %v1589 = vld [vmem:[%s273 + $0x21e8] sm:$0xff]
        %v1590 = vld [vmem:[%s273 + $0x21f0] sm:$0xff]
        %v1591 = vld [vmem:[%s273 + $0x21f8] sm:$0xff]
        %v1592 = vld [vmem:[%s273 + $0x2200] sm:$0xff]
        %v1593 = vld [vmem:[%s273 + $0x2208] sm:$0xff]
        %v1594 = vld [vmem:[%s273 + $0x2210] sm:$0xff]
        %v1595 = vld [vmem:[%s273 + $0x2218] sm:$0xff]
        %v1596 = vld [vmem:[%s273 + $0x2220] sm:$0xff]
        %v1597 = vld [vmem:[%s273 + $0x2228] sm:$0xff]
        %v1598 = vld [vmem:[%s273 + $0x2230] sm:$0xff]
        %v1599 = vld [vmem:[%s273 + $0x2238] sm:$0xff]
        %v1600 = vld [vmem:[%s273 + $0x2240] sm:$0xff]
        %v1601 = vld [vmem:[%s273 + $0x2248] sm:$0xff]
        %v1602 = vld [vmem:[%s273 + $0x2250] sm:$0xff]
        %v1603 = vld [vmem:[%s273 + $0x2258] sm:$0xff]
        %v1604 = vld [vmem:[%s273 + $0x2260] sm:$0xff]
        %v1605 = vld [vmem:[%s273 + $0x2268] sm:$0xff]
        %v1606 = vld [vmem:[%s273 + $0x2270] sm:$0xff]
        %v1607 = vld [vmem:[%s273 + $0x2278] sm:$0xff]
        %v1608 = vld [vmem:[%s273 + $0x2280] sm:$0xff]
        %v1609 = vld [vmem:[%s273 + $0x2288] sm:$0xff]
        %v1610 = vld [vmem:[%s273 + $0x2290] sm:$0xff]
        %v1611 = vld [vmem:[%s273 + $0x2298] sm:$0xff]
        %v1612 = vld [vmem:[%s273 + $0x22a0] sm:$0xff]
        %v1613 = vld [vmem:[%s273 + $0x22a8] sm:$0xff]
        %v1614 = vld [vmem:[%s273 + $0x22b0] sm:$0xff]
        %v1615 = vld [vmem:[%s273 + $0x22b8] sm:$0xff]
        %v1616 = vld [vmem:[%s273 + $0x22c0] sm:$0xff]
        %v1617 = vld [vmem:[%s273 + $0x22c8] sm:$0xff]
        %v1618 = vld [vmem:[%s273 + $0x22d0] sm:$0xff]
        %v1619 = vld [vmem:[%s273 + $0x22d8] sm:$0xff]
        %v1620 = vld [vmem:[%s273 + $0x22e0] sm:$0xff]
        %v1621 = vld [vmem:[%s273 + $0x22e8] sm:$0xff]
        %v1622 = vld [vmem:[%s273 + $0x22f0] sm:$0xff]
        %v1623 = vld [vmem:[%s273 + $0x22f8] sm:$0xff]
        %v1624 = vld [vmem:[%s273 + $0x2300] sm:$0xff]
        %v1625 = vld [vmem:[%s273 + $0x2308] sm:$0xff]
        %v1626 = vld [vmem:[%s273 + $0x2310] sm:$0xff]
        %v1627 = vld [vmem:[%s273 + $0x2318] sm:$0xff]
        %v1628 = vld [vmem:[%s273 + $0x2320] sm:$0xff]
        %v1629 = vld [vmem:[%s273 + $0x2328] sm:$0xff]
        %v1630 = vld [vmem:[%s273 + $0x2330] sm:$0xff]
        %v1631 = vld [vmem:[%s273 + $0x2338] sm:$0xff]
        %v1632 = vld [vmem:[%s273 + $0x2340] sm:$0xff]
        %v1633 = vld [vmem:[%s273 + $0x2348] sm:$0xff]
        %v1634 = vld [vmem:[%s273 + $0x2350] sm:$0xff]
        %v1635 = vld [vmem:[%s273 + $0x2358] sm:$0xff]
        %v1636 = vld [vmem:[%s273 + $0x2360] sm:$0xff]
        %v1637 = vld [vmem:[%s273 + $0x2368] sm:$0xff]
        %v1638 = vld [vmem:[%s273 + $0x2370] sm:$0xff]
        %v1639 = vld [vmem:[%s273 + $0x2378] sm:$0xff]
        %v1640 = vld [vmem:[%s273 + $0x2380] sm:$0xff]
        %v1641 = vld [vmem:[%s273 + $0x2388] sm:$0xff]
        %v1642 = vld [vmem:[%s273 + $0x2390] sm:$0xff]
        %v1643 = vld [vmem:[%s273 + $0x2398] sm:$0xff]
        %v1644 = vld [vmem:[%s273 + $0x23a0] sm:$0xff]
        %v1645 = vld [vmem:[%s273 + $0x23a8] sm:$0xff]
        %v1646 = vld [vmem:[%s273 + $0x23b0] sm:$0xff]
        %v1647 = vld [vmem:[%s273 + $0x23b8] sm:$0xff]
        %v1648 = vld [vmem:[%s273 + $0x23c0] sm:$0xff]
        %v1649 = vld [vmem:[%s273 + $0x23c8] sm:$0xff]
        %v1650 = vld [vmem:[%s273 + $0x23d0] sm:$0xff]
        %v1651 = vld [vmem:[%s273 + $0x23d8] sm:$0xff]
        %v1652 = vld [vmem:[%s273 + $0x23e0] sm:$0xff]
        %v1653 = vld [vmem:[%s273 + $0x23e8] sm:$0xff]
        %v1654 = vld [vmem:[%s273 + $0x23f0] sm:$0xff]
        %v1655 = vld [vmem:[%s273 + $0x23f8] sm:$0xff]
        %v1656 = vld [vmem:[%s273 + $0x2400] sm:$0xff]
        %v1657 = vld [vmem:[%s273 + $0x2408] sm:$0xff]
        %v1658 = vld [vmem:[%s273 + $0x2410] sm:$0xff]
        %v1659 = vld [vmem:[%s273 + $0x2418] sm:$0xff]
        %v1660 = vld [vmem:[%s273 + $0x2420] sm:$0xff]
        %v1661 = vld [vmem:[%s273 + $0x2428] sm:$0xff]
        %v1662 = vld [vmem:[%s273 + $0x2430] sm:$0xff]
        %v1663 = vld [vmem:[%s273 + $0x2438] sm:$0xff]
        %v1664 = vld [vmem:[%s273 + $0x2440] sm:$0xff]
        %v1665 = vld [vmem:[%s273 + $0x2448] sm:$0xff]
        %v1666 = vld [vmem:[%s273 + $0x2450] sm:$0xff]
        %v1667 = vld [vmem:[%s273 + $0x2458] sm:$0xff]
        %v1668 = vld [vmem:[%s273 + $0x2460] sm:$0xff]
        %v1669 = vld [vmem:[%s273 + $0x2468] sm:$0xff]
        %v1670 = vld [vmem:[%s273 + $0x2470] sm:$0xff]
        %v1671 = vld [vmem:[%s273 + $0x2478] sm:$0xff]
        %v1672 = vld [vmem:[%s273 + $0x2480] sm:$0xff]
        %v1673 = vld [vmem:[%s273 + $0x2488] sm:$0xff]
        %v1674 = vld [vmem:[%s273 + $0x2490] sm:$0xff]
        %v1675 = vld [vmem:[%s273 + $0x2498] sm:$0xff]
        %v1676 = vld [vmem:[%s273 + $0x24a0] sm:$0xff]
        %v1677 = vld [vmem:[%s273 + $0x24a8] sm:$0xff]
        %v1678 = vld [vmem:[%s273 + $0x24b0] sm:$0xff]
        %v1679 = vld [vmem:[%s273 + $0x24b8] sm:$0xff]
        %v1680 = vld [vmem:[%s273 + $0x24c0] sm:$0xff]
        %v1681 = vld [vmem:[%s273 + $0x24c8] sm:$0xff]
        %v1682 = vld [vmem:[%s273 + $0x24d0] sm:$0xff]
        %v1683 = vld [vmem:[%s273 + $0x24d8] sm:$0xff]
        %v1684 = vld [vmem:[%s273 + $0x24e0] sm:$0xff]
        %v1685 = vld [vmem:[%s273 + $0x24e8] sm:$0xff]
        %v1686 = vld [vmem:[%s273 + $0x24f0] sm:$0xff]
        %v1687 = vld [vmem:[%s273 + $0x24f8] sm:$0xff]
        %v1688 = vld [vmem:[%s273 + $0x2500] sm:$0xff]
        %v1689 = vld [vmem:[%s273 + $0x2508] sm:$0xff]
        %v1690 = vld [vmem:[%s273 + $0x2510] sm:$0xff]
        %v1691 = vld [vmem:[%s273 + $0x2518] sm:$0xff]
        %v1692 = vld [vmem:[%s273 + $0x2520] sm:$0xff]
        %v1693 = vld [vmem:[%s273 + $0x2528] sm:$0xff]
        %v1694 = vld [vmem:[%s273 + $0x2530] sm:$0xff]
        %v1695 = vld [vmem:[%s273 + $0x2538] sm:$0xff]
        %v1696 = vld [vmem:[%s273 + $0x2540] sm:$0xff]
        %v1697 = vld [vmem:[%s273 + $0x2548] sm:$0xff]
        %v1698 = vld [vmem:[%s273 + $0x2550] sm:$0xff]
        %v1699 = vld [vmem:[%s273 + $0x2558] sm:$0xff]
        %v1700 = vld [vmem:[%s273 + $0x2560] sm:$0xff]
        %v1701 = vld [vmem:[%s273 + $0x2568] sm:$0xff]
        %v1702 = vld [vmem:[%s273 + $0x2570] sm:$0xff]
        %v1703 = vld [vmem:[%s273 + $0x2578] sm:$0xff]
        %v1704 = vld [vmem:[%s273 + $0x2580] sm:$0xff]
        %v1705 = vld [vmem:[%s273 + $0x2588] sm:$0xff]
        %v1706 = vld [vmem:[%s273 + $0x2590] sm:$0xff]
        %v1707 = vld [vmem:[%s273 + $0x2598] sm:$0xff]
        %v1708 = vld [vmem:[%s273 + $0x25a0] sm:$0xff]
        %v1709 = vld [vmem:[%s273 + $0x25a8] sm:$0xff]
        %v1710 = vld [vmem:[%s273 + $0x25b0] sm:$0xff]
        %v1711 = vld [vmem:[%s273 + $0x25b8] sm:$0xff]
        %v1712 = vld [vmem:[%s273 + $0x25c0] sm:$0xff]
        %v1713 = vld [vmem:[%s273 + $0x25c8] sm:$0xff]
        %v1714 = vld [vmem:[%s273 + $0x25d0] sm:$0xff]
        %v1715 = vld [vmem:[%s273 + $0x25d8] sm:$0xff]
        %v1716 = vld [vmem:[%s273 + $0x25e0] sm:$0xff]
        %v1717 = vld [vmem:[%s273 + $0x25e8] sm:$0xff]
        %v1718 = vld [vmem:[%s273 + $0x25f0] sm:$0xff]
        %v1719 = vld [vmem:[%s273 + $0x25f8] sm:$0xff]
        %v1720 = vld [vmem:[%s273 + $0x2600] sm:$0xff]
        %v1721 = vld [vmem:[%s273 + $0x2608] sm:$0xff]
        %v1722 = vld [vmem:[%s273 + $0x2610] sm:$0xff]
        %v1723 = vld [vmem:[%s273 + $0x2618] sm:$0xff]
        %v1724 = vld [vmem:[%s273 + $0x2620] sm:$0xff]
        %v1725 = vld [vmem:[%s273 + $0x2628] sm:$0xff]
        %v1726 = vld [vmem:[%s273 + $0x2630] sm:$0xff]
        %v1727 = vld [vmem:[%s273 + $0x2638] sm:$0xff]
        %v1728 = vld [vmem:[%s273 + $0x2640] sm:$0xff]
        %v1729 = vld [vmem:[%s273 + $0x2648] sm:$0xff]
        %v1730 = vld [vmem:[%s273 + $0x2650] sm:$0xff]
        %v1731 = vld [vmem:[%s273 + $0x2658] sm:$0xff]
        %v1732 = vld [vmem:[%s273 + $0x2660] sm:$0xff]
        %v1733 = vld [vmem:[%s273 + $0x2668] sm:$0xff]
        %v1734 = vld [vmem:[%s273 + $0x2670] sm:$0xff]
        %v1735 = vld [vmem:[%s273 + $0x2678] sm:$0xff]
        %v1736 = vld [vmem:[%s273 + $0x2680] sm:$0xff]
        %v1737 = vld [vmem:[%s273 + $0x2688] sm:$0xff]
        %v1738 = vld [vmem:[%s273 + $0x2690] sm:$0xff]
        %v1739 = vld [vmem:[%s273 + $0x2698] sm:$0xff]
        %v1740 = vld [vmem:[%s273 + $0x26a0] sm:$0xff]
        %v1741 = vld [vmem:[%s273 + $0x26a8] sm:$0xff]
        %v1742 = vld [vmem:[%s273 + $0x26b0] sm:$0xff]
        %v1743 = vld [vmem:[%s273 + $0x26b8] sm:$0xff]
        %v1744 = vld [vmem:[%s273 + $0x26c0] sm:$0xff]
        %v1745 = vld [vmem:[%s273 + $0x26c8] sm:$0xff]
        %v1746 = vld [vmem:[%s273 + $0x26d0] sm:$0xff]
        %v1747 = vld [vmem:[%s273 + $0x26d8] sm:$0xff]
        %v1748 = vld [vmem:[%s273 + $0x26e0] sm:$0xff]
        %v1749 = vld [vmem:[%s273 + $0x26e8] sm:$0xff]
        %v1750 = vld [vmem:[%s273 + $0x26f0] sm:$0xff]
        %v1751 = vld [vmem:[%s273 + $0x26f8] sm:$0xff]
        %v1752 = vld [vmem:[%s273 + $0x2700] sm:$0xff]
        %v1753 = vld [vmem:[%s273 + $0x2708] sm:$0xff]
        %v1754 = vld [vmem:[%s273 + $0x2710] sm:$0xff]
        %v1755 = vld [vmem:[%s273 + $0x2718] sm:$0xff]
        %v1756 = vld [vmem:[%s273 + $0x2720] sm:$0xff]
        %v1757 = vld [vmem:[%s273 + $0x2728] sm:$0xff]
        %v1758 = vld [vmem:[%s273 + $0x2730] sm:$0xff]
        %v1759 = vld [vmem:[%s273 + $0x2738] sm:$0xff]
        %v1760 = vld [vmem:[%s273 + $0x2740] sm:$0xff]
        %v1761 = vld [vmem:[%s273 + $0x2748] sm:$0xff]
        %v1762 = vld [vmem:[%s273 + $0x2750] sm:$0xff]
        %v1763 = vld [vmem:[%s273 + $0x2758] sm:$0xff]
        %v1764 = vld [vmem:[%s273 + $0x2760] sm:$0xff]
        %v1765 = vld [vmem:[%s273 + $0x2768] sm:$0xff]
        %v1766 = vld [vmem:[%s273 + $0x2770] sm:$0xff]
        %v1767 = vld [vmem:[%s273 + $0x2778] sm:$0xff]
        %v1768 = vld [vmem:[%s273 + $0x2780] sm:$0xff]
        %v1769 = vld [vmem:[%s273 + $0x2788] sm:$0xff]
        %v1770 = vld [vmem:[%s273 + $0x2790] sm:$0xff]
        %v1771 = vld [vmem:[%s273 + $0x2798] sm:$0xff]
        %v1772 = vld [vmem:[%s273 + $0x27a0] sm:$0xff]
        %v1773 = vld [vmem:[%s273 + $0x27a8] sm:$0xff]
        %v1774 = vld [vmem:[%s273 + $0x27b0] sm:$0xff]
        %v1775 = vld [vmem:[%s273 + $0x27b8] sm:$0xff]
        %v1776 = vld [vmem:[%s273 + $0x27c0] sm:$0xff]
        %v1777 = vld [vmem:[%s273 + $0x27c8] sm:$0xff]
        %v1778 = vld [vmem:[%s273 + $0x27d0] sm:$0xff]
        %v1779 = vld [vmem:[%s273 + $0x27d8] sm:$0xff]
        %v1780 = vld [vmem:[%s273 + $0x27e0] sm:$0xff]
        %v1781 = vld [vmem:[%s273 + $0x27e8] sm:$0xff]
        %v1782 = vld [vmem:[%s273 + $0x27f0] sm:$0xff]
        %v1783 = vld [vmem:[%s273 + $0x27f8] sm:$0xff]
        %v1784 = vld [vmem:[%s273 + $0x2800] sm:$0xff]
        %v1785 = vld [vmem:[%s273 + $0x2808] sm:$0xff]
        %v1786 = vld [vmem:[%s273 + $0x2810] sm:$0xff]
        %v1787 = vld [vmem:[%s273 + $0x2818] sm:$0xff]
        %v1788 = vld [vmem:[%s273 + $0x2820] sm:$0xff]
        %v1789 = vld [vmem:[%s273 + $0x2828] sm:$0xff]
        %v1790 = vld [vmem:[%s273 + $0x2830] sm:$0xff]
        %v1791 = vld [vmem:[%s273 + $0x2838] sm:$0xff]
        %v1792 = vld [vmem:[%s273 + $0x2840] sm:$0xff]
        %v1793 = vld [vmem:[%s273 + $0x2848] sm:$0xff]
        %v1794 = vld [vmem:[%s273 + $0x2850] sm:$0xff]
        %v1795 = vld [vmem:[%s273 + $0x2858] sm:$0xff]
        %v1796 = vld [vmem:[%s273 + $0x2860] sm:$0xff]
        %v1797 = vld [vmem:[%s273 + $0x2868] sm:$0xff]
        %v1798 = vld [vmem:[%s273 + $0x2870] sm:$0xff]
        %v1799 = vld [vmem:[%s273 + $0x2878] sm:$0xff]
        %v1800 = vld [vmem:[%s273 + $0x2880] sm:$0xff]
        %v1801 = vld [vmem:[%s273 + $0x2888] sm:$0xff]
        %v1802 = vld [vmem:[%s273 + $0x2890] sm:$0xff]
        %v1803 = vld [vmem:[%s273 + $0x2898] sm:$0xff]
        %v1804 = vld [vmem:[%s273 + $0x28a0] sm:$0xff]
        %v1805 = vld [vmem:[%s273 + $0x28a8] sm:$0xff]
        %v1806 = vld [vmem:[%s273 + $0x28b0] sm:$0xff]
        %v1807 = vld [vmem:[%s273 + $0x28b8] sm:$0xff]
        %v1808 = vld [vmem:[%s273 + $0x28c0] sm:$0xff]
        %v1809 = vld [vmem:[%s273 + $0x28c8] sm:$0xff]
        %v1810 = vld [vmem:[%s273 + $0x28d0] sm:$0xff]
        %v1811 = vld [vmem:[%s273 + $0x28d8] sm:$0xff]
        %v1812 = vld [vmem:[%s273 + $0x28e0] sm:$0xff]
        %v1813 = vld [vmem:[%s273 + $0x28e8] sm:$0xff]
        %v1814 = vld [vmem:[%s273 + $0x28f0] sm:$0xff]
        %v1815 = vld [vmem:[%s273 + $0x28f8] sm:$0xff]
        %v1816 = vld [vmem:[%s273 + $0x2900] sm:$0xff]
        %v1817 = vld [vmem:[%s273 + $0x2908] sm:$0xff]
        %v1818 = vld [vmem:[%s273 + $0x2910] sm:$0xff]
        %v1819 = vld [vmem:[%s273 + $0x2918] sm:$0xff]
        %v1820 = vld [vmem:[%s273 + $0x2920] sm:$0xff]
        %v1821 = vld [vmem:[%s273 + $0x2928] sm:$0xff]
        %v1822 = vld [vmem:[%s273 + $0x2930] sm:$0xff]
        %v1823 = vld [vmem:[%s273 + $0x2938] sm:$0xff]
        %v1824 = vld [vmem:[%s273 + $0x2940] sm:$0xff]
        %v1825 = vld [vmem:[%s273 + $0x2948] sm:$0xff]
        %v1826 = vld [vmem:[%s273 + $0x2950] sm:$0xff]
        %v1827 = vld [vmem:[%s273 + $0x2958] sm:$0xff]
        %v1828 = vld [vmem:[%s273 + $0x2960] sm:$0xff]
        %v1829 = vld [vmem:[%s273 + $0x2968] sm:$0xff]
        %v1830 = vld [vmem:[%s273 + $0x2970] sm:$0xff]
        %v1831 = vld [vmem:[%s273 + $0x2978] sm:$0xff]
        %v1832 = vld [vmem:[%s273 + $0x2980] sm:$0xff]
        %v1833 = vld [vmem:[%s273 + $0x2988] sm:$0xff]
        %v1834 = vld [vmem:[%s273 + $0x2990] sm:$0xff]
        %v1835 = vld [vmem:[%s273 + $0x2998] sm:$0xff]
        %v1836 = vld [vmem:[%s273 + $0x29a0] sm:$0xff]
        %v1837 = vld [vmem:[%s273 + $0x29a8] sm:$0xff]
        %v1838 = vld [vmem:[%s273 + $0x29b0] sm:$0xff]
        %v1839 = vld [vmem:[%s273 + $0x29b8] sm:$0xff]
        %v1840 = vld [vmem:[%s273 + $0x29c0] sm:$0xff]
        %v1841 = vld [vmem:[%s273 + $0x29c8] sm:$0xff]
        %v1842 = vld [vmem:[%s273 + $0x29d0] sm:$0xff]
        %v1843 = vld [vmem:[%s273 + $0x29d8] sm:$0xff]
        %v1844 = vld [vmem:[%s273 + $0x29e0] sm:$0xff]
        %v1845 = vld [vmem:[%s273 + $0x29e8] sm:$0xff]
        %v1846 = vld [vmem:[%s273 + $0x29f0] sm:$0xff]
        %v1847 = vld [vmem:[%s273 + $0x29f8] sm:$0xff]
        %v1848 = vld [vmem:[%s273 + $0x2a00] sm:$0xff]
        %v1849 = vld [vmem:[%s273 + $0x2a08] sm:$0xff]
        %v1850 = vld [vmem:[%s273 + $0x2a10] sm:$0xff]
        %v1851 = vld [vmem:[%s273 + $0x2a18] sm:$0xff]
        %v1852 = vld [vmem:[%s273 + $0x2a20] sm:$0xff]
        %v1853 = vld [vmem:[%s273 + $0x2a28] sm:$0xff]
        %v1854 = vld [vmem:[%s273 + $0x2a30] sm:$0xff]
        %v1855 = vld [vmem:[%s273 + $0x2a38] sm:$0xff]
        %v1856 = vld [vmem:[%s273 + $0x2a40] sm:$0xff]
        %v1857 = vld [vmem:[%s273 + $0x2a48] sm:$0xff]
        %v1858 = vld [vmem:[%s273 + $0x2a50] sm:$0xff]
        %v1859 = vld [vmem:[%s273 + $0x2a58] sm:$0xff]
        %v1860 = vld [vmem:[%s273 + $0x2a60] sm:$0xff]
        %v1861 = vld [vmem:[%s273 + $0x2a68] sm:$0xff]
        %v1862 = vld [vmem:[%s273 + $0x2a70] sm:$0xff]
        %v1863 = vld [vmem:[%s273 + $0x2a78] sm:$0xff]
        %v1864 = vld [vmem:[%s273 + $0x2a80] sm:$0xff]
        %v1865 = vld [vmem:[%s273 + $0x2a88] sm:$0xff]
        %v1866 = vld [vmem:[%s273 + $0x2a90] sm:$0xff]
        %v1867 = vld [vmem:[%s273 + $0x2a98] sm:$0xff]
        %v1868 = vld [vmem:[%s273 + $0x2aa0] sm:$0xff]
        %v1869 = vld [vmem:[%s273 + $0x2aa8] sm:$0xff]
        %v1870 = vld [vmem:[%s273 + $0x2ab0] sm:$0xff]
        %v1871 = vld [vmem:[%s273 + $0x2ab8] sm:$0xff]
        %v1872 = vld [vmem:[%s273 + $0x2ac0] sm:$0xff]
        %v1873 = vld [vmem:[%s273 + $0x2ac8] sm:$0xff]
        %v1874 = vld [vmem:[%s273 + $0x2ad0] sm:$0xff]
        %v1875 = vld [vmem:[%s273 + $0x2ad8] sm:$0xff]
        %v1876 = vld [vmem:[%s273 + $0x2ae0] sm:$0xff]
        %v1877 = vld [vmem:[%s273 + $0x2ae8] sm:$0xff]
        %v1878 = vld [vmem:[%s273 + $0x2af0] sm:$0xff]
        %v1879 = vld [vmem:[%s273 + $0x2af8] sm:$0xff]
        %v1880 = vld [vmem:[%s273 + $0x2b00] sm:$0xff]
        %v1881 = vld [vmem:[%s273 + $0x2b08] sm:$0xff]
        %v1882 = vld [vmem:[%s273 + $0x2b10] sm:$0xff]
        %v1883 = vld [vmem:[%s273 + $0x2b18] sm:$0xff]
        %v1884 = vld [vmem:[%s273 + $0x2b20] sm:$0xff]
        %v1885 = vld [vmem:[%s273 + $0x2b28] sm:$0xff]
        %v1886 = vld [vmem:[%s273 + $0x2b30] sm:$0xff]
        %v1887 = vld [vmem:[%s273 + $0x2b38] sm:$0xff]
        %v1888 = vld [vmem:[%s273 + $0x2b40] sm:$0xff]
        %v1889 = vld [vmem:[%s273 + $0x2b48] sm:$0xff]
        %v1890 = vld [vmem:[%s273 + $0x2b50] sm:$0xff]
        %v1891 = vld [vmem:[%s273 + $0x2b58] sm:$0xff]
        %v1892 = vld [vmem:[%s273 + $0x2b60] sm:$0xff]
        %v1893 = vld [vmem:[%s273 + $0x2b68] sm:$0xff]
        %v1894 = vld [vmem:[%s273 + $0x2b70] sm:$0xff]
        %v1895 = vld [vmem:[%s273 + $0x2b78] sm:$0xff]
        %v1896 = vld [vmem:[%s273 + $0x2b80] sm:$0xff]
        %v1897 = vld [vmem:[%s273 + $0x2b88] sm:$0xff]
        %v1898 = vld [vmem:[%s273 + $0x2b90] sm:$0xff]
        %v1899 = vld [vmem:[%s273 + $0x2b98] sm:$0xff]
        %v1900 = vld [vmem:[%s273 + $0x2ba0] sm:$0xff]
        %v1901 = vld [vmem:[%s273 + $0x2ba8] sm:$0xff]
        %v1902 = vld [vmem:[%s273 + $0x2bb0] sm:$0xff]
        %v1903 = vld [vmem:[%s273 + $0x2bb8] sm:$0xff]
        %v1904 = vld [vmem:[%s273 + $0x2bc0] sm:$0xff]
        %v1905 = vld [vmem:[%s273 + $0x2bc8] sm:$0xff]
        %v1906 = vld [vmem:[%s273 + $0x2bd0] sm:$0xff]
        %v1907 = vld [vmem:[%s273 + $0x2bd8] sm:$0xff]
        %v1908 = vld [vmem:[%s273 + $0x2be0] sm:$0xff]
        %v1909 = vld [vmem:[%s273 + $0x2be8] sm:$0xff]
        %v1910 = vld [vmem:[%s273 + $0x2bf0] sm:$0xff]
        %v1911 = vld [vmem:[%s273 + $0x2bf8] sm:$0xff]
        %v1912 = vld [vmem:[%s273 + $0x2c00] sm:$0xff]
        %v1913 = vld [vmem:[%s273 + $0x2c08] sm:$0xff]
        %v1914 = vld [vmem:[%s273 + $0x2c10] sm:$0xff]
        %v1915 = vld [vmem:[%s273 + $0x2c18] sm:$0xff]
        %v1916 = vld [vmem:[%s273 + $0x2c20] sm:$0xff]
        %v1917 = vld [vmem:[%s273 + $0x2c28] sm:$0xff]
        %v1918 = vld [vmem:[%s273 + $0x2c30] sm:$0xff]
        %v1919 = vld [vmem:[%s273 + $0x2c38] sm:$0xff]
        %v1920 = vld [vmem:[%s273 + $0x2c40] sm:$0xff]
        %v1921 = vld [vmem:[%s273 + $0x2c48] sm:$0xff]
        %v1922 = vld [vmem:[%s273 + $0x2c50] sm:$0xff]
        %v1923 = vld [vmem:[%s273 + $0x2c58] sm:$0xff]
        %v1924 = vld [vmem:[%s273 + $0x2c60] sm:$0xff]
        %v1925 = vld [vmem:[%s273 + $0x2c68] sm:$0xff]
        %v1926 = vld [vmem:[%s273 + $0x2c70] sm:$0xff]
        %v1927 = vld [vmem:[%s273 + $0x2c78] sm:$0xff]
        %v1928 = vld [vmem:[%s273 + $0x2c80] sm:$0xff]
        %v1929 = vld [vmem:[%s273 + $0x2c88] sm:$0xff]
        %v1930 = vld [vmem:[%s273 + $0x2c90] sm:$0xff]
        %v1931 = vld [vmem:[%s273 + $0x2c98] sm:$0xff]
        %v1932 = vld [vmem:[%s273 + $0x2ca0] sm:$0xff]
        %v1933 = vld [vmem:[%s273 + $0x2ca8] sm:$0xff]
        %v1934 = vld [vmem:[%s273 + $0x2cb0] sm:$0xff]
        %v1935 = vld [vmem:[%s273 + $0x2cb8] sm:$0xff]
        %v1936 = vld [vmem:[%s273 + $0x2cc0] sm:$0xff]
        %v1937 = vld [vmem:[%s273 + $0x2cc8] sm:$0xff]
        %v1938 = vld [vmem:[%s273 + $0x2cd0] sm:$0xff]
        %v1939 = vld [vmem:[%s273 + $0x2cd8] sm:$0xff]
        %v1940 = vld [vmem:[%s273 + $0x2ce0] sm:$0xff]
        %v1941 = vld [vmem:[%s273 + $0x2ce8] sm:$0xff]
        %v1942 = vld [vmem:[%s273 + $0x2cf0] sm:$0xff]
        %v1943 = vld [vmem:[%s273 + $0x2cf8] sm:$0xff]
        %v1944 = vld [vmem:[%s273 + $0x2d00] sm:$0xff]
        %v1945 = vld [vmem:[%s273 + $0x2d08] sm:$0xff]
        %v1946 = vld [vmem:[%s273 + $0x2d10] sm:$0xff]
        %v1947 = vld [vmem:[%s273 + $0x2d18] sm:$0xff]
        %v1948 = vld [vmem:[%s273 + $0x2d20] sm:$0xff]
        %v1949 = vld [vmem:[%s273 + $0x2d28] sm:$0xff]
        %v1950 = vld [vmem:[%s273 + $0x2d30] sm:$0xff]
        %v1951 = vld [vmem:[%s273 + $0x2d38] sm:$0xff]
        %v1952 = vld [vmem:[%s273 + $0x2d40] sm:$0xff]
        %v1953 = vld [vmem:[%s273 + $0x2d48] sm:$0xff]
        %v1954 = vld [vmem:[%s273 + $0x2d50] sm:$0xff]
        %v1955 = vld [vmem:[%s273 + $0x2d58] sm:$0xff]
        %v1956 = vld [vmem:[%s273 + $0x2d60] sm:$0xff]
        %v1957 = vld [vmem:[%s273 + $0x2d68] sm:$0xff]
        %v1958 = vld [vmem:[%s273 + $0x2d70] sm:$0xff]
        %v1959 = vld [vmem:[%s273 + $0x2d78] sm:$0xff]
        %v1960 = vld [vmem:[%s273 + $0x2d80] sm:$0xff]
        %v1961 = vld [vmem:[%s273 + $0x2d88] sm:$0xff]
        %v1962 = vld [vmem:[%s273 + $0x2d90] sm:$0xff]
        %v1963 = vld [vmem:[%s273 + $0x2d98] sm:$0xff]
        %v1964 = vld [vmem:[%s273 + $0x2da0] sm:$0xff]
        %v1965 = vld [vmem:[%s273 + $0x2da8] sm:$0xff]
        %v1966 = vld [vmem:[%s273 + $0x2db0] sm:$0xff]
        %v1967 = vld [vmem:[%s273 + $0x2db8] sm:$0xff]
        %v1968 = vld [vmem:[%s273 + $0x2dc0] sm:$0xff]
        %v1969 = vld [vmem:[%s273 + $0x2dc8] sm:$0xff]
        %v1970 = vld [vmem:[%s273 + $0x2dd0] sm:$0xff]
        %v1971 = vld [vmem:[%s273 + $0x2dd8] sm:$0xff]
        %v1972 = vld [vmem:[%s273 + $0x2de0] sm:$0xff]
        %v1973 = vld [vmem:[%s273 + $0x2de8] sm:$0xff]
        %v1974 = vld [vmem:[%s273 + $0x2df0] sm:$0xff]
        %v1975 = vld [vmem:[%s273 + $0x2df8] sm:$0xff]
        %v1976 = vld [vmem:[%s273 + $0x2e00] sm:$0xff]
        %v1977 = vld [vmem:[%s273 + $0x2e08] sm:$0xff]
        %v1978 = vld [vmem:[%s273 + $0x2e10] sm:$0xff]
        %v1979 = vld [vmem:[%s273 + $0x2e18] sm:$0xff]
        %v1980 = vld [vmem:[%s273 + $0x2e20] sm:$0xff]
        %v1981 = vld [vmem:[%s273 + $0x2e28] sm:$0xff]
        %v1982 = vld [vmem:[%s273 + $0x2e30] sm:$0xff]
        %v1983 = vld [vmem:[%s273 + $0x2e38] sm:$0xff]
        %v1984 = vld [vmem:[%s273 + $0x2e40] sm:$0xff]
        %v1985 = vld [vmem:[%s273 + $0x2e48] sm:$0xff]
        %v1986 = vld [vmem:[%s273 + $0x2e50] sm:$0xff]
        %v1987 = vld [vmem:[%s273 + $0x2e58] sm:$0xff]
        %v1988 = vld [vmem:[%s273 + $0x2e60] sm:$0xff]
        %v1989 = vld [vmem:[%s273 + $0x2e68] sm:$0xff]
        %v1990 = vld [vmem:[%s273 + $0x2e70] sm:$0xff]
        %v1991 = vld [vmem:[%s273 + $0x2e78] sm:$0xff]
        %v1992 = vld [vmem:[%s273 + $0x2e80] sm:$0xff]
        %v1993 = vld [vmem:[%s273 + $0x2e88] sm:$0xff]
        %v1994 = vld [vmem:[%s273 + $0x2e90] sm:$0xff]
        %v1995 = vld [vmem:[%s273 + $0x2e98] sm:$0xff]
        %v1996 = vld [vmem:[%s273 + $0x2ea0] sm:$0xff]
        %v1997 = vld [vmem:[%s273 + $0x2ea8] sm:$0xff]
        %v1998 = vld [vmem:[%s273 + $0x2eb0] sm:$0xff]
        %v1999 = vld [vmem:[%s273 + $0x2eb8] sm:$0xff]
        %v2000 = vld [vmem:[%s273 + $0x2ec0] sm:$0xff]
        %v2001 = vld [vmem:[%s273 + $0x2ec8] sm:$0xff]
        %v2002 = vld [vmem:[%s273 + $0x2ed0] sm:$0xff]
        %v2003 = vld [vmem:[%s273 + $0x2ed8] sm:$0xff]
        %v2004 = vld [vmem:[%s273 + $0x2ee0] sm:$0xff]
        %v2005 = vld [vmem:[%s273 + $0x2ee8] sm:$0xff]
        %v2006 = vld [vmem:[%s273 + $0x2ef0] sm:$0xff]
        %v2007 = vld [vmem:[%s273 + $0x2ef8] sm:$0xff]
        %v2008 = vld [vmem:[%s273 + $0x2f00] sm:$0xff]
        %v2009 = vld [vmem:[%s273 + $0x2f08] sm:$0xff]
        %v2010 = vld [vmem:[%s273 + $0x2f10] sm:$0xff]
        %v2011 = vld [vmem:[%s273 + $0x2f18] sm:$0xff]
        %v2012 = vld [vmem:[%s273 + $0x2f20] sm:$0xff]
        %v2013 = vld [vmem:[%s273 + $0x2f28] sm:$0xff]
        %v2014 = vld [vmem:[%s273 + $0x2f30] sm:$0xff]
        %v2015 = vld [vmem:[%s273 + $0x2f38] sm:$0xff]
        %v2016 = vld [vmem:[%s273 + $0x2f40] sm:$0xff]
        %v2017 = vld [vmem:[%s273 + $0x2f48] sm:$0xff]
        %v2018 = vld [vmem:[%s273 + $0x2f50] sm:$0xff]
        %v2019 = vld [vmem:[%s273 + $0x2f58] sm:$0xff]
        %v2020 = vld [vmem:[%s273 + $0x2f60] sm:$0xff]
        %v2021 = vld [vmem:[%s273 + $0x2f68] sm:$0xff]
        %v2022 = vld [vmem:[%s273 + $0x2f70] sm:$0xff]
        %v2023 = vld [vmem:[%s273 + $0x2f78] sm:$0xff]
        %v2024 = vld [vmem:[%s273 + $0x2f80] sm:$0xff]
        %v2025 = vld [vmem:[%s273 + $0x2f88] sm:$0xff]
        %v2026 = vld [vmem:[%s273 + $0x2f90] sm:$0xff]
        %v2027 = vld [vmem:[%s273 + $0x2f98] sm:$0xff]
        %v2028 = vld [vmem:[%s273 + $0x2fa0] sm:$0xff]
        %v2029 = vld [vmem:[%s273 + $0x2fa8] sm:$0xff]
        %v2030 = vld [vmem:[%s273 + $0x2fb0] sm:$0xff]
        %v2031 = vld [vmem:[%s273 + $0x2fb8] sm:$0xff]
        %v2032 = vld [vmem:[%s273 + $0x2fc0] sm:$0xff]
        %v2033 = vld [vmem:[%s273 + $0x2fc8] sm:$0xff]
        %v2034 = vld [vmem:[%s273 + $0x2fd0] sm:$0xff]
        %v2035 = vld [vmem:[%s273 + $0x2fd8] sm:$0xff]
        %v2036 = vld [vmem:[%s273 + $0x2fe0] sm:$0xff]
        %v2037 = vld [vmem:[%s273 + $0x2fe8] sm:$0xff]
        %v2038 = vld [vmem:[%s273 + $0x2ff0] sm:$0xff]
        %v2039 = vld [vmem:[%s273 + $0x2ff8] sm:$0xff]
        %v2040 = vunpack.c.l.s8.bf16 %v504
        %v2041 = vunpack.c.l.s8.bf16 %v505
        %v2042 = vunpack.c.l.s8.bf16 %v506
        %v2043 = vunpack.c.l.s8.bf16 %v507
        %v2044 = vunpack.c.l.s8.bf16 %v508
        %v2045 = vunpack.c.l.s8.bf16 %v509
        %v2046 = vunpack.c.l.s8.bf16 %v510
        %v2047 = vunpack.c.l.s8.bf16 %v511
        %v2048 = vunpack.c.l.s8.bf16 %v512
        %v2049 = vunpack.c.l.s8.bf16 %v513
        %v2050 = vunpack.c.l.s8.bf16 %v514
        %v2051 = vunpack.c.l.s8.bf16 %v515
        %v2052 = vunpack.c.l.s8.bf16 %v516
        %v2053 = vunpack.c.l.s8.bf16 %v517
        %v2054 = vunpack.c.l.s8.bf16 %v518
        %v2055 = vunpack.c.l.s8.bf16 %v519
        %v2056 = vunpack.c.h.s8.bf16 %v504
        %v2057 = vunpack.c.h.s8.bf16 %v505
        %v2058 = vunpack.c.h.s8.bf16 %v506
        %v2059 = vunpack.c.h.s8.bf16 %v507
        %v2060 = vunpack.c.h.s8.bf16 %v508
        %v2061 = vunpack.c.h.s8.bf16 %v509
        %v2062 = vunpack.c.h.s8.bf16 %v510
        %v2063 = vunpack.c.h.s8.bf16 %v511
        %v2064 = vunpack.c.h.s8.bf16 %v512
        %v2065 = vunpack.c.h.s8.bf16 %v513
        %v2066 = vunpack.c.h.s8.bf16 %v514
        %v2067 = vunpack.c.h.s8.bf16 %v515
        %v2068 = vunpack.c.h.s8.bf16 %v516
        %v2069 = vunpack.c.h.s8.bf16 %v517
        %v2070 = vunpack.c.h.s8.bf16 %v518
        %v2071 = vunpack.c.h.s8.bf16 %v519
        %v2072 = vunpack.c.l.s8.bf16 %v520
        %v2073 = vunpack.c.l.s8.bf16 %v521
        %v2074 = vunpack.c.l.s8.bf16 %v522
        %v2075 = vunpack.c.l.s8.bf16 %v523
        %v2076 = vunpack.c.l.s8.bf16 %v524
        %v2077 = vunpack.c.l.s8.bf16 %v525
        %v2078 = vunpack.c.l.s8.bf16 %v526
        %v2079 = vunpack.c.l.s8.bf16 %v527
        %v2080 = vunpack.c.l.s8.bf16 %v528
        %v2081 = vunpack.c.l.s8.bf16 %v529
        %v2082 = vunpack.c.l.s8.bf16 %v530
        %v2083 = vunpack.c.l.s8.bf16 %v531
        %v2084 = vunpack.c.l.s8.bf16 %v532
        %v2085 = vunpack.c.l.s8.bf16 %v533
        %v2086 = vunpack.c.l.s8.bf16 %v534
        %v2087 = vunpack.c.l.s8.bf16 %v535
        %v2088 = vunpack.c.h.s8.bf16 %v520
        %v2089 = vunpack.c.h.s8.bf16 %v521
        %v2090 = vunpack.c.h.s8.bf16 %v522
        %v2091 = vunpack.c.h.s8.bf16 %v523
        %v2092 = vunpack.c.h.s8.bf16 %v524
        %v2093 = vunpack.c.h.s8.bf16 %v525
        %v2094 = vunpack.c.h.s8.bf16 %v526
        %v2095 = vunpack.c.h.s8.bf16 %v527
        %v2096 = vunpack.c.h.s8.bf16 %v528
        %v2097 = vunpack.c.h.s8.bf16 %v529
        %v2098 = vunpack.c.h.s8.bf16 %v530
        %v2099 = vunpack.c.h.s8.bf16 %v531
        %v2100 = vunpack.c.h.s8.bf16 %v532
        %v2101 = vunpack.c.h.s8.bf16 %v533
        %v2102 = vunpack.c.h.s8.bf16 %v534
        %v2103 = vunpack.c.h.s8.bf16 %v535
        %v2104 = vunpack.c.l.s8.bf16 %v536
        %v2105 = vunpack.c.l.s8.bf16 %v537
        %v2106 = vunpack.c.l.s8.bf16 %v538
        %v2107 = vunpack.c.l.s8.bf16 %v539
        %v2108 = vunpack.c.l.s8.bf16 %v540
        %v2109 = vunpack.c.l.s8.bf16 %v541
        %v2110 = vunpack.c.l.s8.bf16 %v542
        %v2111 = vunpack.c.l.s8.bf16 %v543
        %v2112 = vunpack.c.l.s8.bf16 %v544
        %v2113 = vunpack.c.l.s8.bf16 %v545
        %v2114 = vunpack.c.l.s8.bf16 %v546
        %v2115 = vunpack.c.l.s8.bf16 %v547
        %v2116 = vunpack.c.l.s8.bf16 %v548
        %v2117 = vunpack.c.l.s8.bf16 %v549
        %v2118 = vunpack.c.l.s8.bf16 %v550
        %v2119 = vunpack.c.l.s8.bf16 %v551
        %v2120 = vunpack.c.h.s8.bf16 %v536
        %v2121 = vunpack.c.h.s8.bf16 %v537
        %v2122 = vunpack.c.h.s8.bf16 %v538
        %v2123 = vunpack.c.h.s8.bf16 %v539
        %v2124 = vunpack.c.h.s8.bf16 %v540
        %v2125 = vunpack.c.h.s8.bf16 %v541
        %v2126 = vunpack.c.h.s8.bf16 %v542
        %v2127 = vunpack.c.h.s8.bf16 %v543
        %v2128 = vunpack.c.h.s8.bf16 %v544
        %v2129 = vunpack.c.h.s8.bf16 %v545
        %v2130 = vunpack.c.h.s8.bf16 %v546
        %v2131 = vunpack.c.h.s8.bf16 %v547
        %v2132 = vunpack.c.h.s8.bf16 %v548
        %v2133 = vunpack.c.h.s8.bf16 %v549
        %v2134 = vunpack.c.h.s8.bf16 %v550
        %v2135 = vunpack.c.h.s8.bf16 %v551
        %v2136 = vunpack.c.l.s8.bf16 %v552
        %v2137 = vunpack.c.l.s8.bf16 %v553
        %v2138 = vunpack.c.l.s8.bf16 %v554
        %v2139 = vunpack.c.l.s8.bf16 %v555
        %v2140 = vunpack.c.l.s8.bf16 %v556
        %v2141 = vunpack.c.l.s8.bf16 %v557
        %v2142 = vunpack.c.l.s8.bf16 %v558
        %v2143 = vunpack.c.l.s8.bf16 %v559
        %v2144 = vunpack.c.l.s8.bf16 %v560
        %v2145 = vunpack.c.l.s8.bf16 %v561
        %v2146 = vunpack.c.l.s8.bf16 %v562
        %v2147 = vunpack.c.l.s8.bf16 %v563
        %v2148 = vunpack.c.l.s8.bf16 %v564
        %v2149 = vunpack.c.l.s8.bf16 %v565
        %v2150 = vunpack.c.l.s8.bf16 %v566
        %v2151 = vunpack.c.l.s8.bf16 %v567
        %v2152 = vunpack.c.h.s8.bf16 %v552
        %v2153 = vunpack.c.h.s8.bf16 %v553
        %v2154 = vunpack.c.h.s8.bf16 %v554
        %v2155 = vunpack.c.h.s8.bf16 %v555
        %v2156 = vunpack.c.h.s8.bf16 %v556
        %v2157 = vunpack.c.h.s8.bf16 %v557
        %v2158 = vunpack.c.h.s8.bf16 %v558
        %v2159 = vunpack.c.h.s8.bf16 %v559
        %v2160 = vunpack.c.h.s8.bf16 %v560
        %v2161 = vunpack.c.h.s8.bf16 %v561
        %v2162 = vunpack.c.h.s8.bf16 %v562
        %v2163 = vunpack.c.h.s8.bf16 %v563
        %v2164 = vunpack.c.h.s8.bf16 %v564
        %v2165 = vunpack.c.h.s8.bf16 %v565
        %v2166 = vunpack.c.h.s8.bf16 %v566
        %v2167 = vunpack.c.h.s8.bf16 %v567
        %v2168 = vunpack.c.l.s8.bf16 %v568
        %v2169 = vunpack.c.l.s8.bf16 %v569
        %v2170 = vunpack.c.l.s8.bf16 %v570
        %v2171 = vunpack.c.l.s8.bf16 %v571
        %v2172 = vunpack.c.l.s8.bf16 %v572
        %v2173 = vunpack.c.l.s8.bf16 %v573
        %v2174 = vunpack.c.l.s8.bf16 %v574
        %v2175 = vunpack.c.l.s8.bf16 %v575
        %v2176 = vunpack.c.l.s8.bf16 %v576
        %v2177 = vunpack.c.l.s8.bf16 %v577
        %v2178 = vunpack.c.l.s8.bf16 %v578
        %v2179 = vunpack.c.l.s8.bf16 %v579
        %v2180 = vunpack.c.l.s8.bf16 %v580
        %v2181 = vunpack.c.l.s8.bf16 %v581
        %v2182 = vunpack.c.l.s8.bf16 %v582
        %v2183 = vunpack.c.l.s8.bf16 %v583
        %v2184 = vunpack.c.h.s8.bf16 %v568
        %v2185 = vunpack.c.h.s8.bf16 %v569
        %v2186 = vunpack.c.h.s8.bf16 %v570
        %v2187 = vunpack.c.h.s8.bf16 %v571
        %v2188 = vunpack.c.h.s8.bf16 %v572
        %v2189 = vunpack.c.h.s8.bf16 %v573
        %v2190 = vunpack.c.h.s8.bf16 %v574
        %v2191 = vunpack.c.h.s8.bf16 %v575
        %v2192 = vunpack.c.h.s8.bf16 %v576
        %v2193 = vunpack.c.h.s8.bf16 %v577
        %v2194 = vunpack.c.h.s8.bf16 %v578
        %v2195 = vunpack.c.h.s8.bf16 %v579
        %v2196 = vunpack.c.h.s8.bf16 %v580
        %v2197 = vunpack.c.h.s8.bf16 %v581
        %v2198 = vunpack.c.h.s8.bf16 %v582
        %v2199 = vunpack.c.h.s8.bf16 %v583
        %v2200 = vunpack.c.l.s8.bf16 %v584
        %v2201 = vunpack.c.l.s8.bf16 %v585
        %v2202 = vunpack.c.l.s8.bf16 %v586
        %v2203 = vunpack.c.l.s8.bf16 %v587
        %v2204 = vunpack.c.l.s8.bf16 %v588
        %v2205 = vunpack.c.l.s8.bf16 %v589
        %v2206 = vunpack.c.l.s8.bf16 %v590
        %v2207 = vunpack.c.l.s8.bf16 %v591
        %v2208 = vunpack.c.l.s8.bf16 %v592
        %v2209 = vunpack.c.l.s8.bf16 %v593
        %v2210 = vunpack.c.l.s8.bf16 %v594
        %v2211 = vunpack.c.l.s8.bf16 %v595
        %v2212 = vunpack.c.l.s8.bf16 %v596
        %v2213 = vunpack.c.l.s8.bf16 %v597
        %v2214 = vunpack.c.l.s8.bf16 %v598
        %v2215 = vunpack.c.l.s8.bf16 %v599
        %v2216 = vunpack.c.h.s8.bf16 %v584
        %v2217 = vunpack.c.h.s8.bf16 %v585
        %v2218 = vunpack.c.h.s8.bf16 %v586
        %v2219 = vunpack.c.h.s8.bf16 %v587
        %v2220 = vunpack.c.h.s8.bf16 %v588
        %v2221 = vunpack.c.h.s8.bf16 %v589
        %v2222 = vunpack.c.h.s8.bf16 %v590
        %v2223 = vunpack.c.h.s8.bf16 %v591
        %v2224 = vunpack.c.h.s8.bf16 %v592
        %v2225 = vunpack.c.h.s8.bf16 %v593
        %v2226 = vunpack.c.h.s8.bf16 %v594
        %v2227 = vunpack.c.h.s8.bf16 %v595
        %v2228 = vunpack.c.h.s8.bf16 %v596
        %v2229 = vunpack.c.h.s8.bf16 %v597
        %v2230 = vunpack.c.h.s8.bf16 %v598
        %v2231 = vunpack.c.h.s8.bf16 %v599
        %v2232 = vunpack.c.l.s8.bf16 %v600
        %v2233 = vunpack.c.l.s8.bf16 %v601
        %v2234 = vunpack.c.l.s8.bf16 %v602
        %v2235 = vunpack.c.l.s8.bf16 %v603
        %v2236 = vunpack.c.l.s8.bf16 %v604
        %v2237 = vunpack.c.l.s8.bf16 %v605
        %v2238 = vunpack.c.l.s8.bf16 %v606
        %v2239 = vunpack.c.l.s8.bf16 %v607
        %v2240 = vunpack.c.l.s8.bf16 %v608
        %v2241 = vunpack.c.l.s8.bf16 %v609
        %v2242 = vunpack.c.l.s8.bf16 %v610
        %v2243 = vunpack.c.l.s8.bf16 %v611
        %v2244 = vunpack.c.l.s8.bf16 %v612
        %v2245 = vunpack.c.l.s8.bf16 %v613
        %v2246 = vunpack.c.l.s8.bf16 %v614
        %v2247 = vunpack.c.l.s8.bf16 %v615
        %v2248 = vunpack.c.h.s8.bf16 %v600
        %v2249 = vunpack.c.h.s8.bf16 %v601
        %v2250 = vunpack.c.h.s8.bf16 %v602
        %v2251 = vunpack.c.h.s8.bf16 %v603
        %v2252 = vunpack.c.h.s8.bf16 %v604
        %v2253 = vunpack.c.h.s8.bf16 %v605
        %v2254 = vunpack.c.h.s8.bf16 %v606
        %v2255 = vunpack.c.h.s8.bf16 %v607
        %v2256 = vunpack.c.h.s8.bf16 %v608
        %v2257 = vunpack.c.h.s8.bf16 %v609
        %v2258 = vunpack.c.h.s8.bf16 %v610
        %v2259 = vunpack.c.h.s8.bf16 %v611
        %v2260 = vunpack.c.h.s8.bf16 %v612
        %v2261 = vunpack.c.h.s8.bf16 %v613
        %v2262 = vunpack.c.h.s8.bf16 %v614
        %v2263 = vunpack.c.h.s8.bf16 %v615
        %v2264 = vunpack.c.l.s8.bf16 %v616
        %v2265 = vunpack.c.l.s8.bf16 %v617
        %v2266 = vunpack.c.l.s8.bf16 %v618
        %v2267 = vunpack.c.l.s8.bf16 %v619
        %v2268 = vunpack.c.l.s8.bf16 %v620
        %v2269 = vunpack.c.l.s8.bf16 %v621
        %v2270 = vunpack.c.l.s8.bf16 %v622
        %v2271 = vunpack.c.l.s8.bf16 %v623
        %v2272 = vunpack.c.l.s8.bf16 %v624
        %v2273 = vunpack.c.l.s8.bf16 %v625
        %v2274 = vunpack.c.l.s8.bf16 %v626
        %v2275 = vunpack.c.l.s8.bf16 %v627
        %v2276 = vunpack.c.l.s8.bf16 %v628
        %v2277 = vunpack.c.l.s8.bf16 %v629
        %v2278 = vunpack.c.l.s8.bf16 %v630
        %v2279 = vunpack.c.l.s8.bf16 %v631
        %v2280 = vunpack.c.h.s8.bf16 %v616
        %v2281 = vunpack.c.h.s8.bf16 %v617
        %v2282 = vunpack.c.h.s8.bf16 %v618
        %v2283 = vunpack.c.h.s8.bf16 %v619
        %v2284 = vunpack.c.h.s8.bf16 %v620
        %v2285 = vunpack.c.h.s8.bf16 %v621
        %v2286 = vunpack.c.h.s8.bf16 %v622
        %v2287 = vunpack.c.h.s8.bf16 %v623
        %v2288 = vunpack.c.h.s8.bf16 %v624
        %v2289 = vunpack.c.h.s8.bf16 %v625
        %v2290 = vunpack.c.h.s8.bf16 %v626
        %v2291 = vunpack.c.h.s8.bf16 %v627
        %v2292 = vunpack.c.h.s8.bf16 %v628
        %v2293 = vunpack.c.h.s8.bf16 %v629
        %v2294 = vunpack.c.h.s8.bf16 %v630
        %v2295 = vunpack.c.h.s8.bf16 %v631
        %v2296 = vunpack.c.l.s8.bf16 %v632
        %v2297 = vunpack.c.l.s8.bf16 %v633
        %v2298 = vunpack.c.l.s8.bf16 %v634
        %v2299 = vunpack.c.l.s8.bf16 %v635
        %v2300 = vunpack.c.l.s8.bf16 %v636
        %v2301 = vunpack.c.l.s8.bf16 %v637
        %v2302 = vunpack.c.l.s8.bf16 %v638
        %v2303 = vunpack.c.l.s8.bf16 %v639
        %v2304 = vunpack.c.l.s8.bf16 %v640
        %v2305 = vunpack.c.l.s8.bf16 %v641
        %v2306 = vunpack.c.l.s8.bf16 %v642
        %v2307 = vunpack.c.l.s8.bf16 %v643
        %v2308 = vunpack.c.l.s8.bf16 %v644
        %v2309 = vunpack.c.l.s8.bf16 %v645
        %v2310 = vunpack.c.l.s8.bf16 %v646
        %v2311 = vunpack.c.l.s8.bf16 %v647
        %v2312 = vunpack.c.h.s8.bf16 %v632
        %v2313 = vunpack.c.h.s8.bf16 %v633
        %v2314 = vunpack.c.h.s8.bf16 %v634
        %v2315 = vunpack.c.h.s8.bf16 %v635
        %v2316 = vunpack.c.h.s8.bf16 %v636
        %v2317 = vunpack.c.h.s8.bf16 %v637
        %v2318 = vunpack.c.h.s8.bf16 %v638
        %v2319 = vunpack.c.h.s8.bf16 %v639
        %v2320 = vunpack.c.h.s8.bf16 %v640
        %v2321 = vunpack.c.h.s8.bf16 %v641
        %v2322 = vunpack.c.h.s8.bf16 %v642
        %v2323 = vunpack.c.h.s8.bf16 %v643
        %v2324 = vunpack.c.h.s8.bf16 %v644
        %v2325 = vunpack.c.h.s8.bf16 %v645
        %v2326 = vunpack.c.h.s8.bf16 %v646
        %v2327 = vunpack.c.h.s8.bf16 %v647
        %v2328 = vunpack.c.l.s8.bf16 %v648
        %v2329 = vunpack.c.l.s8.bf16 %v649
        %v2330 = vunpack.c.l.s8.bf16 %v650
        %v2331 = vunpack.c.l.s8.bf16 %v651
        %v2332 = vunpack.c.l.s8.bf16 %v652
        %v2333 = vunpack.c.l.s8.bf16 %v653
        %v2334 = vunpack.c.l.s8.bf16 %v654
        %v2335 = vunpack.c.l.s8.bf16 %v655
        %v2336 = vunpack.c.l.s8.bf16 %v656
        %v2337 = vunpack.c.l.s8.bf16 %v657
        %v2338 = vunpack.c.l.s8.bf16 %v658
        %v2339 = vunpack.c.l.s8.bf16 %v659
        %v2340 = vunpack.c.l.s8.bf16 %v660
        %v2341 = vunpack.c.l.s8.bf16 %v661
        %v2342 = vunpack.c.l.s8.bf16 %v662
        %v2343 = vunpack.c.l.s8.bf16 %v663
        %v2344 = vunpack.c.h.s8.bf16 %v648
        %v2345 = vunpack.c.h.s8.bf16 %v649
        %v2346 = vunpack.c.h.s8.bf16 %v650
        %v2347 = vunpack.c.h.s8.bf16 %v651
        %v2348 = vunpack.c.h.s8.bf16 %v652
        %v2349 = vunpack.c.h.s8.bf16 %v653
        %v2350 = vunpack.c.h.s8.bf16 %v654
        %v2351 = vunpack.c.h.s8.bf16 %v655
        %v2352 = vunpack.c.h.s8.bf16 %v656
        %v2353 = vunpack.c.h.s8.bf16 %v657
        %v2354 = vunpack.c.h.s8.bf16 %v658
        %v2355 = vunpack.c.h.s8.bf16 %v659
        %v2356 = vunpack.c.h.s8.bf16 %v660
        %v2357 = vunpack.c.h.s8.bf16 %v661
        %v2358 = vunpack.c.h.s8.bf16 %v662
        %v2359 = vunpack.c.h.s8.bf16 %v663
        %v2360 = vunpack.c.l.s8.bf16 %v664
        %v2361 = vunpack.c.l.s8.bf16 %v665
        %v2362 = vunpack.c.l.s8.bf16 %v666
        %v2363 = vunpack.c.l.s8.bf16 %v667
        %v2364 = vunpack.c.l.s8.bf16 %v668
        %v2365 = vunpack.c.l.s8.bf16 %v669
        %v2366 = vunpack.c.l.s8.bf16 %v670
        %v2367 = vunpack.c.l.s8.bf16 %v671
        %v2368 = vunpack.c.l.s8.bf16 %v672
        %v2369 = vunpack.c.l.s8.bf16 %v673
        %v2370 = vunpack.c.l.s8.bf16 %v674
        %v2371 = vunpack.c.l.s8.bf16 %v675
        %v2372 = vunpack.c.l.s8.bf16 %v676
        %v2373 = vunpack.c.l.s8.bf16 %v677
        %v2374 = vunpack.c.l.s8.bf16 %v678
        %v2375 = vunpack.c.l.s8.bf16 %v679
        %v2376 = vunpack.c.h.s8.bf16 %v664
        %v2377 = vunpack.c.h.s8.bf16 %v665
        %v2378 = vunpack.c.h.s8.bf16 %v666
        %v2379 = vunpack.c.h.s8.bf16 %v667
        %v2380 = vunpack.c.h.s8.bf16 %v668
        %v2381 = vunpack.c.h.s8.bf16 %v669
        %v2382 = vunpack.c.h.s8.bf16 %v670
        %v2383 = vunpack.c.h.s8.bf16 %v671
        %v2384 = vunpack.c.h.s8.bf16 %v672
        %v2385 = vunpack.c.h.s8.bf16 %v673
        %v2386 = vunpack.c.h.s8.bf16 %v674
        %v2387 = vunpack.c.h.s8.bf16 %v675
        %v2388 = vunpack.c.h.s8.bf16 %v676
        %v2389 = vunpack.c.h.s8.bf16 %v677
        %v2390 = vunpack.c.h.s8.bf16 %v678
        %v2391 = vunpack.c.h.s8.bf16 %v679
        %v2392 = vunpack.c.l.s8.bf16 %v680
        %v2393 = vunpack.c.l.s8.bf16 %v681
        %v2394 = vunpack.c.l.s8.bf16 %v682
        %v2395 = vunpack.c.l.s8.bf16 %v683
        %v2396 = vunpack.c.l.s8.bf16 %v684
        %v2397 = vunpack.c.l.s8.bf16 %v685
        %v2398 = vunpack.c.l.s8.bf16 %v686
        %v2399 = vunpack.c.l.s8.bf16 %v687
        %v2400 = vunpack.c.l.s8.bf16 %v688
        %v2401 = vunpack.c.l.s8.bf16 %v689
        %v2402 = vunpack.c.l.s8.bf16 %v690
        %v2403 = vunpack.c.l.s8.bf16 %v691
        %v2404 = vunpack.c.l.s8.bf16 %v692
        %v2405 = vunpack.c.l.s8.bf16 %v693
        %v2406 = vunpack.c.l.s8.bf16 %v694
        %v2407 = vunpack.c.l.s8.bf16 %v695
        %v2408 = vunpack.c.h.s8.bf16 %v680
        %v2409 = vunpack.c.h.s8.bf16 %v681
        %v2410 = vunpack.c.h.s8.bf16 %v682
        %v2411 = vunpack.c.h.s8.bf16 %v683
        %v2412 = vunpack.c.h.s8.bf16 %v684
        %v2413 = vunpack.c.h.s8.bf16 %v685
        %v2414 = vunpack.c.h.s8.bf16 %v686
        %v2415 = vunpack.c.h.s8.bf16 %v687
        %v2416 = vunpack.c.h.s8.bf16 %v688
        %v2417 = vunpack.c.h.s8.bf16 %v689
        %v2418 = vunpack.c.h.s8.bf16 %v690
        %v2419 = vunpack.c.h.s8.bf16 %v691
        %v2420 = vunpack.c.h.s8.bf16 %v692
        %v2421 = vunpack.c.h.s8.bf16 %v693
        %v2422 = vunpack.c.h.s8.bf16 %v694
        %v2423 = vunpack.c.h.s8.bf16 %v695
        %v2424 = vunpack.c.l.s8.bf16 %v696
        %v2425 = vunpack.c.l.s8.bf16 %v697
        %v2426 = vunpack.c.l.s8.bf16 %v698
        %v2427 = vunpack.c.l.s8.bf16 %v699
        %v2428 = vunpack.c.l.s8.bf16 %v700
        %v2429 = vunpack.c.l.s8.bf16 %v701
        %v2430 = vunpack.c.l.s8.bf16 %v702
        %v2431 = vunpack.c.l.s8.bf16 %v703
        %v2432 = vunpack.c.l.s8.bf16 %v704
        %v2433 = vunpack.c.l.s8.bf16 %v705
        %v2434 = vunpack.c.l.s8.bf16 %v706
        %v2435 = vunpack.c.l.s8.bf16 %v707
        %v2436 = vunpack.c.l.s8.bf16 %v708
        %v2437 = vunpack.c.l.s8.bf16 %v709
        %v2438 = vunpack.c.l.s8.bf16 %v710
        %v2439 = vunpack.c.l.s8.bf16 %v711
        %v2440 = vunpack.c.h.s8.bf16 %v696
        %v2441 = vunpack.c.h.s8.bf16 %v697
        %v2442 = vunpack.c.h.s8.bf16 %v698
        %v2443 = vunpack.c.h.s8.bf16 %v699
        %v2444 = vunpack.c.h.s8.bf16 %v700
        %v2445 = vunpack.c.h.s8.bf16 %v701
        %v2446 = vunpack.c.h.s8.bf16 %v702
        %v2447 = vunpack.c.h.s8.bf16 %v703
        %v2448 = vunpack.c.h.s8.bf16 %v704
        %v2449 = vunpack.c.h.s8.bf16 %v705
        %v2450 = vunpack.c.h.s8.bf16 %v706
        %v2451 = vunpack.c.h.s8.bf16 %v707
        %v2452 = vunpack.c.h.s8.bf16 %v708
        %v2453 = vunpack.c.h.s8.bf16 %v709
        %v2454 = vunpack.c.h.s8.bf16 %v710
        %v2455 = vunpack.c.h.s8.bf16 %v711
        %v2456 = vunpack.c.l.s8.bf16 %v712
        %v2457 = vunpack.c.l.s8.bf16 %v713
        %v2458 = vunpack.c.l.s8.bf16 %v714
        %v2459 = vunpack.c.l.s8.bf16 %v715
        %v2460 = vunpack.c.l.s8.bf16 %v716
        %v2461 = vunpack.c.l.s8.bf16 %v717
        %v2462 = vunpack.c.l.s8.bf16 %v718
        %v2463 = vunpack.c.l.s8.bf16 %v719
        %v2464 = vunpack.c.l.s8.bf16 %v720
        %v2465 = vunpack.c.l.s8.bf16 %v721
        %v2466 = vunpack.c.l.s8.bf16 %v722
        %v2467 = vunpack.c.l.s8.bf16 %v723
        %v2468 = vunpack.c.l.s8.bf16 %v724
        %v2469 = vunpack.c.l.s8.bf16 %v725
        %v2470 = vunpack.c.l.s8.bf16 %v726
        %v2471 = vunpack.c.l.s8.bf16 %v727
        %v2472 = vunpack.c.h.s8.bf16 %v712
        %v2473 = vunpack.c.h.s8.bf16 %v713
        %v2474 = vunpack.c.h.s8.bf16 %v714
        %v2475 = vunpack.c.h.s8.bf16 %v715
        %v2476 = vunpack.c.h.s8.bf16 %v716
        %v2477 = vunpack.c.h.s8.bf16 %v717
        %v2478 = vunpack.c.h.s8.bf16 %v718
        %v2479 = vunpack.c.h.s8.bf16 %v719
        %v2480 = vunpack.c.h.s8.bf16 %v720
        %v2481 = vunpack.c.h.s8.bf16 %v721
        %v2482 = vunpack.c.h.s8.bf16 %v722
        %v2483 = vunpack.c.h.s8.bf16 %v723
        %v2484 = vunpack.c.h.s8.bf16 %v724
        %v2485 = vunpack.c.h.s8.bf16 %v725
        %v2486 = vunpack.c.h.s8.bf16 %v726
        %v2487 = vunpack.c.h.s8.bf16 %v727
        %v2488 = vunpack.c.l.s8.bf16 %v728
        %v2489 = vunpack.c.l.s8.bf16 %v729
        %v2490 = vunpack.c.l.s8.bf16 %v730
        %v2491 = vunpack.c.l.s8.bf16 %v731
        %v2492 = vunpack.c.l.s8.bf16 %v732
        %v2493 = vunpack.c.l.s8.bf16 %v733
        %v2494 = vunpack.c.l.s8.bf16 %v734
        %v2495 = vunpack.c.l.s8.bf16 %v735
        %v2496 = vunpack.c.l.s8.bf16 %v736
        %v2497 = vunpack.c.l.s8.bf16 %v737
        %v2498 = vunpack.c.l.s8.bf16 %v738
        %v2499 = vunpack.c.l.s8.bf16 %v739
        %v2500 = vunpack.c.l.s8.bf16 %v740
        %v2501 = vunpack.c.l.s8.bf16 %v741
        %v2502 = vunpack.c.l.s8.bf16 %v742
        %v2503 = vunpack.c.l.s8.bf16 %v743
        %v2504 = vunpack.c.h.s8.bf16 %v728
        %v2505 = vunpack.c.h.s8.bf16 %v729
        %v2506 = vunpack.c.h.s8.bf16 %v730
        %v2507 = vunpack.c.h.s8.bf16 %v731
        %v2508 = vunpack.c.h.s8.bf16 %v732
        %v2509 = vunpack.c.h.s8.bf16 %v733
        %v2510 = vunpack.c.h.s8.bf16 %v734
        %v2511 = vunpack.c.h.s8.bf16 %v735
        %v2512 = vunpack.c.h.s8.bf16 %v736
        %v2513 = vunpack.c.h.s8.bf16 %v737
        %v2514 = vunpack.c.h.s8.bf16 %v738
        %v2515 = vunpack.c.h.s8.bf16 %v739
        %v2516 = vunpack.c.h.s8.bf16 %v740
        %v2517 = vunpack.c.h.s8.bf16 %v741
        %v2518 = vunpack.c.h.s8.bf16 %v742
        %v2519 = vunpack.c.h.s8.bf16 %v743
        %v2520 = vunpack.c.l.s8.bf16 %v744
        %v2521 = vunpack.c.l.s8.bf16 %v745
        %v2522 = vunpack.c.l.s8.bf16 %v746
        %v2523 = vunpack.c.l.s8.bf16 %v747
        %v2524 = vunpack.c.l.s8.bf16 %v748
        %v2525 = vunpack.c.l.s8.bf16 %v749
        %v2526 = vunpack.c.l.s8.bf16 %v750
        %v2527 = vunpack.c.l.s8.bf16 %v751
        %v2528 = vunpack.c.l.s8.bf16 %v752
        %v2529 = vunpack.c.l.s8.bf16 %v753
        %v2530 = vunpack.c.l.s8.bf16 %v754
        %v2531 = vunpack.c.l.s8.bf16 %v755
        %v2532 = vunpack.c.l.s8.bf16 %v756
        %v2533 = vunpack.c.l.s8.bf16 %v757
        %v2534 = vunpack.c.l.s8.bf16 %v758
        %v2535 = vunpack.c.l.s8.bf16 %v759
        %v2536 = vunpack.c.h.s8.bf16 %v744
        %v2537 = vunpack.c.h.s8.bf16 %v745
        %v2538 = vunpack.c.h.s8.bf16 %v746
        %v2539 = vunpack.c.h.s8.bf16 %v747
        %v2540 = vunpack.c.h.s8.bf16 %v748
        %v2541 = vunpack.c.h.s8.bf16 %v749
        %v2542 = vunpack.c.h.s8.bf16 %v750
        %v2543 = vunpack.c.h.s8.bf16 %v751
        %v2544 = vunpack.c.h.s8.bf16 %v752
        %v2545 = vunpack.c.h.s8.bf16 %v753
        %v2546 = vunpack.c.h.s8.bf16 %v754
        %v2547 = vunpack.c.h.s8.bf16 %v755
        %v2548 = vunpack.c.h.s8.bf16 %v756
        %v2549 = vunpack.c.h.s8.bf16 %v757
        %v2550 = vunpack.c.h.s8.bf16 %v758
        %v2551 = vunpack.c.h.s8.bf16 %v759
        %v2552 = vunpack.c.l.s8.bf16 %v760
        %v2553 = vunpack.c.l.s8.bf16 %v761
        %v2554 = vunpack.c.l.s8.bf16 %v762
        %v2555 = vunpack.c.l.s8.bf16 %v763
        %v2556 = vunpack.c.l.s8.bf16 %v764
        %v2557 = vunpack.c.l.s8.bf16 %v765
        %v2558 = vunpack.c.l.s8.bf16 %v766
        %v2559 = vunpack.c.l.s8.bf16 %v767
        %v2560 = vunpack.c.l.s8.bf16 %v768
        %v2561 = vunpack.c.l.s8.bf16 %v769
        %v2562 = vunpack.c.l.s8.bf16 %v770
        %v2563 = vunpack.c.l.s8.bf16 %v771
        %v2564 = vunpack.c.l.s8.bf16 %v772
        %v2565 = vunpack.c.l.s8.bf16 %v773
        %v2566 = vunpack.c.l.s8.bf16 %v774
        %v2567 = vunpack.c.l.s8.bf16 %v775
        %v2568 = vunpack.c.h.s8.bf16 %v760
        %v2569 = vunpack.c.h.s8.bf16 %v761
        %v2570 = vunpack.c.h.s8.bf16 %v762
        %v2571 = vunpack.c.h.s8.bf16 %v763
        %v2572 = vunpack.c.h.s8.bf16 %v764
        %v2573 = vunpack.c.h.s8.bf16 %v765
        %v2574 = vunpack.c.h.s8.bf16 %v766
        %v2575 = vunpack.c.h.s8.bf16 %v767
        %v2576 = vunpack.c.h.s8.bf16 %v768
        %v2577 = vunpack.c.h.s8.bf16 %v769
        %v2578 = vunpack.c.h.s8.bf16 %v770
        %v2579 = vunpack.c.h.s8.bf16 %v771
        %v2580 = vunpack.c.h.s8.bf16 %v772
        %v2581 = vunpack.c.h.s8.bf16 %v773
        %v2582 = vunpack.c.h.s8.bf16 %v774
        %v2583 = vunpack.c.h.s8.bf16 %v775
        %v2584 = vunpack.c.l.s8.bf16 %v776
        %v2585 = vunpack.c.l.s8.bf16 %v777
        %v2586 = vunpack.c.l.s8.bf16 %v778
        %v2587 = vunpack.c.l.s8.bf16 %v779
        %v2588 = vunpack.c.l.s8.bf16 %v780
        %v2589 = vunpack.c.l.s8.bf16 %v781
        %v2590 = vunpack.c.l.s8.bf16 %v782
        %v2591 = vunpack.c.l.s8.bf16 %v783
        %v2592 = vunpack.c.l.s8.bf16 %v784
        %v2593 = vunpack.c.l.s8.bf16 %v785
        %v2594 = vunpack.c.l.s8.bf16 %v786
        %v2595 = vunpack.c.l.s8.bf16 %v787
        %v2596 = vunpack.c.l.s8.bf16 %v788
        %v2597 = vunpack.c.l.s8.bf16 %v789
        %v2598 = vunpack.c.l.s8.bf16 %v790
        %v2599 = vunpack.c.l.s8.bf16 %v791
        %v2600 = vunpack.c.h.s8.bf16 %v776
        %v2601 = vunpack.c.h.s8.bf16 %v777
        %v2602 = vunpack.c.h.s8.bf16 %v778
        %v2603 = vunpack.c.h.s8.bf16 %v779
        %v2604 = vunpack.c.h.s8.bf16 %v780
        %v2605 = vunpack.c.h.s8.bf16 %v781
        %v2606 = vunpack.c.h.s8.bf16 %v782
        %v2607 = vunpack.c.h.s8.bf16 %v783
        %v2608 = vunpack.c.h.s8.bf16 %v784
        %v2609 = vunpack.c.h.s8.bf16 %v785
        %v2610 = vunpack.c.h.s8.bf16 %v786
        %v2611 = vunpack.c.h.s8.bf16 %v787
        %v2612 = vunpack.c.h.s8.bf16 %v788
        %v2613 = vunpack.c.h.s8.bf16 %v789
        %v2614 = vunpack.c.h.s8.bf16 %v790
        %v2615 = vunpack.c.h.s8.bf16 %v791
        %v2616 = vunpack.c.l.s8.bf16 %v792
        %v2617 = vunpack.c.l.s8.bf16 %v793
        %v2618 = vunpack.c.l.s8.bf16 %v794
        %v2619 = vunpack.c.l.s8.bf16 %v795
        %v2620 = vunpack.c.l.s8.bf16 %v796
        %v2621 = vunpack.c.l.s8.bf16 %v797
        %v2622 = vunpack.c.l.s8.bf16 %v798
        %v2623 = vunpack.c.l.s8.bf16 %v799
        %v2624 = vunpack.c.l.s8.bf16 %v800
        %v2625 = vunpack.c.l.s8.bf16 %v801
        %v2626 = vunpack.c.l.s8.bf16 %v802
        %v2627 = vunpack.c.l.s8.bf16 %v803
        %v2628 = vunpack.c.l.s8.bf16 %v804
        %v2629 = vunpack.c.l.s8.bf16 %v805
        %v2630 = vunpack.c.l.s8.bf16 %v806
        %v2631 = vunpack.c.l.s8.bf16 %v807
        %v2632 = vunpack.c.h.s8.bf16 %v792
        %v2633 = vunpack.c.h.s8.bf16 %v793
        %v2634 = vunpack.c.h.s8.bf16 %v794
        %v2635 = vunpack.c.h.s8.bf16 %v795
        %v2636 = vunpack.c.h.s8.bf16 %v796
        %v2637 = vunpack.c.h.s8.bf16 %v797
        %v2638 = vunpack.c.h.s8.bf16 %v798
        %v2639 = vunpack.c.h.s8.bf16 %v799
        %v2640 = vunpack.c.h.s8.bf16 %v800
        %v2641 = vunpack.c.h.s8.bf16 %v801
        %v2642 = vunpack.c.h.s8.bf16 %v802
        %v2643 = vunpack.c.h.s8.bf16 %v803
        %v2644 = vunpack.c.h.s8.bf16 %v804
        %v2645 = vunpack.c.h.s8.bf16 %v805
        %v2646 = vunpack.c.h.s8.bf16 %v806
        %v2647 = vunpack.c.h.s8.bf16 %v807
        %v2648 = vunpack.c.l.s8.bf16 %v808
        %v2649 = vunpack.c.l.s8.bf16 %v809
        %v2650 = vunpack.c.l.s8.bf16 %v810
        %v2651 = vunpack.c.l.s8.bf16 %v811
        %v2652 = vunpack.c.l.s8.bf16 %v812
        %v2653 = vunpack.c.l.s8.bf16 %v813
        %v2654 = vunpack.c.l.s8.bf16 %v814
        %v2655 = vunpack.c.l.s8.bf16 %v815
        %v2656 = vunpack.c.l.s8.bf16 %v816
        %v2657 = vunpack.c.l.s8.bf16 %v817
        %v2658 = vunpack.c.l.s8.bf16 %v818
        %v2659 = vunpack.c.l.s8.bf16 %v819
        %v2660 = vunpack.c.l.s8.bf16 %v820
        %v2661 = vunpack.c.l.s8.bf16 %v821
        %v2662 = vunpack.c.l.s8.bf16 %v822
        %v2663 = vunpack.c.l.s8.bf16 %v823
        %v2664 = vunpack.c.h.s8.bf16 %v808
        %v2665 = vunpack.c.h.s8.bf16 %v809
        %v2666 = vunpack.c.h.s8.bf16 %v810
        %v2667 = vunpack.c.h.s8.bf16 %v811
        %v2668 = vunpack.c.h.s8.bf16 %v812
        %v2669 = vunpack.c.h.s8.bf16 %v813
        %v2670 = vunpack.c.h.s8.bf16 %v814
        %v2671 = vunpack.c.h.s8.bf16 %v815
        %v2672 = vunpack.c.h.s8.bf16 %v816
        %v2673 = vunpack.c.h.s8.bf16 %v817
        %v2674 = vunpack.c.h.s8.bf16 %v818
        %v2675 = vunpack.c.h.s8.bf16 %v819
        %v2676 = vunpack.c.h.s8.bf16 %v820
        %v2677 = vunpack.c.h.s8.bf16 %v821
        %v2678 = vunpack.c.h.s8.bf16 %v822
        %v2679 = vunpack.c.h.s8.bf16 %v823
        %v2680 = vunpack.c.l.s8.bf16 %v824
        %v2681 = vunpack.c.l.s8.bf16 %v825
        %v2682 = vunpack.c.l.s8.bf16 %v826
        %v2683 = vunpack.c.l.s8.bf16 %v827
        %v2684 = vunpack.c.l.s8.bf16 %v828
        %v2685 = vunpack.c.l.s8.bf16 %v829
        %v2686 = vunpack.c.l.s8.bf16 %v830
        %v2687 = vunpack.c.l.s8.bf16 %v831
        %v2688 = vunpack.c.l.s8.bf16 %v832
        %v2689 = vunpack.c.l.s8.bf16 %v833
        %v2690 = vunpack.c.l.s8.bf16 %v834
        %v2691 = vunpack.c.l.s8.bf16 %v835
        %v2692 = vunpack.c.l.s8.bf16 %v836
        %v2693 = vunpack.c.l.s8.bf16 %v837
        %v2694 = vunpack.c.l.s8.bf16 %v838
        %v2695 = vunpack.c.l.s8.bf16 %v839
        %v2696 = vunpack.c.h.s8.bf16 %v824
        %v2697 = vunpack.c.h.s8.bf16 %v825
        %v2698 = vunpack.c.h.s8.bf16 %v826
        %v2699 = vunpack.c.h.s8.bf16 %v827
        %v2700 = vunpack.c.h.s8.bf16 %v828
        %v2701 = vunpack.c.h.s8.bf16 %v829
        %v2702 = vunpack.c.h.s8.bf16 %v830
        %v2703 = vunpack.c.h.s8.bf16 %v831
        %v2704 = vunpack.c.h.s8.bf16 %v832
        %v2705 = vunpack.c.h.s8.bf16 %v833
        %v2706 = vunpack.c.h.s8.bf16 %v834
        %v2707 = vunpack.c.h.s8.bf16 %v835
        %v2708 = vunpack.c.h.s8.bf16 %v836
        %v2709 = vunpack.c.h.s8.bf16 %v837
        %v2710 = vunpack.c.h.s8.bf16 %v838
        %v2711 = vunpack.c.h.s8.bf16 %v839
        %v2712 = vunpack.c.l.s8.bf16 %v840
        %v2713 = vunpack.c.l.s8.bf16 %v841
        %v2714 = vunpack.c.l.s8.bf16 %v842
        %v2715 = vunpack.c.l.s8.bf16 %v843
        %v2716 = vunpack.c.l.s8.bf16 %v844
        %v2717 = vunpack.c.l.s8.bf16 %v845
        %v2718 = vunpack.c.l.s8.bf16 %v846
        %v2719 = vunpack.c.l.s8.bf16 %v847
        %v2720 = vunpack.c.l.s8.bf16 %v848
        %v2721 = vunpack.c.l.s8.bf16 %v849
        %v2722 = vunpack.c.l.s8.bf16 %v850
        %v2723 = vunpack.c.l.s8.bf16 %v851
        %v2724 = vunpack.c.l.s8.bf16 %v852
        %v2725 = vunpack.c.l.s8.bf16 %v853
        %v2726 = vunpack.c.l.s8.bf16 %v854
        %v2727 = vunpack.c.l.s8.bf16 %v855
        %v2728 = vunpack.c.h.s8.bf16 %v840
        %v2729 = vunpack.c.h.s8.bf16 %v841
        %v2730 = vunpack.c.h.s8.bf16 %v842
        %v2731 = vunpack.c.h.s8.bf16 %v843
        %v2732 = vunpack.c.h.s8.bf16 %v844
        %v2733 = vunpack.c.h.s8.bf16 %v845
        %v2734 = vunpack.c.h.s8.bf16 %v846
        %v2735 = vunpack.c.h.s8.bf16 %v847
        %v2736 = vunpack.c.h.s8.bf16 %v848
        %v2737 = vunpack.c.h.s8.bf16 %v849
        %v2738 = vunpack.c.h.s8.bf16 %v850
        %v2739 = vunpack.c.h.s8.bf16 %v851
        %v2740 = vunpack.c.h.s8.bf16 %v852
        %v2741 = vunpack.c.h.s8.bf16 %v853
        %v2742 = vunpack.c.h.s8.bf16 %v854
        %v2743 = vunpack.c.h.s8.bf16 %v855
        %v2744 = vunpack.c.l.s8.bf16 %v856
        %v2745 = vunpack.c.l.s8.bf16 %v857
        %v2746 = vunpack.c.l.s8.bf16 %v858
        %v2747 = vunpack.c.l.s8.bf16 %v859
        %v2748 = vunpack.c.l.s8.bf16 %v860
        %v2749 = vunpack.c.l.s8.bf16 %v861
        %v2750 = vunpack.c.l.s8.bf16 %v862
        %v2751 = vunpack.c.l.s8.bf16 %v863
        %v2752 = vunpack.c.l.s8.bf16 %v864
        %v2753 = vunpack.c.l.s8.bf16 %v865
        %v2754 = vunpack.c.l.s8.bf16 %v866
        %v2755 = vunpack.c.l.s8.bf16 %v867
        %v2756 = vunpack.c.l.s8.bf16 %v868
        %v2757 = vunpack.c.l.s8.bf16 %v869
        %v2758 = vunpack.c.l.s8.bf16 %v870
        %v2759 = vunpack.c.l.s8.bf16 %v871
        %v2760 = vunpack.c.h.s8.bf16 %v856
        %v2761 = vunpack.c.h.s8.bf16 %v857
        %v2762 = vunpack.c.h.s8.bf16 %v858
        %v2763 = vunpack.c.h.s8.bf16 %v859
        %v2764 = vunpack.c.h.s8.bf16 %v860
        %v2765 = vunpack.c.h.s8.bf16 %v861
        %v2766 = vunpack.c.h.s8.bf16 %v862
        %v2767 = vunpack.c.h.s8.bf16 %v863
        %v2768 = vunpack.c.h.s8.bf16 %v864
        %v2769 = vunpack.c.h.s8.bf16 %v865
        %v2770 = vunpack.c.h.s8.bf16 %v866
        %v2771 = vunpack.c.h.s8.bf16 %v867
        %v2772 = vunpack.c.h.s8.bf16 %v868
        %v2773 = vunpack.c.h.s8.bf16 %v869
        %v2774 = vunpack.c.h.s8.bf16 %v870
        %v2775 = vunpack.c.h.s8.bf16 %v871
        %v2776 = vunpack.c.l.s8.bf16 %v872
        %v2777 = vunpack.c.l.s8.bf16 %v873
        %v2778 = vunpack.c.l.s8.bf16 %v874
        %v2779 = vunpack.c.l.s8.bf16 %v875
        %v2780 = vunpack.c.l.s8.bf16 %v876
        %v2781 = vunpack.c.l.s8.bf16 %v877
        %v2782 = vunpack.c.l.s8.bf16 %v878
        %v2783 = vunpack.c.l.s8.bf16 %v879
        %v2784 = vunpack.c.l.s8.bf16 %v880
        %v2785 = vunpack.c.l.s8.bf16 %v881
        %v2786 = vunpack.c.l.s8.bf16 %v882
        %v2787 = vunpack.c.l.s8.bf16 %v883
        %v2788 = vunpack.c.l.s8.bf16 %v884
        %v2789 = vunpack.c.l.s8.bf16 %v885
        %v2790 = vunpack.c.l.s8.bf16 %v886
        %v2791 = vunpack.c.l.s8.bf16 %v887
        %v2792 = vunpack.c.h.s8.bf16 %v872
        %v2793 = vunpack.c.h.s8.bf16 %v873
        %v2794 = vunpack.c.h.s8.bf16 %v874
        %v2795 = vunpack.c.h.s8.bf16 %v875
        %v2796 = vunpack.c.h.s8.bf16 %v876
        %v2797 = vunpack.c.h.s8.bf16 %v877
        %v2798 = vunpack.c.h.s8.bf16 %v878
        %v2799 = vunpack.c.h.s8.bf16 %v879
        %v2800 = vunpack.c.h.s8.bf16 %v880
        %v2801 = vunpack.c.h.s8.bf16 %v881
        %v2802 = vunpack.c.h.s8.bf16 %v882
        %v2803 = vunpack.c.h.s8.bf16 %v883
        %v2804 = vunpack.c.h.s8.bf16 %v884
        %v2805 = vunpack.c.h.s8.bf16 %v885
        %v2806 = vunpack.c.h.s8.bf16 %v886
        %v2807 = vunpack.c.h.s8.bf16 %v887
        %v2808 = vunpack.c.l.s8.bf16 %v888
        %v2809 = vunpack.c.l.s8.bf16 %v889
        %v2810 = vunpack.c.l.s8.bf16 %v890
        %v2811 = vunpack.c.l.s8.bf16 %v891
        %v2812 = vunpack.c.l.s8.bf16 %v892
        %v2813 = vunpack.c.l.s8.bf16 %v893
        %v2814 = vunpack.c.l.s8.bf16 %v894
        %v2815 = vunpack.c.l.s8.bf16 %v895
        %v2816 = vunpack.c.l.s8.bf16 %v896
        %v2817 = vunpack.c.l.s8.bf16 %v897
        %v2818 = vunpack.c.l.s8.bf16 %v898
        %v2819 = vunpack.c.l.s8.bf16 %v899
        %v2820 = vunpack.c.l.s8.bf16 %v900
        %v2821 = vunpack.c.l.s8.bf16 %v901
        %v2822 = vunpack.c.l.s8.bf16 %v902
        %v2823 = vunpack.c.l.s8.bf16 %v903
        %v2824 = vunpack.c.h.s8.bf16 %v888
        %v2825 = vunpack.c.h.s8.bf16 %v889
        %v2826 = vunpack.c.h.s8.bf16 %v890
        %v2827 = vunpack.c.h.s8.bf16 %v891
        %v2828 = vunpack.c.h.s8.bf16 %v892
        %v2829 = vunpack.c.h.s8.bf16 %v893
        %v2830 = vunpack.c.h.s8.bf16 %v894
        %v2831 = vunpack.c.h.s8.bf16 %v895
        %v2832 = vunpack.c.h.s8.bf16 %v896
        %v2833 = vunpack.c.h.s8.bf16 %v897
        %v2834 = vunpack.c.h.s8.bf16 %v898
        %v2835 = vunpack.c.h.s8.bf16 %v899
        %v2836 = vunpack.c.h.s8.bf16 %v900
        %v2837 = vunpack.c.h.s8.bf16 %v901
        %v2838 = vunpack.c.h.s8.bf16 %v902
        %v2839 = vunpack.c.h.s8.bf16 %v903
        %v2840 = vunpack.c.l.s8.bf16 %v904
        %v2841 = vunpack.c.l.s8.bf16 %v905
        %v2842 = vunpack.c.l.s8.bf16 %v906
        %v2843 = vunpack.c.l.s8.bf16 %v907
        %v2844 = vunpack.c.l.s8.bf16 %v908
        %v2845 = vunpack.c.l.s8.bf16 %v909
        %v2846 = vunpack.c.l.s8.bf16 %v910
        %v2847 = vunpack.c.l.s8.bf16 %v911
        %v2848 = vunpack.c.l.s8.bf16 %v912
        %v2849 = vunpack.c.l.s8.bf16 %v913
        %v2850 = vunpack.c.l.s8.bf16 %v914
        %v2851 = vunpack.c.l.s8.bf16 %v915
        %v2852 = vunpack.c.l.s8.bf16 %v916
        %v2853 = vunpack.c.l.s8.bf16 %v917
        %v2854 = vunpack.c.l.s8.bf16 %v918
        %v2855 = vunpack.c.l.s8.bf16 %v919
        %v2856 = vunpack.c.h.s8.bf16 %v904
        %v2857 = vunpack.c.h.s8.bf16 %v905
        %v2858 = vunpack.c.h.s8.bf16 %v906
        %v2859 = vunpack.c.h.s8.bf16 %v907
        %v2860 = vunpack.c.h.s8.bf16 %v908
        %v2861 = vunpack.c.h.s8.bf16 %v909
        %v2862 = vunpack.c.h.s8.bf16 %v910
        %v2863 = vunpack.c.h.s8.bf16 %v911
        %v2864 = vunpack.c.h.s8.bf16 %v912
        %v2865 = vunpack.c.h.s8.bf16 %v913
        %v2866 = vunpack.c.h.s8.bf16 %v914
        %v2867 = vunpack.c.h.s8.bf16 %v915
        %v2868 = vunpack.c.h.s8.bf16 %v916
        %v2869 = vunpack.c.h.s8.bf16 %v917
        %v2870 = vunpack.c.h.s8.bf16 %v918
        %v2871 = vunpack.c.h.s8.bf16 %v919
        %v2872 = vunpack.c.l.s8.bf16 %v920
        %v2873 = vunpack.c.l.s8.bf16 %v921
        %v2874 = vunpack.c.l.s8.bf16 %v922
        %v2875 = vunpack.c.l.s8.bf16 %v923
        %v2876 = vunpack.c.l.s8.bf16 %v924
        %v2877 = vunpack.c.l.s8.bf16 %v925
        %v2878 = vunpack.c.l.s8.bf16 %v926
        %v2879 = vunpack.c.l.s8.bf16 %v927
        %v2880 = vunpack.c.l.s8.bf16 %v928
        %v2881 = vunpack.c.l.s8.bf16 %v929
        %v2882 = vunpack.c.l.s8.bf16 %v930
        %v2883 = vunpack.c.l.s8.bf16 %v931
        %v2884 = vunpack.c.l.s8.bf16 %v932
        %v2885 = vunpack.c.l.s8.bf16 %v933
        %v2886 = vunpack.c.l.s8.bf16 %v934
        %v2887 = vunpack.c.l.s8.bf16 %v935
        %v2888 = vunpack.c.h.s8.bf16 %v920
        %v2889 = vunpack.c.h.s8.bf16 %v921
        %v2890 = vunpack.c.h.s8.bf16 %v922
        %v2891 = vunpack.c.h.s8.bf16 %v923
        %v2892 = vunpack.c.h.s8.bf16 %v924
        %v2893 = vunpack.c.h.s8.bf16 %v925
        %v2894 = vunpack.c.h.s8.bf16 %v926
        %v2895 = vunpack.c.h.s8.bf16 %v927
        %v2896 = vunpack.c.h.s8.bf16 %v928
        %v2897 = vunpack.c.h.s8.bf16 %v929
        %v2898 = vunpack.c.h.s8.bf16 %v930
        %v2899 = vunpack.c.h.s8.bf16 %v931
        %v2900 = vunpack.c.h.s8.bf16 %v932
        %v2901 = vunpack.c.h.s8.bf16 %v933
        %v2902 = vunpack.c.h.s8.bf16 %v934
        %v2903 = vunpack.c.h.s8.bf16 %v935
        %v2904 = vunpack.c.l.s8.bf16 %v936
        %v2905 = vunpack.c.l.s8.bf16 %v937
        %v2906 = vunpack.c.l.s8.bf16 %v938
        %v2907 = vunpack.c.l.s8.bf16 %v939
        %v2908 = vunpack.c.l.s8.bf16 %v940
        %v2909 = vunpack.c.l.s8.bf16 %v941
        %v2910 = vunpack.c.l.s8.bf16 %v942
        %v2911 = vunpack.c.l.s8.bf16 %v943
        %v2912 = vunpack.c.l.s8.bf16 %v944
        %v2913 = vunpack.c.l.s8.bf16 %v945
        %v2914 = vunpack.c.l.s8.bf16 %v946
        %v2915 = vunpack.c.l.s8.bf16 %v947
        %v2916 = vunpack.c.l.s8.bf16 %v948
        %v2917 = vunpack.c.l.s8.bf16 %v949
        %v2918 = vunpack.c.l.s8.bf16 %v950
        %v2919 = vunpack.c.l.s8.bf16 %v951
        %v2920 = vunpack.c.h.s8.bf16 %v936
        %v2921 = vunpack.c.h.s8.bf16 %v937
        %v2922 = vunpack.c.h.s8.bf16 %v938
        %v2923 = vunpack.c.h.s8.bf16 %v939
        %v2924 = vunpack.c.h.s8.bf16 %v940
        %v2925 = vunpack.c.h.s8.bf16 %v941
        %v2926 = vunpack.c.h.s8.bf16 %v942
        %v2927 = vunpack.c.h.s8.bf16 %v943
        %v2928 = vunpack.c.h.s8.bf16 %v944
        %v2929 = vunpack.c.h.s8.bf16 %v945
        %v2930 = vunpack.c.h.s8.bf16 %v946
        %v2931 = vunpack.c.h.s8.bf16 %v947
        %v2932 = vunpack.c.h.s8.bf16 %v948
        %v2933 = vunpack.c.h.s8.bf16 %v949
        %v2934 = vunpack.c.h.s8.bf16 %v950
        %v2935 = vunpack.c.h.s8.bf16 %v951
        %v2936 = vunpack.c.l.s8.bf16 %v952
        %v2937 = vunpack.c.l.s8.bf16 %v953
        %v2938 = vunpack.c.l.s8.bf16 %v954
        %v2939 = vunpack.c.l.s8.bf16 %v955
        %v2940 = vunpack.c.l.s8.bf16 %v956
        %v2941 = vunpack.c.l.s8.bf16 %v957
        %v2942 = vunpack.c.l.s8.bf16 %v958
        %v2943 = vunpack.c.l.s8.bf16 %v959
        %v2944 = vunpack.c.l.s8.bf16 %v960
        %v2945 = vunpack.c.l.s8.bf16 %v961
        %v2946 = vunpack.c.l.s8.bf16 %v962
        %v2947 = vunpack.c.l.s8.bf16 %v963
        %v2948 = vunpack.c.l.s8.bf16 %v964
        %v2949 = vunpack.c.l.s8.bf16 %v965
        %v2950 = vunpack.c.l.s8.bf16 %v966
        %v2951 = vunpack.c.l.s8.bf16 %v967
        %v2952 = vunpack.c.h.s8.bf16 %v952
        %v2953 = vunpack.c.h.s8.bf16 %v953
        %v2954 = vunpack.c.h.s8.bf16 %v954
        %v2955 = vunpack.c.h.s8.bf16 %v955
        %v2956 = vunpack.c.h.s8.bf16 %v956
        %v2957 = vunpack.c.h.s8.bf16 %v957
        %v2958 = vunpack.c.h.s8.bf16 %v958
        %v2959 = vunpack.c.h.s8.bf16 %v959
        %v2960 = vunpack.c.h.s8.bf16 %v960
        %v2961 = vunpack.c.h.s8.bf16 %v961
        %v2962 = vunpack.c.h.s8.bf16 %v962
        %v2963 = vunpack.c.h.s8.bf16 %v963
        %v2964 = vunpack.c.h.s8.bf16 %v964
        %v2965 = vunpack.c.h.s8.bf16 %v965
        %v2966 = vunpack.c.h.s8.bf16 %v966
        %v2967 = vunpack.c.h.s8.bf16 %v967
        %v2968 = vunpack.c.l.s8.bf16 %v968
        %v2969 = vunpack.c.l.s8.bf16 %v969
        %v2970 = vunpack.c.l.s8.bf16 %v970
        %v2971 = vunpack.c.l.s8.bf16 %v971
        %v2972 = vunpack.c.l.s8.bf16 %v972
        %v2973 = vunpack.c.l.s8.bf16 %v973
        %v2974 = vunpack.c.l.s8.bf16 %v974
        %v2975 = vunpack.c.l.s8.bf16 %v975
        %v2976 = vunpack.c.l.s8.bf16 %v976
        %v2977 = vunpack.c.l.s8.bf16 %v977
        %v2978 = vunpack.c.l.s8.bf16 %v978
        %v2979 = vunpack.c.l.s8.bf16 %v979
        %v2980 = vunpack.c.l.s8.bf16 %v980
        %v2981 = vunpack.c.l.s8.bf16 %v981
        %v2982 = vunpack.c.l.s8.bf16 %v982
        %v2983 = vunpack.c.l.s8.bf16 %v983
        %v2984 = vunpack.c.h.s8.bf16 %v968
        %v2985 = vunpack.c.h.s8.bf16 %v969
        %v2986 = vunpack.c.h.s8.bf16 %v970
        %v2987 = vunpack.c.h.s8.bf16 %v971
        %v2988 = vunpack.c.h.s8.bf16 %v972
        %v2989 = vunpack.c.h.s8.bf16 %v973
        %v2990 = vunpack.c.h.s8.bf16 %v974
        %v2991 = vunpack.c.h.s8.bf16 %v975
        %v2992 = vunpack.c.h.s8.bf16 %v976
        %v2993 = vunpack.c.h.s8.bf16 %v977
        %v2994 = vunpack.c.h.s8.bf16 %v978
        %v2995 = vunpack.c.h.s8.bf16 %v979
        %v2996 = vunpack.c.h.s8.bf16 %v980
        %v2997 = vunpack.c.h.s8.bf16 %v981
        %v2998 = vunpack.c.h.s8.bf16 %v982
        %v2999 = vunpack.c.h.s8.bf16 %v983
        %v3000 = vunpack.c.l.s8.bf16 %v984
        %v3001 = vunpack.c.l.s8.bf16 %v985
        %v3002 = vunpack.c.l.s8.bf16 %v986
        %v3003 = vunpack.c.l.s8.bf16 %v987
        %v3004 = vunpack.c.l.s8.bf16 %v988
        %v3005 = vunpack.c.l.s8.bf16 %v989
        %v3006 = vunpack.c.l.s8.bf16 %v990
        %v3007 = vunpack.c.l.s8.bf16 %v991
        %v3008 = vunpack.c.l.s8.bf16 %v992
        %v3009 = vunpack.c.l.s8.bf16 %v993
        %v3010 = vunpack.c.l.s8.bf16 %v994
        %v3011 = vunpack.c.l.s8.bf16 %v995
        %v3012 = vunpack.c.l.s8.bf16 %v996
        %v3013 = vunpack.c.l.s8.bf16 %v997
        %v3014 = vunpack.c.l.s8.bf16 %v998
        %v3015 = vunpack.c.l.s8.bf16 %v999
        %v3016 = vunpack.c.h.s8.bf16 %v984
        %v3017 = vunpack.c.h.s8.bf16 %v985
        %v3018 = vunpack.c.h.s8.bf16 %v986
        %v3019 = vunpack.c.h.s8.bf16 %v987
        %v3020 = vunpack.c.h.s8.bf16 %v988
        %v3021 = vunpack.c.h.s8.bf16 %v989
        %v3022 = vunpack.c.h.s8.bf16 %v990
        %v3023 = vunpack.c.h.s8.bf16 %v991
        %v3024 = vunpack.c.h.s8.bf16 %v992
        %v3025 = vunpack.c.h.s8.bf16 %v993
        %v3026 = vunpack.c.h.s8.bf16 %v994
        %v3027 = vunpack.c.h.s8.bf16 %v995
        %v3028 = vunpack.c.h.s8.bf16 %v996
        %v3029 = vunpack.c.h.s8.bf16 %v997
        %v3030 = vunpack.c.h.s8.bf16 %v998
        %v3031 = vunpack.c.h.s8.bf16 %v999
        %v3032 = vunpack.c.l.s8.bf16 %v1000
        %v3033 = vunpack.c.l.s8.bf16 %v1001
        %v3034 = vunpack.c.l.s8.bf16 %v1002
        %v3035 = vunpack.c.l.s8.bf16 %v1003
        %v3036 = vunpack.c.l.s8.bf16 %v1004
        %v3037 = vunpack.c.l.s8.bf16 %v1005
        %v3038 = vunpack.c.l.s8.bf16 %v1006
        %v3039 = vunpack.c.l.s8.bf16 %v1007
        %v3040 = vunpack.c.l.s8.bf16 %v1008
        %v3041 = vunpack.c.l.s8.bf16 %v1009
        %v3042 = vunpack.c.l.s8.bf16 %v1010
        %v3043 = vunpack.c.l.s8.bf16 %v1011
        %v3044 = vunpack.c.l.s8.bf16 %v1012
        %v3045 = vunpack.c.l.s8.bf16 %v1013
        %v3046 = vunpack.c.l.s8.bf16 %v1014
        %v3047 = vunpack.c.l.s8.bf16 %v1015
        %v3048 = vunpack.c.h.s8.bf16 %v1000
        %v3049 = vunpack.c.h.s8.bf16 %v1001
        %v3050 = vunpack.c.h.s8.bf16 %v1002
        %v3051 = vunpack.c.h.s8.bf16 %v1003
        %v3052 = vunpack.c.h.s8.bf16 %v1004
        %v3053 = vunpack.c.h.s8.bf16 %v1005
        %v3054 = vunpack.c.h.s8.bf16 %v1006
        %v3055 = vunpack.c.h.s8.bf16 %v1007
        %v3056 = vunpack.c.h.s8.bf16 %v1008
        %v3057 = vunpack.c.h.s8.bf16 %v1009
        %v3058 = vunpack.c.h.s8.bf16 %v1010
        %v3059 = vunpack.c.h.s8.bf16 %v1011
        %v3060 = vunpack.c.h.s8.bf16 %v1012
        %v3061 = vunpack.c.h.s8.bf16 %v1013
        %v3062 = vunpack.c.h.s8.bf16 %v1014
        %v3063 = vunpack.c.h.s8.bf16 %v1015
        %v3064 = vunpack.c.l.s8.bf16 %v1016
        %v3065 = vunpack.c.l.s8.bf16 %v1017
        %v3066 = vunpack.c.l.s8.bf16 %v1018
        %v3067 = vunpack.c.l.s8.bf16 %v1019
        %v3068 = vunpack.c.l.s8.bf16 %v1020
        %v3069 = vunpack.c.l.s8.bf16 %v1021
        %v3070 = vunpack.c.l.s8.bf16 %v1022
        %v3071 = vunpack.c.l.s8.bf16 %v1023
        %v3072 = vunpack.c.l.s8.bf16 %v1024
        %v3073 = vunpack.c.l.s8.bf16 %v1025
        %v3074 = vunpack.c.l.s8.bf16 %v1026
        %v3075 = vunpack.c.l.s8.bf16 %v1027
        %v3076 = vunpack.c.l.s8.bf16 %v1028
        %v3077 = vunpack.c.l.s8.bf16 %v1029
        %v3078 = vunpack.c.l.s8.bf16 %v1030
        %v3079 = vunpack.c.l.s8.bf16 %v1031
        %v3080 = vunpack.c.h.s8.bf16 %v1016
        %v3081 = vunpack.c.h.s8.bf16 %v1017
        %v3082 = vunpack.c.h.s8.bf16 %v1018
        %v3083 = vunpack.c.h.s8.bf16 %v1019
        %v3084 = vunpack.c.h.s8.bf16 %v1020
        %v3085 = vunpack.c.h.s8.bf16 %v1021
        %v3086 = vunpack.c.h.s8.bf16 %v1022
        %v3087 = vunpack.c.h.s8.bf16 %v1023
        %v3088 = vunpack.c.h.s8.bf16 %v1024
        %v3089 = vunpack.c.h.s8.bf16 %v1025
        %v3090 = vunpack.c.h.s8.bf16 %v1026
        %v3091 = vunpack.c.h.s8.bf16 %v1027
        %v3092 = vunpack.c.h.s8.bf16 %v1028
        %v3093 = vunpack.c.h.s8.bf16 %v1029
        %v3094 = vunpack.c.h.s8.bf16 %v1030
        %v3095 = vunpack.c.h.s8.bf16 %v1031
        %v3096 = vunpack.c.l.s8.bf16 %v1032
        %v3097 = vunpack.c.l.s8.bf16 %v1033
        %v3098 = vunpack.c.l.s8.bf16 %v1034
        %v3099 = vunpack.c.l.s8.bf16 %v1035
        %v3100 = vunpack.c.l.s8.bf16 %v1036
        %v3101 = vunpack.c.l.s8.bf16 %v1037
        %v3102 = vunpack.c.l.s8.bf16 %v1038
        %v3103 = vunpack.c.l.s8.bf16 %v1039
        %v3104 = vunpack.c.l.s8.bf16 %v1040
        %v3105 = vunpack.c.l.s8.bf16 %v1041
        %v3106 = vunpack.c.l.s8.bf16 %v1042
        %v3107 = vunpack.c.l.s8.bf16 %v1043
        %v3108 = vunpack.c.l.s8.bf16 %v1044
        %v3109 = vunpack.c.l.s8.bf16 %v1045
        %v3110 = vunpack.c.l.s8.bf16 %v1046
        %v3111 = vunpack.c.l.s8.bf16 %v1047
        %v3112 = vunpack.c.h.s8.bf16 %v1032
        %v3113 = vunpack.c.h.s8.bf16 %v1033
        %v3114 = vunpack.c.h.s8.bf16 %v1034
        %v3115 = vunpack.c.h.s8.bf16 %v1035
        %v3116 = vunpack.c.h.s8.bf16 %v1036
        %v3117 = vunpack.c.h.s8.bf16 %v1037
        %v3118 = vunpack.c.h.s8.bf16 %v1038
        %v3119 = vunpack.c.h.s8.bf16 %v1039
        %v3120 = vunpack.c.h.s8.bf16 %v1040
        %v3121 = vunpack.c.h.s8.bf16 %v1041
        %v3122 = vunpack.c.h.s8.bf16 %v1042
        %v3123 = vunpack.c.h.s8.bf16 %v1043
        %v3124 = vunpack.c.h.s8.bf16 %v1044
        %v3125 = vunpack.c.h.s8.bf16 %v1045
        %v3126 = vunpack.c.h.s8.bf16 %v1046
        %v3127 = vunpack.c.h.s8.bf16 %v1047
        %v3128 = vunpack.c.l.s8.bf16 %v1048
        %v3129 = vunpack.c.l.s8.bf16 %v1049
        %v3130 = vunpack.c.l.s8.bf16 %v1050
        %v3131 = vunpack.c.l.s8.bf16 %v1051
        %v3132 = vunpack.c.l.s8.bf16 %v1052
        %v3133 = vunpack.c.l.s8.bf16 %v1053
        %v3134 = vunpack.c.l.s8.bf16 %v1054
        %v3135 = vunpack.c.l.s8.bf16 %v1055
        %v3136 = vunpack.c.l.s8.bf16 %v1056
        %v3137 = vunpack.c.l.s8.bf16 %v1057
        %v3138 = vunpack.c.l.s8.bf16 %v1058
        %v3139 = vunpack.c.l.s8.bf16 %v1059
        %v3140 = vunpack.c.l.s8.bf16 %v1060
        %v3141 = vunpack.c.l.s8.bf16 %v1061
        %v3142 = vunpack.c.l.s8.bf16 %v1062
        %v3143 = vunpack.c.l.s8.bf16 %v1063
        %v3144 = vunpack.c.h.s8.bf16 %v1048
        %v3145 = vunpack.c.h.s8.bf16 %v1049
        %v3146 = vunpack.c.h.s8.bf16 %v1050
        %v3147 = vunpack.c.h.s8.bf16 %v1051
        %v3148 = vunpack.c.h.s8.bf16 %v1052
        %v3149 = vunpack.c.h.s8.bf16 %v1053
        %v3150 = vunpack.c.h.s8.bf16 %v1054
        %v3151 = vunpack.c.h.s8.bf16 %v1055
        %v3152 = vunpack.c.h.s8.bf16 %v1056
        %v3153 = vunpack.c.h.s8.bf16 %v1057
        %v3154 = vunpack.c.h.s8.bf16 %v1058
        %v3155 = vunpack.c.h.s8.bf16 %v1059
        %v3156 = vunpack.c.h.s8.bf16 %v1060
        %v3157 = vunpack.c.h.s8.bf16 %v1061
        %v3158 = vunpack.c.h.s8.bf16 %v1062
        %v3159 = vunpack.c.h.s8.bf16 %v1063
        %v3160 = vunpack.c.l.s8.bf16 %v1064
        %v3161 = vunpack.c.l.s8.bf16 %v1065
        %v3162 = vunpack.c.l.s8.bf16 %v1066
        %v3163 = vunpack.c.l.s8.bf16 %v1067
        %v3164 = vunpack.c.l.s8.bf16 %v1068
        %v3165 = vunpack.c.l.s8.bf16 %v1069
        %v3166 = vunpack.c.l.s8.bf16 %v1070
        %v3167 = vunpack.c.l.s8.bf16 %v1071
        %v3168 = vunpack.c.l.s8.bf16 %v1072
        %v3169 = vunpack.c.l.s8.bf16 %v1073
        %v3170 = vunpack.c.l.s8.bf16 %v1074
        %v3171 = vunpack.c.l.s8.bf16 %v1075
        %v3172 = vunpack.c.l.s8.bf16 %v1076
        %v3173 = vunpack.c.l.s8.bf16 %v1077
        %v3174 = vunpack.c.l.s8.bf16 %v1078
        %v3175 = vunpack.c.l.s8.bf16 %v1079
        %v3176 = vunpack.c.h.s8.bf16 %v1064
        %v3177 = vunpack.c.h.s8.bf16 %v1065
        %v3178 = vunpack.c.h.s8.bf16 %v1066
        %v3179 = vunpack.c.h.s8.bf16 %v1067
        %v3180 = vunpack.c.h.s8.bf16 %v1068
        %v3181 = vunpack.c.h.s8.bf16 %v1069
        %v3182 = vunpack.c.h.s8.bf16 %v1070
        %v3183 = vunpack.c.h.s8.bf16 %v1071
        %v3184 = vunpack.c.h.s8.bf16 %v1072
        %v3185 = vunpack.c.h.s8.bf16 %v1073
        %v3186 = vunpack.c.h.s8.bf16 %v1074
        %v3187 = vunpack.c.h.s8.bf16 %v1075
        %v3188 = vunpack.c.h.s8.bf16 %v1076
        %v3189 = vunpack.c.h.s8.bf16 %v1077
        %v3190 = vunpack.c.h.s8.bf16 %v1078
        %v3191 = vunpack.c.h.s8.bf16 %v1079
        %v3192 = vunpack.c.l.s8.bf16 %v1080
        %v3193 = vunpack.c.l.s8.bf16 %v1081
        %v3194 = vunpack.c.l.s8.bf16 %v1082
        %v3195 = vunpack.c.l.s8.bf16 %v1083
        %v3196 = vunpack.c.l.s8.bf16 %v1084
        %v3197 = vunpack.c.l.s8.bf16 %v1085
        %v3198 = vunpack.c.l.s8.bf16 %v1086
        %v3199 = vunpack.c.l.s8.bf16 %v1087
        %v3200 = vunpack.c.l.s8.bf16 %v1088
        %v3201 = vunpack.c.l.s8.bf16 %v1089
        %v3202 = vunpack.c.l.s8.bf16 %v1090
        %v3203 = vunpack.c.l.s8.bf16 %v1091
        %v3204 = vunpack.c.l.s8.bf16 %v1092
        %v3205 = vunpack.c.l.s8.bf16 %v1093
        %v3206 = vunpack.c.l.s8.bf16 %v1094
        %v3207 = vunpack.c.l.s8.bf16 %v1095
        %v3208 = vunpack.c.h.s8.bf16 %v1080
        %v3209 = vunpack.c.h.s8.bf16 %v1081
        %v3210 = vunpack.c.h.s8.bf16 %v1082
        %v3211 = vunpack.c.h.s8.bf16 %v1083
        %v3212 = vunpack.c.h.s8.bf16 %v1084
        %v3213 = vunpack.c.h.s8.bf16 %v1085
        %v3214 = vunpack.c.h.s8.bf16 %v1086
        %v3215 = vunpack.c.h.s8.bf16 %v1087
        %v3216 = vunpack.c.h.s8.bf16 %v1088
        %v3217 = vunpack.c.h.s8.bf16 %v1089
        %v3218 = vunpack.c.h.s8.bf16 %v1090
        %v3219 = vunpack.c.h.s8.bf16 %v1091
        %v3220 = vunpack.c.h.s8.bf16 %v1092
        %v3221 = vunpack.c.h.s8.bf16 %v1093
        %v3222 = vunpack.c.h.s8.bf16 %v1094
        %v3223 = vunpack.c.h.s8.bf16 %v1095
        %v3224 = vunpack.c.l.s8.bf16 %v1096
        %v3225 = vunpack.c.l.s8.bf16 %v1097
        %v3226 = vunpack.c.l.s8.bf16 %v1098
        %v3227 = vunpack.c.l.s8.bf16 %v1099
        %v3228 = vunpack.c.l.s8.bf16 %v1100
        %v3229 = vunpack.c.l.s8.bf16 %v1101
        %v3230 = vunpack.c.l.s8.bf16 %v1102
        %v3231 = vunpack.c.l.s8.bf16 %v1103
        %v3232 = vunpack.c.l.s8.bf16 %v1104
        %v3233 = vunpack.c.l.s8.bf16 %v1105
        %v3234 = vunpack.c.l.s8.bf16 %v1106
        %v3235 = vunpack.c.l.s8.bf16 %v1107
        %v3236 = vunpack.c.l.s8.bf16 %v1108
        %v3237 = vunpack.c.l.s8.bf16 %v1109
        %v3238 = vunpack.c.l.s8.bf16 %v1110
        %v3239 = vunpack.c.l.s8.bf16 %v1111
        %v3240 = vunpack.c.h.s8.bf16 %v1096
        %v3241 = vunpack.c.h.s8.bf16 %v1097
        %v3242 = vunpack.c.h.s8.bf16 %v1098
        %v3243 = vunpack.c.h.s8.bf16 %v1099
        %v3244 = vunpack.c.h.s8.bf16 %v1100
        %v3245 = vunpack.c.h.s8.bf16 %v1101
        %v3246 = vunpack.c.h.s8.bf16 %v1102
        %v3247 = vunpack.c.h.s8.bf16 %v1103
        %v3248 = vunpack.c.h.s8.bf16 %v1104
        %v3249 = vunpack.c.h.s8.bf16 %v1105
        %v3250 = vunpack.c.h.s8.bf16 %v1106
        %v3251 = vunpack.c.h.s8.bf16 %v1107
        %v3252 = vunpack.c.h.s8.bf16 %v1108
        %v3253 = vunpack.c.h.s8.bf16 %v1109
        %v3254 = vunpack.c.h.s8.bf16 %v1110
        %v3255 = vunpack.c.h.s8.bf16 %v1111
        %v3256 = vunpack.c.l.s8.bf16 %v1112
        %v3257 = vunpack.c.l.s8.bf16 %v1113
        %v3258 = vunpack.c.l.s8.bf16 %v1114
        %v3259 = vunpack.c.l.s8.bf16 %v1115
        %v3260 = vunpack.c.l.s8.bf16 %v1116
        %v3261 = vunpack.c.l.s8.bf16 %v1117
        %v3262 = vunpack.c.l.s8.bf16 %v1118
        %v3263 = vunpack.c.l.s8.bf16 %v1119
        %v3264 = vunpack.c.l.s8.bf16 %v1120
        %v3265 = vunpack.c.l.s8.bf16 %v1121
        %v3266 = vunpack.c.l.s8.bf16 %v1122
        %v3267 = vunpack.c.l.s8.bf16 %v1123
        %v3268 = vunpack.c.l.s8.bf16 %v1124
        %v3269 = vunpack.c.l.s8.bf16 %v1125
        %v3270 = vunpack.c.l.s8.bf16 %v1126
        %v3271 = vunpack.c.l.s8.bf16 %v1127
        %v3272 = vunpack.c.h.s8.bf16 %v1112
        %v3273 = vunpack.c.h.s8.bf16 %v1113
        %v3274 = vunpack.c.h.s8.bf16 %v1114
        %v3275 = vunpack.c.h.s8.bf16 %v1115
        %v3276 = vunpack.c.h.s8.bf16 %v1116
        %v3277 = vunpack.c.h.s8.bf16 %v1117
        %v3278 = vunpack.c.h.s8.bf16 %v1118
        %v3279 = vunpack.c.h.s8.bf16 %v1119
        %v3280 = vunpack.c.h.s8.bf16 %v1120
        %v3281 = vunpack.c.h.s8.bf16 %v1121
        %v3282 = vunpack.c.h.s8.bf16 %v1122
        %v3283 = vunpack.c.h.s8.bf16 %v1123
        %v3284 = vunpack.c.h.s8.bf16 %v1124
        %v3285 = vunpack.c.h.s8.bf16 %v1125
        %v3286 = vunpack.c.h.s8.bf16 %v1126
        %v3287 = vunpack.c.h.s8.bf16 %v1127
        %v3288 = vunpack.c.l.s8.bf16 %v1128
        %v3289 = vunpack.c.l.s8.bf16 %v1129
        %v3290 = vunpack.c.l.s8.bf16 %v1130
        %v3291 = vunpack.c.l.s8.bf16 %v1131
        %v3292 = vunpack.c.l.s8.bf16 %v1132
        %v3293 = vunpack.c.l.s8.bf16 %v1133
        %v3294 = vunpack.c.l.s8.bf16 %v1134
        %v3295 = vunpack.c.l.s8.bf16 %v1135
        %v3296 = vunpack.c.l.s8.bf16 %v1136
        %v3297 = vunpack.c.l.s8.bf16 %v1137
        %v3298 = vunpack.c.l.s8.bf16 %v1138
        %v3299 = vunpack.c.l.s8.bf16 %v1139
        %v3300 = vunpack.c.l.s8.bf16 %v1140
        %v3301 = vunpack.c.l.s8.bf16 %v1141
        %v3302 = vunpack.c.l.s8.bf16 %v1142
        %v3303 = vunpack.c.l.s8.bf16 %v1143
        %v3304 = vunpack.c.h.s8.bf16 %v1128
        %v3305 = vunpack.c.h.s8.bf16 %v1129
        %v3306 = vunpack.c.h.s8.bf16 %v1130
        %v3307 = vunpack.c.h.s8.bf16 %v1131
        %v3308 = vunpack.c.h.s8.bf16 %v1132
        %v3309 = vunpack.c.h.s8.bf16 %v1133
        %v3310 = vunpack.c.h.s8.bf16 %v1134
        %v3311 = vunpack.c.h.s8.bf16 %v1135
        %v3312 = vunpack.c.h.s8.bf16 %v1136
        %v3313 = vunpack.c.h.s8.bf16 %v1137
        %v3314 = vunpack.c.h.s8.bf16 %v1138
        %v3315 = vunpack.c.h.s8.bf16 %v1139
        %v3316 = vunpack.c.h.s8.bf16 %v1140
        %v3317 = vunpack.c.h.s8.bf16 %v1141
        %v3318 = vunpack.c.h.s8.bf16 %v1142
        %v3319 = vunpack.c.h.s8.bf16 %v1143
        %v3320 = vunpack.c.l.s8.bf16 %v1144
        %v3321 = vunpack.c.l.s8.bf16 %v1145
        %v3322 = vunpack.c.l.s8.bf16 %v1146
        %v3323 = vunpack.c.l.s8.bf16 %v1147
        %v3324 = vunpack.c.l.s8.bf16 %v1148
        %v3325 = vunpack.c.l.s8.bf16 %v1149
        %v3326 = vunpack.c.l.s8.bf16 %v1150
        %v3327 = vunpack.c.l.s8.bf16 %v1151
        %v3328 = vunpack.c.l.s8.bf16 %v1152
        %v3329 = vunpack.c.l.s8.bf16 %v1153
        %v3330 = vunpack.c.l.s8.bf16 %v1154
        %v3331 = vunpack.c.l.s8.bf16 %v1155
        %v3332 = vunpack.c.l.s8.bf16 %v1156
        %v3333 = vunpack.c.l.s8.bf16 %v1157
        %v3334 = vunpack.c.l.s8.bf16 %v1158
        %v3335 = vunpack.c.l.s8.bf16 %v1159
        %v3336 = vunpack.c.h.s8.bf16 %v1144
        %v3337 = vunpack.c.h.s8.bf16 %v1145
        %v3338 = vunpack.c.h.s8.bf16 %v1146
        %v3339 = vunpack.c.h.s8.bf16 %v1147
        %v3340 = vunpack.c.h.s8.bf16 %v1148
        %v3341 = vunpack.c.h.s8.bf16 %v1149
        %v3342 = vunpack.c.h.s8.bf16 %v1150
        %v3343 = vunpack.c.h.s8.bf16 %v1151
        %v3344 = vunpack.c.h.s8.bf16 %v1152
        %v3345 = vunpack.c.h.s8.bf16 %v1153
        %v3346 = vunpack.c.h.s8.bf16 %v1154
        %v3347 = vunpack.c.h.s8.bf16 %v1155
        %v3348 = vunpack.c.h.s8.bf16 %v1156
        %v3349 = vunpack.c.h.s8.bf16 %v1157
        %v3350 = vunpack.c.h.s8.bf16 %v1158
        %v3351 = vunpack.c.h.s8.bf16 %v1159
        %v3352 = vunpack.c.l.s8.bf16 %v1160
        %v3353 = vunpack.c.l.s8.bf16 %v1161
        %v3354 = vunpack.c.l.s8.bf16 %v1162
        %v3355 = vunpack.c.l.s8.bf16 %v1163
        %v3356 = vunpack.c.l.s8.bf16 %v1164
        %v3357 = vunpack.c.l.s8.bf16 %v1165
        %v3358 = vunpack.c.l.s8.bf16 %v1166
        %v3359 = vunpack.c.l.s8.bf16 %v1167
        %v3360 = vunpack.c.l.s8.bf16 %v1168
        %v3361 = vunpack.c.l.s8.bf16 %v1169
        %v3362 = vunpack.c.l.s8.bf16 %v1170
        %v3363 = vunpack.c.l.s8.bf16 %v1171
        %v3364 = vunpack.c.l.s8.bf16 %v1172
        %v3365 = vunpack.c.l.s8.bf16 %v1173
        %v3366 = vunpack.c.l.s8.bf16 %v1174
        %v3367 = vunpack.c.l.s8.bf16 %v1175
        %v3368 = vunpack.c.h.s8.bf16 %v1160
        %v3369 = vunpack.c.h.s8.bf16 %v1161
        %v3370 = vunpack.c.h.s8.bf16 %v1162
        %v3371 = vunpack.c.h.s8.bf16 %v1163
        %v3372 = vunpack.c.h.s8.bf16 %v1164
        %v3373 = vunpack.c.h.s8.bf16 %v1165
        %v3374 = vunpack.c.h.s8.bf16 %v1166
        %v3375 = vunpack.c.h.s8.bf16 %v1167
        %v3376 = vunpack.c.h.s8.bf16 %v1168
        %v3377 = vunpack.c.h.s8.bf16 %v1169
        %v3378 = vunpack.c.h.s8.bf16 %v1170
        %v3379 = vunpack.c.h.s8.bf16 %v1171
        %v3380 = vunpack.c.h.s8.bf16 %v1172
        %v3381 = vunpack.c.h.s8.bf16 %v1173
        %v3382 = vunpack.c.h.s8.bf16 %v1174
        %v3383 = vunpack.c.h.s8.bf16 %v1175
        %v3384 = vunpack.c.l.s8.bf16 %v1176
        %v3385 = vunpack.c.l.s8.bf16 %v1177
        %v3386 = vunpack.c.l.s8.bf16 %v1178
        %v3387 = vunpack.c.l.s8.bf16 %v1179
        %v3388 = vunpack.c.l.s8.bf16 %v1180
        %v3389 = vunpack.c.l.s8.bf16 %v1181
        %v3390 = vunpack.c.l.s8.bf16 %v1182
        %v3391 = vunpack.c.l.s8.bf16 %v1183
        %v3392 = vunpack.c.l.s8.bf16 %v1184
        %v3393 = vunpack.c.l.s8.bf16 %v1185
        %v3394 = vunpack.c.l.s8.bf16 %v1186
        %v3395 = vunpack.c.l.s8.bf16 %v1187
        %v3396 = vunpack.c.l.s8.bf16 %v1188
        %v3397 = vunpack.c.l.s8.bf16 %v1189
        %v3398 = vunpack.c.l.s8.bf16 %v1190
        %v3399 = vunpack.c.l.s8.bf16 %v1191
        %v3400 = vunpack.c.h.s8.bf16 %v1176
        %v3401 = vunpack.c.h.s8.bf16 %v1177
        %v3402 = vunpack.c.h.s8.bf16 %v1178
        %v3403 = vunpack.c.h.s8.bf16 %v1179
        %v3404 = vunpack.c.h.s8.bf16 %v1180
        %v3405 = vunpack.c.h.s8.bf16 %v1181
        %v3406 = vunpack.c.h.s8.bf16 %v1182
        %v3407 = vunpack.c.h.s8.bf16 %v1183
        %v3408 = vunpack.c.h.s8.bf16 %v1184
        %v3409 = vunpack.c.h.s8.bf16 %v1185
        %v3410 = vunpack.c.h.s8.bf16 %v1186
        %v3411 = vunpack.c.h.s8.bf16 %v1187
        %v3412 = vunpack.c.h.s8.bf16 %v1188
        %v3413 = vunpack.c.h.s8.bf16 %v1189
        %v3414 = vunpack.c.h.s8.bf16 %v1190
        %v3415 = vunpack.c.h.s8.bf16 %v1191
        %v3416 = vunpack.c.l.s8.bf16 %v1192
        %v3417 = vunpack.c.l.s8.bf16 %v1193
        %v3418 = vunpack.c.l.s8.bf16 %v1194
        %v3419 = vunpack.c.l.s8.bf16 %v1195
        %v3420 = vunpack.c.l.s8.bf16 %v1196
        %v3421 = vunpack.c.l.s8.bf16 %v1197
        %v3422 = vunpack.c.l.s8.bf16 %v1198
        %v3423 = vunpack.c.l.s8.bf16 %v1199
        %v3424 = vunpack.c.l.s8.bf16 %v1200
        %v3425 = vunpack.c.l.s8.bf16 %v1201
        %v3426 = vunpack.c.l.s8.bf16 %v1202
        %v3427 = vunpack.c.l.s8.bf16 %v1203
        %v3428 = vunpack.c.l.s8.bf16 %v1204
        %v3429 = vunpack.c.l.s8.bf16 %v1205
        %v3430 = vunpack.c.l.s8.bf16 %v1206
        %v3431 = vunpack.c.l.s8.bf16 %v1207
        %v3432 = vunpack.c.h.s8.bf16 %v1192
        %v3433 = vunpack.c.h.s8.bf16 %v1193
        %v3434 = vunpack.c.h.s8.bf16 %v1194
        %v3435 = vunpack.c.h.s8.bf16 %v1195
        %v3436 = vunpack.c.h.s8.bf16 %v1196
        %v3437 = vunpack.c.h.s8.bf16 %v1197
        %v3438 = vunpack.c.h.s8.bf16 %v1198
        %v3439 = vunpack.c.h.s8.bf16 %v1199
        %v3440 = vunpack.c.h.s8.bf16 %v1200
        %v3441 = vunpack.c.h.s8.bf16 %v1201
        %v3442 = vunpack.c.h.s8.bf16 %v1202
        %v3443 = vunpack.c.h.s8.bf16 %v1203
        %v3444 = vunpack.c.h.s8.bf16 %v1204
        %v3445 = vunpack.c.h.s8.bf16 %v1205
        %v3446 = vunpack.c.h.s8.bf16 %v1206
        %v3447 = vunpack.c.h.s8.bf16 %v1207
        %v3448 = vunpack.c.l.s8.bf16 %v1208
        %v3449 = vunpack.c.l.s8.bf16 %v1209
        %v3450 = vunpack.c.l.s8.bf16 %v1210
        %v3451 = vunpack.c.l.s8.bf16 %v1211
        %v3452 = vunpack.c.l.s8.bf16 %v1212
        %v3453 = vunpack.c.l.s8.bf16 %v1213
        %v3454 = vunpack.c.l.s8.bf16 %v1214
        %v3455 = vunpack.c.l.s8.bf16 %v1215
        %v3456 = vunpack.c.l.s8.bf16 %v1216
        %v3457 = vunpack.c.l.s8.bf16 %v1217
        %v3458 = vunpack.c.l.s8.bf16 %v1218
        %v3459 = vunpack.c.l.s8.bf16 %v1219
        %v3460 = vunpack.c.l.s8.bf16 %v1220
        %v3461 = vunpack.c.l.s8.bf16 %v1221
        %v3462 = vunpack.c.l.s8.bf16 %v1222
        %v3463 = vunpack.c.l.s8.bf16 %v1223
        %v3464 = vunpack.c.h.s8.bf16 %v1208
        %v3465 = vunpack.c.h.s8.bf16 %v1209
        %v3466 = vunpack.c.h.s8.bf16 %v1210
        %v3467 = vunpack.c.h.s8.bf16 %v1211
        %v3468 = vunpack.c.h.s8.bf16 %v1212
        %v3469 = vunpack.c.h.s8.bf16 %v1213
        %v3470 = vunpack.c.h.s8.bf16 %v1214
        %v3471 = vunpack.c.h.s8.bf16 %v1215
        %v3472 = vunpack.c.h.s8.bf16 %v1216
        %v3473 = vunpack.c.h.s8.bf16 %v1217
        %v3474 = vunpack.c.h.s8.bf16 %v1218
        %v3475 = vunpack.c.h.s8.bf16 %v1219
        %v3476 = vunpack.c.h.s8.bf16 %v1220
        %v3477 = vunpack.c.h.s8.bf16 %v1221
        %v3478 = vunpack.c.h.s8.bf16 %v1222
        %v3479 = vunpack.c.h.s8.bf16 %v1223
        %v3480 = vunpack.c.l.s8.bf16 %v1224
        %v3481 = vunpack.c.l.s8.bf16 %v1225
        %v3482 = vunpack.c.l.s8.bf16 %v1226
        %v3483 = vunpack.c.l.s8.bf16 %v1227
        %v3484 = vunpack.c.l.s8.bf16 %v1228
        %v3485 = vunpack.c.l.s8.bf16 %v1229
        %v3486 = vunpack.c.l.s8.bf16 %v1230
        %v3487 = vunpack.c.l.s8.bf16 %v1231
        %v3488 = vunpack.c.l.s8.bf16 %v1232
        %v3489 = vunpack.c.l.s8.bf16 %v1233
        %v3490 = vunpack.c.l.s8.bf16 %v1234
        %v3491 = vunpack.c.l.s8.bf16 %v1235
        %v3492 = vunpack.c.l.s8.bf16 %v1236
        %v3493 = vunpack.c.l.s8.bf16 %v1237
        %v3494 = vunpack.c.l.s8.bf16 %v1238
        %v3495 = vunpack.c.l.s8.bf16 %v1239
        %v3496 = vunpack.c.h.s8.bf16 %v1224
        %v3497 = vunpack.c.h.s8.bf16 %v1225
        %v3498 = vunpack.c.h.s8.bf16 %v1226
        %v3499 = vunpack.c.h.s8.bf16 %v1227
        %v3500 = vunpack.c.h.s8.bf16 %v1228
        %v3501 = vunpack.c.h.s8.bf16 %v1229
        %v3502 = vunpack.c.h.s8.bf16 %v1230
        %v3503 = vunpack.c.h.s8.bf16 %v1231
        %v3504 = vunpack.c.h.s8.bf16 %v1232
        %v3505 = vunpack.c.h.s8.bf16 %v1233
        %v3506 = vunpack.c.h.s8.bf16 %v1234
        %v3507 = vunpack.c.h.s8.bf16 %v1235
        %v3508 = vunpack.c.h.s8.bf16 %v1236
        %v3509 = vunpack.c.h.s8.bf16 %v1237
        %v3510 = vunpack.c.h.s8.bf16 %v1238
        %v3511 = vunpack.c.h.s8.bf16 %v1239
        %v3512 = vunpack.c.l.s8.bf16 %v1240
        %v3513 = vunpack.c.l.s8.bf16 %v1241
        %v3514 = vunpack.c.l.s8.bf16 %v1242
        %v3515 = vunpack.c.l.s8.bf16 %v1243
        %v3516 = vunpack.c.l.s8.bf16 %v1244
        %v3517 = vunpack.c.l.s8.bf16 %v1245
        %v3518 = vunpack.c.l.s8.bf16 %v1246
        %v3519 = vunpack.c.l.s8.bf16 %v1247
        %v3520 = vunpack.c.l.s8.bf16 %v1248
        %v3521 = vunpack.c.l.s8.bf16 %v1249
        %v3522 = vunpack.c.l.s8.bf16 %v1250
        %v3523 = vunpack.c.l.s8.bf16 %v1251
        %v3524 = vunpack.c.l.s8.bf16 %v1252
        %v3525 = vunpack.c.l.s8.bf16 %v1253
        %v3526 = vunpack.c.l.s8.bf16 %v1254
        %v3527 = vunpack.c.l.s8.bf16 %v1255
        %v3528 = vunpack.c.h.s8.bf16 %v1240
        %v3529 = vunpack.c.h.s8.bf16 %v1241
        %v3530 = vunpack.c.h.s8.bf16 %v1242
        %v3531 = vunpack.c.h.s8.bf16 %v1243
        %v3532 = vunpack.c.h.s8.bf16 %v1244
        %v3533 = vunpack.c.h.s8.bf16 %v1245
        %v3534 = vunpack.c.h.s8.bf16 %v1246
        %v3535 = vunpack.c.h.s8.bf16 %v1247
        %v3536 = vunpack.c.h.s8.bf16 %v1248
        %v3537 = vunpack.c.h.s8.bf16 %v1249
        %v3538 = vunpack.c.h.s8.bf16 %v1250
        %v3539 = vunpack.c.h.s8.bf16 %v1251
        %v3540 = vunpack.c.h.s8.bf16 %v1252
        %v3541 = vunpack.c.h.s8.bf16 %v1253
        %v3542 = vunpack.c.h.s8.bf16 %v1254
        %v3543 = vunpack.c.h.s8.bf16 %v1255
        %v3544 = vunpack.c.l.s8.bf16 %v1256
        %v3545 = vunpack.c.l.s8.bf16 %v1257
        %v3546 = vunpack.c.l.s8.bf16 %v1258
        %v3547 = vunpack.c.l.s8.bf16 %v1259
        %v3548 = vunpack.c.l.s8.bf16 %v1260
        %v3549 = vunpack.c.l.s8.bf16 %v1261
        %v3550 = vunpack.c.l.s8.bf16 %v1262
        %v3551 = vunpack.c.l.s8.bf16 %v1263
        %v3552 = vunpack.c.l.s8.bf16 %v1264
        %v3553 = vunpack.c.l.s8.bf16 %v1265
        %v3554 = vunpack.c.l.s8.bf16 %v1266
        %v3555 = vunpack.c.l.s8.bf16 %v1267
        %v3556 = vunpack.c.l.s8.bf16 %v1268
        %v3557 = vunpack.c.l.s8.bf16 %v1269
        %v3558 = vunpack.c.l.s8.bf16 %v1270
        %v3559 = vunpack.c.l.s8.bf16 %v1271
        %v3560 = vunpack.c.h.s8.bf16 %v1256
        %v3561 = vunpack.c.h.s8.bf16 %v1257
        %v3562 = vunpack.c.h.s8.bf16 %v1258
        %v3563 = vunpack.c.h.s8.bf16 %v1259
        %v3564 = vunpack.c.h.s8.bf16 %v1260
        %v3565 = vunpack.c.h.s8.bf16 %v1261
        %v3566 = vunpack.c.h.s8.bf16 %v1262
        %v3567 = vunpack.c.h.s8.bf16 %v1263
        %v3568 = vunpack.c.h.s8.bf16 %v1264
        %v3569 = vunpack.c.h.s8.bf16 %v1265
        %v3570 = vunpack.c.h.s8.bf16 %v1266
        %v3571 = vunpack.c.h.s8.bf16 %v1267
        %v3572 = vunpack.c.h.s8.bf16 %v1268
        %v3573 = vunpack.c.h.s8.bf16 %v1269
        %v3574 = vunpack.c.h.s8.bf16 %v1270
        %v3575 = vunpack.c.h.s8.bf16 %v1271
        %v3576 = vunpack.c.l.s8.bf16 %v1272
        %v3577 = vunpack.c.l.s8.bf16 %v1273
        %v3578 = vunpack.c.l.s8.bf16 %v1274
        %v3579 = vunpack.c.l.s8.bf16 %v1275
        %v3580 = vunpack.c.l.s8.bf16 %v1276
        %v3581 = vunpack.c.l.s8.bf16 %v1277
        %v3582 = vunpack.c.l.s8.bf16 %v1278
        %v3583 = vunpack.c.l.s8.bf16 %v1279
        %v3584 = vunpack.c.l.s8.bf16 %v1280
        %v3585 = vunpack.c.l.s8.bf16 %v1281
        %v3586 = vunpack.c.l.s8.bf16 %v1282
        %v3587 = vunpack.c.l.s8.bf16 %v1283
        %v3588 = vunpack.c.l.s8.bf16 %v1284
        %v3589 = vunpack.c.l.s8.bf16 %v1285
        %v3590 = vunpack.c.l.s8.bf16 %v1286
        %v3591 = vunpack.c.l.s8.bf16 %v1287
        %v3592 = vunpack.c.h.s8.bf16 %v1272
        %v3593 = vunpack.c.h.s8.bf16 %v1273
        %v3594 = vunpack.c.h.s8.bf16 %v1274
        %v3595 = vunpack.c.h.s8.bf16 %v1275
        %v3596 = vunpack.c.h.s8.bf16 %v1276
        %v3597 = vunpack.c.h.s8.bf16 %v1277
        %v3598 = vunpack.c.h.s8.bf16 %v1278
        %v3599 = vunpack.c.h.s8.bf16 %v1279
        %v3600 = vunpack.c.h.s8.bf16 %v1280
        %v3601 = vunpack.c.h.s8.bf16 %v1281
        %v3602 = vunpack.c.h.s8.bf16 %v1282
        %v3603 = vunpack.c.h.s8.bf16 %v1283
        %v3604 = vunpack.c.h.s8.bf16 %v1284
        %v3605 = vunpack.c.h.s8.bf16 %v1285
        %v3606 = vunpack.c.h.s8.bf16 %v1286
        %v3607 = vunpack.c.h.s8.bf16 %v1287
        %v3608 = vunpack.c.l.s8.bf16 %v1288
        %v3609 = vunpack.c.l.s8.bf16 %v1289
        %v3610 = vunpack.c.l.s8.bf16 %v1290
        %v3611 = vunpack.c.l.s8.bf16 %v1291
        %v3612 = vunpack.c.l.s8.bf16 %v1292
        %v3613 = vunpack.c.l.s8.bf16 %v1293
        %v3614 = vunpack.c.l.s8.bf16 %v1294
        %v3615 = vunpack.c.l.s8.bf16 %v1295
        %v3616 = vunpack.c.l.s8.bf16 %v1296
        %v3617 = vunpack.c.l.s8.bf16 %v1297
        %v3618 = vunpack.c.l.s8.bf16 %v1298
        %v3619 = vunpack.c.l.s8.bf16 %v1299
        %v3620 = vunpack.c.l.s8.bf16 %v1300
        %v3621 = vunpack.c.l.s8.bf16 %v1301
        %v3622 = vunpack.c.l.s8.bf16 %v1302
        %v3623 = vunpack.c.l.s8.bf16 %v1303
        %v3624 = vunpack.c.h.s8.bf16 %v1288
        %v3625 = vunpack.c.h.s8.bf16 %v1289
        %v3626 = vunpack.c.h.s8.bf16 %v1290
        %v3627 = vunpack.c.h.s8.bf16 %v1291
        %v3628 = vunpack.c.h.s8.bf16 %v1292
        %v3629 = vunpack.c.h.s8.bf16 %v1293
        %v3630 = vunpack.c.h.s8.bf16 %v1294
        %v3631 = vunpack.c.h.s8.bf16 %v1295
        %v3632 = vunpack.c.h.s8.bf16 %v1296
        %v3633 = vunpack.c.h.s8.bf16 %v1297
        %v3634 = vunpack.c.h.s8.bf16 %v1298
        %v3635 = vunpack.c.h.s8.bf16 %v1299
        %v3636 = vunpack.c.h.s8.bf16 %v1300
        %v3637 = vunpack.c.h.s8.bf16 %v1301
        %v3638 = vunpack.c.h.s8.bf16 %v1302
        %v3639 = vunpack.c.h.s8.bf16 %v1303
        %v3640 = vunpack.c.l.s8.bf16 %v1304
        %v3641 = vunpack.c.l.s8.bf16 %v1305
        %v3642 = vunpack.c.l.s8.bf16 %v1306
        %v3643 = vunpack.c.l.s8.bf16 %v1307
        %v3644 = vunpack.c.l.s8.bf16 %v1308
        %v3645 = vunpack.c.l.s8.bf16 %v1309
        %v3646 = vunpack.c.l.s8.bf16 %v1310
        %v3647 = vunpack.c.l.s8.bf16 %v1311
        %v3648 = vunpack.c.l.s8.bf16 %v1312
        %v3649 = vunpack.c.l.s8.bf16 %v1313
        %v3650 = vunpack.c.l.s8.bf16 %v1314
        %v3651 = vunpack.c.l.s8.bf16 %v1315
        %v3652 = vunpack.c.l.s8.bf16 %v1316
        %v3653 = vunpack.c.l.s8.bf16 %v1317
        %v3654 = vunpack.c.l.s8.bf16 %v1318
        %v3655 = vunpack.c.l.s8.bf16 %v1319
        %v3656 = vunpack.c.h.s8.bf16 %v1304
        %v3657 = vunpack.c.h.s8.bf16 %v1305
        %v3658 = vunpack.c.h.s8.bf16 %v1306
        %v3659 = vunpack.c.h.s8.bf16 %v1307
        %v3660 = vunpack.c.h.s8.bf16 %v1308
        %v3661 = vunpack.c.h.s8.bf16 %v1309
        %v3662 = vunpack.c.h.s8.bf16 %v1310
        %v3663 = vunpack.c.h.s8.bf16 %v1311
        %v3664 = vunpack.c.h.s8.bf16 %v1312
        %v3665 = vunpack.c.h.s8.bf16 %v1313
        %v3666 = vunpack.c.h.s8.bf16 %v1314
        %v3667 = vunpack.c.h.s8.bf16 %v1315
        %v3668 = vunpack.c.h.s8.bf16 %v1316
        %v3669 = vunpack.c.h.s8.bf16 %v1317
        %v3670 = vunpack.c.h.s8.bf16 %v1318
        %v3671 = vunpack.c.h.s8.bf16 %v1319
        %v3672 = vunpack.c.l.s8.bf16 %v1320
        %v3673 = vunpack.c.l.s8.bf16 %v1321
        %v3674 = vunpack.c.l.s8.bf16 %v1322
        %v3675 = vunpack.c.l.s8.bf16 %v1323
        %v3676 = vunpack.c.l.s8.bf16 %v1324
        %v3677 = vunpack.c.l.s8.bf16 %v1325
        %v3678 = vunpack.c.l.s8.bf16 %v1326
        %v3679 = vunpack.c.l.s8.bf16 %v1327
        %v3680 = vunpack.c.l.s8.bf16 %v1328
        %v3681 = vunpack.c.l.s8.bf16 %v1329
        %v3682 = vunpack.c.l.s8.bf16 %v1330
        %v3683 = vunpack.c.l.s8.bf16 %v1331
        %v3684 = vunpack.c.l.s8.bf16 %v1332
        %v3685 = vunpack.c.l.s8.bf16 %v1333
        %v3686 = vunpack.c.l.s8.bf16 %v1334
        %v3687 = vunpack.c.l.s8.bf16 %v1335
        %v3688 = vunpack.c.h.s8.bf16 %v1320
        %v3689 = vunpack.c.h.s8.bf16 %v1321
        %v3690 = vunpack.c.h.s8.bf16 %v1322
        %v3691 = vunpack.c.h.s8.bf16 %v1323
        %v3692 = vunpack.c.h.s8.bf16 %v1324
        %v3693 = vunpack.c.h.s8.bf16 %v1325
        %v3694 = vunpack.c.h.s8.bf16 %v1326
        %v3695 = vunpack.c.h.s8.bf16 %v1327
        %v3696 = vunpack.c.h.s8.bf16 %v1328
        %v3697 = vunpack.c.h.s8.bf16 %v1329
        %v3698 = vunpack.c.h.s8.bf16 %v1330
        %v3699 = vunpack.c.h.s8.bf16 %v1331
        %v3700 = vunpack.c.h.s8.bf16 %v1332
        %v3701 = vunpack.c.h.s8.bf16 %v1333
        %v3702 = vunpack.c.h.s8.bf16 %v1334
        %v3703 = vunpack.c.h.s8.bf16 %v1335
        %v3704 = vunpack.c.l.s8.bf16 %v1336
        %v3705 = vunpack.c.l.s8.bf16 %v1337
        %v3706 = vunpack.c.l.s8.bf16 %v1338
        %v3707 = vunpack.c.l.s8.bf16 %v1339
        %v3708 = vunpack.c.l.s8.bf16 %v1340
        %v3709 = vunpack.c.l.s8.bf16 %v1341
        %v3710 = vunpack.c.l.s8.bf16 %v1342
        %v3711 = vunpack.c.l.s8.bf16 %v1343
        %v3712 = vunpack.c.l.s8.bf16 %v1344
        %v3713 = vunpack.c.l.s8.bf16 %v1345
        %v3714 = vunpack.c.l.s8.bf16 %v1346
        %v3715 = vunpack.c.l.s8.bf16 %v1347
        %v3716 = vunpack.c.l.s8.bf16 %v1348
        %v3717 = vunpack.c.l.s8.bf16 %v1349
        %v3718 = vunpack.c.l.s8.bf16 %v1350
        %v3719 = vunpack.c.l.s8.bf16 %v1351
        %v3720 = vunpack.c.h.s8.bf16 %v1336
        %v3721 = vunpack.c.h.s8.bf16 %v1337
        %v3722 = vunpack.c.h.s8.bf16 %v1338
        %v3723 = vunpack.c.h.s8.bf16 %v1339
        %v3724 = vunpack.c.h.s8.bf16 %v1340
        %v3725 = vunpack.c.h.s8.bf16 %v1341
        %v3726 = vunpack.c.h.s8.bf16 %v1342
        %v3727 = vunpack.c.h.s8.bf16 %v1343
        %v3728 = vunpack.c.h.s8.bf16 %v1344
        %v3729 = vunpack.c.h.s8.bf16 %v1345
        %v3730 = vunpack.c.h.s8.bf16 %v1346
        %v3731 = vunpack.c.h.s8.bf16 %v1347
        %v3732 = vunpack.c.h.s8.bf16 %v1348
        %v3733 = vunpack.c.h.s8.bf16 %v1349
        %v3734 = vunpack.c.h.s8.bf16 %v1350
        %v3735 = vunpack.c.h.s8.bf16 %v1351
        %v3736 = vunpack.c.l.s8.bf16 %v1352
        %v3737 = vunpack.c.l.s8.bf16 %v1353
        %v3738 = vunpack.c.l.s8.bf16 %v1354
        %v3739 = vunpack.c.l.s8.bf16 %v1355
        %v3740 = vunpack.c.l.s8.bf16 %v1356
        %v3741 = vunpack.c.l.s8.bf16 %v1357
        %v3742 = vunpack.c.l.s8.bf16 %v1358
        %v3743 = vunpack.c.l.s8.bf16 %v1359
        %v3744 = vunpack.c.l.s8.bf16 %v1360
        %v3745 = vunpack.c.l.s8.bf16 %v1361
        %v3746 = vunpack.c.l.s8.bf16 %v1362
        %v3747 = vunpack.c.l.s8.bf16 %v1363
        %v3748 = vunpack.c.l.s8.bf16 %v1364
        %v3749 = vunpack.c.l.s8.bf16 %v1365
        %v3750 = vunpack.c.l.s8.bf16 %v1366
        %v3751 = vunpack.c.l.s8.bf16 %v1367
        %v3752 = vunpack.c.h.s8.bf16 %v1352
        %v3753 = vunpack.c.h.s8.bf16 %v1353
        %v3754 = vunpack.c.h.s8.bf16 %v1354
        %v3755 = vunpack.c.h.s8.bf16 %v1355
        %v3756 = vunpack.c.h.s8.bf16 %v1356
        %v3757 = vunpack.c.h.s8.bf16 %v1357
        %v3758 = vunpack.c.h.s8.bf16 %v1358
        %v3759 = vunpack.c.h.s8.bf16 %v1359
        %v3760 = vunpack.c.h.s8.bf16 %v1360
        %v3761 = vunpack.c.h.s8.bf16 %v1361
        %v3762 = vunpack.c.h.s8.bf16 %v1362
        %v3763 = vunpack.c.h.s8.bf16 %v1363
        %v3764 = vunpack.c.h.s8.bf16 %v1364
        %v3765 = vunpack.c.h.s8.bf16 %v1365
        %v3766 = vunpack.c.h.s8.bf16 %v1366
        %v3767 = vunpack.c.h.s8.bf16 %v1367
        %v3768 = vunpack.c.l.s8.bf16 %v1368
        %v3769 = vunpack.c.l.s8.bf16 %v1369
        %v3770 = vunpack.c.l.s8.bf16 %v1370
        %v3771 = vunpack.c.l.s8.bf16 %v1371
        %v3772 = vunpack.c.l.s8.bf16 %v1372
        %v3773 = vunpack.c.l.s8.bf16 %v1373
        %v3774 = vunpack.c.l.s8.bf16 %v1374
        %v3775 = vunpack.c.l.s8.bf16 %v1375
        %v3776 = vunpack.c.l.s8.bf16 %v1376
        %v3777 = vunpack.c.l.s8.bf16 %v1377
        %v3778 = vunpack.c.l.s8.bf16 %v1378
        %v3779 = vunpack.c.l.s8.bf16 %v1379
        %v3780 = vunpack.c.l.s8.bf16 %v1380
        %v3781 = vunpack.c.l.s8.bf16 %v1381
        %v3782 = vunpack.c.l.s8.bf16 %v1382
        %v3783 = vunpack.c.l.s8.bf16 %v1383
        %v3784 = vunpack.c.h.s8.bf16 %v1368
        %v3785 = vunpack.c.h.s8.bf16 %v1369
        %v3786 = vunpack.c.h.s8.bf16 %v1370
        %v3787 = vunpack.c.h.s8.bf16 %v1371
        %v3788 = vunpack.c.h.s8.bf16 %v1372
        %v3789 = vunpack.c.h.s8.bf16 %v1373
        %v3790 = vunpack.c.h.s8.bf16 %v1374
        %v3791 = vunpack.c.h.s8.bf16 %v1375
        %v3792 = vunpack.c.h.s8.bf16 %v1376
        %v3793 = vunpack.c.h.s8.bf16 %v1377
        %v3794 = vunpack.c.h.s8.bf16 %v1378
        %v3795 = vunpack.c.h.s8.bf16 %v1379
        %v3796 = vunpack.c.h.s8.bf16 %v1380
        %v3797 = vunpack.c.h.s8.bf16 %v1381
        %v3798 = vunpack.c.h.s8.bf16 %v1382
        %v3799 = vunpack.c.h.s8.bf16 %v1383
        %v3800 = vunpack.c.l.s8.bf16 %v1384
        %v3801 = vunpack.c.l.s8.bf16 %v1385
        %v3802 = vunpack.c.l.s8.bf16 %v1386
        %v3803 = vunpack.c.l.s8.bf16 %v1387
        %v3804 = vunpack.c.l.s8.bf16 %v1388
        %v3805 = vunpack.c.l.s8.bf16 %v1389
        %v3806 = vunpack.c.l.s8.bf16 %v1390
        %v3807 = vunpack.c.l.s8.bf16 %v1391
        %v3808 = vunpack.c.l.s8.bf16 %v1392
        %v3809 = vunpack.c.l.s8.bf16 %v1393
        %v3810 = vunpack.c.l.s8.bf16 %v1394
        %v3811 = vunpack.c.l.s8.bf16 %v1395
        %v3812 = vunpack.c.l.s8.bf16 %v1396
        %v3813 = vunpack.c.l.s8.bf16 %v1397
        %v3814 = vunpack.c.l.s8.bf16 %v1398
        %v3815 = vunpack.c.l.s8.bf16 %v1399
        %v3816 = vunpack.c.h.s8.bf16 %v1384
        %v3817 = vunpack.c.h.s8.bf16 %v1385
        %v3818 = vunpack.c.h.s8.bf16 %v1386
        %v3819 = vunpack.c.h.s8.bf16 %v1387
        %v3820 = vunpack.c.h.s8.bf16 %v1388
        %v3821 = vunpack.c.h.s8.bf16 %v1389
        %v3822 = vunpack.c.h.s8.bf16 %v1390
        %v3823 = vunpack.c.h.s8.bf16 %v1391
        %v3824 = vunpack.c.h.s8.bf16 %v1392
        %v3825 = vunpack.c.h.s8.bf16 %v1393
        %v3826 = vunpack.c.h.s8.bf16 %v1394
        %v3827 = vunpack.c.h.s8.bf16 %v1395
        %v3828 = vunpack.c.h.s8.bf16 %v1396
        %v3829 = vunpack.c.h.s8.bf16 %v1397
        %v3830 = vunpack.c.h.s8.bf16 %v1398
        %v3831 = vunpack.c.h.s8.bf16 %v1399
        %v3832 = vunpack.c.l.s8.bf16 %v1400
        %v3833 = vunpack.c.l.s8.bf16 %v1401
        %v3834 = vunpack.c.l.s8.bf16 %v1402
        %v3835 = vunpack.c.l.s8.bf16 %v1403
        %v3836 = vunpack.c.l.s8.bf16 %v1404
        %v3837 = vunpack.c.l.s8.bf16 %v1405
        %v3838 = vunpack.c.l.s8.bf16 %v1406
        %v3839 = vunpack.c.l.s8.bf16 %v1407
        %v3840 = vunpack.c.l.s8.bf16 %v1408
        %v3841 = vunpack.c.l.s8.bf16 %v1409
        %v3842 = vunpack.c.l.s8.bf16 %v1410
        %v3843 = vunpack.c.l.s8.bf16 %v1411
        %v3844 = vunpack.c.l.s8.bf16 %v1412
        %v3845 = vunpack.c.l.s8.bf16 %v1413
        %v3846 = vunpack.c.l.s8.bf16 %v1414
        %v3847 = vunpack.c.l.s8.bf16 %v1415
        %v3848 = vunpack.c.h.s8.bf16 %v1400
        %v3849 = vunpack.c.h.s8.bf16 %v1401
        %v3850 = vunpack.c.h.s8.bf16 %v1402
        %v3851 = vunpack.c.h.s8.bf16 %v1403
        %v3852 = vunpack.c.h.s8.bf16 %v1404
        %v3853 = vunpack.c.h.s8.bf16 %v1405
        %v3854 = vunpack.c.h.s8.bf16 %v1406
        %v3855 = vunpack.c.h.s8.bf16 %v1407
        %v3856 = vunpack.c.h.s8.bf16 %v1408
        %v3857 = vunpack.c.h.s8.bf16 %v1409
        %v3858 = vunpack.c.h.s8.bf16 %v1410
        %v3859 = vunpack.c.h.s8.bf16 %v1411
        %v3860 = vunpack.c.h.s8.bf16 %v1412
        %v3861 = vunpack.c.h.s8.bf16 %v1413
        %v3862 = vunpack.c.h.s8.bf16 %v1414
        %v3863 = vunpack.c.h.s8.bf16 %v1415
        %v3864 = vunpack.c.l.s8.bf16 %v1416
        %v3865 = vunpack.c.l.s8.bf16 %v1417
        %v3866 = vunpack.c.l.s8.bf16 %v1418
        %v3867 = vunpack.c.l.s8.bf16 %v1419
        %v3868 = vunpack.c.l.s8.bf16 %v1420
        %v3869 = vunpack.c.l.s8.bf16 %v1421
        %v3870 = vunpack.c.l.s8.bf16 %v1422
        %v3871 = vunpack.c.l.s8.bf16 %v1423
        %v3872 = vunpack.c.l.s8.bf16 %v1424
        %v3873 = vunpack.c.l.s8.bf16 %v1425
        %v3874 = vunpack.c.l.s8.bf16 %v1426
        %v3875 = vunpack.c.l.s8.bf16 %v1427
        %v3876 = vunpack.c.l.s8.bf16 %v1428
        %v3877 = vunpack.c.l.s8.bf16 %v1429
        %v3878 = vunpack.c.l.s8.bf16 %v1430
        %v3879 = vunpack.c.l.s8.bf16 %v1431
        %v3880 = vunpack.c.h.s8.bf16 %v1416
        %v3881 = vunpack.c.h.s8.bf16 %v1417
        %v3882 = vunpack.c.h.s8.bf16 %v1418
        %v3883 = vunpack.c.h.s8.bf16 %v1419
        %v3884 = vunpack.c.h.s8.bf16 %v1420
        %v3885 = vunpack.c.h.s8.bf16 %v1421
        %v3886 = vunpack.c.h.s8.bf16 %v1422
        %v3887 = vunpack.c.h.s8.bf16 %v1423
        %v3888 = vunpack.c.h.s8.bf16 %v1424
        %v3889 = vunpack.c.h.s8.bf16 %v1425
        %v3890 = vunpack.c.h.s8.bf16 %v1426
        %v3891 = vunpack.c.h.s8.bf16 %v1427
        %v3892 = vunpack.c.h.s8.bf16 %v1428
        %v3893 = vunpack.c.h.s8.bf16 %v1429
        %v3894 = vunpack.c.h.s8.bf16 %v1430
        %v3895 = vunpack.c.h.s8.bf16 %v1431
        %v3896 = vunpack.c.l.s8.bf16 %v1432
        %v3897 = vunpack.c.l.s8.bf16 %v1433
        %v3898 = vunpack.c.l.s8.bf16 %v1434
        %v3899 = vunpack.c.l.s8.bf16 %v1435
        %v3900 = vunpack.c.l.s8.bf16 %v1436
        %v3901 = vunpack.c.l.s8.bf16 %v1437
        %v3902 = vunpack.c.l.s8.bf16 %v1438
        %v3903 = vunpack.c.l.s8.bf16 %v1439
        %v3904 = vunpack.c.l.s8.bf16 %v1440
        %v3905 = vunpack.c.l.s8.bf16 %v1441
        %v3906 = vunpack.c.l.s8.bf16 %v1442
        %v3907 = vunpack.c.l.s8.bf16 %v1443
        %v3908 = vunpack.c.l.s8.bf16 %v1444
        %v3909 = vunpack.c.l.s8.bf16 %v1445
        %v3910 = vunpack.c.l.s8.bf16 %v1446
        %v3911 = vunpack.c.l.s8.bf16 %v1447
        %v3912 = vunpack.c.h.s8.bf16 %v1432
        %v3913 = vunpack.c.h.s8.bf16 %v1433
        %v3914 = vunpack.c.h.s8.bf16 %v1434
        %v3915 = vunpack.c.h.s8.bf16 %v1435
        %v3916 = vunpack.c.h.s8.bf16 %v1436
        %v3917 = vunpack.c.h.s8.bf16 %v1437
        %v3918 = vunpack.c.h.s8.bf16 %v1438
        %v3919 = vunpack.c.h.s8.bf16 %v1439
        %v3920 = vunpack.c.h.s8.bf16 %v1440
        %v3921 = vunpack.c.h.s8.bf16 %v1441
        %v3922 = vunpack.c.h.s8.bf16 %v1442
        %v3923 = vunpack.c.h.s8.bf16 %v1443
        %v3924 = vunpack.c.h.s8.bf16 %v1444
        %v3925 = vunpack.c.h.s8.bf16 %v1445
        %v3926 = vunpack.c.h.s8.bf16 %v1446
        %v3927 = vunpack.c.h.s8.bf16 %v1447
        %v3928 = vunpack.c.l.s8.bf16 %v1448
        %v3929 = vunpack.c.l.s8.bf16 %v1449
        %v3930 = vunpack.c.l.s8.bf16 %v1450
        %v3931 = vunpack.c.l.s8.bf16 %v1451
        %v3932 = vunpack.c.l.s8.bf16 %v1452
        %v3933 = vunpack.c.l.s8.bf16 %v1453
        %v3934 = vunpack.c.l.s8.bf16 %v1454
        %v3935 = vunpack.c.l.s8.bf16 %v1455
        %v3936 = vunpack.c.l.s8.bf16 %v1456
        %v3937 = vunpack.c.l.s8.bf16 %v1457
        %v3938 = vunpack.c.l.s8.bf16 %v1458
        %v3939 = vunpack.c.l.s8.bf16 %v1459
        %v3940 = vunpack.c.l.s8.bf16 %v1460
        %v3941 = vunpack.c.l.s8.bf16 %v1461
        %v3942 = vunpack.c.l.s8.bf16 %v1462
        %v3943 = vunpack.c.l.s8.bf16 %v1463
        %v3944 = vunpack.c.h.s8.bf16 %v1448
        %v3945 = vunpack.c.h.s8.bf16 %v1449
        %v3946 = vunpack.c.h.s8.bf16 %v1450
        %v3947 = vunpack.c.h.s8.bf16 %v1451
        %v3948 = vunpack.c.h.s8.bf16 %v1452
        %v3949 = vunpack.c.h.s8.bf16 %v1453
        %v3950 = vunpack.c.h.s8.bf16 %v1454
        %v3951 = vunpack.c.h.s8.bf16 %v1455
        %v3952 = vunpack.c.h.s8.bf16 %v1456
        %v3953 = vunpack.c.h.s8.bf16 %v1457
        %v3954 = vunpack.c.h.s8.bf16 %v1458
        %v3955 = vunpack.c.h.s8.bf16 %v1459
        %v3956 = vunpack.c.h.s8.bf16 %v1460
        %v3957 = vunpack.c.h.s8.bf16 %v1461
        %v3958 = vunpack.c.h.s8.bf16 %v1462
        %v3959 = vunpack.c.h.s8.bf16 %v1463
        %v3960 = vunpack.c.l.s8.bf16 %v1464
        %v3961 = vunpack.c.l.s8.bf16 %v1465
        %v3962 = vunpack.c.l.s8.bf16 %v1466
        %v3963 = vunpack.c.l.s8.bf16 %v1467
        %v3964 = vunpack.c.l.s8.bf16 %v1468
        %v3965 = vunpack.c.l.s8.bf16 %v1469
        %v3966 = vunpack.c.l.s8.bf16 %v1470
        %v3967 = vunpack.c.l.s8.bf16 %v1471
        %v3968 = vunpack.c.l.s8.bf16 %v1472
        %v3969 = vunpack.c.l.s8.bf16 %v1473
        %v3970 = vunpack.c.l.s8.bf16 %v1474
        %v3971 = vunpack.c.l.s8.bf16 %v1475
        %v3972 = vunpack.c.l.s8.bf16 %v1476
        %v3973 = vunpack.c.l.s8.bf16 %v1477
        %v3974 = vunpack.c.l.s8.bf16 %v1478
        %v3975 = vunpack.c.l.s8.bf16 %v1479
        %v3976 = vunpack.c.h.s8.bf16 %v1464
        %v3977 = vunpack.c.h.s8.bf16 %v1465
        %v3978 = vunpack.c.h.s8.bf16 %v1466
        %v3979 = vunpack.c.h.s8.bf16 %v1467
        %v3980 = vunpack.c.h.s8.bf16 %v1468
        %v3981 = vunpack.c.h.s8.bf16 %v1469
        %v3982 = vunpack.c.h.s8.bf16 %v1470
        %v3983 = vunpack.c.h.s8.bf16 %v1471
        %v3984 = vunpack.c.h.s8.bf16 %v1472
        %v3985 = vunpack.c.h.s8.bf16 %v1473
        %v3986 = vunpack.c.h.s8.bf16 %v1474
        %v3987 = vunpack.c.h.s8.bf16 %v1475
        %v3988 = vunpack.c.h.s8.bf16 %v1476
        %v3989 = vunpack.c.h.s8.bf16 %v1477
        %v3990 = vunpack.c.h.s8.bf16 %v1478
        %v3991 = vunpack.c.h.s8.bf16 %v1479
        %v3992 = vunpack.c.l.s8.bf16 %v1480
        %v3993 = vunpack.c.l.s8.bf16 %v1481
        %v3994 = vunpack.c.l.s8.bf16 %v1482
        %v3995 = vunpack.c.l.s8.bf16 %v1483
        %v3996 = vunpack.c.l.s8.bf16 %v1484
        %v3997 = vunpack.c.l.s8.bf16 %v1485
        %v3998 = vunpack.c.l.s8.bf16 %v1486
        %v3999 = vunpack.c.l.s8.bf16 %v1487
        %v4000 = vunpack.c.l.s8.bf16 %v1488
        %v4001 = vunpack.c.l.s8.bf16 %v1489
        %v4002 = vunpack.c.l.s8.bf16 %v1490
        %v4003 = vunpack.c.l.s8.bf16 %v1491
        %v4004 = vunpack.c.l.s8.bf16 %v1492
        %v4005 = vunpack.c.l.s8.bf16 %v1493
        %v4006 = vunpack.c.l.s8.bf16 %v1494
        %v4007 = vunpack.c.l.s8.bf16 %v1495
        %v4008 = vunpack.c.h.s8.bf16 %v1480
        %v4009 = vunpack.c.h.s8.bf16 %v1481
        %v4010 = vunpack.c.h.s8.bf16 %v1482
        %v4011 = vunpack.c.h.s8.bf16 %v1483
        %v4012 = vunpack.c.h.s8.bf16 %v1484
        %v4013 = vunpack.c.h.s8.bf16 %v1485
        %v4014 = vunpack.c.h.s8.bf16 %v1486
        %v4015 = vunpack.c.h.s8.bf16 %v1487
        %v4016 = vunpack.c.h.s8.bf16 %v1488
        %v4017 = vunpack.c.h.s8.bf16 %v1489
        %v4018 = vunpack.c.h.s8.bf16 %v1490
        %v4019 = vunpack.c.h.s8.bf16 %v1491
        %v4020 = vunpack.c.h.s8.bf16 %v1492
        %v4021 = vunpack.c.h.s8.bf16 %v1493
        %v4022 = vunpack.c.h.s8.bf16 %v1494
        %v4023 = vunpack.c.h.s8.bf16 %v1495
        %v4024 = vunpack.c.l.s8.bf16 %v1496
        %v4025 = vunpack.c.l.s8.bf16 %v1497
        %v4026 = vunpack.c.l.s8.bf16 %v1498
        %v4027 = vunpack.c.l.s8.bf16 %v1499
        %v4028 = vunpack.c.l.s8.bf16 %v1500
        %v4029 = vunpack.c.l.s8.bf16 %v1501
        %v4030 = vunpack.c.l.s8.bf16 %v1502
        %v4031 = vunpack.c.l.s8.bf16 %v1503
        %v4032 = vunpack.c.l.s8.bf16 %v1504
        %v4033 = vunpack.c.l.s8.bf16 %v1505
        %v4034 = vunpack.c.l.s8.bf16 %v1506
        %v4035 = vunpack.c.l.s8.bf16 %v1507
        %v4036 = vunpack.c.l.s8.bf16 %v1508
        %v4037 = vunpack.c.l.s8.bf16 %v1509
        %v4038 = vunpack.c.l.s8.bf16 %v1510
        %v4039 = vunpack.c.l.s8.bf16 %v1511
        %v4040 = vunpack.c.h.s8.bf16 %v1496
        %v4041 = vunpack.c.h.s8.bf16 %v1497
        %v4042 = vunpack.c.h.s8.bf16 %v1498
        %v4043 = vunpack.c.h.s8.bf16 %v1499
        %v4044 = vunpack.c.h.s8.bf16 %v1500
        %v4045 = vunpack.c.h.s8.bf16 %v1501
        %v4046 = vunpack.c.h.s8.bf16 %v1502
        %v4047 = vunpack.c.h.s8.bf16 %v1503
        %v4048 = vunpack.c.h.s8.bf16 %v1504
        %v4049 = vunpack.c.h.s8.bf16 %v1505
        %v4050 = vunpack.c.h.s8.bf16 %v1506
        %v4051 = vunpack.c.h.s8.bf16 %v1507
        %v4052 = vunpack.c.h.s8.bf16 %v1508
        %v4053 = vunpack.c.h.s8.bf16 %v1509
        %v4054 = vunpack.c.h.s8.bf16 %v1510
        %v4055 = vunpack.c.h.s8.bf16 %v1511
        %v4056 = vunpack.c.l.s8.bf16 %v1512
        %v4057 = vunpack.c.l.s8.bf16 %v1513
        %v4058 = vunpack.c.l.s8.bf16 %v1514
        %v4059 = vunpack.c.l.s8.bf16 %v1515
        %v4060 = vunpack.c.l.s8.bf16 %v1516
        %v4061 = vunpack.c.l.s8.bf16 %v1517
        %v4062 = vunpack.c.l.s8.bf16 %v1518
        %v4063 = vunpack.c.l.s8.bf16 %v1519
        %v4064 = vunpack.c.l.s8.bf16 %v1520
        %v4065 = vunpack.c.l.s8.bf16 %v1521
        %v4066 = vunpack.c.l.s8.bf16 %v1522
        %v4067 = vunpack.c.l.s8.bf16 %v1523
        %v4068 = vunpack.c.l.s8.bf16 %v1524
        %v4069 = vunpack.c.l.s8.bf16 %v1525
        %v4070 = vunpack.c.l.s8.bf16 %v1526
        %v4071 = vunpack.c.l.s8.bf16 %v1527
        %v4072 = vunpack.c.h.s8.bf16 %v1512
        %v4073 = vunpack.c.h.s8.bf16 %v1513
        %v4074 = vunpack.c.h.s8.bf16 %v1514
        %v4075 = vunpack.c.h.s8.bf16 %v1515
        %v4076 = vunpack.c.h.s8.bf16 %v1516
        %v4077 = vunpack.c.h.s8.bf16 %v1517
        %v4078 = vunpack.c.h.s8.bf16 %v1518
        %v4079 = vunpack.c.h.s8.bf16 %v1519
        %v4080 = vunpack.c.h.s8.bf16 %v1520
        %v4081 = vunpack.c.h.s8.bf16 %v1521
        %v4082 = vunpack.c.h.s8.bf16 %v1522
        %v4083 = vunpack.c.h.s8.bf16 %v1523
        %v4084 = vunpack.c.h.s8.bf16 %v1524
        %v4085 = vunpack.c.h.s8.bf16 %v1525
        %v4086 = vunpack.c.h.s8.bf16 %v1526
        %v4087 = vunpack.c.h.s8.bf16 %v1527
        %v4088 = vunpack.c.l.s8.bf16 %v1528
        %v4089 = vunpack.c.l.s8.bf16 %v1529
        %v4090 = vunpack.c.l.s8.bf16 %v1530
        %v4091 = vunpack.c.l.s8.bf16 %v1531
        %v4092 = vunpack.c.l.s8.bf16 %v1532
        %v4093 = vunpack.c.l.s8.bf16 %v1533
        %v4094 = vunpack.c.l.s8.bf16 %v1534
        %v4095 = vunpack.c.l.s8.bf16 %v1535
        %v4096 = vunpack.c.l.s8.bf16 %v1536
        %v4097 = vunpack.c.l.s8.bf16 %v1537
        %v4098 = vunpack.c.l.s8.bf16 %v1538
        %v4099 = vunpack.c.l.s8.bf16 %v1539
        %v4100 = vunpack.c.l.s8.bf16 %v1540
        %v4101 = vunpack.c.l.s8.bf16 %v1541
        %v4102 = vunpack.c.l.s8.bf16 %v1542
        %v4103 = vunpack.c.l.s8.bf16 %v1543
        %v4104 = vunpack.c.h.s8.bf16 %v1528
        %v4105 = vunpack.c.h.s8.bf16 %v1529
        %v4106 = vunpack.c.h.s8.bf16 %v1530
        %v4107 = vunpack.c.h.s8.bf16 %v1531
        %v4108 = vunpack.c.h.s8.bf16 %v1532
        %v4109 = vunpack.c.h.s8.bf16 %v1533
        %v4110 = vunpack.c.h.s8.bf16 %v1534
        %v4111 = vunpack.c.h.s8.bf16 %v1535
        %v4112 = vunpack.c.h.s8.bf16 %v1536
        %v4113 = vunpack.c.h.s8.bf16 %v1537
        %v4114 = vunpack.c.h.s8.bf16 %v1538
        %v4115 = vunpack.c.h.s8.bf16 %v1539
        %v4116 = vunpack.c.h.s8.bf16 %v1540
        %v4117 = vunpack.c.h.s8.bf16 %v1541
        %v4118 = vunpack.c.h.s8.bf16 %v1542
        %v4119 = vunpack.c.h.s8.bf16 %v1543
        %v4120 = vunpack.c.l.s8.bf16 %v1544
        %v4121 = vunpack.c.l.s8.bf16 %v1545
        %v4122 = vunpack.c.l.s8.bf16 %v1546
        %v4123 = vunpack.c.l.s8.bf16 %v1547
        %v4124 = vunpack.c.l.s8.bf16 %v1548
        %v4125 = vunpack.c.l.s8.bf16 %v1549
        %v4126 = vunpack.c.l.s8.bf16 %v1550
        %v4127 = vunpack.c.l.s8.bf16 %v1551
        %v4128 = vunpack.c.l.s8.bf16 %v1552
        %v4129 = vunpack.c.l.s8.bf16 %v1553
        %v4130 = vunpack.c.l.s8.bf16 %v1554
        %v4131 = vunpack.c.l.s8.bf16 %v1555
        %v4132 = vunpack.c.l.s8.bf16 %v1556
        %v4133 = vunpack.c.l.s8.bf16 %v1557
        %v4134 = vunpack.c.l.s8.bf16 %v1558
        %v4135 = vunpack.c.l.s8.bf16 %v1559
        %v4136 = vunpack.c.h.s8.bf16 %v1544
        %v4137 = vunpack.c.h.s8.bf16 %v1545
        %v4138 = vunpack.c.h.s8.bf16 %v1546
        %v4139 = vunpack.c.h.s8.bf16 %v1547
        %v4140 = vunpack.c.h.s8.bf16 %v1548
        %v4141 = vunpack.c.h.s8.bf16 %v1549
        %v4142 = vunpack.c.h.s8.bf16 %v1550
        %v4143 = vunpack.c.h.s8.bf16 %v1551
        %v4144 = vunpack.c.h.s8.bf16 %v1552
        %v4145 = vunpack.c.h.s8.bf16 %v1553
        %v4146 = vunpack.c.h.s8.bf16 %v1554
        %v4147 = vunpack.c.h.s8.bf16 %v1555
        %v4148 = vunpack.c.h.s8.bf16 %v1556
        %v4149 = vunpack.c.h.s8.bf16 %v1557
        %v4150 = vunpack.c.h.s8.bf16 %v1558
        %v4151 = vunpack.c.h.s8.bf16 %v1559
        %v4152 = vunpack.c.l.s8.bf16 %v1560
        %v4153 = vunpack.c.l.s8.bf16 %v1561
        %v4154 = vunpack.c.l.s8.bf16 %v1562
        %v4155 = vunpack.c.l.s8.bf16 %v1563
        %v4156 = vunpack.c.l.s8.bf16 %v1564
        %v4157 = vunpack.c.l.s8.bf16 %v1565
        %v4158 = vunpack.c.l.s8.bf16 %v1566
        %v4159 = vunpack.c.l.s8.bf16 %v1567
        %v4160 = vunpack.c.l.s8.bf16 %v1568
        %v4161 = vunpack.c.l.s8.bf16 %v1569
        %v4162 = vunpack.c.l.s8.bf16 %v1570
        %v4163 = vunpack.c.l.s8.bf16 %v1571
        %v4164 = vunpack.c.l.s8.bf16 %v1572
        %v4165 = vunpack.c.l.s8.bf16 %v1573
        %v4166 = vunpack.c.l.s8.bf16 %v1574
        %v4167 = vunpack.c.l.s8.bf16 %v1575
        %v4168 = vunpack.c.h.s8.bf16 %v1560
        %v4169 = vunpack.c.h.s8.bf16 %v1561
        %v4170 = vunpack.c.h.s8.bf16 %v1562
        %v4171 = vunpack.c.h.s8.bf16 %v1563
        %v4172 = vunpack.c.h.s8.bf16 %v1564
        %v4173 = vunpack.c.h.s8.bf16 %v1565
        %v4174 = vunpack.c.h.s8.bf16 %v1566
        %v4175 = vunpack.c.h.s8.bf16 %v1567
        %v4176 = vunpack.c.h.s8.bf16 %v1568
        %v4177 = vunpack.c.h.s8.bf16 %v1569
        %v4178 = vunpack.c.h.s8.bf16 %v1570
        %v4179 = vunpack.c.h.s8.bf16 %v1571
        %v4180 = vunpack.c.h.s8.bf16 %v1572
        %v4181 = vunpack.c.h.s8.bf16 %v1573
        %v4182 = vunpack.c.h.s8.bf16 %v1574
        %v4183 = vunpack.c.h.s8.bf16 %v1575
        %v4184 = vunpack.c.l.s8.bf16 %v1576
        %v4185 = vunpack.c.l.s8.bf16 %v1577
        %v4186 = vunpack.c.l.s8.bf16 %v1578
        %v4187 = vunpack.c.l.s8.bf16 %v1579
        %v4188 = vunpack.c.l.s8.bf16 %v1580
        %v4189 = vunpack.c.l.s8.bf16 %v1581
        %v4190 = vunpack.c.l.s8.bf16 %v1582
        %v4191 = vunpack.c.l.s8.bf16 %v1583
        %v4192 = vunpack.c.l.s8.bf16 %v1584
        %v4193 = vunpack.c.l.s8.bf16 %v1585
        %v4194 = vunpack.c.l.s8.bf16 %v1586
        %v4195 = vunpack.c.l.s8.bf16 %v1587
        %v4196 = vunpack.c.l.s8.bf16 %v1588
        %v4197 = vunpack.c.l.s8.bf16 %v1589
        %v4198 = vunpack.c.l.s8.bf16 %v1590
        %v4199 = vunpack.c.l.s8.bf16 %v1591
        %v4200 = vunpack.c.h.s8.bf16 %v1576
        %v4201 = vunpack.c.h.s8.bf16 %v1577
        %v4202 = vunpack.c.h.s8.bf16 %v1578
        %v4203 = vunpack.c.h.s8.bf16 %v1579
        %v4204 = vunpack.c.h.s8.bf16 %v1580
        %v4205 = vunpack.c.h.s8.bf16 %v1581
        %v4206 = vunpack.c.h.s8.bf16 %v1582
        %v4207 = vunpack.c.h.s8.bf16 %v1583
        %v4208 = vunpack.c.h.s8.bf16 %v1584
        %v4209 = vunpack.c.h.s8.bf16 %v1585
        %v4210 = vunpack.c.h.s8.bf16 %v1586
        %v4211 = vunpack.c.h.s8.bf16 %v1587
        %v4212 = vunpack.c.h.s8.bf16 %v1588
        %v4213 = vunpack.c.h.s8.bf16 %v1589
        %v4214 = vunpack.c.h.s8.bf16 %v1590
        %v4215 = vunpack.c.h.s8.bf16 %v1591
        %v4216 = vunpack.c.l.s8.bf16 %v1592
        %v4217 = vunpack.c.l.s8.bf16 %v1593
        %v4218 = vunpack.c.l.s8.bf16 %v1594
        %v4219 = vunpack.c.l.s8.bf16 %v1595
        %v4220 = vunpack.c.l.s8.bf16 %v1596
        %v4221 = vunpack.c.l.s8.bf16 %v1597
        %v4222 = vunpack.c.l.s8.bf16 %v1598
        %v4223 = vunpack.c.l.s8.bf16 %v1599
        %v4224 = vunpack.c.l.s8.bf16 %v1600
        %v4225 = vunpack.c.l.s8.bf16 %v1601
        %v4226 = vunpack.c.l.s8.bf16 %v1602
        %v4227 = vunpack.c.l.s8.bf16 %v1603
        %v4228 = vunpack.c.l.s8.bf16 %v1604
        %v4229 = vunpack.c.l.s8.bf16 %v1605
        %v4230 = vunpack.c.l.s8.bf16 %v1606
        %v4231 = vunpack.c.l.s8.bf16 %v1607
        %v4232 = vunpack.c.h.s8.bf16 %v1592
        %v4233 = vunpack.c.h.s8.bf16 %v1593
        %v4234 = vunpack.c.h.s8.bf16 %v1594
        %v4235 = vunpack.c.h.s8.bf16 %v1595
        %v4236 = vunpack.c.h.s8.bf16 %v1596
        %v4237 = vunpack.c.h.s8.bf16 %v1597
        %v4238 = vunpack.c.h.s8.bf16 %v1598
        %v4239 = vunpack.c.h.s8.bf16 %v1599
        %v4240 = vunpack.c.h.s8.bf16 %v1600
        %v4241 = vunpack.c.h.s8.bf16 %v1601
        %v4242 = vunpack.c.h.s8.bf16 %v1602
        %v4243 = vunpack.c.h.s8.bf16 %v1603
        %v4244 = vunpack.c.h.s8.bf16 %v1604
        %v4245 = vunpack.c.h.s8.bf16 %v1605
        %v4246 = vunpack.c.h.s8.bf16 %v1606
        %v4247 = vunpack.c.h.s8.bf16 %v1607
        %v4248 = vunpack.c.l.s8.bf16 %v1608
        %v4249 = vunpack.c.l.s8.bf16 %v1609
        %v4250 = vunpack.c.l.s8.bf16 %v1610
        %v4251 = vunpack.c.l.s8.bf16 %v1611
        %v4252 = vunpack.c.l.s8.bf16 %v1612
        %v4253 = vunpack.c.l.s8.bf16 %v1613
        %v4254 = vunpack.c.l.s8.bf16 %v1614
        %v4255 = vunpack.c.l.s8.bf16 %v1615
        %v4256 = vunpack.c.l.s8.bf16 %v1616
        %v4257 = vunpack.c.l.s8.bf16 %v1617
        %v4258 = vunpack.c.l.s8.bf16 %v1618
        %v4259 = vunpack.c.l.s8.bf16 %v1619
        %v4260 = vunpack.c.l.s8.bf16 %v1620
        %v4261 = vunpack.c.l.s8.bf16 %v1621
        %v4262 = vunpack.c.l.s8.bf16 %v1622
        %v4263 = vunpack.c.l.s8.bf16 %v1623
        %v4264 = vunpack.c.h.s8.bf16 %v1608
        %v4265 = vunpack.c.h.s8.bf16 %v1609
        %v4266 = vunpack.c.h.s8.bf16 %v1610
        %v4267 = vunpack.c.h.s8.bf16 %v1611
        %v4268 = vunpack.c.h.s8.bf16 %v1612
        %v4269 = vunpack.c.h.s8.bf16 %v1613
        %v4270 = vunpack.c.h.s8.bf16 %v1614
        %v4271 = vunpack.c.h.s8.bf16 %v1615
        %v4272 = vunpack.c.h.s8.bf16 %v1616
        %v4273 = vunpack.c.h.s8.bf16 %v1617
        %v4274 = vunpack.c.h.s8.bf16 %v1618
        %v4275 = vunpack.c.h.s8.bf16 %v1619
        %v4276 = vunpack.c.h.s8.bf16 %v1620
        %v4277 = vunpack.c.h.s8.bf16 %v1621
        %v4278 = vunpack.c.h.s8.bf16 %v1622
        %v4279 = vunpack.c.h.s8.bf16 %v1623
        %v4280 = vunpack.c.l.s8.bf16 %v1624
        %v4281 = vunpack.c.l.s8.bf16 %v1625
        %v4282 = vunpack.c.l.s8.bf16 %v1626
        %v4283 = vunpack.c.l.s8.bf16 %v1627
        %v4284 = vunpack.c.l.s8.bf16 %v1628
        %v4285 = vunpack.c.l.s8.bf16 %v1629
        %v4286 = vunpack.c.l.s8.bf16 %v1630
        %v4287 = vunpack.c.l.s8.bf16 %v1631
        %v4288 = vunpack.c.l.s8.bf16 %v1632
        %v4289 = vunpack.c.l.s8.bf16 %v1633
        %v4290 = vunpack.c.l.s8.bf16 %v1634
        %v4291 = vunpack.c.l.s8.bf16 %v1635
        %v4292 = vunpack.c.l.s8.bf16 %v1636
        %v4293 = vunpack.c.l.s8.bf16 %v1637
        %v4294 = vunpack.c.l.s8.bf16 %v1638
        %v4295 = vunpack.c.l.s8.bf16 %v1639
        %v4296 = vunpack.c.h.s8.bf16 %v1624
        %v4297 = vunpack.c.h.s8.bf16 %v1625
        %v4298 = vunpack.c.h.s8.bf16 %v1626
        %v4299 = vunpack.c.h.s8.bf16 %v1627
        %v4300 = vunpack.c.h.s8.bf16 %v1628
        %v4301 = vunpack.c.h.s8.bf16 %v1629
        %v4302 = vunpack.c.h.s8.bf16 %v1630
        %v4303 = vunpack.c.h.s8.bf16 %v1631
        %v4304 = vunpack.c.h.s8.bf16 %v1632
        %v4305 = vunpack.c.h.s8.bf16 %v1633
        %v4306 = vunpack.c.h.s8.bf16 %v1634
        %v4307 = vunpack.c.h.s8.bf16 %v1635
        %v4308 = vunpack.c.h.s8.bf16 %v1636
        %v4309 = vunpack.c.h.s8.bf16 %v1637
        %v4310 = vunpack.c.h.s8.bf16 %v1638
        %v4311 = vunpack.c.h.s8.bf16 %v1639
        %v4312 = vunpack.c.l.s8.bf16 %v1640
        %v4313 = vunpack.c.l.s8.bf16 %v1641
        %v4314 = vunpack.c.l.s8.bf16 %v1642
        %v4315 = vunpack.c.l.s8.bf16 %v1643
        %v4316 = vunpack.c.l.s8.bf16 %v1644
        %v4317 = vunpack.c.l.s8.bf16 %v1645
        %v4318 = vunpack.c.l.s8.bf16 %v1646
        %v4319 = vunpack.c.l.s8.bf16 %v1647
        %v4320 = vunpack.c.l.s8.bf16 %v1648
        %v4321 = vunpack.c.l.s8.bf16 %v1649
        %v4322 = vunpack.c.l.s8.bf16 %v1650
        %v4323 = vunpack.c.l.s8.bf16 %v1651
        %v4324 = vunpack.c.l.s8.bf16 %v1652
        %v4325 = vunpack.c.l.s8.bf16 %v1653
        %v4326 = vunpack.c.l.s8.bf16 %v1654
        %v4327 = vunpack.c.l.s8.bf16 %v1655
        %v4328 = vunpack.c.h.s8.bf16 %v1640
        %v4329 = vunpack.c.h.s8.bf16 %v1641
        %v4330 = vunpack.c.h.s8.bf16 %v1642
        %v4331 = vunpack.c.h.s8.bf16 %v1643
        %v4332 = vunpack.c.h.s8.bf16 %v1644
        %v4333 = vunpack.c.h.s8.bf16 %v1645
        %v4334 = vunpack.c.h.s8.bf16 %v1646
        %v4335 = vunpack.c.h.s8.bf16 %v1647
        %v4336 = vunpack.c.h.s8.bf16 %v1648
        %v4337 = vunpack.c.h.s8.bf16 %v1649
        %v4338 = vunpack.c.h.s8.bf16 %v1650
        %v4339 = vunpack.c.h.s8.bf16 %v1651
        %v4340 = vunpack.c.h.s8.bf16 %v1652
        %v4341 = vunpack.c.h.s8.bf16 %v1653
        %v4342 = vunpack.c.h.s8.bf16 %v1654
        %v4343 = vunpack.c.h.s8.bf16 %v1655
        %v4344 = vunpack.c.l.s8.bf16 %v1656
        %v4345 = vunpack.c.l.s8.bf16 %v1657
        %v4346 = vunpack.c.l.s8.bf16 %v1658
        %v4347 = vunpack.c.l.s8.bf16 %v1659
        %v4348 = vunpack.c.l.s8.bf16 %v1660
        %v4349 = vunpack.c.l.s8.bf16 %v1661
        %v4350 = vunpack.c.l.s8.bf16 %v1662
        %v4351 = vunpack.c.l.s8.bf16 %v1663
        %v4352 = vunpack.c.l.s8.bf16 %v1664
        %v4353 = vunpack.c.l.s8.bf16 %v1665
        %v4354 = vunpack.c.l.s8.bf16 %v1666
        %v4355 = vunpack.c.l.s8.bf16 %v1667
        %v4356 = vunpack.c.l.s8.bf16 %v1668
        %v4357 = vunpack.c.l.s8.bf16 %v1669
        %v4358 = vunpack.c.l.s8.bf16 %v1670
        %v4359 = vunpack.c.l.s8.bf16 %v1671
        %v4360 = vunpack.c.h.s8.bf16 %v1656
        %v4361 = vunpack.c.h.s8.bf16 %v1657
        %v4362 = vunpack.c.h.s8.bf16 %v1658
        %v4363 = vunpack.c.h.s8.bf16 %v1659
        %v4364 = vunpack.c.h.s8.bf16 %v1660
        %v4365 = vunpack.c.h.s8.bf16 %v1661
        %v4366 = vunpack.c.h.s8.bf16 %v1662
        %v4367 = vunpack.c.h.s8.bf16 %v1663
        %v4368 = vunpack.c.h.s8.bf16 %v1664
        %v4369 = vunpack.c.h.s8.bf16 %v1665
        %v4370 = vunpack.c.h.s8.bf16 %v1666
        %v4371 = vunpack.c.h.s8.bf16 %v1667
        %v4372 = vunpack.c.h.s8.bf16 %v1668
        %v4373 = vunpack.c.h.s8.bf16 %v1669
        %v4374 = vunpack.c.h.s8.bf16 %v1670
        %v4375 = vunpack.c.h.s8.bf16 %v1671
        %v4376 = vunpack.c.l.s8.bf16 %v1672
        %v4377 = vunpack.c.l.s8.bf16 %v1673
        %v4378 = vunpack.c.l.s8.bf16 %v1674
        %v4379 = vunpack.c.l.s8.bf16 %v1675
        %v4380 = vunpack.c.l.s8.bf16 %v1676
        %v4381 = vunpack.c.l.s8.bf16 %v1677
        %v4382 = vunpack.c.l.s8.bf16 %v1678
        %v4383 = vunpack.c.l.s8.bf16 %v1679
        %v4384 = vunpack.c.l.s8.bf16 %v1680
        %v4385 = vunpack.c.l.s8.bf16 %v1681
        %v4386 = vunpack.c.l.s8.bf16 %v1682
        %v4387 = vunpack.c.l.s8.bf16 %v1683
        %v4388 = vunpack.c.l.s8.bf16 %v1684
        %v4389 = vunpack.c.l.s8.bf16 %v1685
        %v4390 = vunpack.c.l.s8.bf16 %v1686
        %v4391 = vunpack.c.l.s8.bf16 %v1687
        %v4392 = vunpack.c.h.s8.bf16 %v1672
        %v4393 = vunpack.c.h.s8.bf16 %v1673
        %v4394 = vunpack.c.h.s8.bf16 %v1674
        %v4395 = vunpack.c.h.s8.bf16 %v1675
        %v4396 = vunpack.c.h.s8.bf16 %v1676
        %v4397 = vunpack.c.h.s8.bf16 %v1677
        %v4398 = vunpack.c.h.s8.bf16 %v1678
        %v4399 = vunpack.c.h.s8.bf16 %v1679
        %v4400 = vunpack.c.h.s8.bf16 %v1680
        %v4401 = vunpack.c.h.s8.bf16 %v1681
        %v4402 = vunpack.c.h.s8.bf16 %v1682
        %v4403 = vunpack.c.h.s8.bf16 %v1683
        %v4404 = vunpack.c.h.s8.bf16 %v1684
        %v4405 = vunpack.c.h.s8.bf16 %v1685
        %v4406 = vunpack.c.h.s8.bf16 %v1686
        %v4407 = vunpack.c.h.s8.bf16 %v1687
        %v4408 = vunpack.c.l.s8.bf16 %v1688
        %v4409 = vunpack.c.l.s8.bf16 %v1689
        %v4410 = vunpack.c.l.s8.bf16 %v1690
        %v4411 = vunpack.c.l.s8.bf16 %v1691
        %v4412 = vunpack.c.l.s8.bf16 %v1692
        %v4413 = vunpack.c.l.s8.bf16 %v1693
        %v4414 = vunpack.c.l.s8.bf16 %v1694
        %v4415 = vunpack.c.l.s8.bf16 %v1695
        %v4416 = vunpack.c.l.s8.bf16 %v1696
        %v4417 = vunpack.c.l.s8.bf16 %v1697
        %v4418 = vunpack.c.l.s8.bf16 %v1698
        %v4419 = vunpack.c.l.s8.bf16 %v1699
        %v4420 = vunpack.c.l.s8.bf16 %v1700
        %v4421 = vunpack.c.l.s8.bf16 %v1701
        %v4422 = vunpack.c.l.s8.bf16 %v1702
        %v4423 = vunpack.c.l.s8.bf16 %v1703
        %v4424 = vunpack.c.h.s8.bf16 %v1688
        %v4425 = vunpack.c.h.s8.bf16 %v1689
        %v4426 = vunpack.c.h.s8.bf16 %v1690
        %v4427 = vunpack.c.h.s8.bf16 %v1691
        %v4428 = vunpack.c.h.s8.bf16 %v1692
        %v4429 = vunpack.c.h.s8.bf16 %v1693
        %v4430 = vunpack.c.h.s8.bf16 %v1694
        %v4431 = vunpack.c.h.s8.bf16 %v1695
        %v4432 = vunpack.c.h.s8.bf16 %v1696
        %v4433 = vunpack.c.h.s8.bf16 %v1697
        %v4434 = vunpack.c.h.s8.bf16 %v1698
        %v4435 = vunpack.c.h.s8.bf16 %v1699
        %v4436 = vunpack.c.h.s8.bf16 %v1700
        %v4437 = vunpack.c.h.s8.bf16 %v1701
        %v4438 = vunpack.c.h.s8.bf16 %v1702
        %v4439 = vunpack.c.h.s8.bf16 %v1703
        %v4440 = vunpack.c.l.s8.bf16 %v1704
        %v4441 = vunpack.c.l.s8.bf16 %v1705
        %v4442 = vunpack.c.l.s8.bf16 %v1706
        %v4443 = vunpack.c.l.s8.bf16 %v1707
        %v4444 = vunpack.c.l.s8.bf16 %v1708
        %v4445 = vunpack.c.l.s8.bf16 %v1709
        %v4446 = vunpack.c.l.s8.bf16 %v1710
        %v4447 = vunpack.c.l.s8.bf16 %v1711
        %v4448 = vunpack.c.l.s8.bf16 %v1712
        %v4449 = vunpack.c.l.s8.bf16 %v1713
        %v4450 = vunpack.c.l.s8.bf16 %v1714
        %v4451 = vunpack.c.l.s8.bf16 %v1715
        %v4452 = vunpack.c.l.s8.bf16 %v1716
        %v4453 = vunpack.c.l.s8.bf16 %v1717
        %v4454 = vunpack.c.l.s8.bf16 %v1718
        %v4455 = vunpack.c.l.s8.bf16 %v1719
        %v4456 = vunpack.c.h.s8.bf16 %v1704
        %v4457 = vunpack.c.h.s8.bf16 %v1705
        %v4458 = vunpack.c.h.s8.bf16 %v1706
        %v4459 = vunpack.c.h.s8.bf16 %v1707
        %v4460 = vunpack.c.h.s8.bf16 %v1708
        %v4461 = vunpack.c.h.s8.bf16 %v1709
        %v4462 = vunpack.c.h.s8.bf16 %v1710
        %v4463 = vunpack.c.h.s8.bf16 %v1711
        %v4464 = vunpack.c.h.s8.bf16 %v1712
        %v4465 = vunpack.c.h.s8.bf16 %v1713
        %v4466 = vunpack.c.h.s8.bf16 %v1714
        %v4467 = vunpack.c.h.s8.bf16 %v1715
        %v4468 = vunpack.c.h.s8.bf16 %v1716
        %v4469 = vunpack.c.h.s8.bf16 %v1717
        %v4470 = vunpack.c.h.s8.bf16 %v1718
        %v4471 = vunpack.c.h.s8.bf16 %v1719
        %v4472 = vunpack.c.l.s8.bf16 %v1720
        %v4473 = vunpack.c.l.s8.bf16 %v1721
        %v4474 = vunpack.c.l.s8.bf16 %v1722
        %v4475 = vunpack.c.l.s8.bf16 %v1723
        %v4476 = vunpack.c.l.s8.bf16 %v1724
        %v4477 = vunpack.c.l.s8.bf16 %v1725
        %v4478 = vunpack.c.l.s8.bf16 %v1726
        %v4479 = vunpack.c.l.s8.bf16 %v1727
        %v4480 = vunpack.c.l.s8.bf16 %v1728
        %v4481 = vunpack.c.l.s8.bf16 %v1729
        %v4482 = vunpack.c.l.s8.bf16 %v1730
        %v4483 = vunpack.c.l.s8.bf16 %v1731
        %v4484 = vunpack.c.l.s8.bf16 %v1732
        %v4485 = vunpack.c.l.s8.bf16 %v1733
        %v4486 = vunpack.c.l.s8.bf16 %v1734
        %v4487 = vunpack.c.l.s8.bf16 %v1735
        %v4488 = vunpack.c.h.s8.bf16 %v1720
        %v4489 = vunpack.c.h.s8.bf16 %v1721
        %v4490 = vunpack.c.h.s8.bf16 %v1722
        %v4491 = vunpack.c.h.s8.bf16 %v1723
        %v4492 = vunpack.c.h.s8.bf16 %v1724
        %v4493 = vunpack.c.h.s8.bf16 %v1725
        %v4494 = vunpack.c.h.s8.bf16 %v1726
        %v4495 = vunpack.c.h.s8.bf16 %v1727
        %v4496 = vunpack.c.h.s8.bf16 %v1728
        %v4497 = vunpack.c.h.s8.bf16 %v1729
        %v4498 = vunpack.c.h.s8.bf16 %v1730
        %v4499 = vunpack.c.h.s8.bf16 %v1731
        %v4500 = vunpack.c.h.s8.bf16 %v1732
        %v4501 = vunpack.c.h.s8.bf16 %v1733
        %v4502 = vunpack.c.h.s8.bf16 %v1734
        %v4503 = vunpack.c.h.s8.bf16 %v1735
        %v4504 = vunpack.c.l.s8.bf16 %v1736
        %v4505 = vunpack.c.l.s8.bf16 %v1737
        %v4506 = vunpack.c.l.s8.bf16 %v1738
        %v4507 = vunpack.c.l.s8.bf16 %v1739
        %v4508 = vunpack.c.l.s8.bf16 %v1740
        %v4509 = vunpack.c.l.s8.bf16 %v1741
        %v4510 = vunpack.c.l.s8.bf16 %v1742
        %v4511 = vunpack.c.l.s8.bf16 %v1743
        %v4512 = vunpack.c.l.s8.bf16 %v1744
        %v4513 = vunpack.c.l.s8.bf16 %v1745
        %v4514 = vunpack.c.l.s8.bf16 %v1746
        %v4515 = vunpack.c.l.s8.bf16 %v1747
        %v4516 = vunpack.c.l.s8.bf16 %v1748
        %v4517 = vunpack.c.l.s8.bf16 %v1749
        %v4518 = vunpack.c.l.s8.bf16 %v1750
        %v4519 = vunpack.c.l.s8.bf16 %v1751
        %v4520 = vunpack.c.h.s8.bf16 %v1736
        %v4521 = vunpack.c.h.s8.bf16 %v1737
        %v4522 = vunpack.c.h.s8.bf16 %v1738
        %v4523 = vunpack.c.h.s8.bf16 %v1739
        %v4524 = vunpack.c.h.s8.bf16 %v1740
        %v4525 = vunpack.c.h.s8.bf16 %v1741
        %v4526 = vunpack.c.h.s8.bf16 %v1742
        %v4527 = vunpack.c.h.s8.bf16 %v1743
        %v4528 = vunpack.c.h.s8.bf16 %v1744
        %v4529 = vunpack.c.h.s8.bf16 %v1745
        %v4530 = vunpack.c.h.s8.bf16 %v1746
        %v4531 = vunpack.c.h.s8.bf16 %v1747
        %v4532 = vunpack.c.h.s8.bf16 %v1748
        %v4533 = vunpack.c.h.s8.bf16 %v1749
        %v4534 = vunpack.c.h.s8.bf16 %v1750
        %v4535 = vunpack.c.h.s8.bf16 %v1751
        %v4536 = vunpack.c.l.s8.bf16 %v1752
        %v4537 = vunpack.c.l.s8.bf16 %v1753
        %v4538 = vunpack.c.l.s8.bf16 %v1754
        %v4539 = vunpack.c.l.s8.bf16 %v1755
        %v4540 = vunpack.c.l.s8.bf16 %v1756
        %v4541 = vunpack.c.l.s8.bf16 %v1757
        %v4542 = vunpack.c.l.s8.bf16 %v1758
        %v4543 = vunpack.c.l.s8.bf16 %v1759
        %v4544 = vunpack.c.l.s8.bf16 %v1760
        %v4545 = vunpack.c.l.s8.bf16 %v1761
        %v4546 = vunpack.c.l.s8.bf16 %v1762
        %v4547 = vunpack.c.l.s8.bf16 %v1763
        %v4548 = vunpack.c.l.s8.bf16 %v1764
        %v4549 = vunpack.c.l.s8.bf16 %v1765
        %v4550 = vunpack.c.l.s8.bf16 %v1766
        %v4551 = vunpack.c.l.s8.bf16 %v1767
        %v4552 = vunpack.c.h.s8.bf16 %v1752
        %v4553 = vunpack.c.h.s8.bf16 %v1753
        %v4554 = vunpack.c.h.s8.bf16 %v1754
        %v4555 = vunpack.c.h.s8.bf16 %v1755
        %v4556 = vunpack.c.h.s8.bf16 %v1756
        %v4557 = vunpack.c.h.s8.bf16 %v1757
        %v4558 = vunpack.c.h.s8.bf16 %v1758
        %v4559 = vunpack.c.h.s8.bf16 %v1759
        %v4560 = vunpack.c.h.s8.bf16 %v1760
        %v4561 = vunpack.c.h.s8.bf16 %v1761
        %v4562 = vunpack.c.h.s8.bf16 %v1762
        %v4563 = vunpack.c.h.s8.bf16 %v1763
        %v4564 = vunpack.c.h.s8.bf16 %v1764
        %v4565 = vunpack.c.h.s8.bf16 %v1765
        %v4566 = vunpack.c.h.s8.bf16 %v1766
        %v4567 = vunpack.c.h.s8.bf16 %v1767
        %v4568 = vunpack.c.l.s8.bf16 %v1768
        %v4569 = vunpack.c.l.s8.bf16 %v1769
        %v4570 = vunpack.c.l.s8.bf16 %v1770
        %v4571 = vunpack.c.l.s8.bf16 %v1771
        %v4572 = vunpack.c.l.s8.bf16 %v1772
        %v4573 = vunpack.c.l.s8.bf16 %v1773
        %v4574 = vunpack.c.l.s8.bf16 %v1774
        %v4575 = vunpack.c.l.s8.bf16 %v1775
        %v4576 = vunpack.c.l.s8.bf16 %v1776
        %v4577 = vunpack.c.l.s8.bf16 %v1777
        %v4578 = vunpack.c.l.s8.bf16 %v1778
        %v4579 = vunpack.c.l.s8.bf16 %v1779
        %v4580 = vunpack.c.l.s8.bf16 %v1780
        %v4581 = vunpack.c.l.s8.bf16 %v1781
        %v4582 = vunpack.c.l.s8.bf16 %v1782
        %v4583 = vunpack.c.l.s8.bf16 %v1783
        %v4584 = vunpack.c.h.s8.bf16 %v1768
        %v4585 = vunpack.c.h.s8.bf16 %v1769
        %v4586 = vunpack.c.h.s8.bf16 %v1770
        %v4587 = vunpack.c.h.s8.bf16 %v1771
        %v4588 = vunpack.c.h.s8.bf16 %v1772
        %v4589 = vunpack.c.h.s8.bf16 %v1773
        %v4590 = vunpack.c.h.s8.bf16 %v1774
        %v4591 = vunpack.c.h.s8.bf16 %v1775
        %v4592 = vunpack.c.h.s8.bf16 %v1776
        %v4593 = vunpack.c.h.s8.bf16 %v1777
        %v4594 = vunpack.c.h.s8.bf16 %v1778
        %v4595 = vunpack.c.h.s8.bf16 %v1779
        %v4596 = vunpack.c.h.s8.bf16 %v1780
        %v4597 = vunpack.c.h.s8.bf16 %v1781
        %v4598 = vunpack.c.h.s8.bf16 %v1782
        %v4599 = vunpack.c.h.s8.bf16 %v1783
        %v4600 = vunpack.c.l.s8.bf16 %v1784
        %v4601 = vunpack.c.l.s8.bf16 %v1785
        %v4602 = vunpack.c.l.s8.bf16 %v1786
        %v4603 = vunpack.c.l.s8.bf16 %v1787
        %v4604 = vunpack.c.l.s8.bf16 %v1788
        %v4605 = vunpack.c.l.s8.bf16 %v1789
        %v4606 = vunpack.c.l.s8.bf16 %v1790
        %v4607 = vunpack.c.l.s8.bf16 %v1791
        %v4608 = vunpack.c.l.s8.bf16 %v1792
        %v4609 = vunpack.c.l.s8.bf16 %v1793
        %v4610 = vunpack.c.l.s8.bf16 %v1794
        %v4611 = vunpack.c.l.s8.bf16 %v1795
        %v4612 = vunpack.c.l.s8.bf16 %v1796
        %v4613 = vunpack.c.l.s8.bf16 %v1797
        %v4614 = vunpack.c.l.s8.bf16 %v1798
        %v4615 = vunpack.c.l.s8.bf16 %v1799
        %v4616 = vunpack.c.h.s8.bf16 %v1784
        %v4617 = vunpack.c.h.s8.bf16 %v1785
        %v4618 = vunpack.c.h.s8.bf16 %v1786
        %v4619 = vunpack.c.h.s8.bf16 %v1787
        %v4620 = vunpack.c.h.s8.bf16 %v1788
        %v4621 = vunpack.c.h.s8.bf16 %v1789
        %v4622 = vunpack.c.h.s8.bf16 %v1790
        %v4623 = vunpack.c.h.s8.bf16 %v1791
        %v4624 = vunpack.c.h.s8.bf16 %v1792
        %v4625 = vunpack.c.h.s8.bf16 %v1793
        %v4626 = vunpack.c.h.s8.bf16 %v1794
        %v4627 = vunpack.c.h.s8.bf16 %v1795
        %v4628 = vunpack.c.h.s8.bf16 %v1796
        %v4629 = vunpack.c.h.s8.bf16 %v1797
        %v4630 = vunpack.c.h.s8.bf16 %v1798
        %v4631 = vunpack.c.h.s8.bf16 %v1799
        %v4632 = vunpack.c.l.s8.bf16 %v1800
        %v4633 = vunpack.c.l.s8.bf16 %v1801
        %v4634 = vunpack.c.l.s8.bf16 %v1802
        %v4635 = vunpack.c.l.s8.bf16 %v1803
        %v4636 = vunpack.c.l.s8.bf16 %v1804
        %v4637 = vunpack.c.l.s8.bf16 %v1805
        %v4638 = vunpack.c.l.s8.bf16 %v1806
        %v4639 = vunpack.c.l.s8.bf16 %v1807
        %v4640 = vunpack.c.l.s8.bf16 %v1808
        %v4641 = vunpack.c.l.s8.bf16 %v1809
        %v4642 = vunpack.c.l.s8.bf16 %v1810
        %v4643 = vunpack.c.l.s8.bf16 %v1811
        %v4644 = vunpack.c.l.s8.bf16 %v1812
        %v4645 = vunpack.c.l.s8.bf16 %v1813
        %v4646 = vunpack.c.l.s8.bf16 %v1814
        %v4647 = vunpack.c.l.s8.bf16 %v1815
        %v4648 = vunpack.c.h.s8.bf16 %v1800
        %v4649 = vunpack.c.h.s8.bf16 %v1801
        %v4650 = vunpack.c.h.s8.bf16 %v1802
        %v4651 = vunpack.c.h.s8.bf16 %v1803
        %v4652 = vunpack.c.h.s8.bf16 %v1804
        %v4653 = vunpack.c.h.s8.bf16 %v1805
        %v4654 = vunpack.c.h.s8.bf16 %v1806
        %v4655 = vunpack.c.h.s8.bf16 %v1807
        %v4656 = vunpack.c.h.s8.bf16 %v1808
        %v4657 = vunpack.c.h.s8.bf16 %v1809
        %v4658 = vunpack.c.h.s8.bf16 %v1810
        %v4659 = vunpack.c.h.s8.bf16 %v1811
        %v4660 = vunpack.c.h.s8.bf16 %v1812
        %v4661 = vunpack.c.h.s8.bf16 %v1813
        %v4662 = vunpack.c.h.s8.bf16 %v1814
        %v4663 = vunpack.c.h.s8.bf16 %v1815
        %v4664 = vunpack.c.l.s8.bf16 %v1816
        %v4665 = vunpack.c.l.s8.bf16 %v1817
        %v4666 = vunpack.c.l.s8.bf16 %v1818
        %v4667 = vunpack.c.l.s8.bf16 %v1819
        %v4668 = vunpack.c.l.s8.bf16 %v1820
        %v4669 = vunpack.c.l.s8.bf16 %v1821
        %v4670 = vunpack.c.l.s8.bf16 %v1822
        %v4671 = vunpack.c.l.s8.bf16 %v1823
        %v4672 = vunpack.c.l.s8.bf16 %v1824
        %v4673 = vunpack.c.l.s8.bf16 %v1825
        %v4674 = vunpack.c.l.s8.bf16 %v1826
        %v4675 = vunpack.c.l.s8.bf16 %v1827
        %v4676 = vunpack.c.l.s8.bf16 %v1828
        %v4677 = vunpack.c.l.s8.bf16 %v1829
        %v4678 = vunpack.c.l.s8.bf16 %v1830
        %v4679 = vunpack.c.l.s8.bf16 %v1831
        %v4680 = vunpack.c.h.s8.bf16 %v1816
        %v4681 = vunpack.c.h.s8.bf16 %v1817
        %v4682 = vunpack.c.h.s8.bf16 %v1818
        %v4683 = vunpack.c.h.s8.bf16 %v1819
        %v4684 = vunpack.c.h.s8.bf16 %v1820
        %v4685 = vunpack.c.h.s8.bf16 %v1821
        %v4686 = vunpack.c.h.s8.bf16 %v1822
        %v4687 = vunpack.c.h.s8.bf16 %v1823
        %v4688 = vunpack.c.h.s8.bf16 %v1824
        %v4689 = vunpack.c.h.s8.bf16 %v1825
        %v4690 = vunpack.c.h.s8.bf16 %v1826
        %v4691 = vunpack.c.h.s8.bf16 %v1827
        %v4692 = vunpack.c.h.s8.bf16 %v1828
        %v4693 = vunpack.c.h.s8.bf16 %v1829
        %v4694 = vunpack.c.h.s8.bf16 %v1830
        %v4695 = vunpack.c.h.s8.bf16 %v1831
        %v4696 = vunpack.c.l.s8.bf16 %v1832
        %v4697 = vunpack.c.l.s8.bf16 %v1833
        %v4698 = vunpack.c.l.s8.bf16 %v1834
        %v4699 = vunpack.c.l.s8.bf16 %v1835
        %v4700 = vunpack.c.l.s8.bf16 %v1836
        %v4701 = vunpack.c.l.s8.bf16 %v1837
        %v4702 = vunpack.c.l.s8.bf16 %v1838
        %v4703 = vunpack.c.l.s8.bf16 %v1839
        %v4704 = vunpack.c.l.s8.bf16 %v1840
        %v4705 = vunpack.c.l.s8.bf16 %v1841
        %v4706 = vunpack.c.l.s8.bf16 %v1842
        %v4707 = vunpack.c.l.s8.bf16 %v1843
        %v4708 = vunpack.c.l.s8.bf16 %v1844
        %v4709 = vunpack.c.l.s8.bf16 %v1845
        %v4710 = vunpack.c.l.s8.bf16 %v1846
        %v4711 = vunpack.c.l.s8.bf16 %v1847
        %v4712 = vunpack.c.h.s8.bf16 %v1832
        %v4713 = vunpack.c.h.s8.bf16 %v1833
        %v4714 = vunpack.c.h.s8.bf16 %v1834
        %v4715 = vunpack.c.h.s8.bf16 %v1835
        %v4716 = vunpack.c.h.s8.bf16 %v1836
        %v4717 = vunpack.c.h.s8.bf16 %v1837
        %v4718 = vunpack.c.h.s8.bf16 %v1838
        %v4719 = vunpack.c.h.s8.bf16 %v1839
        %v4720 = vunpack.c.h.s8.bf16 %v1840
        %v4721 = vunpack.c.h.s8.bf16 %v1841
        %v4722 = vunpack.c.h.s8.bf16 %v1842
        %v4723 = vunpack.c.h.s8.bf16 %v1843
        %v4724 = vunpack.c.h.s8.bf16 %v1844
        %v4725 = vunpack.c.h.s8.bf16 %v1845
        %v4726 = vunpack.c.h.s8.bf16 %v1846
        %v4727 = vunpack.c.h.s8.bf16 %v1847
        %v4728 = vunpack.c.l.s8.bf16 %v1848
        %v4729 = vunpack.c.l.s8.bf16 %v1849
        %v4730 = vunpack.c.l.s8.bf16 %v1850
        %v4731 = vunpack.c.l.s8.bf16 %v1851
        %v4732 = vunpack.c.l.s8.bf16 %v1852
        %v4733 = vunpack.c.l.s8.bf16 %v1853
        %v4734 = vunpack.c.l.s8.bf16 %v1854
        %v4735 = vunpack.c.l.s8.bf16 %v1855
        %v4736 = vunpack.c.l.s8.bf16 %v1856
        %v4737 = vunpack.c.l.s8.bf16 %v1857
        %v4738 = vunpack.c.l.s8.bf16 %v1858
        %v4739 = vunpack.c.l.s8.bf16 %v1859
        %v4740 = vunpack.c.l.s8.bf16 %v1860
        %v4741 = vunpack.c.l.s8.bf16 %v1861
        %v4742 = vunpack.c.l.s8.bf16 %v1862
        %v4743 = vunpack.c.l.s8.bf16 %v1863
        %v4744 = vunpack.c.h.s8.bf16 %v1848
        %v4745 = vunpack.c.h.s8.bf16 %v1849
        %v4746 = vunpack.c.h.s8.bf16 %v1850
        %v4747 = vunpack.c.h.s8.bf16 %v1851
        %v4748 = vunpack.c.h.s8.bf16 %v1852
        %v4749 = vunpack.c.h.s8.bf16 %v1853
        %v4750 = vunpack.c.h.s8.bf16 %v1854
        %v4751 = vunpack.c.h.s8.bf16 %v1855
        %v4752 = vunpack.c.h.s8.bf16 %v1856
        %v4753 = vunpack.c.h.s8.bf16 %v1857
        %v4754 = vunpack.c.h.s8.bf16 %v1858
        %v4755 = vunpack.c.h.s8.bf16 %v1859
        %v4756 = vunpack.c.h.s8.bf16 %v1860
        %v4757 = vunpack.c.h.s8.bf16 %v1861
        %v4758 = vunpack.c.h.s8.bf16 %v1862
        %v4759 = vunpack.c.h.s8.bf16 %v1863
        %v4760 = vunpack.c.l.s8.bf16 %v1864
        %v4761 = vunpack.c.l.s8.bf16 %v1865
        %v4762 = vunpack.c.l.s8.bf16 %v1866
        %v4763 = vunpack.c.l.s8.bf16 %v1867
        %v4764 = vunpack.c.l.s8.bf16 %v1868
        %v4765 = vunpack.c.l.s8.bf16 %v1869
        %v4766 = vunpack.c.l.s8.bf16 %v1870
        %v4767 = vunpack.c.l.s8.bf16 %v1871
        %v4768 = vunpack.c.l.s8.bf16 %v1872
        %v4769 = vunpack.c.l.s8.bf16 %v1873
        %v4770 = vunpack.c.l.s8.bf16 %v1874
        %v4771 = vunpack.c.l.s8.bf16 %v1875
        %v4772 = vunpack.c.l.s8.bf16 %v1876
        %v4773 = vunpack.c.l.s8.bf16 %v1877
        %v4774 = vunpack.c.l.s8.bf16 %v1878
        %v4775 = vunpack.c.l.s8.bf16 %v1879
        %v4776 = vunpack.c.h.s8.bf16 %v1864
        %v4777 = vunpack.c.h.s8.bf16 %v1865
        %v4778 = vunpack.c.h.s8.bf16 %v1866
        %v4779 = vunpack.c.h.s8.bf16 %v1867
        %v4780 = vunpack.c.h.s8.bf16 %v1868
        %v4781 = vunpack.c.h.s8.bf16 %v1869
        %v4782 = vunpack.c.h.s8.bf16 %v1870
        %v4783 = vunpack.c.h.s8.bf16 %v1871
        %v4784 = vunpack.c.h.s8.bf16 %v1872
        %v4785 = vunpack.c.h.s8.bf16 %v1873
        %v4786 = vunpack.c.h.s8.bf16 %v1874
        %v4787 = vunpack.c.h.s8.bf16 %v1875
        %v4788 = vunpack.c.h.s8.bf16 %v1876
        %v4789 = vunpack.c.h.s8.bf16 %v1877
        %v4790 = vunpack.c.h.s8.bf16 %v1878
        %v4791 = vunpack.c.h.s8.bf16 %v1879
        %v4792 = vunpack.c.l.s8.bf16 %v1880
        %v4793 = vunpack.c.l.s8.bf16 %v1881
        %v4794 = vunpack.c.l.s8.bf16 %v1882
        %v4795 = vunpack.c.l.s8.bf16 %v1883
        %v4796 = vunpack.c.l.s8.bf16 %v1884
        %v4797 = vunpack.c.l.s8.bf16 %v1885
        %v4798 = vunpack.c.l.s8.bf16 %v1886
        %v4799 = vunpack.c.l.s8.bf16 %v1887
        %v4800 = vunpack.c.l.s8.bf16 %v1888
        %v4801 = vunpack.c.l.s8.bf16 %v1889
        %v4802 = vunpack.c.l.s8.bf16 %v1890
        %v4803 = vunpack.c.l.s8.bf16 %v1891
        %v4804 = vunpack.c.l.s8.bf16 %v1892
        %v4805 = vunpack.c.l.s8.bf16 %v1893
        %v4806 = vunpack.c.l.s8.bf16 %v1894
        %v4807 = vunpack.c.l.s8.bf16 %v1895
        %v4808 = vunpack.c.h.s8.bf16 %v1880
        %v4809 = vunpack.c.h.s8.bf16 %v1881
        %v4810 = vunpack.c.h.s8.bf16 %v1882
        %v4811 = vunpack.c.h.s8.bf16 %v1883
        %v4812 = vunpack.c.h.s8.bf16 %v1884
        %v4813 = vunpack.c.h.s8.bf16 %v1885
        %v4814 = vunpack.c.h.s8.bf16 %v1886
        %v4815 = vunpack.c.h.s8.bf16 %v1887
        %v4816 = vunpack.c.h.s8.bf16 %v1888
        %v4817 = vunpack.c.h.s8.bf16 %v1889
        %v4818 = vunpack.c.h.s8.bf16 %v1890
        %v4819 = vunpack.c.h.s8.bf16 %v1891
        %v4820 = vunpack.c.h.s8.bf16 %v1892
        %v4821 = vunpack.c.h.s8.bf16 %v1893
        %v4822 = vunpack.c.h.s8.bf16 %v1894
        %v4823 = vunpack.c.h.s8.bf16 %v1895
        %v4824 = vunpack.c.l.s8.bf16 %v1896
        %v4825 = vunpack.c.l.s8.bf16 %v1897
        %v4826 = vunpack.c.l.s8.bf16 %v1898
        %v4827 = vunpack.c.l.s8.bf16 %v1899
        %v4828 = vunpack.c.l.s8.bf16 %v1900
        %v4829 = vunpack.c.l.s8.bf16 %v1901
        %v4830 = vunpack.c.l.s8.bf16 %v1902
        %v4831 = vunpack.c.l.s8.bf16 %v1903
        %v4832 = vunpack.c.l.s8.bf16 %v1904
        %v4833 = vunpack.c.l.s8.bf16 %v1905
        %v4834 = vunpack.c.l.s8.bf16 %v1906
        %v4835 = vunpack.c.l.s8.bf16 %v1907
        %v4836 = vunpack.c.l.s8.bf16 %v1908
        %v4837 = vunpack.c.l.s8.bf16 %v1909
        %v4838 = vunpack.c.l.s8.bf16 %v1910
        %v4839 = vunpack.c.l.s8.bf16 %v1911
        %v4840 = vunpack.c.h.s8.bf16 %v1896
        %v4841 = vunpack.c.h.s8.bf16 %v1897
        %v4842 = vunpack.c.h.s8.bf16 %v1898
        %v4843 = vunpack.c.h.s8.bf16 %v1899
        %v4844 = vunpack.c.h.s8.bf16 %v1900
        %v4845 = vunpack.c.h.s8.bf16 %v1901
        %v4846 = vunpack.c.h.s8.bf16 %v1902
        %v4847 = vunpack.c.h.s8.bf16 %v1903
        %v4848 = vunpack.c.h.s8.bf16 %v1904
        %v4849 = vunpack.c.h.s8.bf16 %v1905
        %v4850 = vunpack.c.h.s8.bf16 %v1906
        %v4851 = vunpack.c.h.s8.bf16 %v1907
        %v4852 = vunpack.c.h.s8.bf16 %v1908
        %v4853 = vunpack.c.h.s8.bf16 %v1909
        %v4854 = vunpack.c.h.s8.bf16 %v1910
        %v4855 = vunpack.c.h.s8.bf16 %v1911
        %v4856 = vunpack.c.l.s8.bf16 %v1912
        %v4857 = vunpack.c.l.s8.bf16 %v1913
        %v4858 = vunpack.c.l.s8.bf16 %v1914
        %v4859 = vunpack.c.l.s8.bf16 %v1915
        %v4860 = vunpack.c.l.s8.bf16 %v1916
        %v4861 = vunpack.c.l.s8.bf16 %v1917
        %v4862 = vunpack.c.l.s8.bf16 %v1918
        %v4863 = vunpack.c.l.s8.bf16 %v1919
        %v4864 = vunpack.c.l.s8.bf16 %v1920
        %v4865 = vunpack.c.l.s8.bf16 %v1921
        %v4866 = vunpack.c.l.s8.bf16 %v1922
        %v4867 = vunpack.c.l.s8.bf16 %v1923
        %v4868 = vunpack.c.l.s8.bf16 %v1924
        %v4869 = vunpack.c.l.s8.bf16 %v1925
        %v4870 = vunpack.c.l.s8.bf16 %v1926
        %v4871 = vunpack.c.l.s8.bf16 %v1927
        %v4872 = vunpack.c.h.s8.bf16 %v1912
        %v4873 = vunpack.c.h.s8.bf16 %v1913
        %v4874 = vunpack.c.h.s8.bf16 %v1914
        %v4875 = vunpack.c.h.s8.bf16 %v1915
        %v4876 = vunpack.c.h.s8.bf16 %v1916
        %v4877 = vunpack.c.h.s8.bf16 %v1917
        %v4878 = vunpack.c.h.s8.bf16 %v1918
        %v4879 = vunpack.c.h.s8.bf16 %v1919
        %v4880 = vunpack.c.h.s8.bf16 %v1920
        %v4881 = vunpack.c.h.s8.bf16 %v1921
        %v4882 = vunpack.c.h.s8.bf16 %v1922
        %v4883 = vunpack.c.h.s8.bf16 %v1923
        %v4884 = vunpack.c.h.s8.bf16 %v1924
        %v4885 = vunpack.c.h.s8.bf16 %v1925
        %v4886 = vunpack.c.h.s8.bf16 %v1926
        %v4887 = vunpack.c.h.s8.bf16 %v1927
        %v4888 = vunpack.c.l.s8.bf16 %v1928
        %v4889 = vunpack.c.l.s8.bf16 %v1929
        %v4890 = vunpack.c.l.s8.bf16 %v1930
        %v4891 = vunpack.c.l.s8.bf16 %v1931
        %v4892 = vunpack.c.l.s8.bf16 %v1932
        %v4893 = vunpack.c.l.s8.bf16 %v1933
        %v4894 = vunpack.c.l.s8.bf16 %v1934
        %v4895 = vunpack.c.l.s8.bf16 %v1935
        %v4896 = vunpack.c.l.s8.bf16 %v1936
        %v4897 = vunpack.c.l.s8.bf16 %v1937
        %v4898 = vunpack.c.l.s8.bf16 %v1938
        %v4899 = vunpack.c.l.s8.bf16 %v1939
        %v4900 = vunpack.c.l.s8.bf16 %v1940
        %v4901 = vunpack.c.l.s8.bf16 %v1941
        %v4902 = vunpack.c.l.s8.bf16 %v1942
        %v4903 = vunpack.c.l.s8.bf16 %v1943
        %v4904 = vunpack.c.h.s8.bf16 %v1928
        %v4905 = vunpack.c.h.s8.bf16 %v1929
        %v4906 = vunpack.c.h.s8.bf16 %v1930
        %v4907 = vunpack.c.h.s8.bf16 %v1931
        %v4908 = vunpack.c.h.s8.bf16 %v1932
        %v4909 = vunpack.c.h.s8.bf16 %v1933
        %v4910 = vunpack.c.h.s8.bf16 %v1934
        %v4911 = vunpack.c.h.s8.bf16 %v1935
        %v4912 = vunpack.c.h.s8.bf16 %v1936
        %v4913 = vunpack.c.h.s8.bf16 %v1937
        %v4914 = vunpack.c.h.s8.bf16 %v1938
        %v4915 = vunpack.c.h.s8.bf16 %v1939
        %v4916 = vunpack.c.h.s8.bf16 %v1940
        %v4917 = vunpack.c.h.s8.bf16 %v1941
        %v4918 = vunpack.c.h.s8.bf16 %v1942
        %v4919 = vunpack.c.h.s8.bf16 %v1943
        %v4920 = vunpack.c.l.s8.bf16 %v1944
        %v4921 = vunpack.c.l.s8.bf16 %v1945
        %v4922 = vunpack.c.l.s8.bf16 %v1946
        %v4923 = vunpack.c.l.s8.bf16 %v1947
        %v4924 = vunpack.c.l.s8.bf16 %v1948
        %v4925 = vunpack.c.l.s8.bf16 %v1949
        %v4926 = vunpack.c.l.s8.bf16 %v1950
        %v4927 = vunpack.c.l.s8.bf16 %v1951
        %v4928 = vunpack.c.l.s8.bf16 %v1952
        %v4929 = vunpack.c.l.s8.bf16 %v1953
        %v4930 = vunpack.c.l.s8.bf16 %v1954
        %v4931 = vunpack.c.l.s8.bf16 %v1955
        %v4932 = vunpack.c.l.s8.bf16 %v1956
        %v4933 = vunpack.c.l.s8.bf16 %v1957
        %v4934 = vunpack.c.l.s8.bf16 %v1958
        %v4935 = vunpack.c.l.s8.bf16 %v1959
        %v4936 = vunpack.c.h.s8.bf16 %v1944
        %v4937 = vunpack.c.h.s8.bf16 %v1945
        %v4938 = vunpack.c.h.s8.bf16 %v1946
        %v4939 = vunpack.c.h.s8.bf16 %v1947
        %v4940 = vunpack.c.h.s8.bf16 %v1948
        %v4941 = vunpack.c.h.s8.bf16 %v1949
        %v4942 = vunpack.c.h.s8.bf16 %v1950
        %v4943 = vunpack.c.h.s8.bf16 %v1951
        %v4944 = vunpack.c.h.s8.bf16 %v1952
        %v4945 = vunpack.c.h.s8.bf16 %v1953
        %v4946 = vunpack.c.h.s8.bf16 %v1954
        %v4947 = vunpack.c.h.s8.bf16 %v1955
        %v4948 = vunpack.c.h.s8.bf16 %v1956
        %v4949 = vunpack.c.h.s8.bf16 %v1957
        %v4950 = vunpack.c.h.s8.bf16 %v1958
        %v4951 = vunpack.c.h.s8.bf16 %v1959
        %v4952 = vunpack.c.l.s8.bf16 %v1960
        %v4953 = vunpack.c.l.s8.bf16 %v1961
        %v4954 = vunpack.c.l.s8.bf16 %v1962
        %v4955 = vunpack.c.l.s8.bf16 %v1963
        %v4956 = vunpack.c.l.s8.bf16 %v1964
        %v4957 = vunpack.c.l.s8.bf16 %v1965
        %v4958 = vunpack.c.l.s8.bf16 %v1966
        %v4959 = vunpack.c.l.s8.bf16 %v1967
        %v4960 = vunpack.c.l.s8.bf16 %v1968
        %v4961 = vunpack.c.l.s8.bf16 %v1969
        %v4962 = vunpack.c.l.s8.bf16 %v1970
        %v4963 = vunpack.c.l.s8.bf16 %v1971
        %v4964 = vunpack.c.l.s8.bf16 %v1972
        %v4965 = vunpack.c.l.s8.bf16 %v1973
        %v4966 = vunpack.c.l.s8.bf16 %v1974
        %v4967 = vunpack.c.l.s8.bf16 %v1975
        %v4968 = vunpack.c.h.s8.bf16 %v1960
        %v4969 = vunpack.c.h.s8.bf16 %v1961
        %v4970 = vunpack.c.h.s8.bf16 %v1962
        %v4971 = vunpack.c.h.s8.bf16 %v1963
        %v4972 = vunpack.c.h.s8.bf16 %v1964
        %v4973 = vunpack.c.h.s8.bf16 %v1965
        %v4974 = vunpack.c.h.s8.bf16 %v1966
        %v4975 = vunpack.c.h.s8.bf16 %v1967
        %v4976 = vunpack.c.h.s8.bf16 %v1968
        %v4977 = vunpack.c.h.s8.bf16 %v1969
        %v4978 = vunpack.c.h.s8.bf16 %v1970
        %v4979 = vunpack.c.h.s8.bf16 %v1971
        %v4980 = vunpack.c.h.s8.bf16 %v1972
        %v4981 = vunpack.c.h.s8.bf16 %v1973
        %v4982 = vunpack.c.h.s8.bf16 %v1974
        %v4983 = vunpack.c.h.s8.bf16 %v1975
        %v4984 = vunpack.c.l.s8.bf16 %v1976
        %v4985 = vunpack.c.l.s8.bf16 %v1977
        %v4986 = vunpack.c.l.s8.bf16 %v1978
        %v4987 = vunpack.c.l.s8.bf16 %v1979
        %v4988 = vunpack.c.l.s8.bf16 %v1980
        %v4989 = vunpack.c.l.s8.bf16 %v1981
        %v4990 = vunpack.c.l.s8.bf16 %v1982
        %v4991 = vunpack.c.l.s8.bf16 %v1983
        %v4992 = vunpack.c.l.s8.bf16 %v1984
        %v4993 = vunpack.c.l.s8.bf16 %v1985
        %v4994 = vunpack.c.l.s8.bf16 %v1986
        %v4995 = vunpack.c.l.s8.bf16 %v1987
        %v4996 = vunpack.c.l.s8.bf16 %v1988
        %v4997 = vunpack.c.l.s8.bf16 %v1989
        %v4998 = vunpack.c.l.s8.bf16 %v1990
        %v4999 = vunpack.c.l.s8.bf16 %v1991
        %v5000 = vunpack.c.h.s8.bf16 %v1976
        %v5001 = vunpack.c.h.s8.bf16 %v1977
        %v5002 = vunpack.c.h.s8.bf16 %v1978
        %v5003 = vunpack.c.h.s8.bf16 %v1979
        %v5004 = vunpack.c.h.s8.bf16 %v1980
        %v5005 = vunpack.c.h.s8.bf16 %v1981
        %v5006 = vunpack.c.h.s8.bf16 %v1982
        %v5007 = vunpack.c.h.s8.bf16 %v1983
        %v5008 = vunpack.c.h.s8.bf16 %v1984
        %v5009 = vunpack.c.h.s8.bf16 %v1985
        %v5010 = vunpack.c.h.s8.bf16 %v1986
        %v5011 = vunpack.c.h.s8.bf16 %v1987
        %v5012 = vunpack.c.h.s8.bf16 %v1988
        %v5013 = vunpack.c.h.s8.bf16 %v1989
        %v5014 = vunpack.c.h.s8.bf16 %v1990
        %v5015 = vunpack.c.h.s8.bf16 %v1991
        %v5016 = vunpack.c.l.s8.bf16 %v1992
        %v5017 = vunpack.c.l.s8.bf16 %v1993
        %v5018 = vunpack.c.l.s8.bf16 %v1994
        %v5019 = vunpack.c.l.s8.bf16 %v1995
        %v5020 = vunpack.c.l.s8.bf16 %v1996
        %v5021 = vunpack.c.l.s8.bf16 %v1997
        %v5022 = vunpack.c.l.s8.bf16 %v1998
        %v5023 = vunpack.c.l.s8.bf16 %v1999
        %v5024 = vunpack.c.l.s8.bf16 %v2000
        %v5025 = vunpack.c.l.s8.bf16 %v2001
        %v5026 = vunpack.c.l.s8.bf16 %v2002
        %v5027 = vunpack.c.l.s8.bf16 %v2003
        %v5028 = vunpack.c.l.s8.bf16 %v2004
        %v5029 = vunpack.c.l.s8.bf16 %v2005
        %v5030 = vunpack.c.l.s8.bf16 %v2006
        %v5031 = vunpack.c.l.s8.bf16 %v2007
        %v5032 = vunpack.c.h.s8.bf16 %v1992
        %v5033 = vunpack.c.h.s8.bf16 %v1993
        %v5034 = vunpack.c.h.s8.bf16 %v1994
        %v5035 = vunpack.c.h.s8.bf16 %v1995
        %v5036 = vunpack.c.h.s8.bf16 %v1996
        %v5037 = vunpack.c.h.s8.bf16 %v1997
        %v5038 = vunpack.c.h.s8.bf16 %v1998
        %v5039 = vunpack.c.h.s8.bf16 %v1999
        %v5040 = vunpack.c.h.s8.bf16 %v2000
        %v5041 = vunpack.c.h.s8.bf16 %v2001
        %v5042 = vunpack.c.h.s8.bf16 %v2002
        %v5043 = vunpack.c.h.s8.bf16 %v2003
        %v5044 = vunpack.c.h.s8.bf16 %v2004
        %v5045 = vunpack.c.h.s8.bf16 %v2005
        %v5046 = vunpack.c.h.s8.bf16 %v2006
        %v5047 = vunpack.c.h.s8.bf16 %v2007
        %v5048 = vunpack.c.l.s8.bf16 %v2008
        %v5049 = vunpack.c.l.s8.bf16 %v2009
        %v5050 = vunpack.c.l.s8.bf16 %v2010
        %v5051 = vunpack.c.l.s8.bf16 %v2011
        %v5052 = vunpack.c.l.s8.bf16 %v2012
        %v5053 = vunpack.c.l.s8.bf16 %v2013
        %v5054 = vunpack.c.l.s8.bf16 %v2014
        %v5055 = vunpack.c.l.s8.bf16 %v2015
        %v5056 = vunpack.c.l.s8.bf16 %v2016
        %v5057 = vunpack.c.l.s8.bf16 %v2017
        %v5058 = vunpack.c.l.s8.bf16 %v2018
        %v5059 = vunpack.c.l.s8.bf16 %v2019
        %v5060 = vunpack.c.l.s8.bf16 %v2020
        %v5061 = vunpack.c.l.s8.bf16 %v2021
        %v5062 = vunpack.c.l.s8.bf16 %v2022
        %v5063 = vunpack.c.l.s8.bf16 %v2023
        %v5064 = vunpack.c.h.s8.bf16 %v2008
        %v5065 = vunpack.c.h.s8.bf16 %v2009
        %v5066 = vunpack.c.h.s8.bf16 %v2010
        %v5067 = vunpack.c.h.s8.bf16 %v2011
        %v5068 = vunpack.c.h.s8.bf16 %v2012
        %v5069 = vunpack.c.h.s8.bf16 %v2013
        %v5070 = vunpack.c.h.s8.bf16 %v2014
        %v5071 = vunpack.c.h.s8.bf16 %v2015
        %v5072 = vunpack.c.h.s8.bf16 %v2016
        %v5073 = vunpack.c.h.s8.bf16 %v2017
        %v5074 = vunpack.c.h.s8.bf16 %v2018
        %v5075 = vunpack.c.h.s8.bf16 %v2019
        %v5076 = vunpack.c.h.s8.bf16 %v2020
        %v5077 = vunpack.c.h.s8.bf16 %v2021
        %v5078 = vunpack.c.h.s8.bf16 %v2022
        %v5079 = vunpack.c.h.s8.bf16 %v2023
        %v5080 = vunpack.c.l.s8.bf16 %v2024
        %v5081 = vunpack.c.l.s8.bf16 %v2025
        %v5082 = vunpack.c.l.s8.bf16 %v2026
        %v5083 = vunpack.c.l.s8.bf16 %v2027
        %v5084 = vunpack.c.l.s8.bf16 %v2028
        %v5085 = vunpack.c.l.s8.bf16 %v2029
        %v5086 = vunpack.c.l.s8.bf16 %v2030
        %v5087 = vunpack.c.l.s8.bf16 %v2031
        %v5088 = vunpack.c.l.s8.bf16 %v2032
        %v5089 = vunpack.c.l.s8.bf16 %v2033
        %v5090 = vunpack.c.l.s8.bf16 %v2034
        %v5091 = vunpack.c.l.s8.bf16 %v2035
        %v5092 = vunpack.c.l.s8.bf16 %v2036
        %v5093 = vunpack.c.l.s8.bf16 %v2037
        %v5094 = vunpack.c.l.s8.bf16 %v2038
        %v5095 = vunpack.c.l.s8.bf16 %v2039
        %v5096 = vunpack.c.h.s8.bf16 %v2024
        %v5097 = vunpack.c.h.s8.bf16 %v2025
        %v5098 = vunpack.c.h.s8.bf16 %v2026
        %v5099 = vunpack.c.h.s8.bf16 %v2027
        %v5100 = vunpack.c.h.s8.bf16 %v2028
        %v5101 = vunpack.c.h.s8.bf16 %v2029
        %v5102 = vunpack.c.h.s8.bf16 %v2030
        %v5103 = vunpack.c.h.s8.bf16 %v2031
        %v5104 = vunpack.c.h.s8.bf16 %v2032
        %v5105 = vunpack.c.h.s8.bf16 %v2033
        %v5106 = vunpack.c.h.s8.bf16 %v2034
        %v5107 = vunpack.c.h.s8.bf16 %v2035
        %v5108 = vunpack.c.h.s8.bf16 %v2036
        %v5109 = vunpack.c.h.s8.bf16 %v2037
        %v5110 = vunpack.c.h.s8.bf16 %v2038
        %v5111 = vunpack.c.h.s8.bf16 %v2039
        %5112 = vmatprep.subr.bf16.mxu0 %v2041
        %5113 = vmatpush1.bf16.msra.mxu0 %v2040
        %5114 = vmatprep.subr.bf16.mxu0 %v2057
        %5115 = vmatpush1.bf16.msra.mxu0 %v2056
        %5116 = vmatprep.subr.bf16.mxu0 %v2073
        %5117 = vmatpush1.bf16.msra.mxu0 %v2072
        %5118 = vmatprep.subr.bf16.mxu0 %v2089
        %5119 = vmatpush1.bf16.msra.mxu0 %v2088
        %5120 = vmatprep.subr.bf16.mxu0 %v2105
        %5121 = vmatpush1.bf16.msra.mxu0 %v2104
        %5122 = vmatprep.subr.bf16.mxu0 %v2121
        %5123 = vmatpush1.bf16.msra.mxu0 %v2120
        %5124 = vmatprep.subr.bf16.mxu0 %v2137
        %5125 = vmatpush1.bf16.msra.mxu0 %v2136
        %5126 = vmatprep.subr.bf16.mxu0 %v2153
        %5127 = vmatpush1.bf16.msra.mxu0 %v2152
        %5128 = vmatprep.subr.bf16.mxu0 %v2169
        %5129 = vmatpush1.bf16.msra.mxu0 %v2168
        %5130 = vmatprep.subr.bf16.mxu0 %v2185
        %5131 = vmatpush1.bf16.msra.mxu0 %v2184
        %5132 = vmatprep.subr.bf16.mxu0 %v2201
        %5133 = vmatpush1.bf16.msra.mxu0 %v2200
        %5134 = vmatprep.subr.bf16.mxu0 %v2217
        %5135 = vmatpush1.bf16.msra.mxu0 %v2216
        %5136 = vmatprep.subr.bf16.mxu0 %v2233
        %5137 = vmatpush1.bf16.msra.mxu0 %v2232
        %5138 = vmatprep.subr.bf16.mxu0 %v2249
        %5139 = vmatpush1.bf16.msra.mxu0 %v2248
        %5140 = vmatprep.subr.bf16.mxu0 %v2265
        %5141 = vmatpush1.bf16.msra.mxu0 %v2264
        %5142 = vmatprep.subr.bf16.mxu0 %v2281
        %5143 = vmatpush1.bf16.msra.mxu0 %v2280
        %5144 = vmatprep.mubr.bf16.mxu0 %v481
        %5145 = vmatmul.mubr.bf16.gmra.mrb[0].mxu0 %v480
        %v5146 = vpop.f32.mrb[0].mxu0
        %v5147 = vadd.f32 0.0, %v5146
        %v5148 = vpop.f32.mrb[0].mxu0
        %v5149 = vadd.f32 0.0, %v5148
        %v5150 = vpop.f32.mrb[0].mxu0
        %v5151 = vpop.f32.mrb[0].mxu0
        %5152 = vdwg.mxu0
        %5153 = vmatprep.subr.bf16.mxu0 %v2297
        %5154 = vmatpush1.bf16.msra.mxu0 %v2296
        %5155 = vmatprep.subr.bf16.mxu0 %v2313
        %5156 = vmatpush1.bf16.msra.mxu0 %v2312
        %5157 = vmatprep.subr.bf16.mxu0 %v2329
        %5158 = vmatpush1.bf16.msra.mxu0 %v2328
        %5159 = vmatprep.subr.bf16.mxu0 %v2345
        %5160 = vmatpush1.bf16.msra.mxu0 %v2344
        %5161 = vmatprep.subr.bf16.mxu0 %v2361
        %5162 = vmatpush1.bf16.msra.mxu0 %v2360
        %5163 = vmatprep.subr.bf16.mxu0 %v2377
        %5164 = vmatpush1.bf16.msra.mxu0 %v2376
        %5165 = vmatprep.subr.bf16.mxu0 %v2393
        %5166 = vmatpush1.bf16.msra.mxu0 %v2392
        %5167 = vmatprep.subr.bf16.mxu0 %v2409
        %5168 = vmatpush1.bf16.msra.mxu0 %v2408
        %5169 = vmatprep.subr.bf16.mxu0 %v2425
        %5170 = vmatpush1.bf16.msra.mxu0 %v2424
        %5171 = vmatprep.subr.bf16.mxu0 %v2441
        %5172 = vmatpush1.bf16.msra.mxu0 %v2440
        %5173 = vmatprep.subr.bf16.mxu0 %v2457
        %5174 = vmatpush1.bf16.msra.mxu0 %v2456
        %5175 = vmatprep.subr.bf16.mxu0 %v2473
        %5176 = vmatpush1.bf16.msra.mxu0 %v2472
        %5177 = vmatprep.subr.bf16.mxu0 %v2489
        %5178 = vmatpush1.bf16.msra.mxu0 %v2488
        %5179 = vmatprep.subr.bf16.mxu0 %v2505
        %5180 = vmatpush1.bf16.msra.mxu0 %v2504
        %5181 = vmatprep.subr.bf16.mxu0 %v2521
        %5182 = vmatpush1.bf16.msra.mxu0 %v2520
        %5183 = vmatprep.subr.bf16.mxu0 %v2537
        %5184 = vmatpush1.bf16.msra.mxu0 %v2536
        %5185 = vmatprep.mubr.bf16.mxu0 %v483
        %5186 = vmatmul.mubr.bf16.gmra.mrb[0].mxu0 %v482
        %v5187 = vpop.f32.mrb[0].mxu0
        %v5188 = vadd.f32 %v5147, %v5187
        %v5189 = vpop.f32.mrb[0].mxu0
        %v5190 = vadd.f32 %v5149, %v5189
        %v5191 = vpop.f32.mrb[0].mxu0
        %v5192 = vpop.f32.mrb[0].mxu0
        %5193 = vdwg.mxu0
        %5194 = vmatprep.subr.bf16.mxu0 %v2553
        %5195 = vmatpush1.bf16.msra.mxu0 %v2552
        %5196 = vmatprep.subr.bf16.mxu0 %v2569
        %5197 = vmatpush1.bf16.msra.mxu0 %v2568
        %5198 = vmatprep.subr.bf16.mxu0 %v2585
        %5199 = vmatpush1.bf16.msra.mxu0 %v2584
        %5200 = vmatprep.subr.bf16.mxu0 %v2601
        %5201 = vmatpush1.bf16.msra.mxu0 %v2600
        %5202 = vmatprep.subr.bf16.mxu0 %v2617
        %5203 = vmatpush1.bf16.msra.mxu0 %v2616
        %5204 = vmatprep.subr.bf16.mxu0 %v2633
        %5205 = vmatpush1.bf16.msra.mxu0 %v2632
        %5206 = vmatprep.subr.bf16.mxu0 %v2649
        %5207 = vmatpush1.bf16.msra.mxu0 %v2648
        %5208 = vmatprep.subr.bf16.mxu0 %v2665
        %5209 = vmatpush1.bf16.msra.mxu0 %v2664
        %5210 = vmatprep.subr.bf16.mxu0 %v2681
        %5211 = vmatpush1.bf16.msra.mxu0 %v2680
        %5212 = vmatprep.subr.bf16.mxu0 %v2697
        %5213 = vmatpush1.bf16.msra.mxu0 %v2696
        %5214 = vmatprep.subr.bf16.mxu0 %v2713
        %5215 = vmatpush1.bf16.msra.mxu0 %v2712
        %5216 = vmatprep.subr.bf16.mxu0 %v2729
        %5217 = vmatpush1.bf16.msra.mxu0 %v2728
        %5218 = vmatprep.subr.bf16.mxu0 %v2745
        %5219 = vmatpush1.bf16.msra.mxu0 %v2744
        %5220 = vmatprep.subr.bf16.mxu0 %v2761
        %5221 = vmatpush1.bf16.msra.mxu0 %v2760
        %5222 = vmatprep.subr.bf16.mxu0 %v2777
        %5223 = vmatpush1.bf16.msra.mxu0 %v2776
        %5224 = vmatprep.subr.bf16.mxu0 %v2793
        %5225 = vmatpush1.bf16.msra.mxu0 %v2792
        %5226 = vmatprep.mubr.bf16.mxu0 %v485
        %5227 = vmatmul.mubr.bf16.gmra.mrb[0].mxu0 %v484
        %v5228 = vpop.f32.mrb[0].mxu0
        %v5229 = vadd.f32 %v5188, %v5228
        %v5230 = vpop.f32.mrb[0].mxu0
        %v5231 = vadd.f32 %v5190, %v5230
        %v5232 = vpop.f32.mrb[0].mxu0
        %v5233 = vpop.f32.mrb[0].mxu0
        %5234 = vdwg.mxu0
        %5235 = vmatprep.subr.bf16.mxu0 %v2809
        %5236 = vmatpush1.bf16.msra.mxu0 %v2808
        %5237 = vmatprep.subr.bf16.mxu0 %v2825
        %5238 = vmatpush1.bf16.msra.mxu0 %v2824
        %5239 = vmatprep.subr.bf16.mxu0 %v2841
        %5240 = vmatpush1.bf16.msra.mxu0 %v2840
        %5241 = vmatprep.subr.bf16.mxu0 %v2857
        %5242 = vmatpush1.bf16.msra.mxu0 %v2856
        %5243 = vmatprep.subr.bf16.mxu0 %v2873
        %5244 = vmatpush1.bf16.msra.mxu0 %v2872
        %5245 = vmatprep.subr.bf16.mxu0 %v2889
        %5246 = vmatpush1.bf16.msra.mxu0 %v2888
        %5247 = vmatprep.subr.bf16.mxu0 %v2905
        %5248 = vmatpush1.bf16.msra.mxu0 %v2904
        %5249 = vmatprep.subr.bf16.mxu0 %v2921
        %5250 = vmatpush1.bf16.msra.mxu0 %v2920
        %5251 = vmatprep.subr.bf16.mxu0 %v2937
        %5252 = vmatpush1.bf16.msra.mxu0 %v2936
        %5253 = vmatprep.subr.bf16.mxu0 %v2953
        %5254 = vmatpush1.bf16.msra.mxu0 %v2952
        %5255 = vmatprep.subr.bf16.mxu0 %v2969
        %5256 = vmatpush1.bf16.msra.mxu0 %v2968
        %5257 = vmatprep.subr.bf16.mxu0 %v2985
        %5258 = vmatpush1.bf16.msra.mxu0 %v2984
        %5259 = vmatprep.subr.bf16.mxu0 %v3001
        %5260 = vmatpush1.bf16.msra.mxu0 %v3000
        %5261 = vmatprep.subr.bf16.mxu0 %v3017
        %5262 = vmatpush1.bf16.msra.mxu0 %v3016
        %5263 = vmatprep.subr.bf16.mxu0 %v3033
        %5264 = vmatpush1.bf16.msra.mxu0 %v3032
        %5265 = vmatprep.subr.bf16.mxu0 %v3049
        %5266 = vmatpush1.bf16.msra.mxu0 %v3048
        %5267 = vmatprep.mubr.bf16.mxu0 %v487
        %5268 = vmatmul.mubr.bf16.gmra.mrb[0].mxu0 %v486
        %v5269 = vpop.f32.mrb[0].mxu0
        %v5270 = vadd.f32 %v5229, %v5269
        %v5271 = vpop.f32.mrb[0].mxu0
        %v5272 = vadd.f32 %v5231, %v5271
        %v5273 = vpop.f32.mrb[0].mxu0
        %v5274 = vpop.f32.mrb[0].mxu0
        %5275 = vdwg.mxu0
        %5276 = vmatprep.subr.bf16.mxu0 %v3065
        %5277 = vmatpush1.bf16.msra.mxu0 %v3064
        %5278 = vmatprep.subr.bf16.mxu0 %v3081
        %5279 = vmatpush1.bf16.msra.mxu0 %v3080
        %5280 = vmatprep.subr.bf16.mxu0 %v3097
        %5281 = vmatpush1.bf16.msra.mxu0 %v3096
        %5282 = vmatprep.subr.bf16.mxu0 %v3113
        %5283 = vmatpush1.bf16.msra.mxu0 %v3112
        %5284 = vmatprep.subr.bf16.mxu0 %v3129
        %5285 = vmatpush1.bf16.msra.mxu0 %v3128
        %5286 = vmatprep.subr.bf16.mxu0 %v3145
        %5287 = vmatpush1.bf16.msra.mxu0 %v3144
        %5288 = vmatprep.subr.bf16.mxu0 %v3161
        %5289 = vmatpush1.bf16.msra.mxu0 %v3160
        %5290 = vmatprep.subr.bf16.mxu0 %v3177
        %5291 = vmatpush1.bf16.msra.mxu0 %v3176
        %5292 = vmatprep.subr.bf16.mxu0 %v3193
        %5293 = vmatpush1.bf16.msra.mxu0 %v3192
        %5294 = vmatprep.subr.bf16.mxu0 %v3209
        %5295 = vmatpush1.bf16.msra.mxu0 %v3208
        %5296 = vmatprep.subr.bf16.mxu0 %v3225
        %5297 = vmatpush1.bf16.msra.mxu0 %v3224
        %5298 = vmatprep.subr.bf16.mxu0 %v3241
        %5299 = vmatpush1.bf16.msra.mxu0 %v3240
        %5300 = vmatprep.subr.bf16.mxu0 %v3257
        %5301 = vmatpush1.bf16.msra.mxu0 %v3256
        %5302 = vmatprep.subr.bf16.mxu0 %v3273
        %5303 = vmatpush1.bf16.msra.mxu0 %v3272
        %5304 = vmatprep.subr.bf16.mxu0 %v3289
        %5305 = vmatpush1.bf16.msra.mxu0 %v3288
        %5306 = vmatprep.subr.bf16.mxu0 %v3305
        %5307 = vmatpush1.bf16.msra.mxu0 %v3304
        %5308 = vmatprep.mubr.bf16.mxu0 %v489
        %5309 = vmatmul.mubr.bf16.gmra.mrb[0].mxu0 %v488
        %v5310 = vpop.f32.mrb[0].mxu0
        %v5311 = vadd.f32 %v5270, %v5310
        %v5312 = vpop.f32.mrb[0].mxu0
        %v5313 = vadd.f32 %v5272, %v5312
        %v5314 = vpop.f32.mrb[0].mxu0
        %v5315 = vpop.f32.mrb[0].mxu0
        %5316 = vdwg.mxu0
        %5317 = vmatprep.subr.bf16.mxu0 %v3321
        %5318 = vmatpush1.bf16.msra.mxu0 %v3320
        %5319 = vmatprep.subr.bf16.mxu0 %v3337
        %5320 = vmatpush1.bf16.msra.mxu0 %v3336
        %5321 = vmatprep.subr.bf16.mxu0 %v3353
        %5322 = vmatpush1.bf16.msra.mxu0 %v3352
        %5323 = vmatprep.subr.bf16.mxu0 %v3369
        %5324 = vmatpush1.bf16.msra.mxu0 %v3368
        %5325 = vmatprep.subr.bf16.mxu0 %v3385
        %5326 = vmatpush1.bf16.msra.mxu0 %v3384
        %5327 = vmatprep.subr.bf16.mxu0 %v3401
        %5328 = vmatpush1.bf16.msra.mxu0 %v3400
        %5329 = vmatprep.subr.bf16.mxu0 %v3417
        %5330 = vmatpush1.bf16.msra.mxu0 %v3416
        %5331 = vmatprep.subr.bf16.mxu0 %v3433
        %5332 = vmatpush1.bf16.msra.mxu0 %v3432
        %5333 = vmatprep.subr.bf16.mxu0 %v3449
        %5334 = vmatpush1.bf16.msra.mxu0 %v3448
        %5335 = vmatprep.subr.bf16.mxu0 %v3465
        %5336 = vmatpush1.bf16.msra.mxu0 %v3464
        %5337 = vmatprep.subr.bf16.mxu0 %v3481
        %5338 = vmatpush1.bf16.msra.mxu0 %v3480
        %5339 = vmatprep.subr.bf16.mxu0 %v3497
        %5340 = vmatpush1.bf16.msra.mxu0 %v3496
        %5341 = vmatprep.subr.bf16.mxu0 %v3513
        %5342 = vmatpush1.bf16.msra.mxu0 %v3512
        %5343 = vmatprep.subr.bf16.mxu0 %v3529
        %5344 = vmatpush1.bf16.msra.mxu0 %v3528
        %5345 = vmatprep.subr.bf16.mxu0 %v3545
        %5346 = vmatpush1.bf16.msra.mxu0 %v3544
        %5347 = vmatprep.subr.bf16.mxu0 %v3561
        %5348 = vmatpush1.bf16.msra.mxu0 %v3560
        %5349 = vmatprep.mubr.bf16.mxu0 %v491
        %5350 = vmatmul.mubr.bf16.gmra.mrb[0].mxu0 %v490
        %v5351 = vpop.f32.mrb[0].mxu0
        %v5352 = vadd.f32 %v5311, %v5351
        %v5353 = vpop.f32.mrb[0].mxu0
        %v5354 = vadd.f32 %v5313, %v5353
        %v5355 = vpop.f32.mrb[0].mxu0
        %v5356 = vpop.f32.mrb[0].mxu0
        %5357 = vdwg.mxu0
        %5358 = vmatprep.subr.bf16.mxu0 %v3577
        %5359 = vmatpush1.bf16.msra.mxu0 %v3576
        %5360 = vmatprep.subr.bf16.mxu0 %v3593
        %5361 = vmatpush1.bf16.msra.mxu0 %v3592
        %5362 = vmatprep.subr.bf16.mxu0 %v3609
        %5363 = vmatpush1.bf16.msra.mxu0 %v3608
        %5364 = vmatprep.subr.bf16.mxu0 %v3625
        %5365 = vmatpush1.bf16.msra.mxu0 %v3624
        %5366 = vmatprep.subr.bf16.mxu0 %v3641
        %5367 = vmatpush1.bf16.msra.mxu0 %v3640
        %5368 = vmatprep.subr.bf16.mxu0 %v3657
        %5369 = vmatpush1.bf16.msra.mxu0 %v3656
        %5370 = vmatprep.subr.bf16.mxu0 %v3673
        %5371 = vmatpush1.bf16.msra.mxu0 %v3672
        %5372 = vmatprep.subr.bf16.mxu0 %v3689
        %5373 = vmatpush1.bf16.msra.mxu0 %v3688
        %5374 = vmatprep.subr.bf16.mxu0 %v3705
        %5375 = vmatpush1.bf16.msra.mxu0 %v3704
        %5376 = vmatprep.subr.bf16.mxu0 %v3721
        %5377 = vmatpush1.bf16.msra.mxu0 %v3720
        %5378 = vmatprep.subr.bf16.mxu0 %v3737
        %5379 = vmatpush1.bf16.msra.mxu0 %v3736
        %5380 = vmatprep.subr.bf16.mxu0 %v3753
        %5381 = vmatpush1.bf16.msra.mxu0 %v3752
        %5382 = vmatprep.subr.bf16.mxu0 %v3769
        %5383 = vmatpush1.bf16.msra.mxu0 %v3768
        %5384 = vmatprep.subr.bf16.mxu0 %v3785
        %5385 = vmatpush1.bf16.msra.mxu0 %v3784
        %5386 = vmatprep.subr.bf16.mxu0 %v3801
        %5387 = vmatpush1.bf16.msra.mxu0 %v3800
        %5388 = vmatprep.subr.bf16.mxu0 %v3817
        %5389 = vmatpush1.bf16.msra.mxu0 %v3816
        %5390 = vmatprep.mubr.bf16.mxu0 %v493
        %5391 = vmatmul.mubr.bf16.gmra.mrb[0].mxu0 %v492
        %v5392 = vpop.f32.mrb[0].mxu0
        %v5393 = vadd.f32 %v5352, %v5392
        %v5394 = vpop.f32.mrb[0].mxu0
        %v5395 = vadd.f32 %v5354, %v5394
        %v5396 = vpop.f32.mrb[0].mxu0
        %v5397 = vpop.f32.mrb[0].mxu0
        %5398 = vdwg.mxu0
        %5399 = vmatprep.subr.bf16.mxu0 %v3833
        %5400 = vmatpush1.bf16.msra.mxu0 %v3832
        %5401 = vmatprep.subr.bf16.mxu0 %v3849
        %5402 = vmatpush1.bf16.msra.mxu0 %v3848
        %5403 = vmatprep.subr.bf16.mxu0 %v3865
        %5404 = vmatpush1.bf16.msra.mxu0 %v3864
        %5405 = vmatprep.subr.bf16.mxu0 %v3881
        %5406 = vmatpush1.bf16.msra.mxu0 %v3880
        %5407 = vmatprep.subr.bf16.mxu0 %v3897
        %5408 = vmatpush1.bf16.msra.mxu0 %v3896
        %5409 = vmatprep.subr.bf16.mxu0 %v3913
        %5410 = vmatpush1.bf16.msra.mxu0 %v3912
        %5411 = vmatprep.subr.bf16.mxu0 %v3929
        %5412 = vmatpush1.bf16.msra.mxu0 %v3928
        %5413 = vmatprep.subr.bf16.mxu0 %v3945
        %5414 = vmatpush1.bf16.msra.mxu0 %v3944
        %5415 = vmatprep.subr.bf16.mxu0 %v3961
        %5416 = vmatpush1.bf16.msra.mxu0 %v3960
        %5417 = vmatprep.subr.bf16.mxu0 %v3977
        %5418 = vmatpush1.bf16.msra.mxu0 %v3976
        %5419 = vmatprep.subr.bf16.mxu0 %v3993
        %5420 = vmatpush1.bf16.msra.mxu0 %v3992
        %5421 = vmatprep.subr.bf16.mxu0 %v4009
        %5422 = vmatpush1.bf16.msra.mxu0 %v4008
        %5423 = vmatprep.subr.bf16.mxu0 %v4025
        %5424 = vmatpush1.bf16.msra.mxu0 %v4024
        %5425 = vmatprep.subr.bf16.mxu0 %v4041
        %5426 = vmatpush1.bf16.msra.mxu0 %v4040
        %5427 = vmatprep.subr.bf16.mxu0 %v4057
        %5428 = vmatpush1.bf16.msra.mxu0 %v4056
        %5429 = vmatprep.subr.bf16.mxu0 %v4073
        %5430 = vmatpush1.bf16.msra.mxu0 %v4072
        %5431 = vmatprep.mubr.bf16.mxu0 %v495
        %5432 = vmatmul.mubr.bf16.gmra.mrb[0].mxu0 %v494
        %v5433 = vpop.f32.mrb[0].mxu0
        %v5434 = vadd.f32 %v5393, %v5433
        %v5435 = vpop.f32.mrb[0].mxu0
        %v5436 = vadd.f32 %v5395, %v5435
        %v5437 = vpop.f32.mrb[0].mxu0
        %v5438 = vpop.f32.mrb[0].mxu0
        %5439 = vdwg.mxu0
        %5440 = vmatprep.subr.bf16.mxu0 %v4089
        %5441 = vmatpush1.bf16.msra.mxu0 %v4088
        %5442 = vmatprep.subr.bf16.mxu0 %v4105
        %5443 = vmatpush1.bf16.msra.mxu0 %v4104
        %5444 = vmatprep.subr.bf16.mxu0 %v4121
        %5445 = vmatpush1.bf16.msra.mxu0 %v4120
        %5446 = vmatprep.subr.bf16.mxu0 %v4137
        %5447 = vmatpush1.bf16.msra.mxu0 %v4136
        %5448 = vmatprep.subr.bf16.mxu0 %v4153
        %5449 = vmatpush1.bf16.msra.mxu0 %v4152
        %5450 = vmatprep.subr.bf16.mxu0 %v4169
        %5451 = vmatpush1.bf16.msra.mxu0 %v4168
        %5452 = vmatprep.subr.bf16.mxu0 %v4185
        %5453 = vmatpush1.bf16.msra.mxu0 %v4184
        %5454 = vmatprep.subr.bf16.mxu0 %v4201
        %5455 = vmatpush1.bf16.msra.mxu0 %v4200
        %5456 = vmatprep.subr.bf16.mxu0 %v4217
        %5457 = vmatpush1.bf16.msra.mxu0 %v4216
        %5458 = vmatprep.subr.bf16.mxu0 %v4233
        %5459 = vmatpush1.bf16.msra.mxu0 %v4232
        %5460 = vmatprep.subr.bf16.mxu0 %v4249
        %5461 = vmatpush1.bf16.msra.mxu0 %v4248
        %5462 = vmatprep.subr.bf16.mxu0 %v4265
        %5463 = vmatpush1.bf16.msra.mxu0 %v4264
        %5464 = vmatprep.subr.bf16.mxu0 %v4281
        %5465 = vmatpush1.bf16.msra.mxu0 %v4280
        %5466 = vmatprep.subr.bf16.mxu0 %v4297
        %5467 = vmatpush1.bf16.msra.mxu0 %v4296
        %5468 = vmatprep.subr.bf16.mxu0 %v4313
        %5469 = vmatpush1.bf16.msra.mxu0 %v4312
        %5470 = vmatprep.subr.bf16.mxu0 %v4329
        %5471 = vmatpush1.bf16.msra.mxu0 %v4328
        %5472 = vmatprep.mubr.bf16.mxu0 %v497
        %5473 = vmatmul.mubr.bf16.gmra.mrb[0].mxu0 %v496
        %v5474 = vpop.f32.mrb[0].mxu0
        %v5475 = vadd.f32 %v5434, %v5474
        %v5476 = vpop.f32.mrb[0].mxu0
        %v5477 = vadd.f32 %v5436, %v5476
        %v5478 = vpop.f32.mrb[0].mxu0
        %v5479 = vpop.f32.mrb[0].mxu0
        %5480 = vdwg.mxu0
        %5481 = vmatprep.subr.bf16.mxu0 %v4345
        %5482 = vmatpush1.bf16.msra.mxu0 %v4344
        %5483 = vmatprep.subr.bf16.mxu0 %v4361
        %5484 = vmatpush1.bf16.msra.mxu0 %v4360
        %5485 = vmatprep.subr.bf16.mxu0 %v4377
        %5486 = vmatpush1.bf16.msra.mxu0 %v4376
        %5487 = vmatprep.subr.bf16.mxu0 %v4393
        %5488 = vmatpush1.bf16.msra.mxu0 %v4392
        %5489 = vmatprep.subr.bf16.mxu0 %v4409
        %5490 = vmatpush1.bf16.msra.mxu0 %v4408
        %5491 = vmatprep.subr.bf16.mxu0 %v4425
        %5492 = vmatpush1.bf16.msra.mxu0 %v4424
        %5493 = vmatprep.subr.bf16.mxu0 %v4441
        %5494 = vmatpush1.bf16.msra.mxu0 %v4440
        %5495 = vmatprep.subr.bf16.mxu0 %v4457
        %5496 = vmatpush1.bf16.msra.mxu0 %v4456
        %5497 = vmatprep.subr.bf16.mxu0 %v4473
        %5498 = vmatpush1.bf16.msra.mxu0 %v4472
        %5499 = vmatprep.subr.bf16.mxu0 %v4489
        %5500 = vmatpush1.bf16.msra.mxu0 %v4488
        %5501 = vmatprep.subr.bf16.mxu0 %v4505
        %5502 = vmatpush1.bf16.msra.mxu0 %v4504
        %5503 = vmatprep.subr.bf16.mxu0 %v4521
        %5504 = vmatpush1.bf16.msra.mxu0 %v4520
        %5505 = vmatprep.subr.bf16.mxu0 %v4537
        %5506 = vmatpush1.bf16.msra.mxu0 %v4536
        %5507 = vmatprep.subr.bf16.mxu0 %v4553
        %5508 = vmatpush1.bf16.msra.mxu0 %v4552
        %5509 = vmatprep.subr.bf16.mxu0 %v4569
        %5510 = vmatpush1.bf16.msra.mxu0 %v4568
        %5511 = vmatprep.subr.bf16.mxu0 %v4585
        %5512 = vmatpush1.bf16.msra.mxu0 %v4584
        %5513 = vmatprep.mubr.bf16.mxu0 %v499
        %5514 = vmatmul.mubr.bf16.gmra.mrb[0].mxu0 %v498
        %v5515 = vpop.f32.mrb[0].mxu0
        %v5516 = vadd.f32 %v5475, %v5515
        %v5517 = vpop.f32.mrb[0].mxu0
        %v5518 = vadd.f32 %v5477, %v5517
        %v5519 = vpop.f32.mrb[0].mxu0
        %v5520 = vpop.f32.mrb[0].mxu0
        %5521 = vdwg.mxu0
        %5522 = vmatprep.subr.bf16.mxu0 %v4601
        %5523 = vmatpush1.bf16.msra.mxu0 %v4600
        %5524 = vmatprep.subr.bf16.mxu0 %v4617
        %5525 = vmatpush1.bf16.msra.mxu0 %v4616
        %5526 = vmatprep.subr.bf16.mxu0 %v4633
        %5527 = vmatpush1.bf16.msra.mxu0 %v4632
        %5528 = vmatprep.subr.bf16.mxu0 %v4649
        %5529 = vmatpush1.bf16.msra.mxu0 %v4648
        %5530 = vmatprep.subr.bf16.mxu0 %v4665
        %5531 = vmatpush1.bf16.msra.mxu0 %v4664
        %5532 = vmatprep.subr.bf16.mxu0 %v4681
        %5533 = vmatpush1.bf16.msra.mxu0 %v4680
        %5534 = vmatprep.subr.bf16.mxu0 %v4697
        %5535 = vmatpush1.bf16.msra.mxu0 %v4696
        %5536 = vmatprep.subr.bf16.mxu0 %v4713
        %5537 = vmatpush1.bf16.msra.mxu0 %v4712
        %5538 = vmatprep.subr.bf16.mxu0 %v4729
        %5539 = vmatpush1.bf16.msra.mxu0 %v4728
        %5540 = vmatprep.subr.bf16.mxu0 %v4745
        %5541 = vmatpush1.bf16.msra.mxu0 %v4744
        %5542 = vmatprep.subr.bf16.mxu0 %v4761
        %5543 = vmatpush1.bf16.msra.mxu0 %v4760
        %5544 = vmatprep.subr.bf16.mxu0 %v4777
        %5545 = vmatpush1.bf16.msra.mxu0 %v4776
        %5546 = vmatprep.subr.bf16.mxu0 %v4793
        %5547 = vmatpush1.bf16.msra.mxu0 %v4792
        %5548 = vmatprep.subr.bf16.mxu0 %v4809
        %5549 = vmatpush1.bf16.msra.mxu0 %v4808
        %5550 = vmatprep.subr.bf16.mxu0 %v4825
        %5551 = vmatpush1.bf16.msra.mxu0 %v4824
        %5552 = vmatprep.subr.bf16.mxu0 %v4841
        %5553 = vmatpush1.bf16.msra.mxu0 %v4840
        %5554 = vmatprep.mubr.bf16.mxu0 %v501
        %5555 = vmatmul.mubr.bf16.gmra.mrb[0].mxu0 %v500
        %v5556 = vpop.f32.mrb[0].mxu0
        %v5557 = vadd.f32 %v5516, %v5556
        %v5558 = vpop.f32.mrb[0].mxu0
        %v5559 = vadd.f32 %v5518, %v5558
        %v5560 = vpop.f32.mrb[0].mxu0
        %v5561 = vpop.f32.mrb[0].mxu0
        %5562 = vdwg.mxu0
        %5563 = vmatprep.subr.bf16.mxu0 %v4857
        %5564 = vmatpush1.bf16.msra.mxu0 %v4856
        %5565 = vmatprep.subr.bf16.mxu0 %v4873
        %5566 = vmatpush1.bf16.msra.mxu0 %v4872
        %5567 = vmatprep.subr.bf16.mxu0 %v4889
        %5568 = vmatpush1.bf16.msra.mxu0 %v4888
        %5569 = vmatprep.subr.bf16.mxu0 %v4905
        %5570 = vmatpush1.bf16.msra.mxu0 %v4904
        %5571 = vmatprep.subr.bf16.mxu0 %v4921
        %5572 = vmatpush1.bf16.msra.mxu0 %v4920
        %5573 = vmatprep.subr.bf16.mxu0 %v4937
        %5574 = vmatpush1.bf16.msra.mxu0 %v4936
        %5575 = vmatprep.subr.bf16.mxu0 %v4953
        %5576 = vmatpush1.bf16.msra.mxu0 %v4952
        %5577 = vmatprep.subr.bf16.mxu0 %v4969
        %5578 = vmatpush1.bf16.msra.mxu0 %v4968
        %5579 = vmatprep.subr.bf16.mxu0 %v4985
        %5580 = vmatpush1.bf16.msra.mxu0 %v4984
        %5581 = vmatprep.subr.bf16.mxu0 %v5001
        %5582 = vmatpush1.bf16.msra.mxu0 %v5000
        %5583 = vmatprep.subr.bf16.mxu0 %v5017
        %5584 = vmatpush1.bf16.msra.mxu0 %v5016
        %5585 = vmatprep.subr.bf16.mxu0 %v5033
        %5586 = vmatpush1.bf16.msra.mxu0 %v5032
        %5587 = vmatprep.subr.bf16.mxu0 %v5049
        %5588 = vmatpush1.bf16.msra.mxu0 %v5048
        %5589 = vmatprep.subr.bf16.mxu0 %v5065
        %5590 = vmatpush1.bf16.msra.mxu0 %v5064
        %5591 = vmatprep.subr.bf16.mxu0 %v5081
        %5592 = vmatpush1.bf16.msra.mxu0 %v5080
        %5593 = vmatprep.subr.bf16.mxu0 %v5097
        %5594 = vmatpush1.bf16.msra.mxu0 %v5096
        %5595 = vmatprep.mubr.bf16.mxu0 %v503
        %5596 = vmatmul.mubr.bf16.gmra.mrb[0].mxu0 %v502
        %v5597 = vpop.f32.mrb[0].mxu0
        %v5598 = vadd.f32 %v5557, %v5597
        %v5599 = vpop.f32.mrb[0].mxu0
        %v5600 = vadd.f32 %v5559, %v5599
        %v5601 = vpop.f32.mrb[0].mxu0
        %v5602 = vpop.f32.mrb[0].mxu0
        %5603 = vdwg.mxu0
        %5604 = vmatprep.subr.bf16.mxu0 %v2043
        %5605 = vmatpush1.bf16.msra.mxu0 %v2042
        %5606 = vmatprep.subr.bf16.mxu0 %v2059
        %5607 = vmatpush1.bf16.msra.mxu0 %v2058
        %5608 = vmatprep.subr.bf16.mxu0 %v2075
        %5609 = vmatpush1.bf16.msra.mxu0 %v2074
        %5610 = vmatprep.subr.bf16.mxu0 %v2091
        %5611 = vmatpush1.bf16.msra.mxu0 %v2090
        %5612 = vmatprep.subr.bf16.mxu0 %v2107
        %5613 = vmatpush1.bf16.msra.mxu0 %v2106
        %5614 = vmatprep.subr.bf16.mxu0 %v2123
        %5615 = vmatpush1.bf16.msra.mxu0 %v2122
        %5616 = vmatprep.subr.bf16.mxu0 %v2139
        %5617 = vmatpush1.bf16.msra.mxu0 %v2138
        %5618 = vmatprep.subr.bf16.mxu0 %v2155
        %5619 = vmatpush1.bf16.msra.mxu0 %v2154
        %5620 = vmatprep.subr.bf16.mxu0 %v2171
        %5621 = vmatpush1.bf16.msra.mxu0 %v2170
        %5622 = vmatprep.subr.bf16.mxu0 %v2187
        %5623 = vmatpush1.bf16.msra.mxu0 %v2186
        %5624 = vmatprep.subr.bf16.mxu0 %v2203
        %5625 = vmatpush1.bf16.msra.mxu0 %v2202
        %5626 = vmatprep.subr.bf16.mxu0 %v2219
        %5627 = vmatpush1.bf16.msra.mxu0 %v2218
        %5628 = vmatprep.subr.bf16.mxu0 %v2235
        %5629 = vmatpush1.bf16.msra.mxu0 %v2234
        %5630 = vmatprep.subr.bf16.mxu0 %v2251
        %5631 = vmatpush1.bf16.msra.mxu0 %v2250
        %5632 = vmatprep.subr.bf16.mxu0 %v2267
        %5633 = vmatpush1.bf16.msra.mxu0 %v2266
        %5634 = vmatprep.subr.bf16.mxu0 %v2283
        %5635 = vmatpush1.bf16.msra.mxu0 %v2282
        %5636 = vmatprep.mubr.bf16.mxu0 %v481
        %5637 = vmatmul.mubr.bf16.gmra.mrb[0].mxu0 %v480
        %v5638 = vpop.f32.mrb[0].mxu0
        %v5639 = vadd.f32 0.0, %v5638
        %v5640 = vpop.f32.mrb[0].mxu0
        %v5641 = vadd.f32 0.0, %v5640
        %v5642 = vpop.f32.mrb[0].mxu0
        %v5643 = vpop.f32.mrb[0].mxu0
        %5644 = vdwg.mxu0
        %5645 = vmatprep.subr.bf16.mxu0 %v2299
        %5646 = vmatpush1.bf16.msra.mxu0 %v2298
        %5647 = vmatprep.subr.bf16.mxu0 %v2315
        %5648 = vmatpush1.bf16.msra.mxu0 %v2314
        %5649 = vmatprep.subr.bf16.mxu0 %v2331
        %5650 = vmatpush1.bf16.msra.mxu0 %v2330
        %5651 = vmatprep.subr.bf16.mxu0 %v2347
        %5652 = vmatpush1.bf16.msra.mxu0 %v2346
        %5653 = vmatprep.subr.bf16.mxu0 %v2363
        %5654 = vmatpush1.bf16.msra.mxu0 %v2362
        %5655 = vmatprep.subr.bf16.mxu0 %v2379
        %5656 = vmatpush1.bf16.msra.mxu0 %v2378
        %5657 = vmatprep.subr.bf16.mxu0 %v2395
        %5658 = vmatpush1.bf16.msra.mxu0 %v2394
        %5659 = vmatprep.subr.bf16.mxu0 %v2411
        %5660 = vmatpush1.bf16.msra.mxu0 %v2410
        %5661 = vmatprep.subr.bf16.mxu0 %v2427
        %5662 = vmatpush1.bf16.msra.mxu0 %v2426
        %5663 = vmatprep.subr.bf16.mxu0 %v2443
        %5664 = vmatpush1.bf16.msra.mxu0 %v2442
        %5665 = vmatprep.subr.bf16.mxu0 %v2459
        %5666 = vmatpush1.bf16.msra.mxu0 %v2458
        %5667 = vmatprep.subr.bf16.mxu0 %v2475
        %5668 = vmatpush1.bf16.msra.mxu0 %v2474
        %5669 = vmatprep.subr.bf16.mxu0 %v2491
        %5670 = vmatpush1.bf16.msra.mxu0 %v2490
        %5671 = vmatprep.subr.bf16.mxu0 %v2507
        %5672 = vmatpush1.bf16.msra.mxu0 %v2506
        %5673 = vmatprep.subr.bf16.mxu0 %v2523
        %5674 = vmatpush1.bf16.msra.mxu0 %v2522
        %5675 = vmatprep.subr.bf16.mxu0 %v2539
        %5676 = vmatpush1.bf16.msra.mxu0 %v2538
        %5677 = vmatprep.mubr.bf16.mxu0 %v483
        %5678 = vmatmul.mubr.bf16.gmra.mrb[0].mxu0 %v482
        %v5679 = vpop.f32.mrb[0].mxu0
        %v5680 = vadd.f32 %v5639, %v5679
        %v5681 = vpop.f32.mrb[0].mxu0
        %v5682 = vadd.f32 %v5641, %v5681
        %v5683 = vpop.f32.mrb[0].mxu0
        %v5684 = vpop.f32.mrb[0].mxu0
        %5685 = vdwg.mxu0
        %5686 = vmatprep.subr.bf16.mxu0 %v2555
        %5687 = vmatpush1.bf16.msra.mxu0 %v2554
        %5688 = vmatprep.subr.bf16.mxu0 %v2571
        %5689 = vmatpush1.bf16.msra.mxu0 %v2570
        %5690 = vmatprep.subr.bf16.mxu0 %v2587
        %5691 = vmatpush1.bf16.msra.mxu0 %v2586
        %5692 = vmatprep.subr.bf16.mxu0 %v2603
        %5693 = vmatpush1.bf16.msra.mxu0 %v2602
        %5694 = vmatprep.subr.bf16.mxu0 %v2619
        %5695 = vmatpush1.bf16.msra.mxu0 %v2618
        %5696 = vmatprep.subr.bf16.mxu0 %v2635
        %5697 = vmatpush1.bf16.msra.mxu0 %v2634
        %5698 = vmatprep.subr.bf16.mxu0 %v2651
        %5699 = vmatpush1.bf16.msra.mxu0 %v2650
        %5700 = vmatprep.subr.bf16.mxu0 %v2667
        %5701 = vmatpush1.bf16.msra.mxu0 %v2666
        %5702 = vmatprep.subr.bf16.mxu0 %v2683
        %5703 = vmatpush1.bf16.msra.mxu0 %v2682
        %5704 = vmatprep.subr.bf16.mxu0 %v2699
        %5705 = vmatpush1.bf16.msra.mxu0 %v2698
        %5706 = vmatprep.subr.bf16.mxu0 %v2715
        %5707 = vmatpush1.bf16.msra.mxu0 %v2714
        %5708 = vmatprep.subr.bf16.mxu0 %v2731
        %5709 = vmatpush1.bf16.msra.mxu0 %v2730
        %5710 = vmatprep.subr.bf16.mxu0 %v2747
        %5711 = vmatpush1.bf16.msra.mxu0 %v2746
        %5712 = vmatprep.subr.bf16.mxu0 %v2763
        %5713 = vmatpush1.bf16.msra.mxu0 %v2762
        %5714 = vmatprep.subr.bf16.mxu0 %v2779
        %5715 = vmatpush1.bf16.msra.mxu0 %v2778
        %5716 = vmatprep.subr.bf16.mxu0 %v2795
        %5717 = vmatpush1.bf16.msra.mxu0 %v2794
        %5718 = vmatprep.mubr.bf16.mxu0 %v485
        %5719 = vmatmul.mubr.bf16.gmra.mrb[0].mxu0 %v484
        %v5720 = vpop.f32.mrb[0].mxu0
        %v5721 = vadd.f32 %v5680, %v5720
        %v5722 = vpop.f32.mrb[0].mxu0
        %v5723 = vadd.f32 %v5682, %v5722
        %v5724 = vpop.f32.mrb[0].mxu0
        %v5725 = vpop.f32.mrb[0].mxu0
        %5726 = vdwg.mxu0
        %5727 = vmatprep.subr.bf16.mxu0 %v2811
        %5728 = vmatpush1.bf16.msra.mxu0 %v2810
        %5729 = vmatprep.subr.bf16.mxu0 %v2827
        %5730 = vmatpush1.bf16.msra.mxu0 %v2826
        %5731 = vmatprep.subr.bf16.mxu0 %v2843
        %5732 = vmatpush1.bf16.msra.mxu0 %v2842
        %5733 = vmatprep.subr.bf16.mxu0 %v2859
        %5734 = vmatpush1.bf16.msra.mxu0 %v2858
        %5735 = vmatprep.subr.bf16.mxu0 %v2875
        %5736 = vmatpush1.bf16.msra.mxu0 %v2874
        %5737 = vmatprep.subr.bf16.mxu0 %v2891
        %5738 = vmatpush1.bf16.msra.mxu0 %v2890
        %5739 = vmatprep.subr.bf16.mxu0 %v2907
        %5740 = vmatpush1.bf16.msra.mxu0 %v2906
        %5741 = vmatprep.subr.bf16.mxu0 %v2923
        %5742 = vmatpush1.bf16.msra.mxu0 %v2922
        %5743 = vmatprep.subr.bf16.mxu0 %v2939
        %5744 = vmatpush1.bf16.msra.mxu0 %v2938
        %5745 = vmatprep.subr.bf16.mxu0 %v2955
        %5746 = vmatpush1.bf16.msra.mxu0 %v2954
        %5747 = vmatprep.subr.bf16.mxu0 %v2971
        %5748 = vmatpush1.bf16.msra.mxu0 %v2970
        %5749 = vmatprep.subr.bf16.mxu0 %v2987
        %5750 = vmatpush1.bf16.msra.mxu0 %v2986
        %5751 = vmatprep.subr.bf16.mxu0 %v3003
        %5752 = vmatpush1.bf16.msra.mxu0 %v3002
        %5753 = vmatprep.subr.bf16.mxu0 %v3019
        %5754 = vmatpush1.bf16.msra.mxu0 %v3018
        %5755 = vmatprep.subr.bf16.mxu0 %v3035
        %5756 = vmatpush1.bf16.msra.mxu0 %v3034
        %5757 = vmatprep.subr.bf16.mxu0 %v3051
        %5758 = vmatpush1.bf16.msra.mxu0 %v3050
        %5759 = vmatprep.mubr.bf16.mxu0 %v487
        %5760 = vmatmul.mubr.bf16.gmra.mrb[0].mxu0 %v486
        %v5761 = vpop.f32.mrb[0].mxu0
        %v5762 = vadd.f32 %v5721, %v5761
        %v5763 = vpop.f32.mrb[0].mxu0
        %v5764 = vadd.f32 %v5723, %v5763
        %v5765 = vpop.f32.mrb[0].mxu0
        %v5766 = vpop.f32.mrb[0].mxu0
        %5767 = vdwg.mxu0
        %5768 = vmatprep.subr.bf16.mxu0 %v3067
        %5769 = vmatpush1.bf16.msra.mxu0 %v3066
        %5770 = vmatprep.subr.bf16.mxu0 %v3083
        %5771 = vmatpush1.bf16.msra.mxu0 %v3082
        %5772 = vmatprep.subr.bf16.mxu0 %v3099
        %5773 = vmatpush1.bf16.msra.mxu0 %v3098
        %5774 = vmatprep.subr.bf16.mxu0 %v3115
        %5775 = vmatpush1.bf16.msra.mxu0 %v3114
        %5776 = vmatprep.subr.bf16.mxu0 %v3131
        %5777 = vmatpush1.bf16.msra.mxu0 %v3130
        %5778 = vmatprep.subr.bf16.mxu0 %v3147
        %5779 = vmatpush1.bf16.msra.mxu0 %v3146
        %5780 = vmatprep.subr.bf16.mxu0 %v3163
        %5781 = vmatpush1.bf16.msra.mxu0 %v3162
        %5782 = vmatprep.subr.bf16.mxu0 %v3179
        %5783 = vmatpush1.bf16.msra.mxu0 %v3178
        %5784 = vmatprep.subr.bf16.mxu0 %v3195
        %5785 = vmatpush1.bf16.msra.mxu0 %v3194
        %5786 = vmatprep.subr.bf16.mxu0 %v3211
        %5787 = vmatpush1.bf16.msra.mxu0 %v3210
        %5788 = vmatprep.subr.bf16.mxu0 %v3227
        %5789 = vmatpush1.bf16.msra.mxu0 %v3226
        %5790 = vmatprep.subr.bf16.mxu0 %v3243
        %5791 = vmatpush1.bf16.msra.mxu0 %v3242
        %5792 = vmatprep.subr.bf16.mxu0 %v3259
        %5793 = vmatpush1.bf16.msra.mxu0 %v3258
        %5794 = vmatprep.subr.bf16.mxu0 %v3275
        %5795 = vmatpush1.bf16.msra.mxu0 %v3274
        %5796 = vmatprep.subr.bf16.mxu0 %v3291
        %5797 = vmatpush1.bf16.msra.mxu0 %v3290
        %5798 = vmatprep.subr.bf16.mxu0 %v3307
        %5799 = vmatpush1.bf16.msra.mxu0 %v3306
        %5800 = vmatprep.mubr.bf16.mxu0 %v489
        %5801 = vmatmul.mubr.bf16.gmra.mrb[0].mxu0 %v488
        %v5802 = vpop.f32.mrb[0].mxu0
        %v5803 = vadd.f32 %v5762, %v5802
        %v5804 = vpop.f32.mrb[0].mxu0
        %v5805 = vadd.f32 %v5764, %v5804
        %v5806 = vpop.f32.mrb[0].mxu0
        %v5807 = vpop.f32.mrb[0].mxu0
        %5808 = vdwg.mxu0
        %5809 = vmatprep.subr.bf16.mxu0 %v3323
        %5810 = vmatpush1.bf16.msra.mxu0 %v3322
        %5811 = vmatprep.subr.bf16.mxu0 %v3339
        %5812 = vmatpush1.bf16.msra.mxu0 %v3338
        %5813 = vmatprep.subr.bf16.mxu0 %v3355
        %5814 = vmatpush1.bf16.msra.mxu0 %v3354
        %5815 = vmatprep.subr.bf16.mxu0 %v3371
        %5816 = vmatpush1.bf16.msra.mxu0 %v3370
        %5817 = vmatprep.subr.bf16.mxu0 %v3387
        %5818 = vmatpush1.bf16.msra.mxu0 %v3386
        %5819 = vmatprep.subr.bf16.mxu0 %v3403
        %5820 = vmatpush1.bf16.msra.mxu0 %v3402
        %5821 = vmatprep.subr.bf16.mxu0 %v3419
        %5822 = vmatpush1.bf16.msra.mxu0 %v3418
        %5823 = vmatprep.subr.bf16.mxu0 %v3435
        %5824 = vmatpush1.bf16.msra.mxu0 %v3434
        %5825 = vmatprep.subr.bf16.mxu0 %v3451
        %5826 = vmatpush1.bf16.msra.mxu0 %v3450
        %5827 = vmatprep.subr.bf16.mxu0 %v3467
        %5828 = vmatpush1.bf16.msra.mxu0 %v3466
        %5829 = vmatprep.subr.bf16.mxu0 %v3483
        %5830 = vmatpush1.bf16.msra.mxu0 %v3482
        %5831 = vmatprep.subr.bf16.mxu0 %v3499
        %5832 = vmatpush1.bf16.msra.mxu0 %v3498
        %5833 = vmatprep.subr.bf16.mxu0 %v3515
        %5834 = vmatpush1.bf16.msra.mxu0 %v3514
        %5835 = vmatprep.subr.bf16.mxu0 %v3531
        %5836 = vmatpush1.bf16.msra.mxu0 %v3530
        %5837 = vmatprep.subr.bf16.mxu0 %v3547
        %5838 = vmatpush1.bf16.msra.mxu0 %v3546
        %5839 = vmatprep.subr.bf16.mxu0 %v3563
        %5840 = vmatpush1.bf16.msra.mxu0 %v3562
        %5841 = vmatprep.mubr.bf16.mxu0 %v491
        %5842 = vmatmul.mubr.bf16.gmra.mrb[0].mxu0 %v490
        %v5843 = vpop.f32.mrb[0].mxu0
        %v5844 = vadd.f32 %v5803, %v5843
        %v5845 = vpop.f32.mrb[0].mxu0
        %v5846 = vadd.f32 %v5805, %v5845
        %v5847 = vpop.f32.mrb[0].mxu0
        %v5848 = vpop.f32.mrb[0].mxu0
        %5849 = vdwg.mxu0
        %5850 = vmatprep.subr.bf16.mxu0 %v3579
        %5851 = vmatpush1.bf16.msra.mxu0 %v3578
        %5852 = vmatprep.subr.bf16.mxu0 %v3595
        %5853 = vmatpush1.bf16.msra.mxu0 %v3594
        %5854 = vmatprep.subr.bf16.mxu0 %v3611
        %5855 = vmatpush1.bf16.msra.mxu0 %v3610
        %5856 = vmatprep.subr.bf16.mxu0 %v3627
        %5857 = vmatpush1.bf16.msra.mxu0 %v3626
        %5858 = vmatprep.subr.bf16.mxu0 %v3643
        %5859 = vmatpush1.bf16.msra.mxu0 %v3642
        %5860 = vmatprep.subr.bf16.mxu0 %v3659
        %5861 = vmatpush1.bf16.msra.mxu0 %v3658
        %5862 = vmatprep.subr.bf16.mxu0 %v3675
        %5863 = vmatpush1.bf16.msra.mxu0 %v3674
        %5864 = vmatprep.subr.bf16.mxu0 %v3691
        %5865 = vmatpush1.bf16.msra.mxu0 %v3690
        %5866 = vmatprep.subr.bf16.mxu0 %v3707
        %5867 = vmatpush1.bf16.msra.mxu0 %v3706
        %5868 = vmatprep.subr.bf16.mxu0 %v3723
        %5869 = vmatpush1.bf16.msra.mxu0 %v3722
        %5870 = vmatprep.subr.bf16.mxu0 %v3739
        %5871 = vmatpush1.bf16.msra.mxu0 %v3738
        %5872 = vmatprep.subr.bf16.mxu0 %v3755
        %5873 = vmatpush1.bf16.msra.mxu0 %v3754
        %5874 = vmatprep.subr.bf16.mxu0 %v3771
        %5875 = vmatpush1.bf16.msra.mxu0 %v3770
        %5876 = vmatprep.subr.bf16.mxu0 %v3787
        %5877 = vmatpush1.bf16.msra.mxu0 %v3786
        %5878 = vmatprep.subr.bf16.mxu0 %v3803
        %5879 = vmatpush1.bf16.msra.mxu0 %v3802
        %5880 = vmatprep.subr.bf16.mxu0 %v3819
        %5881 = vmatpush1.bf16.msra.mxu0 %v3818
        %5882 = vmatprep.mubr.bf16.mxu0 %v493
        %5883 = vmatmul.mubr.bf16.gmra.mrb[0].mxu0 %v492
        %v5884 = vpop.f32.mrb[0].mxu0
        %v5885 = vadd.f32 %v5844, %v5884
        %v5886 = vpop.f32.mrb[0].mxu0
        %v5887 = vadd.f32 %v5846, %v5886
        %v5888 = vpop.f32.mrb[0].mxu0
        %v5889 = vpop.f32.mrb[0].mxu0
        %5890 = vdwg.mxu0
        %5891 = vmatprep.subr.bf16.mxu0 %v3835
        %5892 = vmatpush1.bf16.msra.mxu0 %v3834
        %5893 = vmatprep.subr.bf16.mxu0 %v3851
        %5894 = vmatpush1.bf16.msra.mxu0 %v3850
        %5895 = vmatprep.subr.bf16.mxu0 %v3867
        %5896 = vmatpush1.bf16.msra.mxu0 %v3866
        %5897 = vmatprep.subr.bf16.mxu0 %v3883
        %5898 = vmatpush1.bf16.msra.mxu0 %v3882
        %5899 = vmatprep.subr.bf16.mxu0 %v3899
        %5900 = vmatpush1.bf16.msra.mxu0 %v3898
        %5901 = vmatprep.subr.bf16.mxu0 %v3915
        %5902 = vmatpush1.bf16.msra.mxu0 %v3914
        %5903 = vmatprep.subr.bf16.mxu0 %v3931
        %5904 = vmatpush1.bf16.msra.mxu0 %v3930
        %5905 = vmatprep.subr.bf16.mxu0 %v3947
        %5906 = vmatpush1.bf16.msra.mxu0 %v3946
        %5907 = vmatprep.subr.bf16.mxu0 %v3963
        %5908 = vmatpush1.bf16.msra.mxu0 %v3962
        %5909 = vmatprep.subr.bf16.mxu0 %v3979
        %5910 = vmatpush1.bf16.msra.mxu0 %v3978
        %5911 = vmatprep.subr.bf16.mxu0 %v3995
        %5912 = vmatpush1.bf16.msra.mxu0 %v3994
        %5913 = vmatprep.subr.bf16.mxu0 %v4011
        %5914 = vmatpush1.bf16.msra.mxu0 %v4010
        %5915 = vmatprep.subr.bf16.mxu0 %v4027
        %5916 = vmatpush1.bf16.msra.mxu0 %v4026
        %5917 = vmatprep.subr.bf16.mxu0 %v4043
        %5918 = vmatpush1.bf16.msra.mxu0 %v4042
        %5919 = vmatprep.subr.bf16.mxu0 %v4059
        %5920 = vmatpush1.bf16.msra.mxu0 %v4058
        %5921 = vmatprep.subr.bf16.mxu0 %v4075
        %5922 = vmatpush1.bf16.msra.mxu0 %v4074
        %5923 = vmatprep.mubr.bf16.mxu0 %v495
        %5924 = vmatmul.mubr.bf16.gmra.mrb[0].mxu0 %v494
        %v5925 = vpop.f32.mrb[0].mxu0
        %v5926 = vadd.f32 %v5885, %v5925
        %v5927 = vpop.f32.mrb[0].mxu0
        %v5928 = vadd.f32 %v5887, %v5927
        %v5929 = vpop.f32.mrb[0].mxu0
        %v5930 = vpop.f32.mrb[0].mxu0
        %5931 = vdwg.mxu0
        %5932 = vmatprep.subr.bf16.mxu0 %v4091
        %5933 = vmatpush1.bf16.msra.mxu0 %v4090
        %5934 = vmatprep.subr.bf16.mxu0 %v4107
        %5935 = vmatpush1.bf16.msra.mxu0 %v4106
        %5936 = vmatprep.subr.bf16.mxu0 %v4123
        %5937 = vmatpush1.bf16.msra.mxu0 %v4122
        %5938 = vmatprep.subr.bf16.mxu0 %v4139
        %5939 = vmatpush1.bf16.msra.mxu0 %v4138
        %5940 = vmatprep.subr.bf16.mxu0 %v4155
        %5941 = vmatpush1.bf16.msra.mxu0 %v4154
        %5942 = vmatprep.subr.bf16.mxu0 %v4171
        %5943 = vmatpush1.bf16.msra.mxu0 %v4170
        %5944 = vmatprep.subr.bf16.mxu0 %v4187
        %5945 = vmatpush1.bf16.msra.mxu0 %v4186
        %5946 = vmatprep.subr.bf16.mxu0 %v4203
        %5947 = vmatpush1.bf16.msra.mxu0 %v4202
        %5948 = vmatprep.subr.bf16.mxu0 %v4219
        %5949 = vmatpush1.bf16.msra.mxu0 %v4218
        %5950 = vmatprep.subr.bf16.mxu0 %v4235
        %5951 = vmatpush1.bf16.msra.mxu0 %v4234
        %5952 = vmatprep.subr.bf16.mxu0 %v4251
        %5953 = vmatpush1.bf16.msra.mxu0 %v4250
        %5954 = vmatprep.subr.bf16.mxu0 %v4267
        %5955 = vmatpush1.bf16.msra.mxu0 %v4266
        %5956 = vmatprep.subr.bf16.mxu0 %v4283
        %5957 = vmatpush1.bf16.msra.mxu0 %v4282
        %5958 = vmatprep.subr.bf16.mxu0 %v4299
        %5959 = vmatpush1.bf16.msra.mxu0 %v4298
        %5960 = vmatprep.subr.bf16.mxu0 %v4315
        %5961 = vmatpush1.bf16.msra.mxu0 %v4314
        %5962 = vmatprep.subr.bf16.mxu0 %v4331
        %5963 = vmatpush1.bf16.msra.mxu0 %v4330
        %5964 = vmatprep.mubr.bf16.mxu0 %v497
        %5965 = vmatmul.mubr.bf16.gmra.mrb[0].mxu0 %v496
        %v5966 = vpop.f32.mrb[0].mxu0
        %v5967 = vadd.f32 %v5926, %v5966
        %v5968 = vpop.f32.mrb[0].mxu0
        %v5969 = vadd.f32 %v5928, %v5968
        %v5970 = vpop.f32.mrb[0].mxu0
        %v5971 = vpop.f32.mrb[0].mxu0
        %5972 = vdwg.mxu0
        %5973 = vmatprep.subr.bf16.mxu0 %v4347
        %5974 = vmatpush1.bf16.msra.mxu0 %v4346
        %5975 = vmatprep.subr.bf16.mxu0 %v4363
        %5976 = vmatpush1.bf16.msra.mxu0 %v4362
        %5977 = vmatprep.subr.bf16.mxu0 %v4379
        %5978 = vmatpush1.bf16.msra.mxu0 %v4378
        %5979 = vmatprep.subr.bf16.mxu0 %v4395
        %5980 = vmatpush1.bf16.msra.mxu0 %v4394
        %5981 = vmatprep.subr.bf16.mxu0 %v4411
        %5982 = vmatpush1.bf16.msra.mxu0 %v4410
        %5983 = vmatprep.subr.bf16.mxu0 %v4427
        %5984 = vmatpush1.bf16.msra.mxu0 %v4426
        %5985 = vmatprep.subr.bf16.mxu0 %v4443
        %5986 = vmatpush1.bf16.msra.mxu0 %v4442
        %5987 = vmatprep.subr.bf16.mxu0 %v4459
        %5988 = vmatpush1.bf16.msra.mxu0 %v4458
        %5989 = vmatprep.subr.bf16.mxu0 %v4475
        %5990 = vmatpush1.bf16.msra.mxu0 %v4474
        %5991 = vmatprep.subr.bf16.mxu0 %v4491
        %5992 = vmatpush1.bf16.msra.mxu0 %v4490
        %5993 = vmatprep.subr.bf16.mxu0 %v4507
        %5994 = vmatpush1.bf16.msra.mxu0 %v4506
        %5995 = vmatprep.subr.bf16.mxu0 %v4523
        %5996 = vmatpush1.bf16.msra.mxu0 %v4522
        %5997 = vmatprep.subr.bf16.mxu0 %v4539
        %5998 = vmatpush1.bf16.msra.mxu0 %v4538
        %5999 = vmatprep.subr.bf16.mxu0 %v4555
        %6000 = vmatpush1.bf16.msra.mxu0 %v4554
        %6001 = vmatprep.subr.bf16.mxu0 %v4571
        %6002 = vmatpush1.bf16.msra.mxu0 %v4570
        %6003 = vmatprep.subr.bf16.mxu0 %v4587
        %6004 = vmatpush1.bf16.msra.mxu0 %v4586
        %6005 = vmatprep.mubr.bf16.mxu0 %v499
        %6006 = vmatmul.mubr.bf16.gmra.mrb[0].mxu0 %v498
        %v6007 = vpop.f32.mrb[0].mxu0
        %v6008 = vadd.f32 %v5967, %v6007
        %v6009 = vpop.f32.mrb[0].mxu0
        %v6010 = vadd.f32 %v5969, %v6009
        %v6011 = vpop.f32.mrb[0].mxu0
        %v6012 = vpop.f32.mrb[0].mxu0
        %6013 = vdwg.mxu0
        %6014 = vmatprep.subr.bf16.mxu0 %v4603
        %6015 = vmatpush1.bf16.msra.mxu0 %v4602
        %6016 = vmatprep.subr.bf16.mxu0 %v4619
        %6017 = vmatpush1.bf16.msra.mxu0 %v4618
        %6018 = vmatprep.subr.bf16.mxu0 %v4635
        %6019 = vmatpush1.bf16.msra.mxu0 %v4634
        %6020 = vmatprep.subr.bf16.mxu0 %v4651
        %6021 = vmatpush1.bf16.msra.mxu0 %v4650
        %6022 = vmatprep.subr.bf16.mxu0 %v4667
        %6023 = vmatpush1.bf16.msra.mxu0 %v4666
        %6024 = vmatprep.subr.bf16.mxu0 %v4683
        %6025 = vmatpush1.bf16.msra.mxu0 %v4682
        %6026 = vmatprep.subr.bf16.mxu0 %v4699
        %6027 = vmatpush1.bf16.msra.mxu0 %v4698
        %6028 = vmatprep.subr.bf16.mxu0 %v4715
        %6029 = vmatpush1.bf16.msra.mxu0 %v4714
        %6030 = vmatprep.subr.bf16.mxu0 %v4731
        %6031 = vmatpush1.bf16.msra.mxu0 %v4730
        %6032 = vmatprep.subr.bf16.mxu0 %v4747
        %6033 = vmatpush1.bf16.msra.mxu0 %v4746
        %6034 = vmatprep.subr.bf16.mxu0 %v4763
        %6035 = vmatpush1.bf16.msra.mxu0 %v4762
        %6036 = vmatprep.subr.bf16.mxu0 %v4779
        %6037 = vmatpush1.bf16.msra.mxu0 %v4778
        %6038 = vmatprep.subr.bf16.mxu0 %v4795
        %6039 = vmatpush1.bf16.msra.mxu0 %v4794
        %6040 = vmatprep.subr.bf16.mxu0 %v4811
        %6041 = vmatpush1.bf16.msra.mxu0 %v4810
        %6042 = vmatprep.subr.bf16.mxu0 %v4827
        %6043 = vmatpush1.bf16.msra.mxu0 %v4826
        %6044 = vmatprep.subr.bf16.mxu0 %v4843
        %6045 = vmatpush1.bf16.msra.mxu0 %v4842
        %6046 = vmatprep.mubr.bf16.mxu0 %v501
        %6047 = vmatmul.mubr.bf16.gmra.mrb[0].mxu0 %v500
        %v6048 = vpop.f32.mrb[0].mxu0
        %v6049 = vadd.f32 %v6008, %v6048
        %v6050 = vpop.f32.mrb[0].mxu0
        %v6051 = vadd.f32 %v6010, %v6050
        %v6052 = vpop.f32.mrb[0].mxu0
        %v6053 = vpop.f32.mrb[0].mxu0
        %6054 = vdwg.mxu0
        %6055 = vmatprep.subr.bf16.mxu0 %v4859
        %6056 = vmatpush1.bf16.msra.mxu0 %v4858
        %6057 = vmatprep.subr.bf16.mxu0 %v4875
        %6058 = vmatpush1.bf16.msra.mxu0 %v4874
        %6059 = vmatprep.subr.bf16.mxu0 %v4891
        %6060 = vmatpush1.bf16.msra.mxu0 %v4890
        %6061 = vmatprep.subr.bf16.mxu0 %v4907
        %6062 = vmatpush1.bf16.msra.mxu0 %v4906
        %6063 = vmatprep.subr.bf16.mxu0 %v4923
        %6064 = vmatpush1.bf16.msra.mxu0 %v4922
        %6065 = vmatprep.subr.bf16.mxu0 %v4939
        %6066 = vmatpush1.bf16.msra.mxu0 %v4938
        %6067 = vmatprep.subr.bf16.mxu0 %v4955
        %6068 = vmatpush1.bf16.msra.mxu0 %v4954
        %6069 = vmatprep.subr.bf16.mxu0 %v4971
        %6070 = vmatpush1.bf16.msra.mxu0 %v4970
        %6071 = vmatprep.subr.bf16.mxu0 %v4987
        %6072 = vmatpush1.bf16.msra.mxu0 %v4986
        %6073 = vmatprep.subr.bf16.mxu0 %v5003
        %6074 = vmatpush1.bf16.msra.mxu0 %v5002
        %6075 = vmatprep.subr.bf16.mxu0 %v5019
        %6076 = vmatpush1.bf16.msra.mxu0 %v5018
        %6077 = vmatprep.subr.bf16.mxu0 %v5035
        %6078 = vmatpush1.bf16.msra.mxu0 %v5034
        %6079 = vmatprep.subr.bf16.mxu0 %v5051
        %6080 = vmatpush1.bf16.msra.mxu0 %v5050
        %6081 = vmatprep.subr.bf16.mxu0 %v5067
        %6082 = vmatpush1.bf16.msra.mxu0 %v5066
        %6083 = vmatprep.subr.bf16.mxu0 %v5083
        %6084 = vmatpush1.bf16.msra.mxu0 %v5082
        %6085 = vmatprep.subr.bf16.mxu0 %v5099
        %6086 = vmatpush1.bf16.msra.mxu0 %v5098
        %6087 = vmatprep.mubr.bf16.mxu0 %v503
        %6088 = vmatmul.mubr.bf16.gmra.mrb[0].mxu0 %v502
        %v6089 = vpop.f32.mrb[0].mxu0
        %v6090 = vadd.f32 %v6049, %v6089
        %v6091 = vpop.f32.mrb[0].mxu0
        %v6092 = vadd.f32 %v6051, %v6091
        %v6093 = vpop.f32.mrb[0].mxu0
        %v6094 = vpop.f32.mrb[0].mxu0
        %6095 = vdwg.mxu0
        %6096 = vmatprep.subr.bf16.mxu0 %v2045
        %6097 = vmatpush1.bf16.msra.mxu0 %v2044
        %6098 = vmatprep.subr.bf16.mxu0 %v2061
        %6099 = vmatpush1.bf16.msra.mxu0 %v2060
        %6100 = vmatprep.subr.bf16.mxu0 %v2077
        %6101 = vmatpush1.bf16.msra.mxu0 %v2076
        %6102 = vmatprep.subr.bf16.mxu0 %v2093
        %6103 = vmatpush1.bf16.msra.mxu0 %v2092
        %6104 = vmatprep.subr.bf16.mxu0 %v2109
        %6105 = vmatpush1.bf16.msra.mxu0 %v2108
        %6106 = vmatprep.subr.bf16.mxu0 %v2125
        %6107 = vmatpush1.bf16.msra.mxu0 %v2124
        %6108 = vmatprep.subr.bf16.mxu0 %v2141
        %6109 = vmatpush1.bf16.msra.mxu0 %v2140
        %6110 = vmatprep.subr.bf16.mxu0 %v2157
        %6111 = vmatpush1.bf16.msra.mxu0 %v2156
        %6112 = vmatprep.subr.bf16.mxu0 %v2173
        %6113 = vmatpush1.bf16.msra.mxu0 %v2172
        %6114 = vmatprep.subr.bf16.mxu0 %v2189
        %6115 = vmatpush1.bf16.msra.mxu0 %v2188
        %6116 = vmatprep.subr.bf16.mxu0 %v2205
        %6117 = vmatpush1.bf16.msra.mxu0 %v2204
        %6118 = vmatprep.subr.bf16.mxu0 %v2221
        %6119 = vmatpush1.bf16.msra.mxu0 %v2220
        %6120 = vmatprep.subr.bf16.mxu0 %v2237
        %6121 = vmatpush1.bf16.msra.mxu0 %v2236
        %6122 = vmatprep.subr.bf16.mxu0 %v2253
        %6123 = vmatpush1.bf16.msra.mxu0 %v2252
        %6124 = vmatprep.subr.bf16.mxu0 %v2269
        %6125 = vmatpush1.bf16.msra.mxu0 %v2268
        %6126 = vmatprep.subr.bf16.mxu0 %v2285
        %6127 = vmatpush1.bf16.msra.mxu0 %v2284
        %6128 = vmatprep.mubr.bf16.mxu0 %v481
        %6129 = vmatmul.mubr.bf16.gmra.mrb[0].mxu0 %v480
        %v6130 = vpop.f32.mrb[0].mxu0
        %v6131 = vadd.f32 0.0, %v6130
        %v6132 = vpop.f32.mrb[0].mxu0
        %v6133 = vadd.f32 0.0, %v6132
        %v6134 = vpop.f32.mrb[0].mxu0
        %v6135 = vpop.f32.mrb[0].mxu0
        %6136 = vdwg.mxu0
        %6137 = vmatprep.subr.bf16.mxu0 %v2301
        %6138 = vmatpush1.bf16.msra.mxu0 %v2300
        %6139 = vmatprep.subr.bf16.mxu0 %v2317
        %6140 = vmatpush1.bf16.msra.mxu0 %v2316
        %6141 = vmatprep.subr.bf16.mxu0 %v2333
        %6142 = vmatpush1.bf16.msra.mxu0 %v2332
        %6143 = vmatprep.subr.bf16.mxu0 %v2349
        %6144 = vmatpush1.bf16.msra.mxu0 %v2348
        %6145 = vmatprep.subr.bf16.mxu0 %v2365
        %6146 = vmatpush1.bf16.msra.mxu0 %v2364
        %6147 = vmatprep.subr.bf16.mxu0 %v2381
        %6148 = vmatpush1.bf16.msra.mxu0 %v2380
        %6149 = vmatprep.subr.bf16.mxu0 %v2397
        %6150 = vmatpush1.bf16.msra.mxu0 %v2396
        %6151 = vmatprep.subr.bf16.mxu0 %v2413
        %6152 = vmatpush1.bf16.msra.mxu0 %v2412
        %6153 = vmatprep.subr.bf16.mxu0 %v2429
        %6154 = vmatpush1.bf16.msra.mxu0 %v2428
        %6155 = vmatprep.subr.bf16.mxu0 %v2445
        %6156 = vmatpush1.bf16.msra.mxu0 %v2444
        %6157 = vmatprep.subr.bf16.mxu0 %v2461
        %6158 = vmatpush1.bf16.msra.mxu0 %v2460
        %6159 = vmatprep.subr.bf16.mxu0 %v2477
        %6160 = vmatpush1.bf16.msra.mxu0 %v2476
        %6161 = vmatprep.subr.bf16.mxu0 %v2493
        %6162 = vmatpush1.bf16.msra.mxu0 %v2492
        %6163 = vmatprep.subr.bf16.mxu0 %v2509
        %6164 = vmatpush1.bf16.msra.mxu0 %v2508
        %6165 = vmatprep.subr.bf16.mxu0 %v2525
        %6166 = vmatpush1.bf16.msra.mxu0 %v2524
        %6167 = vmatprep.subr.bf16.mxu0 %v2541
        %6168 = vmatpush1.bf16.msra.mxu0 %v2540
        %6169 = vmatprep.mubr.bf16.mxu0 %v483
        %6170 = vmatmul.mubr.bf16.gmra.mrb[0].mxu0 %v482
        %v6171 = vpop.f32.mrb[0].mxu0
        %v6172 = vadd.f32 %v6131, %v6171
        %v6173 = vpop.f32.mrb[0].mxu0
        %v6174 = vadd.f32 %v6133, %v6173
        %v6175 = vpop.f32.mrb[0].mxu0
        %v6176 = vpop.f32.mrb[0].mxu0
        %6177 = vdwg.mxu0
        %6178 = vmatprep.subr.bf16.mxu0 %v2557
        %6179 = vmatpush1.bf16.msra.mxu0 %v2556
        %6180 = vmatprep.subr.bf16.mxu0 %v2573
        %6181 = vmatpush1.bf16.msra.mxu0 %v2572
        %6182 = vmatprep.subr.bf16.mxu0 %v2589
        %6183 = vmatpush1.bf16.msra.mxu0 %v2588
        %6184 = vmatprep.subr.bf16.mxu0 %v2605
        %6185 = vmatpush1.bf16.msra.mxu0 %v2604
        %6186 = vmatprep.subr.bf16.mxu0 %v2621
        %6187 = vmatpush1.bf16.msra.mxu0 %v2620
        %6188 = vmatprep.subr.bf16.mxu0 %v2637
        %6189 = vmatpush1.bf16.msra.mxu0 %v2636
        %6190 = vmatprep.subr.bf16.mxu0 %v2653
        %6191 = vmatpush1.bf16.msra.mxu0 %v2652
        %6192 = vmatprep.subr.bf16.mxu0 %v2669
        %6193 = vmatpush1.bf16.msra.mxu0 %v2668
        %6194 = vmatprep.subr.bf16.mxu0 %v2685
        %6195 = vmatpush1.bf16.msra.mxu0 %v2684
        %6196 = vmatprep.subr.bf16.mxu0 %v2701
        %6197 = vmatpush1.bf16.msra.mxu0 %v2700
        %6198 = vmatprep.subr.bf16.mxu0 %v2717
        %6199 = vmatpush1.bf16.msra.mxu0 %v2716
        %6200 = vmatprep.subr.bf16.mxu0 %v2733
        %6201 = vmatpush1.bf16.msra.mxu0 %v2732
        %6202 = vmatprep.subr.bf16.mxu0 %v2749
        %6203 = vmatpush1.bf16.msra.mxu0 %v2748
        %6204 = vmatprep.subr.bf16.mxu0 %v2765
        %6205 = vmatpush1.bf16.msra.mxu0 %v2764
        %6206 = vmatprep.subr.bf16.mxu0 %v2781
        %6207 = vmatpush1.bf16.msra.mxu0 %v2780
        %6208 = vmatprep.subr.bf16.mxu0 %v2797
        %6209 = vmatpush1.bf16.msra.mxu0 %v2796
        %6210 = vmatprep.mubr.bf16.mxu0 %v485
        %6211 = vmatmul.mubr.bf16.gmra.mrb[0].mxu0 %v484
        %v6212 = vpop.f32.mrb[0].mxu0
        %v6213 = vadd.f32 %v6172, %v6212
        %v6214 = vpop.f32.mrb[0].mxu0
        %v6215 = vadd.f32 %v6174, %v6214
        %v6216 = vpop.f32.mrb[0].mxu0
        %v6217 = vpop.f32.mrb[0].mxu0
        %6218 = vdwg.mxu0
        %6219 = vmatprep.subr.bf16.mxu0 %v2813
        %6220 = vmatpush1.bf16.msra.mxu0 %v2812
        %6221 = vmatprep.subr.bf16.mxu0 %v2829
        %6222 = vmatpush1.bf16.msra.mxu0 %v2828
        %6223 = vmatprep.subr.bf16.mxu0 %v2845
        %6224 = vmatpush1.bf16.msra.mxu0 %v2844
        %6225 = vmatprep.subr.bf16.mxu0 %v2861
        %6226 = vmatpush1.bf16.msra.mxu0 %v2860
        %6227 = vmatprep.subr.bf16.mxu0 %v2877
        %6228 = vmatpush1.bf16.msra.mxu0 %v2876
        %6229 = vmatprep.subr.bf16.mxu0 %v2893
        %6230 = vmatpush1.bf16.msra.mxu0 %v2892
        %6231 = vmatprep.subr.bf16.mxu0 %v2909
        %6232 = vmatpush1.bf16.msra.mxu0 %v2908
        %6233 = vmatprep.subr.bf16.mxu0 %v2925
        %6234 = vmatpush1.bf16.msra.mxu0 %v2924
        %6235 = vmatprep.subr.bf16.mxu0 %v2941
        %6236 = vmatpush1.bf16.msra.mxu0 %v2940
        %6237 = vmatprep.subr.bf16.mxu0 %v2957
        %6238 = vmatpush1.bf16.msra.mxu0 %v2956
        %6239 = vmatprep.subr.bf16.mxu0 %v2973
        %6240 = vmatpush1.bf16.msra.mxu0 %v2972
        %6241 = vmatprep.subr.bf16.mxu0 %v2989
        %6242 = vmatpush1.bf16.msra.mxu0 %v2988
        %6243 = vmatprep.subr.bf16.mxu0 %v3005
        %6244 = vmatpush1.bf16.msra.mxu0 %v3004
        %6245 = vmatprep.subr.bf16.mxu0 %v3021
        %6246 = vmatpush1.bf16.msra.mxu0 %v3020
        %6247 = vmatprep.subr.bf16.mxu0 %v3037
        %6248 = vmatpush1.bf16.msra.mxu0 %v3036
        %6249 = vmatprep.subr.bf16.mxu0 %v3053
        %6250 = vmatpush1.bf16.msra.mxu0 %v3052
        %6251 = vmatprep.mubr.bf16.mxu0 %v487
        %6252 = vmatmul.mubr.bf16.gmra.mrb[0].mxu0 %v486
        %v6253 = vpop.f32.mrb[0].mxu0
        %v6254 = vadd.f32 %v6213, %v6253
        %v6255 = vpop.f32.mrb[0].mxu0
        %v6256 = vadd.f32 %v6215, %v6255
        %v6257 = vpop.f32.mrb[0].mxu0
        %v6258 = vpop.f32.mrb[0].mxu0
        %6259 = vdwg.mxu0
        %6260 = vmatprep.subr.bf16.mxu0 %v3069
        %6261 = vmatpush1.bf16.msra.mxu0 %v3068
        %6262 = vmatprep.subr.bf16.mxu0 %v3085
        %6263 = vmatpush1.bf16.msra.mxu0 %v3084
        %6264 = vmatprep.subr.bf16.mxu0 %v3101
        %6265 = vmatpush1.bf16.msra.mxu0 %v3100
        %6266 = vmatprep.subr.bf16.mxu0 %v3117
        %6267 = vmatpush1.bf16.msra.mxu0 %v3116
        %6268 = vmatprep.subr.bf16.mxu0 %v3133
        %6269 = vmatpush1.bf16.msra.mxu0 %v3132
        %6270 = vmatprep.subr.bf16.mxu0 %v3149
        %6271 = vmatpush1.bf16.msra.mxu0 %v3148
        %6272 = vmatprep.subr.bf16.mxu0 %v3165
        %6273 = vmatpush1.bf16.msra.mxu0 %v3164
        %6274 = vmatprep.subr.bf16.mxu0 %v3181
        %6275 = vmatpush1.bf16.msra.mxu0 %v3180
        %6276 = vmatprep.subr.bf16.mxu0 %v3197
        %6277 = vmatpush1.bf16.msra.mxu0 %v3196
        %6278 = vmatprep.subr.bf16.mxu0 %v3213
        %6279 = vmatpush1.bf16.msra.mxu0 %v3212
        %6280 = vmatprep.subr.bf16.mxu0 %v3229
        %6281 = vmatpush1.bf16.msra.mxu0 %v3228
        %6282 = vmatprep.subr.bf16.mxu0 %v3245
        %6283 = vmatpush1.bf16.msra.mxu0 %v3244
        %6284 = vmatprep.subr.bf16.mxu0 %v3261
        %6285 = vmatpush1.bf16.msra.mxu0 %v3260
        %6286 = vmatprep.subr.bf16.mxu0 %v3277
        %6287 = vmatpush1.bf16.msra.mxu0 %v3276
        %6288 = vmatprep.subr.bf16.mxu0 %v3293
        %6289 = vmatpush1.bf16.msra.mxu0 %v3292
        %6290 = vmatprep.subr.bf16.mxu0 %v3309
        %6291 = vmatpush1.bf16.msra.mxu0 %v3308
        %6292 = vmatprep.mubr.bf16.mxu0 %v489
        %6293 = vmatmul.mubr.bf16.gmra.mrb[0].mxu0 %v488
        %v6294 = vpop.f32.mrb[0].mxu0
        %v6295 = vadd.f32 %v6254, %v6294
        %v6296 = vpop.f32.mrb[0].mxu0
        %v6297 = vadd.f32 %v6256, %v6296
        %v6298 = vpop.f32.mrb[0].mxu0
        %v6299 = vpop.f32.mrb[0].mxu0
        %6300 = vdwg.mxu0
        %6301 = vmatprep.subr.bf16.mxu0 %v3325
        %6302 = vmatpush1.bf16.msra.mxu0 %v3324
        %6303 = vmatprep.subr.bf16.mxu0 %v3341
        %6304 = vmatpush1.bf16.msra.mxu0 %v3340
        %6305 = vmatprep.subr.bf16.mxu0 %v3357
        %6306 = vmatpush1.bf16.msra.mxu0 %v3356
        %6307 = vmatprep.subr.bf16.mxu0 %v3373
        %6308 = vmatpush1.bf16.msra.mxu0 %v3372
        %6309 = vmatprep.subr.bf16.mxu0 %v3389
        %6310 = vmatpush1.bf16.msra.mxu0 %v3388
        %6311 = vmatprep.subr.bf16.mxu0 %v3405
        %6312 = vmatpush1.bf16.msra.mxu0 %v3404
        %6313 = vmatprep.subr.bf16.mxu0 %v3421
        %6314 = vmatpush1.bf16.msra.mxu0 %v3420
        %6315 = vmatprep.subr.bf16.mxu0 %v3437
        %6316 = vmatpush1.bf16.msra.mxu0 %v3436
        %6317 = vmatprep.subr.bf16.mxu0 %v3453
        %6318 = vmatpush1.bf16.msra.mxu0 %v3452
        %6319 = vmatprep.subr.bf16.mxu0 %v3469
        %6320 = vmatpush1.bf16.msra.mxu0 %v3468
        %6321 = vmatprep.subr.bf16.mxu0 %v3485
        %6322 = vmatpush1.bf16.msra.mxu0 %v3484
        %6323 = vmatprep.subr.bf16.mxu0 %v3501
        %6324 = vmatpush1.bf16.msra.mxu0 %v3500
        %6325 = vmatprep.subr.bf16.mxu0 %v3517
        %6326 = vmatpush1.bf16.msra.mxu0 %v3516
        %6327 = vmatprep.subr.bf16.mxu0 %v3533
        %6328 = vmatpush1.bf16.msra.mxu0 %v3532
        %6329 = vmatprep.subr.bf16.mxu0 %v3549
        %6330 = vmatpush1.bf16.msra.mxu0 %v3548
        %6331 = vmatprep.subr.bf16.mxu0 %v3565
        %6332 = vmatpush1.bf16.msra.mxu0 %v3564
        %6333 = vmatprep.mubr.bf16.mxu0 %v491
        %6334 = vmatmul.mubr.bf16.gmra.mrb[0].mxu0 %v490
        %v6335 = vpop.f32.mrb[0].mxu0
        %v6336 = vadd.f32 %v6295, %v6335
        %v6337 = vpop.f32.mrb[0].mxu0
        %v6338 = vadd.f32 %v6297, %v6337
        %v6339 = vpop.f32.mrb[0].mxu0
        %v6340 = vpop.f32.mrb[0].mxu0
        %6341 = vdwg.mxu0
        %6342 = vmatprep.subr.bf16.mxu0 %v3581
        %6343 = vmatpush1.bf16.msra.mxu0 %v3580
        %6344 = vmatprep.subr.bf16.mxu0 %v3597
        %6345 = vmatpush1.bf16.msra.mxu0 %v3596
        %6346 = vmatprep.subr.bf16.mxu0 %v3613
        %6347 = vmatpush1.bf16.msra.mxu0 %v3612
        %6348 = vmatprep.subr.bf16.mxu0 %v3629
        %6349 = vmatpush1.bf16.msra.mxu0 %v3628
        %6350 = vmatprep.subr.bf16.mxu0 %v3645
        %6351 = vmatpush1.bf16.msra.mxu0 %v3644
        %6352 = vmatprep.subr.bf16.mxu0 %v3661
        %6353 = vmatpush1.bf16.msra.mxu0 %v3660
        %6354 = vmatprep.subr.bf16.mxu0 %v3677
        %6355 = vmatpush1.bf16.msra.mxu0 %v3676
        %6356 = vmatprep.subr.bf16.mxu0 %v3693
        %6357 = vmatpush1.bf16.msra.mxu0 %v3692
        %6358 = vmatprep.subr.bf16.mxu0 %v3709
        %6359 = vmatpush1.bf16.msra.mxu0 %v3708
        %6360 = vmatprep.subr.bf16.mxu0 %v3725
        %6361 = vmatpush1.bf16.msra.mxu0 %v3724
        %6362 = vmatprep.subr.bf16.mxu0 %v3741
        %6363 = vmatpush1.bf16.msra.mxu0 %v3740
        %6364 = vmatprep.subr.bf16.mxu0 %v3757
        %6365 = vmatpush1.bf16.msra.mxu0 %v3756
        %6366 = vmatprep.subr.bf16.mxu0 %v3773
        %6367 = vmatpush1.bf16.msra.mxu0 %v3772
        %6368 = vmatprep.subr.bf16.mxu0 %v3789
        %6369 = vmatpush1.bf16.msra.mxu0 %v3788
        %6370 = vmatprep.subr.bf16.mxu0 %v3805
        %6371 = vmatpush1.bf16.msra.mxu0 %v3804
        %6372 = vmatprep.subr.bf16.mxu0 %v3821
        %6373 = vmatpush1.bf16.msra.mxu0 %v3820
        %6374 = vmatprep.mubr.bf16.mxu0 %v493
        %6375 = vmatmul.mubr.bf16.gmra.mrb[0].mxu0 %v492
        %v6376 = vpop.f32.mrb[0].mxu0
        %v6377 = vadd.f32 %v6336, %v6376
        %v6378 = vpop.f32.mrb[0].mxu0
        %v6379 = vadd.f32 %v6338, %v6378
        %v6380 = vpop.f32.mrb[0].mxu0
        %v6381 = vpop.f32.mrb[0].mxu0
        %6382 = vdwg.mxu0
        %6383 = vmatprep.subr.bf16.mxu0 %v3837
        %6384 = vmatpush1.bf16.msra.mxu0 %v3836
        %6385 = vmatprep.subr.bf16.mxu0 %v3853
        %6386 = vmatpush1.bf16.msra.mxu0 %v3852
        %6387 = vmatprep.subr.bf16.mxu0 %v3869
        %6388 = vmatpush1.bf16.msra.mxu0 %v3868
        %6389 = vmatprep.subr.bf16.mxu0 %v3885
        %6390 = vmatpush1.bf16.msra.mxu0 %v3884
        %6391 = vmatprep.subr.bf16.mxu0 %v3901
        %6392 = vmatpush1.bf16.msra.mxu0 %v3900
        %6393 = vmatprep.subr.bf16.mxu0 %v3917
        %6394 = vmatpush1.bf16.msra.mxu0 %v3916
        %6395 = vmatprep.subr.bf16.mxu0 %v3933
        %6396 = vmatpush1.bf16.msra.mxu0 %v3932
        %6397 = vmatprep.subr.bf16.mxu0 %v3949
        %6398 = vmatpush1.bf16.msra.mxu0 %v3948
        %6399 = vmatprep.subr.bf16.mxu0 %v3965
        %6400 = vmatpush1.bf16.msra.mxu0 %v3964
        %6401 = vmatprep.subr.bf16.mxu0 %v3981
        %6402 = vmatpush1.bf16.msra.mxu0 %v3980
        %6403 = vmatprep.subr.bf16.mxu0 %v3997
        %6404 = vmatpush1.bf16.msra.mxu0 %v3996
        %6405 = vmatprep.subr.bf16.mxu0 %v4013
        %6406 = vmatpush1.bf16.msra.mxu0 %v4012
        %6407 = vmatprep.subr.bf16.mxu0 %v4029
        %6408 = vmatpush1.bf16.msra.mxu0 %v4028
        %6409 = vmatprep.subr.bf16.mxu0 %v4045
        %6410 = vmatpush1.bf16.msra.mxu0 %v4044
        %6411 = vmatprep.subr.bf16.mxu0 %v4061
        %6412 = vmatpush1.bf16.msra.mxu0 %v4060
        %6413 = vmatprep.subr.bf16.mxu0 %v4077
        %6414 = vmatpush1.bf16.msra.mxu0 %v4076
        %6415 = vmatprep.mubr.bf16.mxu0 %v495
        %6416 = vmatmul.mubr.bf16.gmra.mrb[0].mxu0 %v494
        %v6417 = vpop.f32.mrb[0].mxu0
        %v6418 = vadd.f32 %v6377, %v6417
        %v6419 = vpop.f32.mrb[0].mxu0
        %v6420 = vadd.f32 %v6379, %v6419
        %v6421 = vpop.f32.mrb[0].mxu0
        %v6422 = vpop.f32.mrb[0].mxu0
        %6423 = vdwg.mxu0
        %6424 = vmatprep.subr.bf16.mxu0 %v4093
        %6425 = vmatpush1.bf16.msra.mxu0 %v4092
        %6426 = vmatprep.subr.bf16.mxu0 %v4109
        %6427 = vmatpush1.bf16.msra.mxu0 %v4108
        %6428 = vmatprep.subr.bf16.mxu0 %v4125
        %6429 = vmatpush1.bf16.msra.mxu0 %v4124
        %6430 = vmatprep.subr.bf16.mxu0 %v4141
        %6431 = vmatpush1.bf16.msra.mxu0 %v4140
        %6432 = vmatprep.subr.bf16.mxu0 %v4157
        %6433 = vmatpush1.bf16.msra.mxu0 %v4156
        %6434 = vmatprep.subr.bf16.mxu0 %v4173
        %6435 = vmatpush1.bf16.msra.mxu0 %v4172
        %6436 = vmatprep.subr.bf16.mxu0 %v4189
        %6437 = vmatpush1.bf16.msra.mxu0 %v4188
        %6438 = vmatprep.subr.bf16.mxu0 %v4205
        %6439 = vmatpush1.bf16.msra.mxu0 %v4204
        %6440 = vmatprep.subr.bf16.mxu0 %v4221
        %6441 = vmatpush1.bf16.msra.mxu0 %v4220
        %6442 = vmatprep.subr.bf16.mxu0 %v4237
        %6443 = vmatpush1.bf16.msra.mxu0 %v4236
        %6444 = vmatprep.subr.bf16.mxu0 %v4253
        %6445 = vmatpush1.bf16.msra.mxu0 %v4252
        %6446 = vmatprep.subr.bf16.mxu0 %v4269
        %6447 = vmatpush1.bf16.msra.mxu0 %v4268
        %6448 = vmatprep.subr.bf16.mxu0 %v4285
        %6449 = vmatpush1.bf16.msra.mxu0 %v4284
        %6450 = vmatprep.subr.bf16.mxu0 %v4301
        %6451 = vmatpush1.bf16.msra.mxu0 %v4300
        %6452 = vmatprep.subr.bf16.mxu0 %v4317
        %6453 = vmatpush1.bf16.msra.mxu0 %v4316
        %6454 = vmatprep.subr.bf16.mxu0 %v4333
        %6455 = vmatpush1.bf16.msra.mxu0 %v4332
        %6456 = vmatprep.mubr.bf16.mxu0 %v497
        %6457 = vmatmul.mubr.bf16.gmra.mrb[0].mxu0 %v496
        %v6458 = vpop.f32.mrb[0].mxu0
        %v6459 = vadd.f32 %v6418, %v6458
        %v6460 = vpop.f32.mrb[0].mxu0
        %v6461 = vadd.f32 %v6420, %v6460
        %v6462 = vpop.f32.mrb[0].mxu0
        %v6463 = vpop.f32.mrb[0].mxu0
        %6464 = vdwg.mxu0
        %6465 = vmatprep.subr.bf16.mxu0 %v4349
        %6466 = vmatpush1.bf16.msra.mxu0 %v4348
        %6467 = vmatprep.subr.bf16.mxu0 %v4365
        %6468 = vmatpush1.bf16.msra.mxu0 %v4364
        %6469 = vmatprep.subr.bf16.mxu0 %v4381
        %6470 = vmatpush1.bf16.msra.mxu0 %v4380
        %6471 = vmatprep.subr.bf16.mxu0 %v4397
        %6472 = vmatpush1.bf16.msra.mxu0 %v4396
        %6473 = vmatprep.subr.bf16.mxu0 %v4413
        %6474 = vmatpush1.bf16.msra.mxu0 %v4412
        %6475 = vmatprep.subr.bf16.mxu0 %v4429
        %6476 = vmatpush1.bf16.msra.mxu0 %v4428
        %6477 = vmatprep.subr.bf16.mxu0 %v4445
        %6478 = vmatpush1.bf16.msra.mxu0 %v4444
        %6479 = vmatprep.subr.bf16.mxu0 %v4461
        %6480 = vmatpush1.bf16.msra.mxu0 %v4460
        %6481 = vmatprep.subr.bf16.mxu0 %v4477
        %6482 = vmatpush1.bf16.msra.mxu0 %v4476
        %6483 = vmatprep.subr.bf16.mxu0 %v4493
        %6484 = vmatpush1.bf16.msra.mxu0 %v4492
        %6485 = vmatprep.subr.bf16.mxu0 %v4509
        %6486 = vmatpush1.bf16.msra.mxu0 %v4508
        %6487 = vmatprep.subr.bf16.mxu0 %v4525
        %6488 = vmatpush1.bf16.msra.mxu0 %v4524
        %6489 = vmatprep.subr.bf16.mxu0 %v4541
        %6490 = vmatpush1.bf16.msra.mxu0 %v4540
        %6491 = vmatprep.subr.bf16.mxu0 %v4557
        %6492 = vmatpush1.bf16.msra.mxu0 %v4556
        %6493 = vmatprep.subr.bf16.mxu0 %v4573
        %6494 = vmatpush1.bf16.msra.mxu0 %v4572
        %6495 = vmatprep.subr.bf16.mxu0 %v4589
        %6496 = vmatpush1.bf16.msra.mxu0 %v4588
        %6497 = vmatprep.mubr.bf16.mxu0 %v499
        %6498 = vmatmul.mubr.bf16.gmra.mrb[0].mxu0 %v498
        %v6499 = vpop.f32.mrb[0].mxu0
        %v6500 = vadd.f32 %v6459, %v6499
        %v6501 = vpop.f32.mrb[0].mxu0
        %v6502 = vadd.f32 %v6461, %v6501
        %v6503 = vpop.f32.mrb[0].mxu0
        %v6504 = vpop.f32.mrb[0].mxu0
        %6505 = vdwg.mxu0
        %6506 = vmatprep.subr.bf16.mxu0 %v4605
        %6507 = vmatpush1.bf16.msra.mxu0 %v4604
        %6508 = vmatprep.subr.bf16.mxu0 %v4621
        %6509 = vmatpush1.bf16.msra.mxu0 %v4620
        %6510 = vmatprep.subr.bf16.mxu0 %v4637
        %6511 = vmatpush1.bf16.msra.mxu0 %v4636
        %6512 = vmatprep.subr.bf16.mxu0 %v4653
        %6513 = vmatpush1.bf16.msra.mxu0 %v4652
        %6514 = vmatprep.subr.bf16.mxu0 %v4669
        %6515 = vmatpush1.bf16.msra.mxu0 %v4668
        %6516 = vmatprep.subr.bf16.mxu0 %v4685
        %6517 = vmatpush1.bf16.msra.mxu0 %v4684
        %6518 = vmatprep.subr.bf16.mxu0 %v4701
        %6519 = vmatpush1.bf16.msra.mxu0 %v4700
        %6520 = vmatprep.subr.bf16.mxu0 %v4717
        %6521 = vmatpush1.bf16.msra.mxu0 %v4716
        %6522 = vmatprep.subr.bf16.mxu0 %v4733
        %6523 = vmatpush1.bf16.msra.mxu0 %v4732
        %6524 = vmatprep.subr.bf16.mxu0 %v4749
        %6525 = vmatpush1.bf16.msra.mxu0 %v4748
        %6526 = vmatprep.subr.bf16.mxu0 %v4765
        %6527 = vmatpush1.bf16.msra.mxu0 %v4764
        %6528 = vmatprep.subr.bf16.mxu0 %v4781
        %6529 = vmatpush1.bf16.msra.mxu0 %v4780
        %6530 = vmatprep.subr.bf16.mxu0 %v4797
        %6531 = vmatpush1.bf16.msra.mxu0 %v4796
        %6532 = vmatprep.subr.bf16.mxu0 %v4813
        %6533 = vmatpush1.bf16.msra.mxu0 %v4812
        %6534 = vmatprep.subr.bf16.mxu0 %v4829
        %6535 = vmatpush1.bf16.msra.mxu0 %v4828
        %6536 = vmatprep.subr.bf16.mxu0 %v4845
        %6537 = vmatpush1.bf16.msra.mxu0 %v4844
        %6538 = vmatprep.mubr.bf16.mxu0 %v501
        %6539 = vmatmul.mubr.bf16.gmra.mrb[0].mxu0 %v500
        %v6540 = vpop.f32.mrb[0].mxu0
        %v6541 = vadd.f32 %v6500, %v6540
        %v6542 = vpop.f32.mrb[0].mxu0
        %v6543 = vadd.f32 %v6502, %v6542
        %v6544 = vpop.f32.mrb[0].mxu0
        %v6545 = vpop.f32.mrb[0].mxu0
        %6546 = vdwg.mxu0
        %6547 = vmatprep.subr.bf16.mxu0 %v4861
        %6548 = vmatpush1.bf16.msra.mxu0 %v4860
        %6549 = vmatprep.subr.bf16.mxu0 %v4877
        %6550 = vmatpush1.bf16.msra.mxu0 %v4876
        %6551 = vmatprep.subr.bf16.mxu0 %v4893
        %6552 = vmatpush1.bf16.msra.mxu0 %v4892
        %6553 = vmatprep.subr.bf16.mxu0 %v4909
        %6554 = vmatpush1.bf16.msra.mxu0 %v4908
        %6555 = vmatprep.subr.bf16.mxu0 %v4925
        %6556 = vmatpush1.bf16.msra.mxu0 %v4924
        %6557 = vmatprep.subr.bf16.mxu0 %v4941
        %6558 = vmatpush1.bf16.msra.mxu0 %v4940
        %6559 = vmatprep.subr.bf16.mxu0 %v4957
        %6560 = vmatpush1.bf16.msra.mxu0 %v4956
        %6561 = vmatprep.subr.bf16.mxu0 %v4973
        %6562 = vmatpush1.bf16.msra.mxu0 %v4972
        %6563 = vmatprep.subr.bf16.mxu0 %v4989
        %6564 = vmatpush1.bf16.msra.mxu0 %v4988
        %6565 = vmatprep.subr.bf16.mxu0 %v5005
        %6566 = vmatpush1.bf16.msra.mxu0 %v5004
        %6567 = vmatprep.subr.bf16.mxu0 %v5021
        %6568 = vmatpush1.bf16.msra.mxu0 %v5020
        %6569 = vmatprep.subr.bf16.mxu0 %v5037
        %6570 = vmatpush1.bf16.msra.mxu0 %v5036
        %6571 = vmatprep.subr.bf16.mxu0 %v5053
        %6572 = vmatpush1.bf16.msra.mxu0 %v5052
        %6573 = vmatprep.subr.bf16.mxu0 %v5069
        %6574 = vmatpush1.bf16.msra.mxu0 %v5068
        %6575 = vmatprep.subr.bf16.mxu0 %v5085
        %6576 = vmatpush1.bf16.msra.mxu0 %v5084
        %6577 = vmatprep.subr.bf16.mxu0 %v5101
        %6578 = vmatpush1.bf16.msra.mxu0 %v5100
        %6579 = vmatprep.mubr.bf16.mxu0 %v503
        %6580 = vmatmul.mubr.bf16.gmra.mrb[0].mxu0 %v502
        %v6581 = vpop.f32.mrb[0].mxu0
        %v6582 = vadd.f32 %v6541, %v6581
        %v6583 = vpop.f32.mrb[0].mxu0
        %v6584 = vadd.f32 %v6543, %v6583
        %v6585 = vpop.f32.mrb[0].mxu0
        %v6586 = vpop.f32.mrb[0].mxu0
        %6587 = vdwg.mxu0
        %6588 = vmatprep.subr.bf16.mxu0 %v2047
        %6589 = vmatpush1.bf16.msra.mxu0 %v2046
        %6590 = vmatprep.subr.bf16.mxu0 %v2063
        %6591 = vmatpush1.bf16.msra.mxu0 %v2062
        %6592 = vmatprep.subr.bf16.mxu0 %v2079
        %6593 = vmatpush1.bf16.msra.mxu0 %v2078
        %6594 = vmatprep.subr.bf16.mxu0 %v2095
        %6595 = vmatpush1.bf16.msra.mxu0 %v2094
        %6596 = vmatprep.subr.bf16.mxu0 %v2111
        %6597 = vmatpush1.bf16.msra.mxu0 %v2110
        %6598 = vmatprep.subr.bf16.mxu0 %v2127
        %6599 = vmatpush1.bf16.msra.mxu0 %v2126
        %6600 = vmatprep.subr.bf16.mxu0 %v2143
        %6601 = vmatpush1.bf16.msra.mxu0 %v2142
        %6602 = vmatprep.subr.bf16.mxu0 %v2159
        %6603 = vmatpush1.bf16.msra.mxu0 %v2158
        %6604 = vmatprep.subr.bf16.mxu0 %v2175
        %6605 = vmatpush1.bf16.msra.mxu0 %v2174
        %6606 = vmatprep.subr.bf16.mxu0 %v2191
        %6607 = vmatpush1.bf16.msra.mxu0 %v2190
        %6608 = vmatprep.subr.bf16.mxu0 %v2207
        %6609 = vmatpush1.bf16.msra.mxu0 %v2206
        %6610 = vmatprep.subr.bf16.mxu0 %v2223
        %6611 = vmatpush1.bf16.msra.mxu0 %v2222
        %6612 = vmatprep.subr.bf16.mxu0 %v2239
        %6613 = vmatpush1.bf16.msra.mxu0 %v2238
        %6614 = vmatprep.subr.bf16.mxu0 %v2255
        %6615 = vmatpush1.bf16.msra.mxu0 %v2254
        %6616 = vmatprep.subr.bf16.mxu0 %v2271
        %6617 = vmatpush1.bf16.msra.mxu0 %v2270
        %6618 = vmatprep.subr.bf16.mxu0 %v2287
        %6619 = vmatpush1.bf16.msra.mxu0 %v2286
        %6620 = vmatprep.mubr.bf16.mxu0 %v481
        %6621 = vmatmul.mubr.bf16.gmra.mrb[0].mxu0 %v480
        %v6622 = vpop.f32.mrb[0].mxu0
        %v6623 = vadd.f32 0.0, %v6622
        %v6624 = vpop.f32.mrb[0].mxu0
        %v6625 = vadd.f32 0.0, %v6624
        %v6626 = vpop.f32.mrb[0].mxu0
        %v6627 = vpop.f32.mrb[0].mxu0
        %6628 = vdwg.mxu0
        %6629 = vmatprep.subr.bf16.mxu0 %v2303
        %6630 = vmatpush1.bf16.msra.mxu0 %v2302
        %6631 = vmatprep.subr.bf16.mxu0 %v2319
        %6632 = vmatpush1.bf16.msra.mxu0 %v2318
        %6633 = vmatprep.subr.bf16.mxu0 %v2335
        %6634 = vmatpush1.bf16.msra.mxu0 %v2334
        %6635 = vmatprep.subr.bf16.mxu0 %v2351
        %6636 = vmatpush1.bf16.msra.mxu0 %v2350
        %6637 = vmatprep.subr.bf16.mxu0 %v2367
        %6638 = vmatpush1.bf16.msra.mxu0 %v2366
        %6639 = vmatprep.subr.bf16.mxu0 %v2383
        %6640 = vmatpush1.bf16.msra.mxu0 %v2382
        %6641 = vmatprep.subr.bf16.mxu0 %v2399
        %6642 = vmatpush1.bf16.msra.mxu0 %v2398
        %6643 = vmatprep.subr.bf16.mxu0 %v2415
        %6644 = vmatpush1.bf16.msra.mxu0 %v2414
        %6645 = vmatprep.subr.bf16.mxu0 %v2431
        %6646 = vmatpush1.bf16.msra.mxu0 %v2430
        %6647 = vmatprep.subr.bf16.mxu0 %v2447
        %6648 = vmatpush1.bf16.msra.mxu0 %v2446
        %6649 = vmatprep.subr.bf16.mxu0 %v2463
        %6650 = vmatpush1.bf16.msra.mxu0 %v2462
        %6651 = vmatprep.subr.bf16.mxu0 %v2479
        %6652 = vmatpush1.bf16.msra.mxu0 %v2478
        %6653 = vmatprep.subr.bf16.mxu0 %v2495
        %6654 = vmatpush1.bf16.msra.mxu0 %v2494
        %6655 = vmatprep.subr.bf16.mxu0 %v2511
        %6656 = vmatpush1.bf16.msra.mxu0 %v2510
        %6657 = vmatprep.subr.bf16.mxu0 %v2527
        %6658 = vmatpush1.bf16.msra.mxu0 %v2526
        %6659 = vmatprep.subr.bf16.mxu0 %v2543
        %6660 = vmatpush1.bf16.msra.mxu0 %v2542
        %6661 = vmatprep.mubr.bf16.mxu0 %v483
        %6662 = vmatmul.mubr.bf16.gmra.mrb[0].mxu0 %v482
        %v6663 = vpop.f32.mrb[0].mxu0
        %v6664 = vadd.f32 %v6623, %v6663
        %v6665 = vpop.f32.mrb[0].mxu0
        %v6666 = vadd.f32 %v6625, %v6665
        %v6667 = vpop.f32.mrb[0].mxu0
        %v6668 = vpop.f32.mrb[0].mxu0
        %6669 = vdwg.mxu0
        %6670 = vmatprep.subr.bf16.mxu0 %v2559
        %6671 = vmatpush1.bf16.msra.mxu0 %v2558
        %6672 = vmatprep.subr.bf16.mxu0 %v2575
        %6673 = vmatpush1.bf16.msra.mxu0 %v2574
        %6674 = vmatprep.subr.bf16.mxu0 %v2591
        %6675 = vmatpush1.bf16.msra.mxu0 %v2590
        %6676 = vmatprep.subr.bf16.mxu0 %v2607
        %6677 = vmatpush1.bf16.msra.mxu0 %v2606
        %6678 = vmatprep.subr.bf16.mxu0 %v2623
        %6679 = vmatpush1.bf16.msra.mxu0 %v2622
        %6680 = vmatprep.subr.bf16.mxu0 %v2639
        %6681 = vmatpush1.bf16.msra.mxu0 %v2638
        %6682 = vmatprep.subr.bf16.mxu0 %v2655
        %6683 = vmatpush1.bf16.msra.mxu0 %v2654
        %6684 = vmatprep.subr.bf16.mxu0 %v2671
        %6685 = vmatpush1.bf16.msra.mxu0 %v2670
        %6686 = vmatprep.subr.bf16.mxu0 %v2687
        %6687 = vmatpush1.bf16.msra.mxu0 %v2686
        %6688 = vmatprep.subr.bf16.mxu0 %v2703
        %6689 = vmatpush1.bf16.msra.mxu0 %v2702
        %6690 = vmatprep.subr.bf16.mxu0 %v2719
        %6691 = vmatpush1.bf16.msra.mxu0 %v2718
        %6692 = vmatprep.subr.bf16.mxu0 %v2735
        %6693 = vmatpush1.bf16.msra.mxu0 %v2734
        %6694 = vmatprep.subr.bf16.mxu0 %v2751
        %6695 = vmatpush1.bf16.msra.mxu0 %v2750
        %6696 = vmatprep.subr.bf16.mxu0 %v2767
        %6697 = vmatpush1.bf16.msra.mxu0 %v2766
        %6698 = vmatprep.subr.bf16.mxu0 %v2783
        %6699 = vmatpush1.bf16.msra.mxu0 %v2782
        %6700 = vmatprep.subr.bf16.mxu0 %v2799
        %6701 = vmatpush1.bf16.msra.mxu0 %v2798
        %6702 = vmatprep.mubr.bf16.mxu0 %v485
        %6703 = vmatmul.mubr.bf16.gmra.mrb[0].mxu0 %v484
        %v6704 = vpop.f32.mrb[0].mxu0
        %v6705 = vadd.f32 %v6664, %v6704
        %v6706 = vpop.f32.mrb[0].mxu0
        %v6707 = vadd.f32 %v6666, %v6706
        %v6708 = vpop.f32.mrb[0].mxu0
        %v6709 = vpop.f32.mrb[0].mxu0
        %6710 = vdwg.mxu0
        %6711 = vmatprep.subr.bf16.mxu0 %v2815
        %6712 = vmatpush1.bf16.msra.mxu0 %v2814
        %6713 = vmatprep.subr.bf16.mxu0 %v2831
        %6714 = vmatpush1.bf16.msra.mxu0 %v2830
        %6715 = vmatprep.subr.bf16.mxu0 %v2847
        %6716 = vmatpush1.bf16.msra.mxu0 %v2846
        %6717 = vmatprep.subr.bf16.mxu0 %v2863
        %6718 = vmatpush1.bf16.msra.mxu0 %v2862
        %6719 = vmatprep.subr.bf16.mxu0 %v2879
        %6720 = vmatpush1.bf16.msra.mxu0 %v2878
        %6721 = vmatprep.subr.bf16.mxu0 %v2895
        %6722 = vmatpush1.bf16.msra.mxu0 %v2894
        %6723 = vmatprep.subr.bf16.mxu0 %v2911
        %6724 = vmatpush1.bf16.msra.mxu0 %v2910
        %6725 = vmatprep.subr.bf16.mxu0 %v2927
        %6726 = vmatpush1.bf16.msra.mxu0 %v2926
        %6727 = vmatprep.subr.bf16.mxu0 %v2943
        %6728 = vmatpush1.bf16.msra.mxu0 %v2942
        %6729 = vmatprep.subr.bf16.mxu0 %v2959
        %6730 = vmatpush1.bf16.msra.mxu0 %v2958
        %6731 = vmatprep.subr.bf16.mxu0 %v2975
        %6732 = vmatpush1.bf16.msra.mxu0 %v2974
        %6733 = vmatprep.subr.bf16.mxu0 %v2991
        %6734 = vmatpush1.bf16.msra.mxu0 %v2990
        %6735 = vmatprep.subr.bf16.mxu0 %v3007
        %6736 = vmatpush1.bf16.msra.mxu0 %v3006
        %6737 = vmatprep.subr.bf16.mxu0 %v3023
        %6738 = vmatpush1.bf16.msra.mxu0 %v3022
        %6739 = vmatprep.subr.bf16.mxu0 %v3039
        %6740 = vmatpush1.bf16.msra.mxu0 %v3038
        %6741 = vmatprep.subr.bf16.mxu0 %v3055
        %6742 = vmatpush1.bf16.msra.mxu0 %v3054
        %6743 = vmatprep.mubr.bf16.mxu0 %v487
        %6744 = vmatmul.mubr.bf16.gmra.mrb[0].mxu0 %v486
        %v6745 = vpop.f32.mrb[0].mxu0
        %v6746 = vadd.f32 %v6705, %v6745
        %v6747 = vpop.f32.mrb[0].mxu0
        %v6748 = vadd.f32 %v6707, %v6747
        %v6749 = vpop.f32.mrb[0].mxu0
        %v6750 = vpop.f32.mrb[0].mxu0
        %6751 = vdwg.mxu0
        %6752 = vmatprep.subr.bf16.mxu0 %v3071
        %6753 = vmatpush1.bf16.msra.mxu0 %v3070
        %6754 = vmatprep.subr.bf16.mxu0 %v3087
        %6755 = vmatpush1.bf16.msra.mxu0 %v3086
        %6756 = vmatprep.subr.bf16.mxu0 %v3103
        %6757 = vmatpush1.bf16.msra.mxu0 %v3102
        %6758 = vmatprep.subr.bf16.mxu0 %v3119
        %6759 = vmatpush1.bf16.msra.mxu0 %v3118
        %6760 = vmatprep.subr.bf16.mxu0 %v3135
        %6761 = vmatpush1.bf16.msra.mxu0 %v3134
        %6762 = vmatprep.subr.bf16.mxu0 %v3151
        %6763 = vmatpush1.bf16.msra.mxu0 %v3150
        %6764 = vmatprep.subr.bf16.mxu0 %v3167
        %6765 = vmatpush1.bf16.msra.mxu0 %v3166
        %6766 = vmatprep.subr.bf16.mxu0 %v3183
        %6767 = vmatpush1.bf16.msra.mxu0 %v3182
        %6768 = vmatprep.subr.bf16.mxu0 %v3199
        %6769 = vmatpush1.bf16.msra.mxu0 %v3198
        %6770 = vmatprep.subr.bf16.mxu0 %v3215
        %6771 = vmatpush1.bf16.msra.mxu0 %v3214
        %6772 = vmatprep.subr.bf16.mxu0 %v3231
        %6773 = vmatpush1.bf16.msra.mxu0 %v3230
        %6774 = vmatprep.subr.bf16.mxu0 %v3247
        %6775 = vmatpush1.bf16.msra.mxu0 %v3246
        %6776 = vmatprep.subr.bf16.mxu0 %v3263
        %6777 = vmatpush1.bf16.msra.mxu0 %v3262
        %6778 = vmatprep.subr.bf16.mxu0 %v3279
        %6779 = vmatpush1.bf16.msra.mxu0 %v3278
        %6780 = vmatprep.subr.bf16.mxu0 %v3295
        %6781 = vmatpush1.bf16.msra.mxu0 %v3294
        %6782 = vmatprep.subr.bf16.mxu0 %v3311
        %6783 = vmatpush1.bf16.msra.mxu0 %v3310
        %6784 = vmatprep.mubr.bf16.mxu0 %v489
        %6785 = vmatmul.mubr.bf16.gmra.mrb[0].mxu0 %v488
        %v6786 = vpop.f32.mrb[0].mxu0
        %v6787 = vadd.f32 %v6746, %v6786
        %v6788 = vpop.f32.mrb[0].mxu0
        %v6789 = vadd.f32 %v6748, %v6788
        %v6790 = vpop.f32.mrb[0].mxu0
        %v6791 = vpop.f32.mrb[0].mxu0
        %6792 = vdwg.mxu0
        %6793 = vmatprep.subr.bf16.mxu0 %v3327
        %6794 = vmatpush1.bf16.msra.mxu0 %v3326
        %6795 = vmatprep.subr.bf16.mxu0 %v3343
        %6796 = vmatpush1.bf16.msra.mxu0 %v3342
        %6797 = vmatprep.subr.bf16.mxu0 %v3359
        %6798 = vmatpush1.bf16.msra.mxu0 %v3358
        %6799 = vmatprep.subr.bf16.mxu0 %v3375
        %6800 = vmatpush1.bf16.msra.mxu0 %v3374
        %6801 = vmatprep.subr.bf16.mxu0 %v3391
        %6802 = vmatpush1.bf16.msra.mxu0 %v3390
        %6803 = vmatprep.subr.bf16.mxu0 %v3407
        %6804 = vmatpush1.bf16.msra.mxu0 %v3406
        %6805 = vmatprep.subr.bf16.mxu0 %v3423
        %6806 = vmatpush1.bf16.msra.mxu0 %v3422
        %6807 = vmatprep.subr.bf16.mxu0 %v3439
        %6808 = vmatpush1.bf16.msra.mxu0 %v3438
        %6809 = vmatprep.subr.bf16.mxu0 %v3455
        %6810 = vmatpush1.bf16.msra.mxu0 %v3454
        %6811 = vmatprep.subr.bf16.mxu0 %v3471
        %6812 = vmatpush1.bf16.msra.mxu0 %v3470
        %6813 = vmatprep.subr.bf16.mxu0 %v3487
        %6814 = vmatpush1.bf16.msra.mxu0 %v3486
        %6815 = vmatprep.subr.bf16.mxu0 %v3503
        %6816 = vmatpush1.bf16.msra.mxu0 %v3502
        %6817 = vmatprep.subr.bf16.mxu0 %v3519
        %6818 = vmatpush1.bf16.msra.mxu0 %v3518
        %6819 = vmatprep.subr.bf16.mxu0 %v3535
        %6820 = vmatpush1.bf16.msra.mxu0 %v3534
        %6821 = vmatprep.subr.bf16.mxu0 %v3551
        %6822 = vmatpush1.bf16.msra.mxu0 %v3550
        %6823 = vmatprep.subr.bf16.mxu0 %v3567
        %6824 = vmatpush1.bf16.msra.mxu0 %v3566
        %6825 = vmatprep.mubr.bf16.mxu0 %v491
        %6826 = vmatmul.mubr.bf16.gmra.mrb[0].mxu0 %v490
        %v6827 = vpop.f32.mrb[0].mxu0
        %v6828 = vadd.f32 %v6787, %v6827
        %v6829 = vpop.f32.mrb[0].mxu0
        %v6830 = vadd.f32 %v6789, %v6829
        %v6831 = vpop.f32.mrb[0].mxu0
        %v6832 = vpop.f32.mrb[0].mxu0
        %6833 = vdwg.mxu0
        %6834 = vmatprep.subr.bf16.mxu0 %v3583
        %6835 = vmatpush1.bf16.msra.mxu0 %v3582
        %6836 = vmatprep.subr.bf16.mxu0 %v3599
        %6837 = vmatpush1.bf16.msra.mxu0 %v3598
        %6838 = vmatprep.subr.bf16.mxu0 %v3615
        %6839 = vmatpush1.bf16.msra.mxu0 %v3614
        %6840 = vmatprep.subr.bf16.mxu0 %v3631
        %6841 = vmatpush1.bf16.msra.mxu0 %v3630
        %6842 = vmatprep.subr.bf16.mxu0 %v3647
        %6843 = vmatpush1.bf16.msra.mxu0 %v3646
        %6844 = vmatprep.subr.bf16.mxu0 %v3663
        %6845 = vmatpush1.bf16.msra.mxu0 %v3662
        %6846 = vmatprep.subr.bf16.mxu0 %v3679
        %6847 = vmatpush1.bf16.msra.mxu0 %v3678
        %6848 = vmatprep.subr.bf16.mxu0 %v3695
        %6849 = vmatpush1.bf16.msra.mxu0 %v3694
        %6850 = vmatprep.subr.bf16.mxu0 %v3711
        %6851 = vmatpush1.bf16.msra.mxu0 %v3710
        %6852 = vmatprep.subr.bf16.mxu0 %v3727
        %6853 = vmatpush1.bf16.msra.mxu0 %v3726
        %6854 = vmatprep.subr.bf16.mxu0 %v3743
        %6855 = vmatpush1.bf16.msra.mxu0 %v3742
        %6856 = vmatprep.subr.bf16.mxu0 %v3759
        %6857 = vmatpush1.bf16.msra.mxu0 %v3758
        %6858 = vmatprep.subr.bf16.mxu0 %v3775
        %6859 = vmatpush1.bf16.msra.mxu0 %v3774
        %6860 = vmatprep.subr.bf16.mxu0 %v3791
        %6861 = vmatpush1.bf16.msra.mxu0 %v3790
        %6862 = vmatprep.subr.bf16.mxu0 %v3807
        %6863 = vmatpush1.bf16.msra.mxu0 %v3806
        %6864 = vmatprep.subr.bf16.mxu0 %v3823
        %6865 = vmatpush1.bf16.msra.mxu0 %v3822
        %6866 = vmatprep.mubr.bf16.mxu0 %v493
        %6867 = vmatmul.mubr.bf16.gmra.mrb[0].mxu0 %v492
        %v6868 = vpop.f32.mrb[0].mxu0
        %v6869 = vadd.f32 %v6828, %v6868
        %v6870 = vpop.f32.mrb[0].mxu0
        %v6871 = vadd.f32 %v6830, %v6870
        %v6872 = vpop.f32.mrb[0].mxu0
        %v6873 = vpop.f32.mrb[0].mxu0
        %6874 = vdwg.mxu0
        %6875 = vmatprep.subr.bf16.mxu0 %v3839
        %6876 = vmatpush1.bf16.msra.mxu0 %v3838
        %6877 = vmatprep.subr.bf16.mxu0 %v3855
        %6878 = vmatpush1.bf16.msra.mxu0 %v3854
        %6879 = vmatprep.subr.bf16.mxu0 %v3871
        %6880 = vmatpush1.bf16.msra.mxu0 %v3870
        %6881 = vmatprep.subr.bf16.mxu0 %v3887
        %6882 = vmatpush1.bf16.msra.mxu0 %v3886
        %6883 = vmatprep.subr.bf16.mxu0 %v3903
        %6884 = vmatpush1.bf16.msra.mxu0 %v3902
        %6885 = vmatprep.subr.bf16.mxu0 %v3919
        %6886 = vmatpush1.bf16.msra.mxu0 %v3918
        %6887 = vmatprep.subr.bf16.mxu0 %v3935
        %6888 = vmatpush1.bf16.msra.mxu0 %v3934
        %6889 = vmatprep.subr.bf16.mxu0 %v3951
        %6890 = vmatpush1.bf16.msra.mxu0 %v3950
        %6891 = vmatprep.subr.bf16.mxu0 %v3967
        %6892 = vmatpush1.bf16.msra.mxu0 %v3966
        %6893 = vmatprep.subr.bf16.mxu0 %v3983
        %6894 = vmatpush1.bf16.msra.mxu0 %v3982
        %6895 = vmatprep.subr.bf16.mxu0 %v3999
        %6896 = vmatpush1.bf16.msra.mxu0 %v3998
        %6897 = vmatprep.subr.bf16.mxu0 %v4015
        %6898 = vmatpush1.bf16.msra.mxu0 %v4014
        %6899 = vmatprep.subr.bf16.mxu0 %v4031
        %6900 = vmatpush1.bf16.msra.mxu0 %v4030
        %6901 = vmatprep.subr.bf16.mxu0 %v4047
        %6902 = vmatpush1.bf16.msra.mxu0 %v4046
        %6903 = vmatprep.subr.bf16.mxu0 %v4063
        %6904 = vmatpush1.bf16.msra.mxu0 %v4062
        %6905 = vmatprep.subr.bf16.mxu0 %v4079
        %6906 = vmatpush1.bf16.msra.mxu0 %v4078
        %6907 = vmatprep.mubr.bf16.mxu0 %v495
        %6908 = vmatmul.mubr.bf16.gmra.mrb[0].mxu0 %v494
        %v6909 = vpop.f32.mrb[0].mxu0
        %v6910 = vadd.f32 %v6869, %v6909
        %v6911 = vpop.f32.mrb[0].mxu0
        %v6912 = vadd.f32 %v6871, %v6911
        %v6913 = vpop.f32.mrb[0].mxu0
        %v6914 = vpop.f32.mrb[0].mxu0
        %6915 = vdwg.mxu0
        %6916 = vmatprep.subr.bf16.mxu0 %v4095
        %6917 = vmatpush1.bf16.msra.mxu0 %v4094
        %6918 = vmatprep.subr.bf16.mxu0 %v4111
        %6919 = vmatpush1.bf16.msra.mxu0 %v4110
        %6920 = vmatprep.subr.bf16.mxu0 %v4127
        %6921 = vmatpush1.bf16.msra.mxu0 %v4126
        %6922 = vmatprep.subr.bf16.mxu0 %v4143
        %6923 = vmatpush1.bf16.msra.mxu0 %v4142
        %6924 = vmatprep.subr.bf16.mxu0 %v4159
        %6925 = vmatpush1.bf16.msra.mxu0 %v4158
        %6926 = vmatprep.subr.bf16.mxu0 %v4175
        %6927 = vmatpush1.bf16.msra.mxu0 %v4174
        %6928 = vmatprep.subr.bf16.mxu0 %v4191
        %6929 = vmatpush1.bf16.msra.mxu0 %v4190
        %6930 = vmatprep.subr.bf16.mxu0 %v4207
        %6931 = vmatpush1.bf16.msra.mxu0 %v4206
        %6932 = vmatprep.subr.bf16.mxu0 %v4223
        %6933 = vmatpush1.bf16.msra.mxu0 %v4222
        %6934 = vmatprep.subr.bf16.mxu0 %v4239
        %6935 = vmatpush1.bf16.msra.mxu0 %v4238
        %6936 = vmatprep.subr.bf16.mxu0 %v4255
        %6937 = vmatpush1.bf16.msra.mxu0 %v4254
        %6938 = vmatprep.subr.bf16.mxu0 %v4271
        %6939 = vmatpush1.bf16.msra.mxu0 %v4270
        %6940 = vmatprep.subr.bf16.mxu0 %v4287
        %6941 = vmatpush1.bf16.msra.mxu0 %v4286
        %6942 = vmatprep.subr.bf16.mxu0 %v4303
        %6943 = vmatpush1.bf16.msra.mxu0 %v4302
        %6944 = vmatprep.subr.bf16.mxu0 %v4319
        %6945 = vmatpush1.bf16.msra.mxu0 %v4318
        %6946 = vmatprep.subr.bf16.mxu0 %v4335
        %6947 = vmatpush1.bf16.msra.mxu0 %v4334
        %6948 = vmatprep.mubr.bf16.mxu0 %v497
        %6949 = vmatmul.mubr.bf16.gmra.mrb[0].mxu0 %v496
        %v6950 = vpop.f32.mrb[0].mxu0
        %v6951 = vadd.f32 %v6910, %v6950
        %v6952 = vpop.f32.mrb[0].mxu0
        %v6953 = vadd.f32 %v6912, %v6952
        %v6954 = vpop.f32.mrb[0].mxu0
        %v6955 = vpop.f32.mrb[0].mxu0
        %6956 = vdwg.mxu0
        %6957 = vmatprep.subr.bf16.mxu0 %v4351
        %6958 = vmatpush1.bf16.msra.mxu0 %v4350
        %6959 = vmatprep.subr.bf16.mxu0 %v4367
        %6960 = vmatpush1.bf16.msra.mxu0 %v4366
        %6961 = vmatprep.subr.bf16.mxu0 %v4383
        %6962 = vmatpush1.bf16.msra.mxu0 %v4382
        %6963 = vmatprep.subr.bf16.mxu0 %v4399
        %6964 = vmatpush1.bf16.msra.mxu0 %v4398
        %6965 = vmatprep.subr.bf16.mxu0 %v4415
        %6966 = vmatpush1.bf16.msra.mxu0 %v4414
        %6967 = vmatprep.subr.bf16.mxu0 %v4431
        %6968 = vmatpush1.bf16.msra.mxu0 %v4430
        %6969 = vmatprep.subr.bf16.mxu0 %v4447
        %6970 = vmatpush1.bf16.msra.mxu0 %v4446
        %6971 = vmatprep.subr.bf16.mxu0 %v4463
        %6972 = vmatpush1.bf16.msra.mxu0 %v4462
        %6973 = vmatprep.subr.bf16.mxu0 %v4479
        %6974 = vmatpush1.bf16.msra.mxu0 %v4478
        %6975 = vmatprep.subr.bf16.mxu0 %v4495
        %6976 = vmatpush1.bf16.msra.mxu0 %v4494
        %6977 = vmatprep.subr.bf16.mxu0 %v4511
        %6978 = vmatpush1.bf16.msra.mxu0 %v4510
        %6979 = vmatprep.subr.bf16.mxu0 %v4527
        %6980 = vmatpush1.bf16.msra.mxu0 %v4526
        %6981 = vmatprep.subr.bf16.mxu0 %v4543
        %6982 = vmatpush1.bf16.msra.mxu0 %v4542
        %6983 = vmatprep.subr.bf16.mxu0 %v4559
        %6984 = vmatpush1.bf16.msra.mxu0 %v4558
        %6985 = vmatprep.subr.bf16.mxu0 %v4575
        %6986 = vmatpush1.bf16.msra.mxu0 %v4574
        %6987 = vmatprep.subr.bf16.mxu0 %v4591
        %6988 = vmatpush1.bf16.msra.mxu0 %v4590
        %6989 = vmatprep.mubr.bf16.mxu0 %v499
        %6990 = vmatmul.mubr.bf16.gmra.mrb[0].mxu0 %v498
        %v6991 = vpop.f32.mrb[0].mxu0
        %v6992 = vadd.f32 %v6951, %v6991
        %v6993 = vpop.f32.mrb[0].mxu0
        %v6994 = vadd.f32 %v6953, %v6993
        %v6995 = vpop.f32.mrb[0].mxu0
        %v6996 = vpop.f32.mrb[0].mxu0
        %6997 = vdwg.mxu0
        %6998 = vmatprep.subr.bf16.mxu0 %v4607
        %6999 = vmatpush1.bf16.msra.mxu0 %v4606
        %7000 = vmatprep.subr.bf16.mxu0 %v4623
        %7001 = vmatpush1.bf16.msra.mxu0 %v4622
        %7002 = vmatprep.subr.bf16.mxu0 %v4639
        %7003 = vmatpush1.bf16.msra.mxu0 %v4638
        %7004 = vmatprep.subr.bf16.mxu0 %v4655
        %7005 = vmatpush1.bf16.msra.mxu0 %v4654
        %7006 = vmatprep.subr.bf16.mxu0 %v4671
        %7007 = vmatpush1.bf16.msra.mxu0 %v4670
        %7008 = vmatprep.subr.bf16.mxu0 %v4687
        %7009 = vmatpush1.bf16.msra.mxu0 %v4686
        %7010 = vmatprep.subr.bf16.mxu0 %v4703
        %7011 = vmatpush1.bf16.msra.mxu0 %v4702
        %7012 = vmatprep.subr.bf16.mxu0 %v4719
        %7013 = vmatpush1.bf16.msra.mxu0 %v4718
        %7014 = vmatprep.subr.bf16.mxu0 %v4735
        %7015 = vmatpush1.bf16.msra.mxu0 %v4734
        %7016 = vmatprep.subr.bf16.mxu0 %v4751
        %7017 = vmatpush1.bf16.msra.mxu0 %v4750
        %7018 = vmatprep.subr.bf16.mxu0 %v4767
        %7019 = vmatpush1.bf16.msra.mxu0 %v4766
        %7020 = vmatprep.subr.bf16.mxu0 %v4783
        %7021 = vmatpush1.bf16.msra.mxu0 %v4782
        %7022 = vmatprep.subr.bf16.mxu0 %v4799
        %7023 = vmatpush1.bf16.msra.mxu0 %v4798
        %7024 = vmatprep.subr.bf16.mxu0 %v4815
        %7025 = vmatpush1.bf16.msra.mxu0 %v4814
        %7026 = vmatprep.subr.bf16.mxu0 %v4831
        %7027 = vmatpush1.bf16.msra.mxu0 %v4830
        %7028 = vmatprep.subr.bf16.mxu0 %v4847
        %7029 = vmatpush1.bf16.msra.mxu0 %v4846
        %7030 = vmatprep.mubr.bf16.mxu0 %v501
        %7031 = vmatmul.mubr.bf16.gmra.mrb[0].mxu0 %v500
        %v7032 = vpop.f32.mrb[0].mxu0
        %v7033 = vadd.f32 %v6992, %v7032
        %v7034 = vpop.f32.mrb[0].mxu0
        %v7035 = vadd.f32 %v6994, %v7034
        %v7036 = vpop.f32.mrb[0].mxu0
        %v7037 = vpop.f32.mrb[0].mxu0
        %7038 = vdwg.mxu0
        %7039 = vmatprep.subr.bf16.mxu0 %v4863
        %7040 = vmatpush1.bf16.msra.mxu0 %v4862
        %7041 = vmatprep.subr.bf16.mxu0 %v4879
        %7042 = vmatpush1.bf16.msra.mxu0 %v4878
        %7043 = vmatprep.subr.bf16.mxu0 %v4895
        %7044 = vmatpush1.bf16.msra.mxu0 %v4894
        %7045 = vmatprep.subr.bf16.mxu0 %v4911
        %7046 = vmatpush1.bf16.msra.mxu0 %v4910
        %7047 = vmatprep.subr.bf16.mxu0 %v4927
        %7048 = vmatpush1.bf16.msra.mxu0 %v4926
        %7049 = vmatprep.subr.bf16.mxu0 %v4943
        %7050 = vmatpush1.bf16.msra.mxu0 %v4942
        %7051 = vmatprep.subr.bf16.mxu0 %v4959
        %7052 = vmatpush1.bf16.msra.mxu0 %v4958
        %7053 = vmatprep.subr.bf16.mxu0 %v4975
        %7054 = vmatpush1.bf16.msra.mxu0 %v4974
        %7055 = vmatprep.subr.bf16.mxu0 %v4991
        %7056 = vmatpush1.bf16.msra.mxu0 %v4990
        %7057 = vmatprep.subr.bf16.mxu0 %v5007
        %7058 = vmatpush1.bf16.msra.mxu0 %v5006
        %7059 = vmatprep.subr.bf16.mxu0 %v5023
        %7060 = vmatpush1.bf16.msra.mxu0 %v5022
        %7061 = vmatprep.subr.bf16.mxu0 %v5039
        %7062 = vmatpush1.bf16.msra.mxu0 %v5038
        %7063 = vmatprep.subr.bf16.mxu0 %v5055
        %7064 = vmatpush1.bf16.msra.mxu0 %v5054
        %7065 = vmatprep.subr.bf16.mxu0 %v5071
        %7066 = vmatpush1.bf16.msra.mxu0 %v5070
        %7067 = vmatprep.subr.bf16.mxu0 %v5087
        %7068 = vmatpush1.bf16.msra.mxu0 %v5086
        %7069 = vmatprep.subr.bf16.mxu0 %v5103
        %7070 = vmatpush1.bf16.msra.mxu0 %v5102
        %7071 = vmatprep.mubr.bf16.mxu0 %v503
        %7072 = vmatmul.mubr.bf16.gmra.mrb[0].mxu0 %v502
        %v7073 = vpop.f32.mrb[0].mxu0
        %v7074 = vadd.f32 %v7033, %v7073
        %v7075 = vpop.f32.mrb[0].mxu0
        %v7076 = vadd.f32 %v7035, %v7075
        %v7077 = vpop.f32.mrb[0].mxu0
        %v7078 = vpop.f32.mrb[0].mxu0
        %7079 = vdwg.mxu0
        %7080 = vmatprep.subr.bf16.mxu0 %v2049
        %7081 = vmatpush1.bf16.msra.mxu0 %v2048
        %7082 = vmatprep.subr.bf16.mxu0 %v2065
        %7083 = vmatpush1.bf16.msra.mxu0 %v2064
        %7084 = vmatprep.subr.bf16.mxu0 %v2081
        %7085 = vmatpush1.bf16.msra.mxu0 %v2080
        %7086 = vmatprep.subr.bf16.mxu0 %v2097
        %7087 = vmatpush1.bf16.msra.mxu0 %v2096
        %7088 = vmatprep.subr.bf16.mxu0 %v2113
        %7089 = vmatpush1.bf16.msra.mxu0 %v2112
        %7090 = vmatprep.subr.bf16.mxu0 %v2129
        %7091 = vmatpush1.bf16.msra.mxu0 %v2128
        %7092 = vmatprep.subr.bf16.mxu0 %v2145
        %7093 = vmatpush1.bf16.msra.mxu0 %v2144
        %7094 = vmatprep.subr.bf16.mxu0 %v2161
        %7095 = vmatpush1.bf16.msra.mxu0 %v2160
        %7096 = vmatprep.subr.bf16.mxu0 %v2177
        %7097 = vmatpush1.bf16.msra.mxu0 %v2176
        %7098 = vmatprep.subr.bf16.mxu0 %v2193
        %7099 = vmatpush1.bf16.msra.mxu0 %v2192
        %7100 = vmatprep.subr.bf16.mxu0 %v2209
        %7101 = vmatpush1.bf16.msra.mxu0 %v2208
        %7102 = vmatprep.subr.bf16.mxu0 %v2225
        %7103 = vmatpush1.bf16.msra.mxu0 %v2224
        %7104 = vmatprep.subr.bf16.mxu0 %v2241
        %7105 = vmatpush1.bf16.msra.mxu0 %v2240
        %7106 = vmatprep.subr.bf16.mxu0 %v2257
        %7107 = vmatpush1.bf16.msra.mxu0 %v2256
        %7108 = vmatprep.subr.bf16.mxu0 %v2273
        %7109 = vmatpush1.bf16.msra.mxu0 %v2272
        %7110 = vmatprep.subr.bf16.mxu0 %v2289
        %7111 = vmatpush1.bf16.msra.mxu0 %v2288
        %7112 = vmatprep.mubr.bf16.mxu0 %v481
        %7113 = vmatmul.mubr.bf16.gmra.mrb[0].mxu0 %v480
        %v7114 = vpop.f32.mrb[0].mxu0
        %v7115 = vadd.f32 0.0, %v7114
        %v7116 = vpop.f32.mrb[0].mxu0
        %v7117 = vadd.f32 0.0, %v7116
        %v7118 = vpop.f32.mrb[0].mxu0
        %v7119 = vpop.f32.mrb[0].mxu0
        %7120 = vdwg.mxu0
        %7121 = vmatprep.subr.bf16.mxu0 %v2305
        %7122 = vmatpush1.bf16.msra.mxu0 %v2304
        %7123 = vmatprep.subr.bf16.mxu0 %v2321
        %7124 = vmatpush1.bf16.msra.mxu0 %v2320
        %7125 = vmatprep.subr.bf16.mxu0 %v2337
        %7126 = vmatpush1.bf16.msra.mxu0 %v2336
        %7127 = vmatprep.subr.bf16.mxu0 %v2353
        %7128 = vmatpush1.bf16.msra.mxu0 %v2352
        %7129 = vmatprep.subr.bf16.mxu0 %v2369
        %7130 = vmatpush1.bf16.msra.mxu0 %v2368
        %7131 = vmatprep.subr.bf16.mxu0 %v2385
        %7132 = vmatpush1.bf16.msra.mxu0 %v2384
        %7133 = vmatprep.subr.bf16.mxu0 %v2401
        %7134 = vmatpush1.bf16.msra.mxu0 %v2400
        %7135 = vmatprep.subr.bf16.mxu0 %v2417
        %7136 = vmatpush1.bf16.msra.mxu0 %v2416
        %7137 = vmatprep.subr.bf16.mxu0 %v2433
        %7138 = vmatpush1.bf16.msra.mxu0 %v2432
        %7139 = vmatprep.subr.bf16.mxu0 %v2449
        %7140 = vmatpush1.bf16.msra.mxu0 %v2448
        %7141 = vmatprep.subr.bf16.mxu0 %v2465
        %7142 = vmatpush1.bf16.msra.mxu0 %v2464
        %7143 = vmatprep.subr.bf16.mxu0 %v2481
        %7144 = vmatpush1.bf16.msra.mxu0 %v2480
        %7145 = vmatprep.subr.bf16.mxu0 %v2497
        %7146 = vmatpush1.bf16.msra.mxu0 %v2496
        %7147 = vmatprep.subr.bf16.mxu0 %v2513
        %7148 = vmatpush1.bf16.msra.mxu0 %v2512
        %7149 = vmatprep.subr.bf16.mxu0 %v2529
        %7150 = vmatpush1.bf16.msra.mxu0 %v2528
        %7151 = vmatprep.subr.bf16.mxu0 %v2545
        %7152 = vmatpush1.bf16.msra.mxu0 %v2544
        %7153 = vmatprep.mubr.bf16.mxu0 %v483
        %7154 = vmatmul.mubr.bf16.gmra.mrb[0].mxu0 %v482
        %v7155 = vpop.f32.mrb[0].mxu0
        %v7156 = vadd.f32 %v7115, %v7155
        %v7157 = vpop.f32.mrb[0].mxu0
        %v7158 = vadd.f32 %v7117, %v7157
        %v7159 = vpop.f32.mrb[0].mxu0
        %v7160 = vpop.f32.mrb[0].mxu0
        %7161 = vdwg.mxu0
        %7162 = vmatprep.subr.bf16.mxu0 %v2561
        %7163 = vmatpush1.bf16.msra.mxu0 %v2560
        %7164 = vmatprep.subr.bf16.mxu0 %v2577
        %7165 = vmatpush1.bf16.msra.mxu0 %v2576
        %7166 = vmatprep.subr.bf16.mxu0 %v2593
        %7167 = vmatpush1.bf16.msra.mxu0 %v2592
        %7168 = vmatprep.subr.bf16.mxu0 %v2609
        %7169 = vmatpush1.bf16.msra.mxu0 %v2608
        %7170 = vmatprep.subr.bf16.mxu0 %v2625
        %7171 = vmatpush1.bf16.msra.mxu0 %v2624
        %7172 = vmatprep.subr.bf16.mxu0 %v2641
        %7173 = vmatpush1.bf16.msra.mxu0 %v2640
        %7174 = vmatprep.subr.bf16.mxu0 %v2657
        %7175 = vmatpush1.bf16.msra.mxu0 %v2656
        %7176 = vmatprep.subr.bf16.mxu0 %v2673
        %7177 = vmatpush1.bf16.msra.mxu0 %v2672
        %7178 = vmatprep.subr.bf16.mxu0 %v2689
        %7179 = vmatpush1.bf16.msra.mxu0 %v2688
        %7180 = vmatprep.subr.bf16.mxu0 %v2705
        %7181 = vmatpush1.bf16.msra.mxu0 %v2704
        %7182 = vmatprep.subr.bf16.mxu0 %v2721
        %7183 = vmatpush1.bf16.msra.mxu0 %v2720
        %7184 = vmatprep.subr.bf16.mxu0 %v2737
        %7185 = vmatpush1.bf16.msra.mxu0 %v2736
        %7186 = vmatprep.subr.bf16.mxu0 %v2753
        %7187 = vmatpush1.bf16.msra.mxu0 %v2752
        %7188 = vmatprep.subr.bf16.mxu0 %v2769
        %7189 = vmatpush1.bf16.msra.mxu0 %v2768
        %7190 = vmatprep.subr.bf16.mxu0 %v2785
        %7191 = vmatpush1.bf16.msra.mxu0 %v2784
        %7192 = vmatprep.subr.bf16.mxu0 %v2801
        %7193 = vmatpush1.bf16.msra.mxu0 %v2800
        %7194 = vmatprep.mubr.bf16.mxu0 %v485
        %7195 = vmatmul.mubr.bf16.gmra.mrb[0].mxu0 %v484
        %v7196 = vpop.f32.mrb[0].mxu0
        %v7197 = vadd.f32 %v7156, %v7196
        %v7198 = vpop.f32.mrb[0].mxu0
        %v7199 = vadd.f32 %v7158, %v7198
        %v7200 = vpop.f32.mrb[0].mxu0
        %v7201 = vpop.f32.mrb[0].mxu0
        %7202 = vdwg.mxu0
        %7203 = vmatprep.subr.bf16.mxu0 %v2817
        %7204 = vmatpush1.bf16.msra.mxu0 %v2816
        %7205 = vmatprep.subr.bf16.mxu0 %v2833
        %7206 = vmatpush1.bf16.msra.mxu0 %v2832
        %7207 = vmatprep.subr.bf16.mxu0 %v2849
        %7208 = vmatpush1.bf16.msra.mxu0 %v2848
        %7209 = vmatprep.subr.bf16.mxu0 %v2865
        %7210 = vmatpush1.bf16.msra.mxu0 %v2864
        %7211 = vmatprep.subr.bf16.mxu0 %v2881
        %7212 = vmatpush1.bf16.msra.mxu0 %v2880
        %7213 = vmatprep.subr.bf16.mxu0 %v2897
        %7214 = vmatpush1.bf16.msra.mxu0 %v2896
        %7215 = vmatprep.subr.bf16.mxu0 %v2913
        %7216 = vmatpush1.bf16.msra.mxu0 %v2912
        %7217 = vmatprep.subr.bf16.mxu0 %v2929
        %7218 = vmatpush1.bf16.msra.mxu0 %v2928
        %7219 = vmatprep.subr.bf16.mxu0 %v2945
        %7220 = vmatpush1.bf16.msra.mxu0 %v2944
        %7221 = vmatprep.subr.bf16.mxu0 %v2961
        %7222 = vmatpush1.bf16.msra.mxu0 %v2960
        %7223 = vmatprep.subr.bf16.mxu0 %v2977
        %7224 = vmatpush1.bf16.msra.mxu0 %v2976
        %7225 = vmatprep.subr.bf16.mxu0 %v2993
        %7226 = vmatpush1.bf16.msra.mxu0 %v2992
        %7227 = vmatprep.subr.bf16.mxu0 %v3009
        %7228 = vmatpush1.bf16.msra.mxu0 %v3008
        %7229 = vmatprep.subr.bf16.mxu0 %v3025
        %7230 = vmatpush1.bf16.msra.mxu0 %v3024
        %7231 = vmatprep.subr.bf16.mxu0 %v3041
        %7232 = vmatpush1.bf16.msra.mxu0 %v3040
        %7233 = vmatprep.subr.bf16.mxu0 %v3057
        %7234 = vmatpush1.bf16.msra.mxu0 %v3056
        %7235 = vmatprep.mubr.bf16.mxu0 %v487
        %7236 = vmatmul.mubr.bf16.gmra.mrb[0].mxu0 %v486
        %v7237 = vpop.f32.mrb[0].mxu0
        %v7238 = vadd.f32 %v7197, %v7237
        %v7239 = vpop.f32.mrb[0].mxu0
        %v7240 = vadd.f32 %v7199, %v7239
        %v7241 = vpop.f32.mrb[0].mxu0
        %v7242 = vpop.f32.mrb[0].mxu0
        %7243 = vdwg.mxu0
        %7244 = vmatprep.subr.bf16.mxu0 %v3073
        %7245 = vmatpush1.bf16.msra.mxu0 %v3072
        %7246 = vmatprep.subr.bf16.mxu0 %v3089
        %7247 = vmatpush1.bf16.msra.mxu0 %v3088
        %7248 = vmatprep.subr.bf16.mxu0 %v3105
        %7249 = vmatpush1.bf16.msra.mxu0 %v3104
        %7250 = vmatprep.subr.bf16.mxu0 %v3121
        %7251 = vmatpush1.bf16.msra.mxu0 %v3120
        %7252 = vmatprep.subr.bf16.mxu0 %v3137
        %7253 = vmatpush1.bf16.msra.mxu0 %v3136
        %7254 = vmatprep.subr.bf16.mxu0 %v3153
        %7255 = vmatpush1.bf16.msra.mxu0 %v3152
        %7256 = vmatprep.subr.bf16.mxu0 %v3169
        %7257 = vmatpush1.bf16.msra.mxu0 %v3168
        %7258 = vmatprep.subr.bf16.mxu0 %v3185
        %7259 = vmatpush1.bf16.msra.mxu0 %v3184
        %7260 = vmatprep.subr.bf16.mxu0 %v3201
        %7261 = vmatpush1.bf16.msra.mxu0 %v3200
        %7262 = vmatprep.subr.bf16.mxu0 %v3217
        %7263 = vmatpush1.bf16.msra.mxu0 %v3216
        %7264 = vmatprep.subr.bf16.mxu0 %v3233
        %7265 = vmatpush1.bf16.msra.mxu0 %v3232
        %7266 = vmatprep.subr.bf16.mxu0 %v3249
        %7267 = vmatpush1.bf16.msra.mxu0 %v3248
        %7268 = vmatprep.subr.bf16.mxu0 %v3265
        %7269 = vmatpush1.bf16.msra.mxu0 %v3264
        %7270 = vmatprep.subr.bf16.mxu0 %v3281
        %7271 = vmatpush1.bf16.msra.mxu0 %v3280
        %7272 = vmatprep.subr.bf16.mxu0 %v3297
        %7273 = vmatpush1.bf16.msra.mxu0 %v3296
        %7274 = vmatprep.subr.bf16.mxu0 %v3313
        %7275 = vmatpush1.bf16.msra.mxu0 %v3312
        %7276 = vmatprep.mubr.bf16.mxu0 %v489
        %7277 = vmatmul.mubr.bf16.gmra.mrb[0].mxu0 %v488
        %v7278 = vpop.f32.mrb[0].mxu0
        %v7279 = vadd.f32 %v7238, %v7278
        %v7280 = vpop.f32.mrb[0].mxu0
        %v7281 = vadd.f32 %v7240, %v7280
        %v7282 = vpop.f32.mrb[0].mxu0
        %v7283 = vpop.f32.mrb[0].mxu0
        %7284 = vdwg.mxu0
        %7285 = vmatprep.subr.bf16.mxu0 %v3329
        %7286 = vmatpush1.bf16.msra.mxu0 %v3328
        %7287 = vmatprep.subr.bf16.mxu0 %v3345
        %7288 = vmatpush1.bf16.msra.mxu0 %v3344
        %7289 = vmatprep.subr.bf16.mxu0 %v3361
        %7290 = vmatpush1.bf16.msra.mxu0 %v3360
        %7291 = vmatprep.subr.bf16.mxu0 %v3377
        %7292 = vmatpush1.bf16.msra.mxu0 %v3376
        %7293 = vmatprep.subr.bf16.mxu0 %v3393
        %7294 = vmatpush1.bf16.msra.mxu0 %v3392
        %7295 = vmatprep.subr.bf16.mxu0 %v3409
        %7296 = vmatpush1.bf16.msra.mxu0 %v3408
        %7297 = vmatprep.subr.bf16.mxu0 %v3425
        %7298 = vmatpush1.bf16.msra.mxu0 %v3424
        %7299 = vmatprep.subr.bf16.mxu0 %v3441
        %7300 = vmatpush1.bf16.msra.mxu0 %v3440
        %7301 = vmatprep.subr.bf16.mxu0 %v3457
        %7302 = vmatpush1.bf16.msra.mxu0 %v3456
        %7303 = vmatprep.subr.bf16.mxu0 %v3473
        %7304 = vmatpush1.bf16.msra.mxu0 %v3472
        %7305 = vmatprep.subr.bf16.mxu0 %v3489
        %7306 = vmatpush1.bf16.msra.mxu0 %v3488
        %7307 = vmatprep.subr.bf16.mxu0 %v3505
        %7308 = vmatpush1.bf16.msra.mxu0 %v3504
        %7309 = vmatprep.subr.bf16.mxu0 %v3521
        %7310 = vmatpush1.bf16.msra.mxu0 %v3520
        %7311 = vmatprep.subr.bf16.mxu0 %v3537
        %7312 = vmatpush1.bf16.msra.mxu0 %v3536
        %7313 = vmatprep.subr.bf16.mxu0 %v3553
        %7314 = vmatpush1.bf16.msra.mxu0 %v3552
        %7315 = vmatprep.subr.bf16.mxu0 %v3569
        %7316 = vmatpush1.bf16.msra.mxu0 %v3568
        %7317 = vmatprep.mubr.bf16.mxu0 %v491
        %7318 = vmatmul.mubr.bf16.gmra.mrb[0].mxu0 %v490
        %v7319 = vpop.f32.mrb[0].mxu0
        %v7320 = vadd.f32 %v7279, %v7319
        %v7321 = vpop.f32.mrb[0].mxu0
        %v7322 = vadd.f32 %v7281, %v7321
        %v7323 = vpop.f32.mrb[0].mxu0
        %v7324 = vpop.f32.mrb[0].mxu0
        %7325 = vdwg.mxu0
        %7326 = vmatprep.subr.bf16.mxu0 %v3585
        %7327 = vmatpush1.bf16.msra.mxu0 %v3584
        %7328 = vmatprep.subr.bf16.mxu0 %v3601
        %7329 = vmatpush1.bf16.msra.mxu0 %v3600
        %7330 = vmatprep.subr.bf16.mxu0 %v3617
        %7331 = vmatpush1.bf16.msra.mxu0 %v3616
        %7332 = vmatprep.subr.bf16.mxu0 %v3633
        %7333 = vmatpush1.bf16.msra.mxu0 %v3632
        %7334 = vmatprep.subr.bf16.mxu0 %v3649
        %7335 = vmatpush1.bf16.msra.mxu0 %v3648
        %7336 = vmatprep.subr.bf16.mxu0 %v3665
        %7337 = vmatpush1.bf16.msra.mxu0 %v3664
        %7338 = vmatprep.subr.bf16.mxu0 %v3681
        %7339 = vmatpush1.bf16.msra.mxu0 %v3680
        %7340 = vmatprep.subr.bf16.mxu0 %v3697
        %7341 = vmatpush1.bf16.msra.mxu0 %v3696
        %7342 = vmatprep.subr.bf16.mxu0 %v3713
        %7343 = vmatpush1.bf16.msra.mxu0 %v3712
        %7344 = vmatprep.subr.bf16.mxu0 %v3729
        %7345 = vmatpush1.bf16.msra.mxu0 %v3728
        %7346 = vmatprep.subr.bf16.mxu0 %v3745
        %7347 = vmatpush1.bf16.msra.mxu0 %v3744
        %7348 = vmatprep.subr.bf16.mxu0 %v3761
        %7349 = vmatpush1.bf16.msra.mxu0 %v3760
        %7350 = vmatprep.subr.bf16.mxu0 %v3777
        %7351 = vmatpush1.bf16.msra.mxu0 %v3776
        %7352 = vmatprep.subr.bf16.mxu0 %v3793
        %7353 = vmatpush1.bf16.msra.mxu0 %v3792
        %7354 = vmatprep.subr.bf16.mxu0 %v3809
        %7355 = vmatpush1.bf16.msra.mxu0 %v3808
        %7356 = vmatprep.subr.bf16.mxu0 %v3825
        %7357 = vmatpush1.bf16.msra.mxu0 %v3824
        %7358 = vmatprep.mubr.bf16.mxu0 %v493
        %7359 = vmatmul.mubr.bf16.gmra.mrb[0].mxu0 %v492
        %v7360 = vpop.f32.mrb[0].mxu0
        %v7361 = vadd.f32 %v7320, %v7360
        %v7362 = vpop.f32.mrb[0].mxu0
        %v7363 = vadd.f32 %v7322, %v7362
        %v7364 = vpop.f32.mrb[0].mxu0
        %v7365 = vpop.f32.mrb[0].mxu0
        %7366 = vdwg.mxu0
        %7367 = vmatprep.subr.bf16.mxu0 %v3841
        %7368 = vmatpush1.bf16.msra.mxu0 %v3840
        %7369 = vmatprep.subr.bf16.mxu0 %v3857
        %7370 = vmatpush1.bf16.msra.mxu0 %v3856
        %7371 = vmatprep.subr.bf16.mxu0 %v3873
        %7372 = vmatpush1.bf16.msra.mxu0 %v3872
        %7373 = vmatprep.subr.bf16.mxu0 %v3889
        %7374 = vmatpush1.bf16.msra.mxu0 %v3888
        %7375 = vmatprep.subr.bf16.mxu0 %v3905
        %7376 = vmatpush1.bf16.msra.mxu0 %v3904
        %7377 = vmatprep.subr.bf16.mxu0 %v3921
        %7378 = vmatpush1.bf16.msra.mxu0 %v3920
        %7379 = vmatprep.subr.bf16.mxu0 %v3937
        %7380 = vmatpush1.bf16.msra.mxu0 %v3936
        %7381 = vmatprep.subr.bf16.mxu0 %v3953
        %7382 = vmatpush1.bf16.msra.mxu0 %v3952
        %7383 = vmatprep.subr.bf16.mxu0 %v3969
        %7384 = vmatpush1.bf16.msra.mxu0 %v3968
        %7385 = vmatprep.subr.bf16.mxu0 %v3985
        %7386 = vmatpush1.bf16.msra.mxu0 %v3984
        %7387 = vmatprep.subr.bf16.mxu0 %v4001
        %7388 = vmatpush1.bf16.msra.mxu0 %v4000
        %7389 = vmatprep.subr.bf16.mxu0 %v4017
        %7390 = vmatpush1.bf16.msra.mxu0 %v4016
        %7391 = vmatprep.subr.bf16.mxu0 %v4033
        %7392 = vmatpush1.bf16.msra.mxu0 %v4032
        %7393 = vmatprep.subr.bf16.mxu0 %v4049
        %7394 = vmatpush1.bf16.msra.mxu0 %v4048
        %7395 = vmatprep.subr.bf16.mxu0 %v4065
        %7396 = vmatpush1.bf16.msra.mxu0 %v4064
        %7397 = vmatprep.subr.bf16.mxu0 %v4081
        %7398 = vmatpush1.bf16.msra.mxu0 %v4080
        %7399 = vmatprep.mubr.bf16.mxu0 %v495
        %7400 = vmatmul.mubr.bf16.gmra.mrb[0].mxu0 %v494
        %v7401 = vpop.f32.mrb[0].mxu0
        %v7402 = vadd.f32 %v7361, %v7401
        %v7403 = vpop.f32.mrb[0].mxu0
        %v7404 = vadd.f32 %v7363, %v7403
        %v7405 = vpop.f32.mrb[0].mxu0
        %v7406 = vpop.f32.mrb[0].mxu0
        %7407 = vdwg.mxu0
        %7408 = vmatprep.subr.bf16.mxu0 %v4097
        %7409 = vmatpush1.bf16.msra.mxu0 %v4096
        %7410 = vmatprep.subr.bf16.mxu0 %v4113
        %7411 = vmatpush1.bf16.msra.mxu0 %v4112
        %7412 = vmatprep.subr.bf16.mxu0 %v4129
        %7413 = vmatpush1.bf16.msra.mxu0 %v4128
        %7414 = vmatprep.subr.bf16.mxu0 %v4145
        %7415 = vmatpush1.bf16.msra.mxu0 %v4144
        %7416 = vmatprep.subr.bf16.mxu0 %v4161
        %7417 = vmatpush1.bf16.msra.mxu0 %v4160
        %7418 = vmatprep.subr.bf16.mxu0 %v4177
        %7419 = vmatpush1.bf16.msra.mxu0 %v4176
        %7420 = vmatprep.subr.bf16.mxu0 %v4193
        %7421 = vmatpush1.bf16.msra.mxu0 %v4192
        %7422 = vmatprep.subr.bf16.mxu0 %v4209
        %7423 = vmatpush1.bf16.msra.mxu0 %v4208
        %7424 = vmatprep.subr.bf16.mxu0 %v4225
        %7425 = vmatpush1.bf16.msra.mxu0 %v4224
        %7426 = vmatprep.subr.bf16.mxu0 %v4241
        %7427 = vmatpush1.bf16.msra.mxu0 %v4240
        %7428 = vmatprep.subr.bf16.mxu0 %v4257
        %7429 = vmatpush1.bf16.msra.mxu0 %v4256
        %7430 = vmatprep.subr.bf16.mxu0 %v4273
        %7431 = vmatpush1.bf16.msra.mxu0 %v4272
        %7432 = vmatprep.subr.bf16.mxu0 %v4289
        %7433 = vmatpush1.bf16.msra.mxu0 %v4288
        %7434 = vmatprep.subr.bf16.mxu0 %v4305
        %7435 = vmatpush1.bf16.msra.mxu0 %v4304
        %7436 = vmatprep.subr.bf16.mxu0 %v4321
        %7437 = vmatpush1.bf16.msra.mxu0 %v4320
        %7438 = vmatprep.subr.bf16.mxu0 %v4337
        %7439 = vmatpush1.bf16.msra.mxu0 %v4336
        %7440 = vmatprep.mubr.bf16.mxu0 %v497
        %7441 = vmatmul.mubr.bf16.gmra.mrb[0].mxu0 %v496
        %v7442 = vpop.f32.mrb[0].mxu0
        %v7443 = vadd.f32 %v7402, %v7442
        %v7444 = vpop.f32.mrb[0].mxu0
        %v7445 = vadd.f32 %v7404, %v7444
        %v7446 = vpop.f32.mrb[0].mxu0
        %v7447 = vpop.f32.mrb[0].mxu0
        %7448 = vdwg.mxu0
        %7449 = vmatprep.subr.bf16.mxu0 %v4353
        %7450 = vmatpush1.bf16.msra.mxu0 %v4352
        %7451 = vmatprep.subr.bf16.mxu0 %v4369
        %7452 = vmatpush1.bf16.msra.mxu0 %v4368
        %7453 = vmatprep.subr.bf16.mxu0 %v4385
        %7454 = vmatpush1.bf16.msra.mxu0 %v4384
        %7455 = vmatprep.subr.bf16.mxu0 %v4401
        %7456 = vmatpush1.bf16.msra.mxu0 %v4400
        %7457 = vmatprep.subr.bf16.mxu0 %v4417
        %7458 = vmatpush1.bf16.msra.mxu0 %v4416
        %7459 = vmatprep.subr.bf16.mxu0 %v4433
        %7460 = vmatpush1.bf16.msra.mxu0 %v4432
        %7461 = vmatprep.subr.bf16.mxu0 %v4449
        %7462 = vmatpush1.bf16.msra.mxu0 %v4448
        %7463 = vmatprep.subr.bf16.mxu0 %v4465
        %7464 = vmatpush1.bf16.msra.mxu0 %v4464
        %7465 = vmatprep.subr.bf16.mxu0 %v4481
        %7466 = vmatpush1.bf16.msra.mxu0 %v4480
        %7467 = vmatprep.subr.bf16.mxu0 %v4497
        %7468 = vmatpush1.bf16.msra.mxu0 %v4496
        %7469 = vmatprep.subr.bf16.mxu0 %v4513
        %7470 = vmatpush1.bf16.msra.mxu0 %v4512
        %7471 = vmatprep.subr.bf16.mxu0 %v4529
        %7472 = vmatpush1.bf16.msra.mxu0 %v4528
        %7473 = vmatprep.subr.bf16.mxu0 %v4545
        %7474 = vmatpush1.bf16.msra.mxu0 %v4544
        %7475 = vmatprep.subr.bf16.mxu0 %v4561
        %7476 = vmatpush1.bf16.msra.mxu0 %v4560
        %7477 = vmatprep.subr.bf16.mxu0 %v4577
        %7478 = vmatpush1.bf16.msra.mxu0 %v4576
        %7479 = vmatprep.subr.bf16.mxu0 %v4593
        %7480 = vmatpush1.bf16.msra.mxu0 %v4592
        %7481 = vmatprep.mubr.bf16.mxu0 %v499
        %7482 = vmatmul.mubr.bf16.gmra.mrb[0].mxu0 %v498
        %v7483 = vpop.f32.mrb[0].mxu0
        %v7484 = vadd.f32 %v7443, %v7483
        %v7485 = vpop.f32.mrb[0].mxu0
        %v7486 = vadd.f32 %v7445, %v7485
        %v7487 = vpop.f32.mrb[0].mxu0
        %v7488 = vpop.f32.mrb[0].mxu0
        %7489 = vdwg.mxu0
        %7490 = vmatprep.subr.bf16.mxu0 %v4609
        %7491 = vmatpush1.bf16.msra.mxu0 %v4608
        %7492 = vmatprep.subr.bf16.mxu0 %v4625
        %7493 = vmatpush1.bf16.msra.mxu0 %v4624
        %7494 = vmatprep.subr.bf16.mxu0 %v4641
        %7495 = vmatpush1.bf16.msra.mxu0 %v4640
        %7496 = vmatprep.subr.bf16.mxu0 %v4657
        %7497 = vmatpush1.bf16.msra.mxu0 %v4656
        %7498 = vmatprep.subr.bf16.mxu0 %v4673
        %7499 = vmatpush1.bf16.msra.mxu0 %v4672
        %7500 = vmatprep.subr.bf16.mxu0 %v4689
        %7501 = vmatpush1.bf16.msra.mxu0 %v4688
        %7502 = vmatprep.subr.bf16.mxu0 %v4705
        %7503 = vmatpush1.bf16.msra.mxu0 %v4704
        %7504 = vmatprep.subr.bf16.mxu0 %v4721
        %7505 = vmatpush1.bf16.msra.mxu0 %v4720
        %7506 = vmatprep.subr.bf16.mxu0 %v4737
        %7507 = vmatpush1.bf16.msra.mxu0 %v4736
        %7508 = vmatprep.subr.bf16.mxu0 %v4753
        %7509 = vmatpush1.bf16.msra.mxu0 %v4752
        %7510 = vmatprep.subr.bf16.mxu0 %v4769
        %7511 = vmatpush1.bf16.msra.mxu0 %v4768
        %7512 = vmatprep.subr.bf16.mxu0 %v4785
        %7513 = vmatpush1.bf16.msra.mxu0 %v4784
        %7514 = vmatprep.subr.bf16.mxu0 %v4801
        %7515 = vmatpush1.bf16.msra.mxu0 %v4800
        %7516 = vmatprep.subr.bf16.mxu0 %v4817
        %7517 = vmatpush1.bf16.msra.mxu0 %v4816
        %7518 = vmatprep.subr.bf16.mxu0 %v4833
        %7519 = vmatpush1.bf16.msra.mxu0 %v4832
        %7520 = vmatprep.subr.bf16.mxu0 %v4849
        %7521 = vmatpush1.bf16.msra.mxu0 %v4848
        %7522 = vmatprep.mubr.bf16.mxu0 %v501
        %7523 = vmatmul.mubr.bf16.gmra.mrb[0].mxu0 %v500
        %v7524 = vpop.f32.mrb[0].mxu0
        %v7525 = vadd.f32 %v7484, %v7524
        %v7526 = vpop.f32.mrb[0].mxu0
        %v7527 = vadd.f32 %v7486, %v7526
        %v7528 = vpop.f32.mrb[0].mxu0
        %v7529 = vpop.f32.mrb[0].mxu0
        %7530 = vdwg.mxu0
        %7531 = vmatprep.subr.bf16.mxu0 %v4865
        %7532 = vmatpush1.bf16.msra.mxu0 %v4864
        %7533 = vmatprep.subr.bf16.mxu0 %v4881
        %7534 = vmatpush1.bf16.msra.mxu0 %v4880
        %7535 = vmatprep.subr.bf16.mxu0 %v4897
        %7536 = vmatpush1.bf16.msra.mxu0 %v4896
        %7537 = vmatprep.subr.bf16.mxu0 %v4913
        %7538 = vmatpush1.bf16.msra.mxu0 %v4912
        %7539 = vmatprep.subr.bf16.mxu0 %v4929
        %7540 = vmatpush1.bf16.msra.mxu0 %v4928
        %7541 = vmatprep.subr.bf16.mxu0 %v4945
        %7542 = vmatpush1.bf16.msra.mxu0 %v4944
        %7543 = vmatprep.subr.bf16.mxu0 %v4961
        %7544 = vmatpush1.bf16.msra.mxu0 %v4960
        %7545 = vmatprep.subr.bf16.mxu0 %v4977
        %7546 = vmatpush1.bf16.msra.mxu0 %v4976
        %7547 = vmatprep.subr.bf16.mxu0 %v4993
        %7548 = vmatpush1.bf16.msra.mxu0 %v4992
        %7549 = vmatprep.subr.bf16.mxu0 %v5009
        %7550 = vmatpush1.bf16.msra.mxu0 %v5008
        %7551 = vmatprep.subr.bf16.mxu0 %v5025
        %7552 = vmatpush1.bf16.msra.mxu0 %v5024
        %7553 = vmatprep.subr.bf16.mxu0 %v5041
        %7554 = vmatpush1.bf16.msra.mxu0 %v5040
        %7555 = vmatprep.subr.bf16.mxu0 %v5057
        %7556 = vmatpush1.bf16.msra.mxu0 %v5056
        %7557 = vmatprep.subr.bf16.mxu0 %v5073
        %7558 = vmatpush1.bf16.msra.mxu0 %v5072
        %7559 = vmatprep.subr.bf16.mxu0 %v5089
        %7560 = vmatpush1.bf16.msra.mxu0 %v5088
        %7561 = vmatprep.subr.bf16.mxu0 %v5105
        %7562 = vmatpush1.bf16.msra.mxu0 %v5104
        %7563 = vmatprep.mubr.bf16.mxu0 %v503
        %7564 = vmatmul.mubr.bf16.gmra.mrb[0].mxu0 %v502
        %v7565 = vpop.f32.mrb[0].mxu0
        %v7566 = vadd.f32 %v7525, %v7565
        %v7567 = vpop.f32.mrb[0].mxu0
        %v7568 = vadd.f32 %v7527, %v7567
        %v7569 = vpop.f32.mrb[0].mxu0
        %v7570 = vpop.f32.mrb[0].mxu0
        %7571 = vdwg.mxu0
        %7572 = vmatprep.subr.bf16.mxu0 %v2051
        %7573 = vmatpush1.bf16.msra.mxu0 %v2050
        %7574 = vmatprep.subr.bf16.mxu0 %v2067
        %7575 = vmatpush1.bf16.msra.mxu0 %v2066
        %7576 = vmatprep.subr.bf16.mxu0 %v2083
        %7577 = vmatpush1.bf16.msra.mxu0 %v2082
        %7578 = vmatprep.subr.bf16.mxu0 %v2099
        %7579 = vmatpush1.bf16.msra.mxu0 %v2098
        %7580 = vmatprep.subr.bf16.mxu0 %v2115
        %7581 = vmatpush1.bf16.msra.mxu0 %v2114
        %7582 = vmatprep.subr.bf16.mxu0 %v2131
        %7583 = vmatpush1.bf16.msra.mxu0 %v2130
        %7584 = vmatprep.subr.bf16.mxu0 %v2147
        %7585 = vmatpush1.bf16.msra.mxu0 %v2146
        %7586 = vmatprep.subr.bf16.mxu0 %v2163
        %7587 = vmatpush1.bf16.msra.mxu0 %v2162
        %7588 = vmatprep.subr.bf16.mxu0 %v2179
        %7589 = vmatpush1.bf16.msra.mxu0 %v2178
        %7590 = vmatprep.subr.bf16.mxu0 %v2195
        %7591 = vmatpush1.bf16.msra.mxu0 %v2194
        %7592 = vmatprep.subr.bf16.mxu0 %v2211
        %7593 = vmatpush1.bf16.msra.mxu0 %v2210
        %7594 = vmatprep.subr.bf16.mxu0 %v2227
        %7595 = vmatpush1.bf16.msra.mxu0 %v2226
        %7596 = vmatprep.subr.bf16.mxu0 %v2243
        %7597 = vmatpush1.bf16.msra.mxu0 %v2242
        %7598 = vmatprep.subr.bf16.mxu0 %v2259
        %7599 = vmatpush1.bf16.msra.mxu0 %v2258
        %7600 = vmatprep.subr.bf16.mxu0 %v2275
        %7601 = vmatpush1.bf16.msra.mxu0 %v2274
        %7602 = vmatprep.subr.bf16.mxu0 %v2291
        %7603 = vmatpush1.bf16.msra.mxu0 %v2290
        %7604 = vmatprep.mubr.bf16.mxu0 %v481
        %7605 = vmatmul.mubr.bf16.gmra.mrb[0].mxu0 %v480
        %v7606 = vpop.f32.mrb[0].mxu0
        %v7607 = vadd.f32 0.0, %v7606
        %v7608 = vpop.f32.mrb[0].mxu0
        %v7609 = vadd.f32 0.0, %v7608
        %v7610 = vpop.f32.mrb[0].mxu0
        %v7611 = vpop.f32.mrb[0].mxu0
        %7612 = vdwg.mxu0
        %7613 = vmatprep.subr.bf16.mxu0 %v2307
        %7614 = vmatpush1.bf16.msra.mxu0 %v2306
        %7615 = vmatprep.subr.bf16.mxu0 %v2323
        %7616 = vmatpush1.bf16.msra.mxu0 %v2322
        %7617 = vmatprep.subr.bf16.mxu0 %v2339
        %7618 = vmatpush1.bf16.msra.mxu0 %v2338
        %7619 = vmatprep.subr.bf16.mxu0 %v2355
        %7620 = vmatpush1.bf16.msra.mxu0 %v2354
        %7621 = vmatprep.subr.bf16.mxu0 %v2371
        %7622 = vmatpush1.bf16.msra.mxu0 %v2370
        %7623 = vmatprep.subr.bf16.mxu0 %v2387
        %7624 = vmatpush1.bf16.msra.mxu0 %v2386
        %7625 = vmatprep.subr.bf16.mxu0 %v2403
        %7626 = vmatpush1.bf16.msra.mxu0 %v2402
        %7627 = vmatprep.subr.bf16.mxu0 %v2419
        %7628 = vmatpush1.bf16.msra.mxu0 %v2418
        %7629 = vmatprep.subr.bf16.mxu0 %v2435
        %7630 = vmatpush1.bf16.msra.mxu0 %v2434
        %7631 = vmatprep.subr.bf16.mxu0 %v2451
        %7632 = vmatpush1.bf16.msra.mxu0 %v2450
        %7633 = vmatprep.subr.bf16.mxu0 %v2467
        %7634 = vmatpush1.bf16.msra.mxu0 %v2466
        %7635 = vmatprep.subr.bf16.mxu0 %v2483
        %7636 = vmatpush1.bf16.msra.mxu0 %v2482
        %7637 = vmatprep.subr.bf16.mxu0 %v2499
        %7638 = vmatpush1.bf16.msra.mxu0 %v2498
        %7639 = vmatprep.subr.bf16.mxu0 %v2515
        %7640 = vmatpush1.bf16.msra.mxu0 %v2514
        %7641 = vmatprep.subr.bf16.mxu0 %v2531
        %7642 = vmatpush1.bf16.msra.mxu0 %v2530
        %7643 = vmatprep.subr.bf16.mxu0 %v2547
        %7644 = vmatpush1.bf16.msra.mxu0 %v2546
        %7645 = vmatprep.mubr.bf16.mxu0 %v483
        %7646 = vmatmul.mubr.bf16.gmra.mrb[0].mxu0 %v482
        %v7647 = vpop.f32.mrb[0].mxu0
        %v7648 = vadd.f32 %v7607, %v7647
        %v7649 = vpop.f32.mrb[0].mxu0
        %v7650 = vadd.f32 %v7609, %v7649
        %v7651 = vpop.f32.mrb[0].mxu0
        %v7652 = vpop.f32.mrb[0].mxu0
        %7653 = vdwg.mxu0
        %7654 = vmatprep.subr.bf16.mxu0 %v2563
        %7655 = vmatpush1.bf16.msra.mxu0 %v2562
        %7656 = vmatprep.subr.bf16.mxu0 %v2579
        %7657 = vmatpush1.bf16.msra.mxu0 %v2578
        %7658 = vmatprep.subr.bf16.mxu0 %v2595
        %7659 = vmatpush1.bf16.msra.mxu0 %v2594
        %7660 = vmatprep.subr.bf16.mxu0 %v2611
        %7661 = vmatpush1.bf16.msra.mxu0 %v2610
        %7662 = vmatprep.subr.bf16.mxu0 %v2627
        %7663 = vmatpush1.bf16.msra.mxu0 %v2626
        %7664 = vmatprep.subr.bf16.mxu0 %v2643
        %7665 = vmatpush1.bf16.msra.mxu0 %v2642
        %7666 = vmatprep.subr.bf16.mxu0 %v2659
        %7667 = vmatpush1.bf16.msra.mxu0 %v2658
        %7668 = vmatprep.subr.bf16.mxu0 %v2675
        %7669 = vmatpush1.bf16.msra.mxu0 %v2674
        %7670 = vmatprep.subr.bf16.mxu0 %v2691
        %7671 = vmatpush1.bf16.msra.mxu0 %v2690
        %7672 = vmatprep.subr.bf16.mxu0 %v2707
        %7673 = vmatpush1.bf16.msra.mxu0 %v2706
        %7674 = vmatprep.subr.bf16.mxu0 %v2723
        %7675 = vmatpush1.bf16.msra.mxu0 %v2722
        %7676 = vmatprep.subr.bf16.mxu0 %v2739
        %7677 = vmatpush1.bf16.msra.mxu0 %v2738
        %7678 = vmatprep.subr.bf16.mxu0 %v2755
        %7679 = vmatpush1.bf16.msra.mxu0 %v2754
        %7680 = vmatprep.subr.bf16.mxu0 %v2771
        %7681 = vmatpush1.bf16.msra.mxu0 %v2770
        %7682 = vmatprep.subr.bf16.mxu0 %v2787
        %7683 = vmatpush1.bf16.msra.mxu0 %v2786
        %7684 = vmatprep.subr.bf16.mxu0 %v2803
        %7685 = vmatpush1.bf16.msra.mxu0 %v2802
        %7686 = vmatprep.mubr.bf16.mxu0 %v485
        %7687 = vmatmul.mubr.bf16.gmra.mrb[0].mxu0 %v484
        %v7688 = vpop.f32.mrb[0].mxu0
        %v7689 = vadd.f32 %v7648, %v7688
        %v7690 = vpop.f32.mrb[0].mxu0
        %v7691 = vadd.f32 %v7650, %v7690
        %v7692 = vpop.f32.mrb[0].mxu0
        %v7693 = vpop.f32.mrb[0].mxu0
        %7694 = vdwg.mxu0
        %7695 = vmatprep.subr.bf16.mxu0 %v2819
        %7696 = vmatpush1.bf16.msra.mxu0 %v2818
        %7697 = vmatprep.subr.bf16.mxu0 %v2835
        %7698 = vmatpush1.bf16.msra.mxu0 %v2834
        %7699 = vmatprep.subr.bf16.mxu0 %v2851
        %7700 = vmatpush1.bf16.msra.mxu0 %v2850
        %7701 = vmatprep.subr.bf16.mxu0 %v2867
        %7702 = vmatpush1.bf16.msra.mxu0 %v2866
        %7703 = vmatprep.subr.bf16.mxu0 %v2883
        %7704 = vmatpush1.bf16.msra.mxu0 %v2882
        %7705 = vmatprep.subr.bf16.mxu0 %v2899
        %7706 = vmatpush1.bf16.msra.mxu0 %v2898
        %7707 = vmatprep.subr.bf16.mxu0 %v2915
        %7708 = vmatpush1.bf16.msra.mxu0 %v2914
        %7709 = vmatprep.subr.bf16.mxu0 %v2931
        %7710 = vmatpush1.bf16.msra.mxu0 %v2930
        %7711 = vmatprep.subr.bf16.mxu0 %v2947
        %7712 = vmatpush1.bf16.msra.mxu0 %v2946
        %7713 = vmatprep.subr.bf16.mxu0 %v2963
        %7714 = vmatpush1.bf16.msra.mxu0 %v2962
        %7715 = vmatprep.subr.bf16.mxu0 %v2979
        %7716 = vmatpush1.bf16.msra.mxu0 %v2978
        %7717 = vmatprep.subr.bf16.mxu0 %v2995
        %7718 = vmatpush1.bf16.msra.mxu0 %v2994
        %7719 = vmatprep.subr.bf16.mxu0 %v3011
        %7720 = vmatpush1.bf16.msra.mxu0 %v3010
        %7721 = vmatprep.subr.bf16.mxu0 %v3027
        %7722 = vmatpush1.bf16.msra.mxu0 %v3026
        %7723 = vmatprep.subr.bf16.mxu0 %v3043
        %7724 = vmatpush1.bf16.msra.mxu0 %v3042
        %7725 = vmatprep.subr.bf16.mxu0 %v3059
        %7726 = vmatpush1.bf16.msra.mxu0 %v3058
        %7727 = vmatprep.mubr.bf16.mxu0 %v487
        %7728 = vmatmul.mubr.bf16.gmra.mrb[0].mxu0 %v486
        %v7729 = vpop.f32.mrb[0].mxu0
        %v7730 = vadd.f32 %v7689, %v7729
        %v7731 = vpop.f32.mrb[0].mxu0
        %v7732 = vadd.f32 %v7691, %v7731
        %v7733 = vpop.f32.mrb[0].mxu0
        %v7734 = vpop.f32.mrb[0].mxu0
        %7735 = vdwg.mxu0
        %7736 = vmatprep.subr.bf16.mxu0 %v3075
        %7737 = vmatpush1.bf16.msra.mxu0 %v3074
        %7738 = vmatprep.subr.bf16.mxu0 %v3091
        %7739 = vmatpush1.bf16.msra.mxu0 %v3090
        %7740 = vmatprep.subr.bf16.mxu0 %v3107
        %7741 = vmatpush1.bf16.msra.mxu0 %v3106
        %7742 = vmatprep.subr.bf16.mxu0 %v3123
        %7743 = vmatpush1.bf16.msra.mxu0 %v3122
        %7744 = vmatprep.subr.bf16.mxu0 %v3139
        %7745 = vmatpush1.bf16.msra.mxu0 %v3138
        %7746 = vmatprep.subr.bf16.mxu0 %v3155
        %7747 = vmatpush1.bf16.msra.mxu0 %v3154
        %7748 = vmatprep.subr.bf16.mxu0 %v3171
        %7749 = vmatpush1.bf16.msra.mxu0 %v3170
        %7750 = vmatprep.subr.bf16.mxu0 %v3187
        %7751 = vmatpush1.bf16.msra.mxu0 %v3186
        %7752 = vmatprep.subr.bf16.mxu0 %v3203
        %7753 = vmatpush1.bf16.msra.mxu0 %v3202
        %7754 = vmatprep.subr.bf16.mxu0 %v3219
        %7755 = vmatpush1.bf16.msra.mxu0 %v3218
        %7756 = vmatprep.subr.bf16.mxu0 %v3235
        %7757 = vmatpush1.bf16.msra.mxu0 %v3234
        %7758 = vmatprep.subr.bf16.mxu0 %v3251
        %7759 = vmatpush1.bf16.msra.mxu0 %v3250
        %7760 = vmatprep.subr.bf16.mxu0 %v3267
        %7761 = vmatpush1.bf16.msra.mxu0 %v3266
        %7762 = vmatprep.subr.bf16.mxu0 %v3283
        %7763 = vmatpush1.bf16.msra.mxu0 %v3282
        %7764 = vmatprep.subr.bf16.mxu0 %v3299
        %7765 = vmatpush1.bf16.msra.mxu0 %v3298
        %7766 = vmatprep.subr.bf16.mxu0 %v3315
        %7767 = vmatpush1.bf16.msra.mxu0 %v3314
        %7768 = vmatprep.mubr.bf16.mxu0 %v489
        %7769 = vmatmul.mubr.bf16.gmra.mrb[0].mxu0 %v488
        %v7770 = vpop.f32.mrb[0].mxu0
        %v7771 = vadd.f32 %v7730, %v7770
        %v7772 = vpop.f32.mrb[0].mxu0
        %v7773 = vadd.f32 %v7732, %v7772
        %v7774 = vpop.f32.mrb[0].mxu0
        %v7775 = vpop.f32.mrb[0].mxu0
        %7776 = vdwg.mxu0
        %7777 = vmatprep.subr.bf16.mxu0 %v3331
        %7778 = vmatpush1.bf16.msra.mxu0 %v3330
        %7779 = vmatprep.subr.bf16.mxu0 %v3347
        %7780 = vmatpush1.bf16.msra.mxu0 %v3346
        %7781 = vmatprep.subr.bf16.mxu0 %v3363
        %7782 = vmatpush1.bf16.msra.mxu0 %v3362
        %7783 = vmatprep.subr.bf16.mxu0 %v3379
        %7784 = vmatpush1.bf16.msra.mxu0 %v3378
        %7785 = vmatprep.subr.bf16.mxu0 %v3395
        %7786 = vmatpush1.bf16.msra.mxu0 %v3394
        %7787 = vmatprep.subr.bf16.mxu0 %v3411
        %7788 = vmatpush1.bf16.msra.mxu0 %v3410
        %7789 = vmatprep.subr.bf16.mxu0 %v3427
        %7790 = vmatpush1.bf16.msra.mxu0 %v3426
        %7791 = vmatprep.subr.bf16.mxu0 %v3443
        %7792 = vmatpush1.bf16.msra.mxu0 %v3442
        %7793 = vmatprep.subr.bf16.mxu0 %v3459
        %7794 = vmatpush1.bf16.msra.mxu0 %v3458
        %7795 = vmatprep.subr.bf16.mxu0 %v3475
        %7796 = vmatpush1.bf16.msra.mxu0 %v3474
        %7797 = vmatprep.subr.bf16.mxu0 %v3491
        %7798 = vmatpush1.bf16.msra.mxu0 %v3490
        %7799 = vmatprep.subr.bf16.mxu0 %v3507
        %7800 = vmatpush1.bf16.msra.mxu0 %v3506
        %7801 = vmatprep.subr.bf16.mxu0 %v3523
        %7802 = vmatpush1.bf16.msra.mxu0 %v3522
        %7803 = vmatprep.subr.bf16.mxu0 %v3539
        %7804 = vmatpush1.bf16.msra.mxu0 %v3538
        %7805 = vmatprep.subr.bf16.mxu0 %v3555
        %7806 = vmatpush1.bf16.msra.mxu0 %v3554
        %7807 = vmatprep.subr.bf16.mxu0 %v3571
        %7808 = vmatpush1.bf16.msra.mxu0 %v3570
        %7809 = vmatprep.mubr.bf16.mxu0 %v491
        %7810 = vmatmul.mubr.bf16.gmra.mrb[0].mxu0 %v490
        %v7811 = vpop.f32.mrb[0].mxu0
        %v7812 = vadd.f32 %v7771, %v7811
        %v7813 = vpop.f32.mrb[0].mxu0
        %v7814 = vadd.f32 %v7773, %v7813
        %v7815 = vpop.f32.mrb[0].mxu0
        %v7816 = vpop.f32.mrb[0].mxu0
        %7817 = vdwg.mxu0
        %7818 = vmatprep.subr.bf16.mxu0 %v3587
        %7819 = vmatpush1.bf16.msra.mxu0 %v3586
        %7820 = vmatprep.subr.bf16.mxu0 %v3603
        %7821 = vmatpush1.bf16.msra.mxu0 %v3602
        %7822 = vmatprep.subr.bf16.mxu0 %v3619
        %7823 = vmatpush1.bf16.msra.mxu0 %v3618
        %7824 = vmatprep.subr.bf16.mxu0 %v3635
        %7825 = vmatpush1.bf16.msra.mxu0 %v3634
        %7826 = vmatprep.subr.bf16.mxu0 %v3651
        %7827 = vmatpush1.bf16.msra.mxu0 %v3650
        %7828 = vmatprep.subr.bf16.mxu0 %v3667
        %7829 = vmatpush1.bf16.msra.mxu0 %v3666
        %7830 = vmatprep.subr.bf16.mxu0 %v3683
        %7831 = vmatpush1.bf16.msra.mxu0 %v3682
        %7832 = vmatprep.subr.bf16.mxu0 %v3699
        %7833 = vmatpush1.bf16.msra.mxu0 %v3698
        %7834 = vmatprep.subr.bf16.mxu0 %v3715
        %7835 = vmatpush1.bf16.msra.mxu0 %v3714
        %7836 = vmatprep.subr.bf16.mxu0 %v3731
        %7837 = vmatpush1.bf16.msra.mxu0 %v3730
        %7838 = vmatprep.subr.bf16.mxu0 %v3747
        %7839 = vmatpush1.bf16.msra.mxu0 %v3746
        %7840 = vmatprep.subr.bf16.mxu0 %v3763
        %7841 = vmatpush1.bf16.msra.mxu0 %v3762
        %7842 = vmatprep.subr.bf16.mxu0 %v3779
        %7843 = vmatpush1.bf16.msra.mxu0 %v3778
        %7844 = vmatprep.subr.bf16.mxu0 %v3795
        %7845 = vmatpush1.bf16.msra.mxu0 %v3794
        %7846 = vmatprep.subr.bf16.mxu0 %v3811
        %7847 = vmatpush1.bf16.msra.mxu0 %v3810
        %7848 = vmatprep.subr.bf16.mxu0 %v3827
        %7849 = vmatpush1.bf16.msra.mxu0 %v3826
        %7850 = vmatprep.mubr.bf16.mxu0 %v493
        %7851 = vmatmul.mubr.bf16.gmra.mrb[0].mxu0 %v492
        %v7852 = vpop.f32.mrb[0].mxu0
        %v7853 = vadd.f32 %v7812, %v7852
        %v7854 = vpop.f32.mrb[0].mxu0
        %v7855 = vadd.f32 %v7814, %v7854
        %v7856 = vpop.f32.mrb[0].mxu0
        %v7857 = vpop.f32.mrb[0].mxu0
        %7858 = vdwg.mxu0
        %7859 = vmatprep.subr.bf16.mxu0 %v3843
        %7860 = vmatpush1.bf16.msra.mxu0 %v3842
        %7861 = vmatprep.subr.bf16.mxu0 %v3859
        %7862 = vmatpush1.bf16.msra.mxu0 %v3858
        %7863 = vmatprep.subr.bf16.mxu0 %v3875
        %7864 = vmatpush1.bf16.msra.mxu0 %v3874
        %7865 = vmatprep.subr.bf16.mxu0 %v3891
        %7866 = vmatpush1.bf16.msra.mxu0 %v3890
        %7867 = vmatprep.subr.bf16.mxu0 %v3907
        %7868 = vmatpush1.bf16.msra.mxu0 %v3906
        %7869 = vmatprep.subr.bf16.mxu0 %v3923
        %7870 = vmatpush1.bf16.msra.mxu0 %v3922
        %7871 = vmatprep.subr.bf16.mxu0 %v3939
        %7872 = vmatpush1.bf16.msra.mxu0 %v3938
        %7873 = vmatprep.subr.bf16.mxu0 %v3955
        %7874 = vmatpush1.bf16.msra.mxu0 %v3954
        %7875 = vmatprep.subr.bf16.mxu0 %v3971
        %7876 = vmatpush1.bf16.msra.mxu0 %v3970
        %7877 = vmatprep.subr.bf16.mxu0 %v3987
        %7878 = vmatpush1.bf16.msra.mxu0 %v3986
        %7879 = vmatprep.subr.bf16.mxu0 %v4003
        %7880 = vmatpush1.bf16.msra.mxu0 %v4002
        %7881 = vmatprep.subr.bf16.mxu0 %v4019
        %7882 = vmatpush1.bf16.msra.mxu0 %v4018
        %7883 = vmatprep.subr.bf16.mxu0 %v4035
        %7884 = vmatpush1.bf16.msra.mxu0 %v4034
        %7885 = vmatprep.subr.bf16.mxu0 %v4051
        %7886 = vmatpush1.bf16.msra.mxu0 %v4050
        %7887 = vmatprep.subr.bf16.mxu0 %v4067
        %7888 = vmatpush1.bf16.msra.mxu0 %v4066
        %7889 = vmatprep.subr.bf16.mxu0 %v4083
        %7890 = vmatpush1.bf16.msra.mxu0 %v4082
        %7891 = vmatprep.mubr.bf16.mxu0 %v495
        %7892 = vmatmul.mubr.bf16.gmra.mrb[0].mxu0 %v494
        %v7893 = vpop.f32.mrb[0].mxu0
        %v7894 = vadd.f32 %v7853, %v7893
        %v7895 = vpop.f32.mrb[0].mxu0
        %v7896 = vadd.f32 %v7855, %v7895
        %v7897 = vpop.f32.mrb[0].mxu0
        %v7898 = vpop.f32.mrb[0].mxu0
        %7899 = vdwg.mxu0
        %7900 = vmatprep.subr.bf16.mxu0 %v4099
        %7901 = vmatpush1.bf16.msra.mxu0 %v4098
        %7902 = vmatprep.subr.bf16.mxu0 %v4115
        %7903 = vmatpush1.bf16.msra.mxu0 %v4114
        %7904 = vmatprep.subr.bf16.mxu0 %v4131
        %7905 = vmatpush1.bf16.msra.mxu0 %v4130
        %7906 = vmatprep.subr.bf16.mxu0 %v4147
        %7907 = vmatpush1.bf16.msra.mxu0 %v4146
        %7908 = vmatprep.subr.bf16.mxu0 %v4163
        %7909 = vmatpush1.bf16.msra.mxu0 %v4162
        %7910 = vmatprep.subr.bf16.mxu0 %v4179
        %7911 = vmatpush1.bf16.msra.mxu0 %v4178
        %7912 = vmatprep.subr.bf16.mxu0 %v4195
        %7913 = vmatpush1.bf16.msra.mxu0 %v4194
        %7914 = vmatprep.subr.bf16.mxu0 %v4211
        %7915 = vmatpush1.bf16.msra.mxu0 %v4210
        %7916 = vmatprep.subr.bf16.mxu0 %v4227
        %7917 = vmatpush1.bf16.msra.mxu0 %v4226
        %7918 = vmatprep.subr.bf16.mxu0 %v4243
        %7919 = vmatpush1.bf16.msra.mxu0 %v4242
        %7920 = vmatprep.subr.bf16.mxu0 %v4259
        %7921 = vmatpush1.bf16.msra.mxu0 %v4258
        %7922 = vmatprep.subr.bf16.mxu0 %v4275
        %7923 = vmatpush1.bf16.msra.mxu0 %v4274
        %7924 = vmatprep.subr.bf16.mxu0 %v4291
        %7925 = vmatpush1.bf16.msra.mxu0 %v4290
        %7926 = vmatprep.subr.bf16.mxu0 %v4307
        %7927 = vmatpush1.bf16.msra.mxu0 %v4306
        %7928 = vmatprep.subr.bf16.mxu0 %v4323
        %7929 = vmatpush1.bf16.msra.mxu0 %v4322
        %7930 = vmatprep.subr.bf16.mxu0 %v4339
        %7931 = vmatpush1.bf16.msra.mxu0 %v4338
        %7932 = vmatprep.mubr.bf16.mxu0 %v497
        %7933 = vmatmul.mubr.bf16.gmra.mrb[0].mxu0 %v496
        %v7934 = vpop.f32.mrb[0].mxu0
        %v7935 = vadd.f32 %v7894, %v7934
        %v7936 = vpop.f32.mrb[0].mxu0
        %v7937 = vadd.f32 %v7896, %v7936
        %v7938 = vpop.f32.mrb[0].mxu0
        %v7939 = vpop.f32.mrb[0].mxu0
        %7940 = vdwg.mxu0
        %7941 = vmatprep.subr.bf16.mxu0 %v4355
        %7942 = vmatpush1.bf16.msra.mxu0 %v4354
        %7943 = vmatprep.subr.bf16.mxu0 %v4371
        %7944 = vmatpush1.bf16.msra.mxu0 %v4370
        %7945 = vmatprep.subr.bf16.mxu0 %v4387
        %7946 = vmatpush1.bf16.msra.mxu0 %v4386
        %7947 = vmatprep.subr.bf16.mxu0 %v4403
        %7948 = vmatpush1.bf16.msra.mxu0 %v4402
        %7949 = vmatprep.subr.bf16.mxu0 %v4419
        %7950 = vmatpush1.bf16.msra.mxu0 %v4418
        %7951 = vmatprep.subr.bf16.mxu0 %v4435
        %7952 = vmatpush1.bf16.msra.mxu0 %v4434
        %7953 = vmatprep.subr.bf16.mxu0 %v4451
        %7954 = vmatpush1.bf16.msra.mxu0 %v4450
        %7955 = vmatprep.subr.bf16.mxu0 %v4467
        %7956 = vmatpush1.bf16.msra.mxu0 %v4466
        %7957 = vmatprep.subr.bf16.mxu0 %v4483
        %7958 = vmatpush1.bf16.msra.mxu0 %v4482
        %7959 = vmatprep.subr.bf16.mxu0 %v4499
        %7960 = vmatpush1.bf16.msra.mxu0 %v4498
        %7961 = vmatprep.subr.bf16.mxu0 %v4515
        %7962 = vmatpush1.bf16.msra.mxu0 %v4514
        %7963 = vmatprep.subr.bf16.mxu0 %v4531
        %7964 = vmatpush1.bf16.msra.mxu0 %v4530
        %7965 = vmatprep.subr.bf16.mxu0 %v4547
        %7966 = vmatpush1.bf16.msra.mxu0 %v4546
        %7967 = vmatprep.subr.bf16.mxu0 %v4563
        %7968 = vmatpush1.bf16.msra.mxu0 %v4562
        %7969 = vmatprep.subr.bf16.mxu0 %v4579
        %7970 = vmatpush1.bf16.msra.mxu0 %v4578
        %7971 = vmatprep.subr.bf16.mxu0 %v4595
        %7972 = vmatpush1.bf16.msra.mxu0 %v4594
        %7973 = vmatprep.mubr.bf16.mxu0 %v499
        %7974 = vmatmul.mubr.bf16.gmra.mrb[0].mxu0 %v498
        %v7975 = vpop.f32.mrb[0].mxu0
        %v7976 = vadd.f32 %v7935, %v7975
        %v7977 = vpop.f32.mrb[0].mxu0
        %v7978 = vadd.f32 %v7937, %v7977
        %v7979 = vpop.f32.mrb[0].mxu0
        %v7980 = vpop.f32.mrb[0].mxu0
        %7981 = vdwg.mxu0
        %7982 = vmatprep.subr.bf16.mxu0 %v4611
        %7983 = vmatpush1.bf16.msra.mxu0 %v4610
        %7984 = vmatprep.subr.bf16.mxu0 %v4627
        %7985 = vmatpush1.bf16.msra.mxu0 %v4626
        %7986 = vmatprep.subr.bf16.mxu0 %v4643
        %7987 = vmatpush1.bf16.msra.mxu0 %v4642
        %7988 = vmatprep.subr.bf16.mxu0 %v4659
        %7989 = vmatpush1.bf16.msra.mxu0 %v4658
        %7990 = vmatprep.subr.bf16.mxu0 %v4675
        %7991 = vmatpush1.bf16.msra.mxu0 %v4674
        %7992 = vmatprep.subr.bf16.mxu0 %v4691
        %7993 = vmatpush1.bf16.msra.mxu0 %v4690
        %7994 = vmatprep.subr.bf16.mxu0 %v4707
        %7995 = vmatpush1.bf16.msra.mxu0 %v4706
        %7996 = vmatprep.subr.bf16.mxu0 %v4723
        %7997 = vmatpush1.bf16.msra.mxu0 %v4722
        %7998 = vmatprep.subr.bf16.mxu0 %v4739
        %7999 = vmatpush1.bf16.msra.mxu0 %v4738
        %8000 = vmatprep.subr.bf16.mxu0 %v4755
        %8001 = vmatpush1.bf16.msra.mxu0 %v4754
        %8002 = vmatprep.subr.bf16.mxu0 %v4771
        %8003 = vmatpush1.bf16.msra.mxu0 %v4770
        %8004 = vmatprep.subr.bf16.mxu0 %v4787
        %8005 = vmatpush1.bf16.msra.mxu0 %v4786
        %8006 = vmatprep.subr.bf16.mxu0 %v4803
        %8007 = vmatpush1.bf16.msra.mxu0 %v4802
        %8008 = vmatprep.subr.bf16.mxu0 %v4819
        %8009 = vmatpush1.bf16.msra.mxu0 %v4818
        %8010 = vmatprep.subr.bf16.mxu0 %v4835
        %8011 = vmatpush1.bf16.msra.mxu0 %v4834
        %8012 = vmatprep.subr.bf16.mxu0 %v4851
        %8013 = vmatpush1.bf16.msra.mxu0 %v4850
        %8014 = vmatprep.mubr.bf16.mxu0 %v501
        %8015 = vmatmul.mubr.bf16.gmra.mrb[0].mxu0 %v500
        %v8016 = vpop.f32.mrb[0].mxu0
        %v8017 = vadd.f32 %v7976, %v8016
        %v8018 = vpop.f32.mrb[0].mxu0
        %v8019 = vadd.f32 %v7978, %v8018
        %v8020 = vpop.f32.mrb[0].mxu0
        %v8021 = vpop.f32.mrb[0].mxu0
        %8022 = vdwg.mxu0
        %8023 = vmatprep.subr.bf16.mxu0 %v4867
        %8024 = vmatpush1.bf16.msra.mxu0 %v4866
        %8025 = vmatprep.subr.bf16.mxu0 %v4883
        %8026 = vmatpush1.bf16.msra.mxu0 %v4882
        %8027 = vmatprep.subr.bf16.mxu0 %v4899
        %8028 = vmatpush1.bf16.msra.mxu0 %v4898
        %8029 = vmatprep.subr.bf16.mxu0 %v4915
        %8030 = vmatpush1.bf16.msra.mxu0 %v4914
        %8031 = vmatprep.subr.bf16.mxu0 %v4931
        %8032 = vmatpush1.bf16.msra.mxu0 %v4930
        %8033 = vmatprep.subr.bf16.mxu0 %v4947
        %8034 = vmatpush1.bf16.msra.mxu0 %v4946
        %8035 = vmatprep.subr.bf16.mxu0 %v4963
        %8036 = vmatpush1.bf16.msra.mxu0 %v4962
        %8037 = vmatprep.subr.bf16.mxu0 %v4979
        %8038 = vmatpush1.bf16.msra.mxu0 %v4978
        %8039 = vmatprep.subr.bf16.mxu0 %v4995
        %8040 = vmatpush1.bf16.msra.mxu0 %v4994
        %8041 = vmatprep.subr.bf16.mxu0 %v5011
        %8042 = vmatpush1.bf16.msra.mxu0 %v5010
        %8043 = vmatprep.subr.bf16.mxu0 %v5027
        %8044 = vmatpush1.bf16.msra.mxu0 %v5026
        %8045 = vmatprep.subr.bf16.mxu0 %v5043
        %8046 = vmatpush1.bf16.msra.mxu0 %v5042
        %8047 = vmatprep.subr.bf16.mxu0 %v5059
        %8048 = vmatpush1.bf16.msra.mxu0 %v5058
        %8049 = vmatprep.subr.bf16.mxu0 %v5075
        %8050 = vmatpush1.bf16.msra.mxu0 %v5074
        %8051 = vmatprep.subr.bf16.mxu0 %v5091
        %8052 = vmatpush1.bf16.msra.mxu0 %v5090
        %8053 = vmatprep.subr.bf16.mxu0 %v5107
        %8054 = vmatpush1.bf16.msra.mxu0 %v5106
        %8055 = vmatprep.mubr.bf16.mxu0 %v503
        %8056 = vmatmul.mubr.bf16.gmra.mrb[0].mxu0 %v502
        %v8057 = vpop.f32.mrb[0].mxu0
        %v8058 = vadd.f32 %v8017, %v8057
        %v8059 = vpop.f32.mrb[0].mxu0
        %v8060 = vadd.f32 %v8019, %v8059
        %v8061 = vpop.f32.mrb[0].mxu0
        %v8062 = vpop.f32.mrb[0].mxu0
        %8063 = vdwg.mxu0
        %8064 = vmatprep.subr.bf16.mxu0 %v2053
        %8065 = vmatpush1.bf16.msra.mxu0 %v2052
        %8066 = vmatprep.subr.bf16.mxu0 %v2069
        %8067 = vmatpush1.bf16.msra.mxu0 %v2068
        %8068 = vmatprep.subr.bf16.mxu0 %v2085
        %8069 = vmatpush1.bf16.msra.mxu0 %v2084
        %8070 = vmatprep.subr.bf16.mxu0 %v2101
        %8071 = vmatpush1.bf16.msra.mxu0 %v2100
        %8072 = vmatprep.subr.bf16.mxu0 %v2117
        %8073 = vmatpush1.bf16.msra.mxu0 %v2116
        %8074 = vmatprep.subr.bf16.mxu0 %v2133
        %8075 = vmatpush1.bf16.msra.mxu0 %v2132
        %8076 = vmatprep.subr.bf16.mxu0 %v2149
        %8077 = vmatpush1.bf16.msra.mxu0 %v2148
        %8078 = vmatprep.subr.bf16.mxu0 %v2165
        %8079 = vmatpush1.bf16.msra.mxu0 %v2164
        %8080 = vmatprep.subr.bf16.mxu0 %v2181
        %8081 = vmatpush1.bf16.msra.mxu0 %v2180
        %8082 = vmatprep.subr.bf16.mxu0 %v2197
        %8083 = vmatpush1.bf16.msra.mxu0 %v2196
        %8084 = vmatprep.subr.bf16.mxu0 %v2213
        %8085 = vmatpush1.bf16.msra.mxu0 %v2212
        %8086 = vmatprep.subr.bf16.mxu0 %v2229
        %8087 = vmatpush1.bf16.msra.mxu0 %v2228
        %8088 = vmatprep.subr.bf16.mxu0 %v2245
        %8089 = vmatpush1.bf16.msra.mxu0 %v2244
        %8090 = vmatprep.subr.bf16.mxu0 %v2261
        %8091 = vmatpush1.bf16.msra.mxu0 %v2260
        %8092 = vmatprep.subr.bf16.mxu0 %v2277
        %8093 = vmatpush1.bf16.msra.mxu0 %v2276
        %8094 = vmatprep.subr.bf16.mxu0 %v2293
        %8095 = vmatpush1.bf16.msra.mxu0 %v2292
        %8096 = vmatprep.mubr.bf16.mxu0 %v481
        %8097 = vmatmul.mubr.bf16.gmra.mrb[0].mxu0 %v480
        %v8098 = vpop.f32.mrb[0].mxu0
        %v8099 = vadd.f32 0.0, %v8098
        %v8100 = vpop.f32.mrb[0].mxu0
        %v8101 = vadd.f32 0.0, %v8100
        %v8102 = vpop.f32.mrb[0].mxu0
        %v8103 = vpop.f32.mrb[0].mxu0
        %8104 = vdwg.mxu0
        %8105 = vmatprep.subr.bf16.mxu0 %v2309
        %8106 = vmatpush1.bf16.msra.mxu0 %v2308
        %8107 = vmatprep.subr.bf16.mxu0 %v2325
        %8108 = vmatpush1.bf16.msra.mxu0 %v2324
        %8109 = vmatprep.subr.bf16.mxu0 %v2341
        %8110 = vmatpush1.bf16.msra.mxu0 %v2340
        %8111 = vmatprep.subr.bf16.mxu0 %v2357
        %8112 = vmatpush1.bf16.msra.mxu0 %v2356
        %8113 = vmatprep.subr.bf16.mxu0 %v2373
        %8114 = vmatpush1.bf16.msra.mxu0 %v2372
        %8115 = vmatprep.subr.bf16.mxu0 %v2389
        %8116 = vmatpush1.bf16.msra.mxu0 %v2388
        %8117 = vmatprep.subr.bf16.mxu0 %v2405
        %8118 = vmatpush1.bf16.msra.mxu0 %v2404
        %8119 = vmatprep.subr.bf16.mxu0 %v2421
        %8120 = vmatpush1.bf16.msra.mxu0 %v2420
        %8121 = vmatprep.subr.bf16.mxu0 %v2437
        %8122 = vmatpush1.bf16.msra.mxu0 %v2436
        %8123 = vmatprep.subr.bf16.mxu0 %v2453
        %8124 = vmatpush1.bf16.msra.mxu0 %v2452
        %8125 = vmatprep.subr.bf16.mxu0 %v2469
        %8126 = vmatpush1.bf16.msra.mxu0 %v2468
        %8127 = vmatprep.subr.bf16.mxu0 %v2485
        %8128 = vmatpush1.bf16.msra.mxu0 %v2484
        %8129 = vmatprep.subr.bf16.mxu0 %v2501
        %8130 = vmatpush1.bf16.msra.mxu0 %v2500
        %8131 = vmatprep.subr.bf16.mxu0 %v2517
        %8132 = vmatpush1.bf16.msra.mxu0 %v2516
        %8133 = vmatprep.subr.bf16.mxu0 %v2533
        %8134 = vmatpush1.bf16.msra.mxu0 %v2532
        %8135 = vmatprep.subr.bf16.mxu0 %v2549
        %8136 = vmatpush1.bf16.msra.mxu0 %v2548
        %8137 = vmatprep.mubr.bf16.mxu0 %v483
        %8138 = vmatmul.mubr.bf16.gmra.mrb[0].mxu0 %v482
        %v8139 = vpop.f32.mrb[0].mxu0
        %v8140 = vadd.f32 %v8099, %v8139
        %v8141 = vpop.f32.mrb[0].mxu0
        %v8142 = vadd.f32 %v8101, %v8141
        %v8143 = vpop.f32.mrb[0].mxu0
        %v8144 = vpop.f32.mrb[0].mxu0
        %8145 = vdwg.mxu0
        %8146 = vmatprep.subr.bf16.mxu0 %v2565
        %8147 = vmatpush1.bf16.msra.mxu0 %v2564
        %8148 = vmatprep.subr.bf16.mxu0 %v2581
        %8149 = vmatpush1.bf16.msra.mxu0 %v2580
        %8150 = vmatprep.subr.bf16.mxu0 %v2597
        %8151 = vmatpush1.bf16.msra.mxu0 %v2596
        %8152 = vmatprep.subr.bf16.mxu0 %v2613
        %8153 = vmatpush1.bf16.msra.mxu0 %v2612
        %8154 = vmatprep.subr.bf16.mxu0 %v2629
        %8155 = vmatpush1.bf16.msra.mxu0 %v2628
        %8156 = vmatprep.subr.bf16.mxu0 %v2645
        %8157 = vmatpush1.bf16.msra.mxu0 %v2644
        %8158 = vmatprep.subr.bf16.mxu0 %v2661
        %8159 = vmatpush1.bf16.msra.mxu0 %v2660
        %8160 = vmatprep.subr.bf16.mxu0 %v2677
        %8161 = vmatpush1.bf16.msra.mxu0 %v2676
        %8162 = vmatprep.subr.bf16.mxu0 %v2693
        %8163 = vmatpush1.bf16.msra.mxu0 %v2692
        %8164 = vmatprep.subr.bf16.mxu0 %v2709
        %8165 = vmatpush1.bf16.msra.mxu0 %v2708
        %8166 = vmatprep.subr.bf16.mxu0 %v2725
        %8167 = vmatpush1.bf16.msra.mxu0 %v2724
        %8168 = vmatprep.subr.bf16.mxu0 %v2741
        %8169 = vmatpush1.bf16.msra.mxu0 %v2740
        %8170 = vmatprep.subr.bf16.mxu0 %v2757
        %8171 = vmatpush1.bf16.msra.mxu0 %v2756
        %8172 = vmatprep.subr.bf16.mxu0 %v2773
        %8173 = vmatpush1.bf16.msra.mxu0 %v2772
        %8174 = vmatprep.subr.bf16.mxu0 %v2789
        %8175 = vmatpush1.bf16.msra.mxu0 %v2788
        %8176 = vmatprep.subr.bf16.mxu0 %v2805
        %8177 = vmatpush1.bf16.msra.mxu0 %v2804
        %8178 = vmatprep.mubr.bf16.mxu0 %v485
        %8179 = vmatmul.mubr.bf16.gmra.mrb[0].mxu0 %v484
        %v8180 = vpop.f32.mrb[0].mxu0
        %v8181 = vadd.f32 %v8140, %v8180
        %v8182 = vpop.f32.mrb[0].mxu0
        %v8183 = vadd.f32 %v8142, %v8182
        %v8184 = vpop.f32.mrb[0].mxu0
        %v8185 = vpop.f32.mrb[0].mxu0
        %8186 = vdwg.mxu0
        %8187 = vmatprep.subr.bf16.mxu0 %v2821
        %8188 = vmatpush1.bf16.msra.mxu0 %v2820
        %8189 = vmatprep.subr.bf16.mxu0 %v2837
        %8190 = vmatpush1.bf16.msra.mxu0 %v2836
        %8191 = vmatprep.subr.bf16.mxu0 %v2853
        %8192 = vmatpush1.bf16.msra.mxu0 %v2852
        %8193 = vmatprep.subr.bf16.mxu0 %v2869
        %8194 = vmatpush1.bf16.msra.mxu0 %v2868
        %8195 = vmatprep.subr.bf16.mxu0 %v2885
        %8196 = vmatpush1.bf16.msra.mxu0 %v2884
        %8197 = vmatprep.subr.bf16.mxu0 %v2901
        %8198 = vmatpush1.bf16.msra.mxu0 %v2900
        %8199 = vmatprep.subr.bf16.mxu0 %v2917
        %8200 = vmatpush1.bf16.msra.mxu0 %v2916
        %8201 = vmatprep.subr.bf16.mxu0 %v2933
        %8202 = vmatpush1.bf16.msra.mxu0 %v2932
        %8203 = vmatprep.subr.bf16.mxu0 %v2949
        %8204 = vmatpush1.bf16.msra.mxu0 %v2948
        %8205 = vmatprep.subr.bf16.mxu0 %v2965
        %8206 = vmatpush1.bf16.msra.mxu0 %v2964
        %8207 = vmatprep.subr.bf16.mxu0 %v2981
        %8208 = vmatpush1.bf16.msra.mxu0 %v2980
        %8209 = vmatprep.subr.bf16.mxu0 %v2997
        %8210 = vmatpush1.bf16.msra.mxu0 %v2996
        %8211 = vmatprep.subr.bf16.mxu0 %v3013
        %8212 = vmatpush1.bf16.msra.mxu0 %v3012
        %8213 = vmatprep.subr.bf16.mxu0 %v3029
        %8214 = vmatpush1.bf16.msra.mxu0 %v3028
        %8215 = vmatprep.subr.bf16.mxu0 %v3045
        %8216 = vmatpush1.bf16.msra.mxu0 %v3044
        %8217 = vmatprep.subr.bf16.mxu0 %v3061
        %8218 = vmatpush1.bf16.msra.mxu0 %v3060
        %8219 = vmatprep.mubr.bf16.mxu0 %v487
        %8220 = vmatmul.mubr.bf16.gmra.mrb[0].mxu0 %v486
        %v8221 = vpop.f32.mrb[0].mxu0
        %v8222 = vadd.f32 %v8181, %v8221
        %v8223 = vpop.f32.mrb[0].mxu0
        %v8224 = vadd.f32 %v8183, %v8223
        %v8225 = vpop.f32.mrb[0].mxu0
        %v8226 = vpop.f32.mrb[0].mxu0
        %8227 = vdwg.mxu0
        %8228 = vmatprep.subr.bf16.mxu0 %v3077
        %8229 = vmatpush1.bf16.msra.mxu0 %v3076
        %8230 = vmatprep.subr.bf16.mxu0 %v3093
        %8231 = vmatpush1.bf16.msra.mxu0 %v3092
        %8232 = vmatprep.subr.bf16.mxu0 %v3109
        %8233 = vmatpush1.bf16.msra.mxu0 %v3108
        %8234 = vmatprep.subr.bf16.mxu0 %v3125
        %8235 = vmatpush1.bf16.msra.mxu0 %v3124
        %8236 = vmatprep.subr.bf16.mxu0 %v3141
        %8237 = vmatpush1.bf16.msra.mxu0 %v3140
        %8238 = vmatprep.subr.bf16.mxu0 %v3157
        %8239 = vmatpush1.bf16.msra.mxu0 %v3156
        %8240 = vmatprep.subr.bf16.mxu0 %v3173
        %8241 = vmatpush1.bf16.msra.mxu0 %v3172
        %8242 = vmatprep.subr.bf16.mxu0 %v3189
        %8243 = vmatpush1.bf16.msra.mxu0 %v3188
        %8244 = vmatprep.subr.bf16.mxu0 %v3205
        %8245 = vmatpush1.bf16.msra.mxu0 %v3204
        %8246 = vmatprep.subr.bf16.mxu0 %v3221
        %8247 = vmatpush1.bf16.msra.mxu0 %v3220
        %8248 = vmatprep.subr.bf16.mxu0 %v3237
        %8249 = vmatpush1.bf16.msra.mxu0 %v3236
        %8250 = vmatprep.subr.bf16.mxu0 %v3253
        %8251 = vmatpush1.bf16.msra.mxu0 %v3252
        %8252 = vmatprep.subr.bf16.mxu0 %v3269
        %8253 = vmatpush1.bf16.msra.mxu0 %v3268
        %8254 = vmatprep.subr.bf16.mxu0 %v3285
        %8255 = vmatpush1.bf16.msra.mxu0 %v3284
        %8256 = vmatprep.subr.bf16.mxu0 %v3301
        %8257 = vmatpush1.bf16.msra.mxu0 %v3300
        %8258 = vmatprep.subr.bf16.mxu0 %v3317
        %8259 = vmatpush1.bf16.msra.mxu0 %v3316
        %8260 = vmatprep.mubr.bf16.mxu0 %v489
        %8261 = vmatmul.mubr.bf16.gmra.mrb[0].mxu0 %v488
        %v8262 = vpop.f32.mrb[0].mxu0
        %v8263 = vadd.f32 %v8222, %v8262
        %v8264 = vpop.f32.mrb[0].mxu0
        %v8265 = vadd.f32 %v8224, %v8264
        %v8266 = vpop.f32.mrb[0].mxu0
        %v8267 = vpop.f32.mrb[0].mxu0
        %8268 = vdwg.mxu0
        %8269 = vmatprep.subr.bf16.mxu0 %v3333
        %8270 = vmatpush1.bf16.msra.mxu0 %v3332
        %8271 = vmatprep.subr.bf16.mxu0 %v3349
        %8272 = vmatpush1.bf16.msra.mxu0 %v3348
        %8273 = vmatprep.subr.bf16.mxu0 %v3365
        %8274 = vmatpush1.bf16.msra.mxu0 %v3364
        %8275 = vmatprep.subr.bf16.mxu0 %v3381
        %8276 = vmatpush1.bf16.msra.mxu0 %v3380
        %8277 = vmatprep.subr.bf16.mxu0 %v3397
        %8278 = vmatpush1.bf16.msra.mxu0 %v3396
        %8279 = vmatprep.subr.bf16.mxu0 %v3413
        %8280 = vmatpush1.bf16.msra.mxu0 %v3412
        %8281 = vmatprep.subr.bf16.mxu0 %v3429
        %8282 = vmatpush1.bf16.msra.mxu0 %v3428
        %8283 = vmatprep.subr.bf16.mxu0 %v3445
        %8284 = vmatpush1.bf16.msra.mxu0 %v3444
        %8285 = vmatprep.subr.bf16.mxu0 %v3461
        %8286 = vmatpush1.bf16.msra.mxu0 %v3460
        %8287 = vmatprep.subr.bf16.mxu0 %v3477
        %8288 = vmatpush1.bf16.msra.mxu0 %v3476
        %8289 = vmatprep.subr.bf16.mxu0 %v3493
        %8290 = vmatpush1.bf16.msra.mxu0 %v3492
        %8291 = vmatprep.subr.bf16.mxu0 %v3509
        %8292 = vmatpush1.bf16.msra.mxu0 %v3508
        %8293 = vmatprep.subr.bf16.mxu0 %v3525
        %8294 = vmatpush1.bf16.msra.mxu0 %v3524
        %8295 = vmatprep.subr.bf16.mxu0 %v3541
        %8296 = vmatpush1.bf16.msra.mxu0 %v3540
        %8297 = vmatprep.subr.bf16.mxu0 %v3557
        %8298 = vmatpush1.bf16.msra.mxu0 %v3556
        %8299 = vmatprep.subr.bf16.mxu0 %v3573
        %8300 = vmatpush1.bf16.msra.mxu0 %v3572
        %8301 = vmatprep.mubr.bf16.mxu0 %v491
        %8302 = vmatmul.mubr.bf16.gmra.mrb[0].mxu0 %v490
        %v8303 = vpop.f32.mrb[0].mxu0
        %v8304 = vadd.f32 %v8263, %v8303
        %v8305 = vpop.f32.mrb[0].mxu0
        %v8306 = vadd.f32 %v8265, %v8305
        %v8307 = vpop.f32.mrb[0].mxu0
        %v8308 = vpop.f32.mrb[0].mxu0
        %8309 = vdwg.mxu0
        %8310 = vmatprep.subr.bf16.mxu0 %v3589
        %8311 = vmatpush1.bf16.msra.mxu0 %v3588
        %8312 = vmatprep.subr.bf16.mxu0 %v3605
        %8313 = vmatpush1.bf16.msra.mxu0 %v3604
        %8314 = vmatprep.subr.bf16.mxu0 %v3621
        %8315 = vmatpush1.bf16.msra.mxu0 %v3620
        %8316 = vmatprep.subr.bf16.mxu0 %v3637
        %8317 = vmatpush1.bf16.msra.mxu0 %v3636
        %8318 = vmatprep.subr.bf16.mxu0 %v3653
        %8319 = vmatpush1.bf16.msra.mxu0 %v3652
        %8320 = vmatprep.subr.bf16.mxu0 %v3669
        %8321 = vmatpush1.bf16.msra.mxu0 %v3668
        %8322 = vmatprep.subr.bf16.mxu0 %v3685
        %8323 = vmatpush1.bf16.msra.mxu0 %v3684
        %8324 = vmatprep.subr.bf16.mxu0 %v3701
        %8325 = vmatpush1.bf16.msra.mxu0 %v3700
        %8326 = vmatprep.subr.bf16.mxu0 %v3717
        %8327 = vmatpush1.bf16.msra.mxu0 %v3716
        %8328 = vmatprep.subr.bf16.mxu0 %v3733
        %8329 = vmatpush1.bf16.msra.mxu0 %v3732
        %8330 = vmatprep.subr.bf16.mxu0 %v3749
        %8331 = vmatpush1.bf16.msra.mxu0 %v3748
        %8332 = vmatprep.subr.bf16.mxu0 %v3765
        %8333 = vmatpush1.bf16.msra.mxu0 %v3764
        %8334 = vmatprep.subr.bf16.mxu0 %v3781
        %8335 = vmatpush1.bf16.msra.mxu0 %v3780
        %8336 = vmatprep.subr.bf16.mxu0 %v3797
        %8337 = vmatpush1.bf16.msra.mxu0 %v3796
        %8338 = vmatprep.subr.bf16.mxu0 %v3813
        %8339 = vmatpush1.bf16.msra.mxu0 %v3812
        %8340 = vmatprep.subr.bf16.mxu0 %v3829
        %8341 = vmatpush1.bf16.msra.mxu0 %v3828
        %8342 = vmatprep.mubr.bf16.mxu0 %v493
        %8343 = vmatmul.mubr.bf16.gmra.mrb[0].mxu0 %v492
        %v8344 = vpop.f32.mrb[0].mxu0
        %v8345 = vadd.f32 %v8304, %v8344
        %v8346 = vpop.f32.mrb[0].mxu0
        %v8347 = vadd.f32 %v8306, %v8346
        %v8348 = vpop.f32.mrb[0].mxu0
        %v8349 = vpop.f32.mrb[0].mxu0
        %8350 = vdwg.mxu0
        %8351 = vmatprep.subr.bf16.mxu0 %v3845
        %8352 = vmatpush1.bf16.msra.mxu0 %v3844
        %8353 = vmatprep.subr.bf16.mxu0 %v3861
        %8354 = vmatpush1.bf16.msra.mxu0 %v3860
        %8355 = vmatprep.subr.bf16.mxu0 %v3877
        %8356 = vmatpush1.bf16.msra.mxu0 %v3876
        %8357 = vmatprep.subr.bf16.mxu0 %v3893
        %8358 = vmatpush1.bf16.msra.mxu0 %v3892
        %8359 = vmatprep.subr.bf16.mxu0 %v3909
        %8360 = vmatpush1.bf16.msra.mxu0 %v3908
        %8361 = vmatprep.subr.bf16.mxu0 %v3925
        %8362 = vmatpush1.bf16.msra.mxu0 %v3924
        %8363 = vmatprep.subr.bf16.mxu0 %v3941
        %8364 = vmatpush1.bf16.msra.mxu0 %v3940
        %8365 = vmatprep.subr.bf16.mxu0 %v3957
        %8366 = vmatpush1.bf16.msra.mxu0 %v3956
        %8367 = vmatprep.subr.bf16.mxu0 %v3973
        %8368 = vmatpush1.bf16.msra.mxu0 %v3972
        %8369 = vmatprep.subr.bf16.mxu0 %v3989
        %8370 = vmatpush1.bf16.msra.mxu0 %v3988
        %8371 = vmatprep.subr.bf16.mxu0 %v4005
        %8372 = vmatpush1.bf16.msra.mxu0 %v4004
        %8373 = vmatprep.subr.bf16.mxu0 %v4021
        %8374 = vmatpush1.bf16.msra.mxu0 %v4020
        %8375 = vmatprep.subr.bf16.mxu0 %v4037
        %8376 = vmatpush1.bf16.msra.mxu0 %v4036
        %8377 = vmatprep.subr.bf16.mxu0 %v4053
        %8378 = vmatpush1.bf16.msra.mxu0 %v4052
        %8379 = vmatprep.subr.bf16.mxu0 %v4069
        %8380 = vmatpush1.bf16.msra.mxu0 %v4068
        %8381 = vmatprep.subr.bf16.mxu0 %v4085
        %8382 = vmatpush1.bf16.msra.mxu0 %v4084
        %8383 = vmatprep.mubr.bf16.mxu0 %v495
        %8384 = vmatmul.mubr.bf16.gmra.mrb[0].mxu0 %v494
        %v8385 = vpop.f32.mrb[0].mxu0
        %v8386 = vadd.f32 %v8345, %v8385
        %v8387 = vpop.f32.mrb[0].mxu0
        %v8388 = vadd.f32 %v8347, %v8387
        %v8389 = vpop.f32.mrb[0].mxu0
        %v8390 = vpop.f32.mrb[0].mxu0
        %8391 = vdwg.mxu0
        %8392 = vmatprep.subr.bf16.mxu0 %v4101
        %8393 = vmatpush1.bf16.msra.mxu0 %v4100
        %8394 = vmatprep.subr.bf16.mxu0 %v4117
        %8395 = vmatpush1.bf16.msra.mxu0 %v4116
        %8396 = vmatprep.subr.bf16.mxu0 %v4133
        %8397 = vmatpush1.bf16.msra.mxu0 %v4132
        %8398 = vmatprep.subr.bf16.mxu0 %v4149
        %8399 = vmatpush1.bf16.msra.mxu0 %v4148
        %8400 = vmatprep.subr.bf16.mxu0 %v4165
        %8401 = vmatpush1.bf16.msra.mxu0 %v4164
        %8402 = vmatprep.subr.bf16.mxu0 %v4181
        %8403 = vmatpush1.bf16.msra.mxu0 %v4180
        %8404 = vmatprep.subr.bf16.mxu0 %v4197
        %8405 = vmatpush1.bf16.msra.mxu0 %v4196
        %8406 = vmatprep.subr.bf16.mxu0 %v4213
        %8407 = vmatpush1.bf16.msra.mxu0 %v4212
        %8408 = vmatprep.subr.bf16.mxu0 %v4229
        %8409 = vmatpush1.bf16.msra.mxu0 %v4228
        %8410 = vmatprep.subr.bf16.mxu0 %v4245
        %8411 = vmatpush1.bf16.msra.mxu0 %v4244
        %8412 = vmatprep.subr.bf16.mxu0 %v4261
        %8413 = vmatpush1.bf16.msra.mxu0 %v4260
        %8414 = vmatprep.subr.bf16.mxu0 %v4277
        %8415 = vmatpush1.bf16.msra.mxu0 %v4276
        %8416 = vmatprep.subr.bf16.mxu0 %v4293
        %8417 = vmatpush1.bf16.msra.mxu0 %v4292
        %8418 = vmatprep.subr.bf16.mxu0 %v4309
        %8419 = vmatpush1.bf16.msra.mxu0 %v4308
        %8420 = vmatprep.subr.bf16.mxu0 %v4325
        %8421 = vmatpush1.bf16.msra.mxu0 %v4324
        %8422 = vmatprep.subr.bf16.mxu0 %v4341
        %8423 = vmatpush1.bf16.msra.mxu0 %v4340
        %8424 = vmatprep.mubr.bf16.mxu0 %v497
        %8425 = vmatmul.mubr.bf16.gmra.mrb[0].mxu0 %v496
        %v8426 = vpop.f32.mrb[0].mxu0
        %v8427 = vadd.f32 %v8386, %v8426
        %v8428 = vpop.f32.mrb[0].mxu0
        %v8429 = vadd.f32 %v8388, %v8428
        %v8430 = vpop.f32.mrb[0].mxu0
        %v8431 = vpop.f32.mrb[0].mxu0
        %8432 = vdwg.mxu0
        %8433 = vmatprep.subr.bf16.mxu0 %v4357
        %8434 = vmatpush1.bf16.msra.mxu0 %v4356
        %8435 = vmatprep.subr.bf16.mxu0 %v4373
        %8436 = vmatpush1.bf16.msra.mxu0 %v4372
        %8437 = vmatprep.subr.bf16.mxu0 %v4389
        %8438 = vmatpush1.bf16.msra.mxu0 %v4388
        %8439 = vmatprep.subr.bf16.mxu0 %v4405
        %8440 = vmatpush1.bf16.msra.mxu0 %v4404
        %8441 = vmatprep.subr.bf16.mxu0 %v4421
        %8442 = vmatpush1.bf16.msra.mxu0 %v4420
        %8443 = vmatprep.subr.bf16.mxu0 %v4437
        %8444 = vmatpush1.bf16.msra.mxu0 %v4436
        %8445 = vmatprep.subr.bf16.mxu0 %v4453
        %8446 = vmatpush1.bf16.msra.mxu0 %v4452
        %8447 = vmatprep.subr.bf16.mxu0 %v4469
        %8448 = vmatpush1.bf16.msra.mxu0 %v4468
        %8449 = vmatprep.subr.bf16.mxu0 %v4485
        %8450 = vmatpush1.bf16.msra.mxu0 %v4484
        %8451 = vmatprep.subr.bf16.mxu0 %v4501
        %8452 = vmatpush1.bf16.msra.mxu0 %v4500
        %8453 = vmatprep.subr.bf16.mxu0 %v4517
        %8454 = vmatpush1.bf16.msra.mxu0 %v4516
        %8455 = vmatprep.subr.bf16.mxu0 %v4533
        %8456 = vmatpush1.bf16.msra.mxu0 %v4532
        %8457 = vmatprep.subr.bf16.mxu0 %v4549
        %8458 = vmatpush1.bf16.msra.mxu0 %v4548
        %8459 = vmatprep.subr.bf16.mxu0 %v4565
        %8460 = vmatpush1.bf16.msra.mxu0 %v4564
        %8461 = vmatprep.subr.bf16.mxu0 %v4581
        %8462 = vmatpush1.bf16.msra.mxu0 %v4580
        %8463 = vmatprep.subr.bf16.mxu0 %v4597
        %8464 = vmatpush1.bf16.msra.mxu0 %v4596
        %8465 = vmatprep.mubr.bf16.mxu0 %v499
        %8466 = vmatmul.mubr.bf16.gmra.mrb[0].mxu0 %v498
        %v8467 = vpop.f32.mrb[0].mxu0
        %v8468 = vadd.f32 %v8427, %v8467
        %v8469 = vpop.f32.mrb[0].mxu0
        %v8470 = vadd.f32 %v8429, %v8469
        %v8471 = vpop.f32.mrb[0].mxu0
        %v8472 = vpop.f32.mrb[0].mxu0
        %8473 = vdwg.mxu0
        %8474 = vmatprep.subr.bf16.mxu0 %v4613
        %8475 = vmatpush1.bf16.msra.mxu0 %v4612
        %8476 = vmatprep.subr.bf16.mxu0 %v4629
        %8477 = vmatpush1.bf16.msra.mxu0 %v4628
        %8478 = vmatprep.subr.bf16.mxu0 %v4645
        %8479 = vmatpush1.bf16.msra.mxu0 %v4644
        %8480 = vmatprep.subr.bf16.mxu0 %v4661
        %8481 = vmatpush1.bf16.msra.mxu0 %v4660
        %8482 = vmatprep.subr.bf16.mxu0 %v4677
        %8483 = vmatpush1.bf16.msra.mxu0 %v4676
        %8484 = vmatprep.subr.bf16.mxu0 %v4693
        %8485 = vmatpush1.bf16.msra.mxu0 %v4692
        %8486 = vmatprep.subr.bf16.mxu0 %v4709
        %8487 = vmatpush1.bf16.msra.mxu0 %v4708
        %8488 = vmatprep.subr.bf16.mxu0 %v4725
        %8489 = vmatpush1.bf16.msra.mxu0 %v4724
        %8490 = vmatprep.subr.bf16.mxu0 %v4741
        %8491 = vmatpush1.bf16.msra.mxu0 %v4740
        %8492 = vmatprep.subr.bf16.mxu0 %v4757
        %8493 = vmatpush1.bf16.msra.mxu0 %v4756
        %8494 = vmatprep.subr.bf16.mxu0 %v4773
        %8495 = vmatpush1.bf16.msra.mxu0 %v4772
        %8496 = vmatprep.subr.bf16.mxu0 %v4789
        %8497 = vmatpush1.bf16.msra.mxu0 %v4788
        %8498 = vmatprep.subr.bf16.mxu0 %v4805
        %8499 = vmatpush1.bf16.msra.mxu0 %v4804
        %8500 = vmatprep.subr.bf16.mxu0 %v4821
        %8501 = vmatpush1.bf16.msra.mxu0 %v4820
        %8502 = vmatprep.subr.bf16.mxu0 %v4837
        %8503 = vmatpush1.bf16.msra.mxu0 %v4836
        %8504 = vmatprep.subr.bf16.mxu0 %v4853
        %8505 = vmatpush1.bf16.msra.mxu0 %v4852
        %8506 = vmatprep.mubr.bf16.mxu0 %v501
        %8507 = vmatmul.mubr.bf16.gmra.mrb[0].mxu0 %v500
        %v8508 = vpop.f32.mrb[0].mxu0
        %v8509 = vadd.f32 %v8468, %v8508
        %v8510 = vpop.f32.mrb[0].mxu0
        %v8511 = vadd.f32 %v8470, %v8510
        %v8512 = vpop.f32.mrb[0].mxu0
        %v8513 = vpop.f32.mrb[0].mxu0
        %8514 = vdwg.mxu0
        %8515 = vmatprep.subr.bf16.mxu0 %v4869
        %8516 = vmatpush1.bf16.msra.mxu0 %v4868
        %8517 = vmatprep.subr.bf16.mxu0 %v4885
        %8518 = vmatpush1.bf16.msra.mxu0 %v4884
        %8519 = vmatprep.subr.bf16.mxu0 %v4901
        %8520 = vmatpush1.bf16.msra.mxu0 %v4900
        %8521 = vmatprep.subr.bf16.mxu0 %v4917
        %8522 = vmatpush1.bf16.msra.mxu0 %v4916
        %8523 = vmatprep.subr.bf16.mxu0 %v4933
        %8524 = vmatpush1.bf16.msra.mxu0 %v4932
        %8525 = vmatprep.subr.bf16.mxu0 %v4949
        %8526 = vmatpush1.bf16.msra.mxu0 %v4948
        %8527 = vmatprep.subr.bf16.mxu0 %v4965
        %8528 = vmatpush1.bf16.msra.mxu0 %v4964
        %8529 = vmatprep.subr.bf16.mxu0 %v4981
        %8530 = vmatpush1.bf16.msra.mxu0 %v4980
        %8531 = vmatprep.subr.bf16.mxu0 %v4997
        %8532 = vmatpush1.bf16.msra.mxu0 %v4996
        %8533 = vmatprep.subr.bf16.mxu0 %v5013
        %8534 = vmatpush1.bf16.msra.mxu0 %v5012
        %8535 = vmatprep.subr.bf16.mxu0 %v5029
        %8536 = vmatpush1.bf16.msra.mxu0 %v5028
        %8537 = vmatprep.subr.bf16.mxu0 %v5045
        %8538 = vmatpush1.bf16.msra.mxu0 %v5044
        %8539 = vmatprep.subr.bf16.mxu0 %v5061
        %8540 = vmatpush1.bf16.msra.mxu0 %v5060
        %8541 = vmatprep.subr.bf16.mxu0 %v5077
        %8542 = vmatpush1.bf16.msra.mxu0 %v5076
        %8543 = vmatprep.subr.bf16.mxu0 %v5093
        %8544 = vmatpush1.bf16.msra.mxu0 %v5092
        %8545 = vmatprep.subr.bf16.mxu0 %v5109
        %8546 = vmatpush1.bf16.msra.mxu0 %v5108
        %8547 = vmatprep.mubr.bf16.mxu0 %v503
        %8548 = vmatmul.mubr.bf16.gmra.mrb[0].mxu0 %v502
        %v8549 = vpop.f32.mrb[0].mxu0
        %v8550 = vadd.f32 %v8509, %v8549
        %v8551 = vpop.f32.mrb[0].mxu0
        %v8552 = vadd.f32 %v8511, %v8551
        %v8553 = vpop.f32.mrb[0].mxu0
        %v8554 = vpop.f32.mrb[0].mxu0
        %8555 = vdwg.mxu0
        %8556 = vmatprep.subr.bf16.mxu0 %v2055
        %8557 = vmatpush1.bf16.msra.mxu0 %v2054
        %8558 = vmatprep.subr.bf16.mxu0 %v2071
        %8559 = vmatpush1.bf16.msra.mxu0 %v2070
        %8560 = vmatprep.subr.bf16.mxu0 %v2087
        %8561 = vmatpush1.bf16.msra.mxu0 %v2086
        %8562 = vmatprep.subr.bf16.mxu0 %v2103
        %8563 = vmatpush1.bf16.msra.mxu0 %v2102
        %8564 = vmatprep.subr.bf16.mxu0 %v2119
        %8565 = vmatpush1.bf16.msra.mxu0 %v2118
        %8566 = vmatprep.subr.bf16.mxu0 %v2135
        %8567 = vmatpush1.bf16.msra.mxu0 %v2134
        %8568 = vmatprep.subr.bf16.mxu0 %v2151
        %8569 = vmatpush1.bf16.msra.mxu0 %v2150
        %8570 = vmatprep.subr.bf16.mxu0 %v2167
        %8571 = vmatpush1.bf16.msra.mxu0 %v2166
        %8572 = vmatprep.subr.bf16.mxu0 %v2183
        %8573 = vmatpush1.bf16.msra.mxu0 %v2182
        %8574 = vmatprep.subr.bf16.mxu0 %v2199
        %8575 = vmatpush1.bf16.msra.mxu0 %v2198
        %8576 = vmatprep.subr.bf16.mxu0 %v2215
        %8577 = vmatpush1.bf16.msra.mxu0 %v2214
        %8578 = vmatprep.subr.bf16.mxu0 %v2231
        %8579 = vmatpush1.bf16.msra.mxu0 %v2230
        %8580 = vmatprep.subr.bf16.mxu0 %v2247
        %8581 = vmatpush1.bf16.msra.mxu0 %v2246
        %8582 = vmatprep.subr.bf16.mxu0 %v2263
        %8583 = vmatpush1.bf16.msra.mxu0 %v2262
        %8584 = vmatprep.subr.bf16.mxu0 %v2279
        %8585 = vmatpush1.bf16.msra.mxu0 %v2278
        %8586 = vmatprep.subr.bf16.mxu0 %v2295
        %8587 = vmatpush1.bf16.msra.mxu0 %v2294
        %8588 = vmatprep.mubr.bf16.mxu0 %v481
        %8589 = vmatmul.mubr.bf16.gmra.mrb[0].mxu0 %v480
        %v8590 = vpop.f32.mrb[0].mxu0
        %v8591 = vadd.f32 0.0, %v8590
        %v8592 = vpop.f32.mrb[0].mxu0
        %v8593 = vadd.f32 0.0, %v8592
        %v8594 = vpop.f32.mrb[0].mxu0
        %v8595 = vpop.f32.mrb[0].mxu0
        %8596 = vdwg.mxu0
        %8597 = vmatprep.subr.bf16.mxu0 %v2311
        %8598 = vmatpush1.bf16.msra.mxu0 %v2310
        %8599 = vmatprep.subr.bf16.mxu0 %v2327
        %8600 = vmatpush1.bf16.msra.mxu0 %v2326
        %8601 = vmatprep.subr.bf16.mxu0 %v2343
        %8602 = vmatpush1.bf16.msra.mxu0 %v2342
        %8603 = vmatprep.subr.bf16.mxu0 %v2359
        %8604 = vmatpush1.bf16.msra.mxu0 %v2358
        %8605 = vmatprep.subr.bf16.mxu0 %v2375
        %8606 = vmatpush1.bf16.msra.mxu0 %v2374
        %8607 = vmatprep.subr.bf16.mxu0 %v2391
        %8608 = vmatpush1.bf16.msra.mxu0 %v2390
        %8609 = vmatprep.subr.bf16.mxu0 %v2407
        %8610 = vmatpush1.bf16.msra.mxu0 %v2406
        %8611 = vmatprep.subr.bf16.mxu0 %v2423
        %8612 = vmatpush1.bf16.msra.mxu0 %v2422
        %8613 = vmatprep.subr.bf16.mxu0 %v2439
        %8614 = vmatpush1.bf16.msra.mxu0 %v2438
        %8615 = vmatprep.subr.bf16.mxu0 %v2455
        %8616 = vmatpush1.bf16.msra.mxu0 %v2454
        %8617 = vmatprep.subr.bf16.mxu0 %v2471
        %8618 = vmatpush1.bf16.msra.mxu0 %v2470
        %8619 = vmatprep.subr.bf16.mxu0 %v2487
        %8620 = vmatpush1.bf16.msra.mxu0 %v2486
        %8621 = vmatprep.subr.bf16.mxu0 %v2503
        %8622 = vmatpush1.bf16.msra.mxu0 %v2502
        %8623 = vmatprep.subr.bf16.mxu0 %v2519
        %8624 = vmatpush1.bf16.msra.mxu0 %v2518
        %8625 = vmatprep.subr.bf16.mxu0 %v2535
        %8626 = vmatpush1.bf16.msra.mxu0 %v2534
        %8627 = vmatprep.subr.bf16.mxu0 %v2551
        %8628 = vmatpush1.bf16.msra.mxu0 %v2550
        %8629 = vmatprep.mubr.bf16.mxu0 %v483
        %8630 = vmatmul.mubr.bf16.gmra.mrb[0].mxu0 %v482
        %v8631 = vpop.f32.mrb[0].mxu0
        %v8632 = vadd.f32 %v8591, %v8631
        %v8633 = vpop.f32.mrb[0].mxu0
        %v8634 = vadd.f32 %v8593, %v8633
        %v8635 = vpop.f32.mrb[0].mxu0
        %v8636 = vpop.f32.mrb[0].mxu0
        %8637 = vdwg.mxu0
        %8638 = vmatprep.subr.bf16.mxu0 %v2567
        %8639 = vmatpush1.bf16.msra.mxu0 %v2566
        %8640 = vmatprep.subr.bf16.mxu0 %v2583
        %8641 = vmatpush1.bf16.msra.mxu0 %v2582
        %8642 = vmatprep.subr.bf16.mxu0 %v2599
        %8643 = vmatpush1.bf16.msra.mxu0 %v2598
        %8644 = vmatprep.subr.bf16.mxu0 %v2615
        %8645 = vmatpush1.bf16.msra.mxu0 %v2614
        %8646 = vmatprep.subr.bf16.mxu0 %v2631
        %8647 = vmatpush1.bf16.msra.mxu0 %v2630
        %8648 = vmatprep.subr.bf16.mxu0 %v2647
        %8649 = vmatpush1.bf16.msra.mxu0 %v2646
        %8650 = vmatprep.subr.bf16.mxu0 %v2663
        %8651 = vmatpush1.bf16.msra.mxu0 %v2662
        %8652 = vmatprep.subr.bf16.mxu0 %v2679
        %8653 = vmatpush1.bf16.msra.mxu0 %v2678
        %8654 = vmatprep.subr.bf16.mxu0 %v2695
        %8655 = vmatpush1.bf16.msra.mxu0 %v2694
        %8656 = vmatprep.subr.bf16.mxu0 %v2711
        %8657 = vmatpush1.bf16.msra.mxu0 %v2710
        %8658 = vmatprep.subr.bf16.mxu0 %v2727
        %8659 = vmatpush1.bf16.msra.mxu0 %v2726
        %8660 = vmatprep.subr.bf16.mxu0 %v2743
        %8661 = vmatpush1.bf16.msra.mxu0 %v2742
        %8662 = vmatprep.subr.bf16.mxu0 %v2759
        %8663 = vmatpush1.bf16.msra.mxu0 %v2758
        %8664 = vmatprep.subr.bf16.mxu0 %v2775
        %8665 = vmatpush1.bf16.msra.mxu0 %v2774
        %8666 = vmatprep.subr.bf16.mxu0 %v2791
        %8667 = vmatpush1.bf16.msra.mxu0 %v2790
        %8668 = vmatprep.subr.bf16.mxu0 %v2807
        %8669 = vmatpush1.bf16.msra.mxu0 %v2806
        %8670 = vmatprep.mubr.bf16.mxu0 %v485
        %8671 = vmatmul.mubr.bf16.gmra.mrb[0].mxu0 %v484
        %v8672 = vpop.f32.mrb[0].mxu0
        %v8673 = vadd.f32 %v8632, %v8672
        %v8674 = vpop.f32.mrb[0].mxu0
        %v8675 = vadd.f32 %v8634, %v8674
        %v8676 = vpop.f32.mrb[0].mxu0
        %v8677 = vpop.f32.mrb[0].mxu0
        %8678 = vdwg.mxu0
        %8679 = vmatprep.subr.bf16.mxu0 %v2823
        %8680 = vmatpush1.bf16.msra.mxu0 %v2822
        %8681 = vmatprep.subr.bf16.mxu0 %v2839
        %8682 = vmatpush1.bf16.msra.mxu0 %v2838
        %8683 = vmatprep.subr.bf16.mxu0 %v2855
        %8684 = vmatpush1.bf16.msra.mxu0 %v2854
        %8685 = vmatprep.subr.bf16.mxu0 %v2871
        %8686 = vmatpush1.bf16.msra.mxu0 %v2870
        %8687 = vmatprep.subr.bf16.mxu0 %v2887
        %8688 = vmatpush1.bf16.msra.mxu0 %v2886
        %8689 = vmatprep.subr.bf16.mxu0 %v2903
        %8690 = vmatpush1.bf16.msra.mxu0 %v2902
        %8691 = vmatprep.subr.bf16.mxu0 %v2919
        %8692 = vmatpush1.bf16.msra.mxu0 %v2918
        %8693 = vmatprep.subr.bf16.mxu0 %v2935
        %8694 = vmatpush1.bf16.msra.mxu0 %v2934
        %8695 = vmatprep.subr.bf16.mxu0 %v2951
        %8696 = vmatpush1.bf16.msra.mxu0 %v2950
        %8697 = vmatprep.subr.bf16.mxu0 %v2967
        %8698 = vmatpush1.bf16.msra.mxu0 %v2966
        %8699 = vmatprep.subr.bf16.mxu0 %v2983
        %8700 = vmatpush1.bf16.msra.mxu0 %v2982
        %8701 = vmatprep.subr.bf16.mxu0 %v2999
        %8702 = vmatpush1.bf16.msra.mxu0 %v2998
        %8703 = vmatprep.subr.bf16.mxu0 %v3015
        %8704 = vmatpush1.bf16.msra.mxu0 %v3014
        %8705 = vmatprep.subr.bf16.mxu0 %v3031
        %8706 = vmatpush1.bf16.msra.mxu0 %v3030
        %8707 = vmatprep.subr.bf16.mxu0 %v3047
        %8708 = vmatpush1.bf16.msra.mxu0 %v3046
        %8709 = vmatprep.subr.bf16.mxu0 %v3063
        %8710 = vmatpush1.bf16.msra.mxu0 %v3062
        %8711 = vmatprep.mubr.bf16.mxu0 %v487
        %8712 = vmatmul.mubr.bf16.gmra.mrb[0].mxu0 %v486
        %v8713 = vpop.f32.mrb[0].mxu0
        %v8714 = vadd.f32 %v8673, %v8713
        %v8715 = vpop.f32.mrb[0].mxu0
        %v8716 = vadd.f32 %v8675, %v8715
        %v8717 = vpop.f32.mrb[0].mxu0
        %v8718 = vpop.f32.mrb[0].mxu0
        %8719 = vdwg.mxu0
        %8720 = vmatprep.subr.bf16.mxu0 %v3079
        %8721 = vmatpush1.bf16.msra.mxu0 %v3078
        %8722 = vmatprep.subr.bf16.mxu0 %v3095
        %8723 = vmatpush1.bf16.msra.mxu0 %v3094
        %8724 = vmatprep.subr.bf16.mxu0 %v3111
        %8725 = vmatpush1.bf16.msra.mxu0 %v3110
        %8726 = vmatprep.subr.bf16.mxu0 %v3127
        %8727 = vmatpush1.bf16.msra.mxu0 %v3126
        %8728 = vmatprep.subr.bf16.mxu0 %v3143
        %8729 = vmatpush1.bf16.msra.mxu0 %v3142
        %8730 = vmatprep.subr.bf16.mxu0 %v3159
        %8731 = vmatpush1.bf16.msra.mxu0 %v3158
        %8732 = vmatprep.subr.bf16.mxu0 %v3175
        %8733 = vmatpush1.bf16.msra.mxu0 %v3174
        %8734 = vmatprep.subr.bf16.mxu0 %v3191
        %8735 = vmatpush1.bf16.msra.mxu0 %v3190
        %8736 = vmatprep.subr.bf16.mxu0 %v3207
        %8737 = vmatpush1.bf16.msra.mxu0 %v3206
        %8738 = vmatprep.subr.bf16.mxu0 %v3223
        %8739 = vmatpush1.bf16.msra.mxu0 %v3222
        %8740 = vmatprep.subr.bf16.mxu0 %v3239
        %8741 = vmatpush1.bf16.msra.mxu0 %v3238
        %8742 = vmatprep.subr.bf16.mxu0 %v3255
        %8743 = vmatpush1.bf16.msra.mxu0 %v3254
        %8744 = vmatprep.subr.bf16.mxu0 %v3271
        %8745 = vmatpush1.bf16.msra.mxu0 %v3270
        %8746 = vmatprep.subr.bf16.mxu0 %v3287
        %8747 = vmatpush1.bf16.msra.mxu0 %v3286
        %8748 = vmatprep.subr.bf16.mxu0 %v3303
        %8749 = vmatpush1.bf16.msra.mxu0 %v3302
        %8750 = vmatprep.subr.bf16.mxu0 %v3319
        %8751 = vmatpush1.bf16.msra.mxu0 %v3318
        %8752 = vmatprep.mubr.bf16.mxu0 %v489
        %8753 = vmatmul.mubr.bf16.gmra.mrb[0].mxu0 %v488
        %v8754 = vpop.f32.mrb[0].mxu0
        %v8755 = vadd.f32 %v8714, %v8754
        %v8756 = vpop.f32.mrb[0].mxu0
        %v8757 = vadd.f32 %v8716, %v8756
        %v8758 = vpop.f32.mrb[0].mxu0
        %v8759 = vpop.f32.mrb[0].mxu0
        %8760 = vdwg.mxu0
        %8761 = vmatprep.subr.bf16.mxu0 %v3335
        %8762 = vmatpush1.bf16.msra.mxu0 %v3334
        %8763 = vmatprep.subr.bf16.mxu0 %v3351
        %8764 = vmatpush1.bf16.msra.mxu0 %v3350
        %8765 = vmatprep.subr.bf16.mxu0 %v3367
        %8766 = vmatpush1.bf16.msra.mxu0 %v3366
        %8767 = vmatprep.subr.bf16.mxu0 %v3383
        %8768 = vmatpush1.bf16.msra.mxu0 %v3382
        %8769 = vmatprep.subr.bf16.mxu0 %v3399
        %8770 = vmatpush1.bf16.msra.mxu0 %v3398
        %8771 = vmatprep.subr.bf16.mxu0 %v3415
        %8772 = vmatpush1.bf16.msra.mxu0 %v3414
        %8773 = vmatprep.subr.bf16.mxu0 %v3431
        %8774 = vmatpush1.bf16.msra.mxu0 %v3430
        %8775 = vmatprep.subr.bf16.mxu0 %v3447
        %8776 = vmatpush1.bf16.msra.mxu0 %v3446
        %8777 = vmatprep.subr.bf16.mxu0 %v3463
        %8778 = vmatpush1.bf16.msra.mxu0 %v3462
        %8779 = vmatprep.subr.bf16.mxu0 %v3479
        %8780 = vmatpush1.bf16.msra.mxu0 %v3478
        %8781 = vmatprep.subr.bf16.mxu0 %v3495
        %8782 = vmatpush1.bf16.msra.mxu0 %v3494
        %8783 = vmatprep.subr.bf16.mxu0 %v3511
        %8784 = vmatpush1.bf16.msra.mxu0 %v3510
        %8785 = vmatprep.subr.bf16.mxu0 %v3527
        %8786 = vmatpush1.bf16.msra.mxu0 %v3526
        %8787 = vmatprep.subr.bf16.mxu0 %v3543
        %8788 = vmatpush1.bf16.msra.mxu0 %v3542
        %8789 = vmatprep.subr.bf16.mxu0 %v3559
        %8790 = vmatpush1.bf16.msra.mxu0 %v3558
        %8791 = vmatprep.subr.bf16.mxu0 %v3575
        %8792 = vmatpush1.bf16.msra.mxu0 %v3574
        %8793 = vmatprep.mubr.bf16.mxu0 %v491
        %8794 = vmatmul.mubr.bf16.gmra.mrb[0].mxu0 %v490
        %v8795 = vpop.f32.mrb[0].mxu0
        %v8796 = vadd.f32 %v8755, %v8795
        %v8797 = vpop.f32.mrb[0].mxu0
        %v8798 = vadd.f32 %v8757, %v8797
        %v8799 = vpop.f32.mrb[0].mxu0
        %v8800 = vpop.f32.mrb[0].mxu0
        %8801 = vdwg.mxu0
        %8802 = vmatprep.subr.bf16.mxu0 %v3591
        %8803 = vmatpush1.bf16.msra.mxu0 %v3590
        %8804 = vmatprep.subr.bf16.mxu0 %v3607
        %8805 = vmatpush1.bf16.msra.mxu0 %v3606
        %8806 = vmatprep.subr.bf16.mxu0 %v3623
        %8807 = vmatpush1.bf16.msra.mxu0 %v3622
        %8808 = vmatprep.subr.bf16.mxu0 %v3639
        %8809 = vmatpush1.bf16.msra.mxu0 %v3638
        %8810 = vmatprep.subr.bf16.mxu0 %v3655
        %8811 = vmatpush1.bf16.msra.mxu0 %v3654
        %8812 = vmatprep.subr.bf16.mxu0 %v3671
        %8813 = vmatpush1.bf16.msra.mxu0 %v3670
        %8814 = vmatprep.subr.bf16.mxu0 %v3687
        %8815 = vmatpush1.bf16.msra.mxu0 %v3686
        %8816 = vmatprep.subr.bf16.mxu0 %v3703
        %8817 = vmatpush1.bf16.msra.mxu0 %v3702
        %8818 = vmatprep.subr.bf16.mxu0 %v3719
        %8819 = vmatpush1.bf16.msra.mxu0 %v3718
        %8820 = vmatprep.subr.bf16.mxu0 %v3735
        %8821 = vmatpush1.bf16.msra.mxu0 %v3734
        %8822 = vmatprep.subr.bf16.mxu0 %v3751
        %8823 = vmatpush1.bf16.msra.mxu0 %v3750
        %8824 = vmatprep.subr.bf16.mxu0 %v3767
        %8825 = vmatpush1.bf16.msra.mxu0 %v3766
        %8826 = vmatprep.subr.bf16.mxu0 %v3783
        %8827 = vmatpush1.bf16.msra.mxu0 %v3782
        %8828 = vmatprep.subr.bf16.mxu0 %v3799
        %8829 = vmatpush1.bf16.msra.mxu0 %v3798
        %8830 = vmatprep.subr.bf16.mxu0 %v3815
        %8831 = vmatpush1.bf16.msra.mxu0 %v3814
        %8832 = vmatprep.subr.bf16.mxu0 %v3831
        %8833 = vmatpush1.bf16.msra.mxu0 %v3830
        %8834 = vmatprep.mubr.bf16.mxu0 %v493
        %8835 = vmatmul.mubr.bf16.gmra.mrb[0].mxu0 %v492
        %v8836 = vpop.f32.mrb[0].mxu0
        %v8837 = vadd.f32 %v8796, %v8836
        %v8838 = vpop.f32.mrb[0].mxu0
        %v8839 = vadd.f32 %v8798, %v8838
        %v8840 = vpop.f32.mrb[0].mxu0
        %v8841 = vpop.f32.mrb[0].mxu0
        %8842 = vdwg.mxu0
        %8843 = vmatprep.subr.bf16.mxu0 %v3847
        %8844 = vmatpush1.bf16.msra.mxu0 %v3846
        %8845 = vmatprep.subr.bf16.mxu0 %v3863
        %8846 = vmatpush1.bf16.msra.mxu0 %v3862
        %8847 = vmatprep.subr.bf16.mxu0 %v3879
        %8848 = vmatpush1.bf16.msra.mxu0 %v3878
        %8849 = vmatprep.subr.bf16.mxu0 %v3895
        %8850 = vmatpush1.bf16.msra.mxu0 %v3894
        %8851 = vmatprep.subr.bf16.mxu0 %v3911
        %8852 = vmatpush1.bf16.msra.mxu0 %v3910
        %8853 = vmatprep.subr.bf16.mxu0 %v3927
        %8854 = vmatpush1.bf16.msra.mxu0 %v3926
        %8855 = vmatprep.subr.bf16.mxu0 %v3943
        %8856 = vmatpush1.bf16.msra.mxu0 %v3942
        %8857 = vmatprep.subr.bf16.mxu0 %v3959
        %8858 = vmatpush1.bf16.msra.mxu0 %v3958
        %8859 = vmatprep.subr.bf16.mxu0 %v3975
        %8860 = vmatpush1.bf16.msra.mxu0 %v3974
        %8861 = vmatprep.subr.bf16.mxu0 %v3991
        %8862 = vmatpush1.bf16.msra.mxu0 %v3990
        %8863 = vmatprep.subr.bf16.mxu0 %v4007
        %8864 = vmatpush1.bf16.msra.mxu0 %v4006
        %8865 = vmatprep.subr.bf16.mxu0 %v4023
        %8866 = vmatpush1.bf16.msra.mxu0 %v4022
        %8867 = vmatprep.subr.bf16.mxu0 %v4039
        %8868 = vmatpush1.bf16.msra.mxu0 %v4038
        %8869 = vmatprep.subr.bf16.mxu0 %v4055
        %8870 = vmatpush1.bf16.msra.mxu0 %v4054
        %8871 = vmatprep.subr.bf16.mxu0 %v4071
        %8872 = vmatpush1.bf16.msra.mxu0 %v4070
        %8873 = vmatprep.subr.bf16.mxu0 %v4087
        %8874 = vmatpush1.bf16.msra.mxu0 %v4086
        %8875 = vmatprep.mubr.bf16.mxu0 %v495
        %8876 = vmatmul.mubr.bf16.gmra.mrb[0].mxu0 %v494
        %v8877 = vpop.f32.mrb[0].mxu0
        %v8878 = vadd.f32 %v8837, %v8877
        %v8879 = vpop.f32.mrb[0].mxu0
        %v8880 = vadd.f32 %v8839, %v8879
        %v8881 = vpop.f32.mrb[0].mxu0
        %v8882 = vpop.f32.mrb[0].mxu0
        %8883 = vdwg.mxu0
        %8884 = vmatprep.subr.bf16.mxu0 %v4103
        %8885 = vmatpush1.bf16.msra.mxu0 %v4102
        %8886 = vmatprep.subr.bf16.mxu0 %v4119
        %8887 = vmatpush1.bf16.msra.mxu0 %v4118
        %8888 = vmatprep.subr.bf16.mxu0 %v4135
        %8889 = vmatpush1.bf16.msra.mxu0 %v4134
        %8890 = vmatprep.subr.bf16.mxu0 %v4151
        %8891 = vmatpush1.bf16.msra.mxu0 %v4150
        %8892 = vmatprep.subr.bf16.mxu0 %v4167
        %8893 = vmatpush1.bf16.msra.mxu0 %v4166
        %8894 = vmatprep.subr.bf16.mxu0 %v4183
        %8895 = vmatpush1.bf16.msra.mxu0 %v4182
        %8896 = vmatprep.subr.bf16.mxu0 %v4199
        %8897 = vmatpush1.bf16.msra.mxu0 %v4198
        %8898 = vmatprep.subr.bf16.mxu0 %v4215
        %8899 = vmatpush1.bf16.msra.mxu0 %v4214
        %8900 = vmatprep.subr.bf16.mxu0 %v4231
        %8901 = vmatpush1.bf16.msra.mxu0 %v4230
        %8902 = vmatprep.subr.bf16.mxu0 %v4247
        %8903 = vmatpush1.bf16.msra.mxu0 %v4246
        %8904 = vmatprep.subr.bf16.mxu0 %v4263
        %8905 = vmatpush1.bf16.msra.mxu0 %v4262
        %8906 = vmatprep.subr.bf16.mxu0 %v4279
        %8907 = vmatpush1.bf16.msra.mxu0 %v4278
        %8908 = vmatprep.subr.bf16.mxu0 %v4295
        %8909 = vmatpush1.bf16.msra.mxu0 %v4294
        %8910 = vmatprep.subr.bf16.mxu0 %v4311
        %8911 = vmatpush1.bf16.msra.mxu0 %v4310
        %8912 = vmatprep.subr.bf16.mxu0 %v4327
        %8913 = vmatpush1.bf16.msra.mxu0 %v4326
        %8914 = vmatprep.subr.bf16.mxu0 %v4343
        %8915 = vmatpush1.bf16.msra.mxu0 %v4342
        %8916 = vmatprep.mubr.bf16.mxu0 %v497
        %8917 = vmatmul.mubr.bf16.gmra.mrb[0].mxu0 %v496
        %v8918 = vpop.f32.mrb[0].mxu0
        %v8919 = vadd.f32 %v8878, %v8918
        %v8920 = vpop.f32.mrb[0].mxu0
        %v8921 = vadd.f32 %v8880, %v8920
        %v8922 = vpop.f32.mrb[0].mxu0
        %v8923 = vpop.f32.mrb[0].mxu0
        %8924 = vdwg.mxu0
        %8925 = vmatprep.subr.bf16.mxu0 %v4359
        %8926 = vmatpush1.bf16.msra.mxu0 %v4358
        %8927 = vmatprep.subr.bf16.mxu0 %v4375
        %8928 = vmatpush1.bf16.msra.mxu0 %v4374
        %8929 = vmatprep.subr.bf16.mxu0 %v4391
        %8930 = vmatpush1.bf16.msra.mxu0 %v4390
        %8931 = vmatprep.subr.bf16.mxu0 %v4407
        %8932 = vmatpush1.bf16.msra.mxu0 %v4406
        %8933 = vmatprep.subr.bf16.mxu0 %v4423
        %8934 = vmatpush1.bf16.msra.mxu0 %v4422
        %8935 = vmatprep.subr.bf16.mxu0 %v4439
        %8936 = vmatpush1.bf16.msra.mxu0 %v4438
        %8937 = vmatprep.subr.bf16.mxu0 %v4455
        %8938 = vmatpush1.bf16.msra.mxu0 %v4454
        %8939 = vmatprep.subr.bf16.mxu0 %v4471
        %8940 = vmatpush1.bf16.msra.mxu0 %v4470
        %8941 = vmatprep.subr.bf16.mxu0 %v4487
        %8942 = vmatpush1.bf16.msra.mxu0 %v4486
        %8943 = vmatprep.subr.bf16.mxu0 %v4503
        %8944 = vmatpush1.bf16.msra.mxu0 %v4502
        %8945 = vmatprep.subr.bf16.mxu0 %v4519
        %8946 = vmatpush1.bf16.msra.mxu0 %v4518
        %8947 = vmatprep.subr.bf16.mxu0 %v4535
        %8948 = vmatpush1.bf16.msra.mxu0 %v4534
        %8949 = vmatprep.subr.bf16.mxu0 %v4551
        %8950 = vmatpush1.bf16.msra.mxu0 %v4550
        %8951 = vmatprep.subr.bf16.mxu0 %v4567
        %8952 = vmatpush1.bf16.msra.mxu0 %v4566
        %8953 = vmatprep.subr.bf16.mxu0 %v4583
        %8954 = vmatpush1.bf16.msra.mxu0 %v4582
        %8955 = vmatprep.subr.bf16.mxu0 %v4599
        %8956 = vmatpush1.bf16.msra.mxu0 %v4598
        %8957 = vmatprep.mubr.bf16.mxu0 %v499
        %8958 = vmatmul.mubr.bf16.gmra.mrb[0].mxu0 %v498
        %v8959 = vpop.f32.mrb[0].mxu0
        %v8960 = vadd.f32 %v8919, %v8959
        %v8961 = vpop.f32.mrb[0].mxu0
        %v8962 = vadd.f32 %v8921, %v8961
        %v8963 = vpop.f32.mrb[0].mxu0
        %v8964 = vpop.f32.mrb[0].mxu0
        %8965 = vdwg.mxu0
        %8966 = vmatprep.subr.bf16.mxu0 %v4615
        %8967 = vmatpush1.bf16.msra.mxu0 %v4614
        %8968 = vmatprep.subr.bf16.mxu0 %v4631
        %8969 = vmatpush1.bf16.msra.mxu0 %v4630
        %8970 = vmatprep.subr.bf16.mxu0 %v4647
        %8971 = vmatpush1.bf16.msra.mxu0 %v4646
        %8972 = vmatprep.subr.bf16.mxu0 %v4663
        %8973 = vmatpush1.bf16.msra.mxu0 %v4662
        %8974 = vmatprep.subr.bf16.mxu0 %v4679
        %8975 = vmatpush1.bf16.msra.mxu0 %v4678
        %8976 = vmatprep.subr.bf16.mxu0 %v4695
        %8977 = vmatpush1.bf16.msra.mxu0 %v4694
        %8978 = vmatprep.subr.bf16.mxu0 %v4711
        %8979 = vmatpush1.bf16.msra.mxu0 %v4710
        %8980 = vmatprep.subr.bf16.mxu0 %v4727
        %8981 = vmatpush1.bf16.msra.mxu0 %v4726
        %8982 = vmatprep.subr.bf16.mxu0 %v4743
        %8983 = vmatpush1.bf16.msra.mxu0 %v4742
        %8984 = vmatprep.subr.bf16.mxu0 %v4759
        %8985 = vmatpush1.bf16.msra.mxu0 %v4758
        %8986 = vmatprep.subr.bf16.mxu0 %v4775
        %8987 = vmatpush1.bf16.msra.mxu0 %v4774
        %8988 = vmatprep.subr.bf16.mxu0 %v4791
        %8989 = vmatpush1.bf16.msra.mxu0 %v4790
        %8990 = vmatprep.subr.bf16.mxu0 %v4807
        %8991 = vmatpush1.bf16.msra.mxu0 %v4806
        %8992 = vmatprep.subr.bf16.mxu0 %v4823
        %8993 = vmatpush1.bf16.msra.mxu0 %v4822
        %8994 = vmatprep.subr.bf16.mxu0 %v4839
        %8995 = vmatpush1.bf16.msra.mxu0 %v4838
        %8996 = vmatprep.subr.bf16.mxu0 %v4855
        %8997 = vmatpush1.bf16.msra.mxu0 %v4854
        %8998 = vmatprep.mubr.bf16.mxu0 %v501
        %8999 = vmatmul.mubr.bf16.gmra.mrb[0].mxu0 %v500
        %v9000 = vpop.f32.mrb[0].mxu0
        %v9001 = vadd.f32 %v8960, %v9000
        %v9002 = vpop.f32.mrb[0].mxu0
        %v9003 = vadd.f32 %v8962, %v9002
        %v9004 = vpop.f32.mrb[0].mxu0
        %v9005 = vpop.f32.mrb[0].mxu0
        %9006 = vdwg.mxu0
        %9007 = vmatprep.subr.bf16.mxu0 %v4871
        %9008 = vmatpush1.bf16.msra.mxu0 %v4870
        %9009 = vmatprep.subr.bf16.mxu0 %v4887
        %9010 = vmatpush1.bf16.msra.mxu0 %v4886
        %9011 = vmatprep.subr.bf16.mxu0 %v4903
        %9012 = vmatpush1.bf16.msra.mxu0 %v4902
        %9013 = vmatprep.subr.bf16.mxu0 %v4919
        %9014 = vmatpush1.bf16.msra.mxu0 %v4918
        %9015 = vmatprep.subr.bf16.mxu0 %v4935
        %9016 = vmatpush1.bf16.msra.mxu0 %v4934
        %9017 = vmatprep.subr.bf16.mxu0 %v4951
        %9018 = vmatpush1.bf16.msra.mxu0 %v4950
        %9019 = vmatprep.subr.bf16.mxu0 %v4967
        %9020 = vmatpush1.bf16.msra.mxu0 %v4966
        %9021 = vmatprep.subr.bf16.mxu0 %v4983
        %9022 = vmatpush1.bf16.msra.mxu0 %v4982
        %9023 = vmatprep.subr.bf16.mxu0 %v4999
        %9024 = vmatpush1.bf16.msra.mxu0 %v4998
        %9025 = vmatprep.subr.bf16.mxu0 %v5015
        %9026 = vmatpush1.bf16.msra.mxu0 %v5014
        %9027 = vmatprep.subr.bf16.mxu0 %v5031
        %9028 = vmatpush1.bf16.msra.mxu0 %v5030
        %9029 = vmatprep.subr.bf16.mxu0 %v5047
        %9030 = vmatpush1.bf16.msra.mxu0 %v5046
        %9031 = vmatprep.subr.bf16.mxu0 %v5063
        %9032 = vmatpush1.bf16.msra.mxu0 %v5062
        %9033 = vmatprep.subr.bf16.mxu0 %v5079
        %9034 = vmatpush1.bf16.msra.mxu0 %v5078
        %9035 = vmatprep.subr.bf16.mxu0 %v5095
        %9036 = vmatpush1.bf16.msra.mxu0 %v5094
        %9037 = vmatprep.subr.bf16.mxu0 %v5111
        %9038 = vmatpush1.bf16.msra.mxu0 %v5110
        %9039 = vmatprep.mubr.bf16.mxu0 %v503
        %9040 = vmatmul.mubr.bf16.gmra.mrb[0].mxu0 %v502
        %v9041 = vpop.f32.mrb[0].mxu0
        %v9042 = vadd.f32 %v9001, %v9041
        %v9043 = vpop.f32.mrb[0].mxu0
        %v9044 = vadd.f32 %v9003, %v9043
        %v9045 = vpop.f32.mrb[0].mxu0
        %v9046 = vpop.f32.mrb[0].mxu0
        %9047 = vdwg.mxu0
        %v9064 = vcombine.low %v5598, %v5600
        %v9065 = vcombine.low %v6090, %v6092
        %v9067 = vunpack.c.l.s4 1983009808
        %v9068 = vunpack.c.0.s8 %v9067
        %v9069 = vlaneseq
        %v9070 = vshrl.u32 %v9069, 7
        %v9071 = vsub.s32 %v9068, %v9070
        %v9072 = vrot.slane %v9064, %v9071
        %v9074 = vunpack.c.l.s4 1983009808
        %v9075 = vunpack.c.0.s8 %v9074
        %v9076 = vlaneseq
        %v9077 = vshrl.u32 %v9076, 7
        %v9078 = vsub.s32 %v9075, %v9077
        %v9079 = vrot.slane %v9065, %v9078
        %v9080 = vcombine.low %v9072, %v9079
        %v9081 = vcombine.low %v6582, %v6584
        %v9082 = vcombine.low %v7074, %v7076
        %v9084 = vunpack.c.l.s4 1983009808
        %v9085 = vunpack.c.0.s8 %v9084
        %v9086 = vlaneseq
        %v9087 = vshrl.u32 %v9086, 7
        %v9088 = vsub.s32 %v9085, %v9087
        %v9089 = vrot.slane %v9081, %v9088
        %v9091 = vunpack.c.l.s4 1983009808
        %v9092 = vunpack.c.0.s8 %v9091
        %v9093 = vlaneseq
        %v9094 = vshrl.u32 %v9093, 7
        %v9095 = vsub.s32 %v9092, %v9094
        %v9096 = vrot.slane %v9082, %v9095
        %v9097 = vcombine.low %v9089, %v9096
        %v9098 = vcombine.low %v7566, %v7568
        %v9099 = vcombine.low %v8058, %v8060
        %v9101 = vunpack.c.l.s4 1983009808
        %v9102 = vunpack.c.0.s8 %v9101
        %v9103 = vlaneseq
        %v9104 = vshrl.u32 %v9103, 7
        %v9105 = vsub.s32 %v9102, %v9104
        %v9106 = vrot.slane %v9098, %v9105
        %v9108 = vunpack.c.l.s4 1983009808
        %v9109 = vunpack.c.0.s8 %v9108
        %v9110 = vlaneseq
        %v9111 = vshrl.u32 %v9110, 7
        %v9112 = vsub.s32 %v9109, %v9111
        %v9113 = vrot.slane %v9099, %v9112
        %v9114 = vcombine.low %v9106, %v9113
        %v9115 = vcombine.low %v8550, %v8552
        %v9116 = vcombine.low %v9042, %v9044
        %v9118 = vunpack.c.l.s4 1983009808
        %v9119 = vunpack.c.0.s8 %v9118
        %v9120 = vlaneseq
        %v9121 = vshrl.u32 %v9120, 7
        %v9122 = vsub.s32 %v9119, %v9121
        %v9123 = vrot.slane %v9115, %v9122
        %v9125 = vunpack.c.l.s4 1983009808
        %v9126 = vunpack.c.0.s8 %v9125
        %v9127 = vlaneseq
        %v9128 = vshrl.u32 %v9127, 7
        %v9129 = vsub.s32 %v9126, %v9128
        %v9130 = vrot.slane %v9116, %v9129
        %v9131 = vcombine.low %v9123, %v9130
        %v9136 = vadd.f32 %v338, %v9080
        %v9137 = vadd.f32 %v339, %v9097
        %v9138 = vadd.f32 %v340, %v9114
        %v9139 = vadd.f32 %v341, %v9131
        %9140 = vst [vmem:[%s325] sm:$0xff] %v9136
        %9141 = vst [vmem:[%s325 + $0x8] sm:$0xff] %v9137
        %9142 = vst [vmem:[%s325 + $0x10] sm:$0xff] %v9138
        %9143 = vst [vmem:[%s325 + $0x18] sm:$0xff] %v9139
        // Predicated region
        $region57: #{tpu_custom_call.1} parent=35 // pred_check
          %p9144 = pneg %p330
        $region58: #{tpu_custom_call.1} parent=35 // pred_check_branch
          %9146 = sbr.rel (%p9144) target = $region60
        $region59: #{tpu_custom_call.1} parent=35 // pred_region
          %v9147 = vld [vmem:[%s325] sm:$0xff]
          %v9148 = vld [vmem:[%s325 + $0x8] sm:$0xff]
          %v9149 = vld [vmem:[%s325 + $0x10] sm:$0xff]
          %v9150 = vld [vmem:[%s325 + $0x18] sm:$0xff]
          %v9151 = vld [vmem:[%s282] sm:$0xff]
          %v9152 = vld [vmem:[%s282 + $0x8] sm:$0xff]
          %v9155 = vlaneseq
          %v9156 = vshrl.u32 %v9155, 7
          %v9157 = vsub.s32 0, %v9156
          %v9158 = vrot.slane %v9151, %v9157
          %v9159 = vlaneseq
          %v9160 = vshrl.u32 %v9159, 7
          %v9161 = vsub.s32 1, %v9160
          %v9162 = vrot.slane %v9151, %v9161
          %v9163 = vlaneseq
          %v9164 = vshrl.u32 %v9163, 7
          %v9165 = vsub.s32 2, %v9164
          %v9166 = vrot.slane %v9151, %v9165
          %v9167 = vlaneseq
          %v9168 = vshrl.u32 %v9167, 7
          %v9169 = vsub.s32 3, %v9168
          %v9170 = vrot.slane %v9151, %v9169
          %v9171 = vlaneseq
          %v9172 = vshrl.u32 %v9171, 7
          %v9173 = vsub.s32 4, %v9172
          %v9174 = vrot.slane %v9151, %v9173
          %v9175 = vlaneseq
          %v9176 = vshrl.u32 %v9175, 7
          %v9177 = vsub.s32 5, %v9176
          %v9178 = vrot.slane %v9151, %v9177
          %v9179 = vlaneseq
          %v9180 = vshrl.u32 %v9179, 7
          %v9181 = vsub.s32 6, %v9180
          %v9182 = vrot.slane %v9151, %v9181
          %v9183 = vlaneseq
          %v9184 = vshrl.u32 %v9183, 7
          %v9185 = vsub.s32 7, %v9184
          %v9186 = vrot.slane %v9151, %v9185
          %v9187 = vlaneseq
          %v9188 = vshrl.u32 %v9187, 7
          %v9189 = vsub.s32 0, %v9188
          %v9190 = vrot.slane %v9152, %v9189
          %v9191 = vlaneseq
          %v9192 = vshrl.u32 %v9191, 7
          %v9193 = vsub.s32 1, %v9192
          %v9194 = vrot.slane %v9152, %v9193
          %v9195 = vlaneseq
          %v9196 = vshrl.u32 %v9195, 7
          %v9197 = vsub.s32 2, %v9196
          %v9198 = vrot.slane %v9152, %v9197
          %v9199 = vlaneseq
          %v9200 = vshrl.u32 %v9199, 7
          %v9201 = vsub.s32 3, %v9200
          %v9202 = vrot.slane %v9152, %v9201
          %v9203 = vlaneseq
          %v9204 = vshrl.u32 %v9203, 7
          %v9205 = vsub.s32 4, %v9204
          %v9206 = vrot.slane %v9152, %v9205
          %v9207 = vlaneseq
          %v9208 = vshrl.u32 %v9207, 7
          %v9209 = vsub.s32 5, %v9208
          %v9210 = vrot.slane %v9152, %v9209
          %v9211 = vlaneseq
          %v9212 = vshrl.u32 %v9211, 7
          %v9213 = vsub.s32 6, %v9212
          %v9214 = vrot.slane %v9152, %v9213
          %v9215 = vlaneseq
          %v9216 = vshrl.u32 %v9215, 7
          %v9217 = vsub.s32 7, %v9216
          %v9218 = vrot.slane %v9152, %v9217
          %v9219 = vcombine.low %v9158, %v9162
          %v9220 = vcombine.low %v9166, %v9170
          %v9222 = vunpack.c.l.s4 1983009808
          %v9223 = vunpack.c.0.s8 %v9222
          %v9224 = vlaneseq
          %v9225 = vshrl.u32 %v9224, 7
          %v9226 = vsub.s32 %v9223, %v9225
          %v9227 = vrot.slane %v9219, %v9226
          %v9229 = vunpack.c.l.s4 1983009808
          %v9230 = vunpack.c.0.s8 %v9229
          %v9231 = vlaneseq
          %v9232 = vshrl.u32 %v9231, 7
          %v9233 = vsub.s32 %v9230, %v9232
          %v9234 = vrot.slane %v9220, %v9233
          %v9235 = vcombine.low %v9227, %v9234
          %v9236 = vcombine.low %v9174, %v9178
          %v9237 = vcombine.low %v9182, %v9186
          %v9239 = vunpack.c.l.s4 1983009808
          %v9240 = vunpack.c.0.s8 %v9239
          %v9241 = vlaneseq
          %v9242 = vshrl.u32 %v9241, 7
          %v9243 = vsub.s32 %v9240, %v9242
          %v9244 = vrot.slane %v9236, %v9243
          %v9246 = vunpack.c.l.s4 1983009808
          %v9247 = vunpack.c.0.s8 %v9246
          %v9248 = vlaneseq
          %v9249 = vshrl.u32 %v9248, 7
          %v9250 = vsub.s32 %v9247, %v9249
          %v9251 = vrot.slane %v9237, %v9250
          %v9252 = vcombine.low %v9244, %v9251
          %v9253 = vcombine.low %v9190, %v9194
          %v9254 = vcombine.low %v9198, %v9202
          %v9256 = vunpack.c.l.s4 1983009808
          %v9257 = vunpack.c.0.s8 %v9256
          %v9258 = vlaneseq
          %v9259 = vshrl.u32 %v9258, 7
          %v9260 = vsub.s32 %v9257, %v9259
          %v9261 = vrot.slane %v9253, %v9260
          %v9263 = vunpack.c.l.s4 1983009808
          %v9264 = vunpack.c.0.s8 %v9263
          %v9265 = vlaneseq
          %v9266 = vshrl.u32 %v9265, 7
          %v9267 = vsub.s32 %v9264, %v9266
          %v9268 = vrot.slane %v9254, %v9267
          %v9269 = vcombine.low %v9261, %v9268
          %v9270 = vcombine.low %v9206, %v9210
          %v9271 = vcombine.low %v9214, %v9218
          %v9273 = vunpack.c.l.s4 1983009808
          %v9274 = vunpack.c.0.s8 %v9273
          %v9275 = vlaneseq
          %v9276 = vshrl.u32 %v9275, 7
          %v9277 = vsub.s32 %v9274, %v9276
          %v9278 = vrot.slane %v9270, %v9277
          %v9280 = vunpack.c.l.s4 1983009808
          %v9281 = vunpack.c.0.s8 %v9280
          %v9282 = vlaneseq
          %v9283 = vshrl.u32 %v9282, 7
          %v9284 = vsub.s32 %v9281, %v9283
          %v9285 = vrot.slane %v9271, %v9284
          %v9286 = vcombine.low %v9278, %v9285
          %v9291 = vmul.f32 %v9147, %v9235
          %v9292 = vmul.f32 %v9148, %v9252
          %v9293 = vmul.f32 %v9149, %v9269
          %v9294 = vmul.f32 %v9150, %v9286
          %v9295 = vld [vmem:[%s291] sm:$0xff]
          %v9296 = vld [vmem:[%s291 + $0x8] sm:$0xff]
          %v9299 = vlaneseq
          %v9300 = vshrl.u32 %v9299, 7
          %v9301 = vsub.s32 0, %v9300
          %v9302 = vrot.slane %v9295, %v9301
          %v9303 = vlaneseq
          %v9304 = vshrl.u32 %v9303, 7
          %v9305 = vsub.s32 1, %v9304
          %v9306 = vrot.slane %v9295, %v9305
          %v9307 = vlaneseq
          %v9308 = vshrl.u32 %v9307, 7
          %v9309 = vsub.s32 2, %v9308
          %v9310 = vrot.slane %v9295, %v9309
          %v9311 = vlaneseq
          %v9312 = vshrl.u32 %v9311, 7
          %v9313 = vsub.s32 3, %v9312
          %v9314 = vrot.slane %v9295, %v9313
          %v9315 = vlaneseq
          %v9316 = vshrl.u32 %v9315, 7
          %v9317 = vsub.s32 4, %v9316
          %v9318 = vrot.slane %v9295, %v9317
          %v9319 = vlaneseq
          %v9320 = vshrl.u32 %v9319, 7
          %v9321 = vsub.s32 5, %v9320
          %v9322 = vrot.slane %v9295, %v9321
          %v9323 = vlaneseq
          %v9324 = vshrl.u32 %v9323, 7
          %v9325 = vsub.s32 6, %v9324
          %v9326 = vrot.slane %v9295, %v9325
          %v9327 = vlaneseq
          %v9328 = vshrl.u32 %v9327, 7
          %v9329 = vsub.s32 7, %v9328
          %v9330 = vrot.slane %v9295, %v9329
          %v9331 = vlaneseq
          %v9332 = vshrl.u32 %v9331, 7
          %v9333 = vsub.s32 0, %v9332
          %v9334 = vrot.slane %v9296, %v9333
          %v9335 = vlaneseq
          %v9336 = vshrl.u32 %v9335, 7
          %v9337 = vsub.s32 1, %v9336
          %v9338 = vrot.slane %v9296, %v9337
          %v9339 = vlaneseq
          %v9340 = vshrl.u32 %v9339, 7
          %v9341 = vsub.s32 2, %v9340
          %v9342 = vrot.slane %v9296, %v9341
          %v9343 = vlaneseq
          %v9344 = vshrl.u32 %v9343, 7
          %v9345 = vsub.s32 3, %v9344
          %v9346 = vrot.slane %v9296, %v9345
          %v9347 = vlaneseq
          %v9348 = vshrl.u32 %v9347, 7
          %v9349 = vsub.s32 4, %v9348
          %v9350 = vrot.slane %v9296, %v9349
          %v9351 = vlaneseq
          %v9352 = vshrl.u32 %v9351, 7
          %v9353 = vsub.s32 5, %v9352
          %v9354 = vrot.slane %v9296, %v9353
          %v9355 = vlaneseq
          %v9356 = vshrl.u32 %v9355, 7
          %v9357 = vsub.s32 6, %v9356
          %v9358 = vrot.slane %v9296, %v9357
          %v9359 = vlaneseq
          %v9360 = vshrl.u32 %v9359, 7
          %v9361 = vsub.s32 7, %v9360
          %v9362 = vrot.slane %v9296, %v9361
          %v9363 = vcombine.low %v9302, %v9306
          %v9364 = vcombine.low %v9310, %v9314
          %v9366 = vunpack.c.l.s4 1983009808
          %v9367 = vunpack.c.0.s8 %v9366
          %v9368 = vlaneseq
          %v9369 = vshrl.u32 %v9368, 7
          %v9370 = vsub.s32 %v9367, %v9369
          %v9371 = vrot.slane %v9363, %v9370
          %v9373 = vunpack.c.l.s4 1983009808
          %v9374 = vunpack.c.0.s8 %v9373
          %v9375 = vlaneseq
          %v9376 = vshrl.u32 %v9375, 7
          %v9377 = vsub.s32 %v9374, %v9376
          %v9378 = vrot.slane %v9364, %v9377
          %v9379 = vcombine.low %v9371, %v9378
          %v9380 = vcombine.low %v9318, %v9322
          %v9381 = vcombine.low %v9326, %v9330
          %v9383 = vunpack.c.l.s4 1983009808
          %v9384 = vunpack.c.0.s8 %v9383
          %v9385 = vlaneseq
          %v9386 = vshrl.u32 %v9385, 7
          %v9387 = vsub.s32 %v9384, %v9386
          %v9388 = vrot.slane %v9380, %v9387
          %v9390 = vunpack.c.l.s4 1983009808
          %v9391 = vunpack.c.0.s8 %v9390
          %v9392 = vlaneseq
          %v9393 = vshrl.u32 %v9392, 7
          %v9394 = vsub.s32 %v9391, %v9393
          %v9395 = vrot.slane %v9381, %v9394
          %v9396 = vcombine.low %v9388, %v9395
          %v9397 = vcombine.low %v9334, %v9338
          %v9398 = vcombine.low %v9342, %v9346
          %v9400 = vunpack.c.l.s4 1983009808
          %v9401 = vunpack.c.0.s8 %v9400
          %v9402 = vlaneseq
          %v9403 = vshrl.u32 %v9402, 7
          %v9404 = vsub.s32 %v9401, %v9403
          %v9405 = vrot.slane %v9397, %v9404
          %v9407 = vunpack.c.l.s4 1983009808
          %v9408 = vunpack.c.0.s8 %v9407
          %v9409 = vlaneseq
          %v9410 = vshrl.u32 %v9409, 7
          %v9411 = vsub.s32 %v9408, %v9410
          %v9412 = vrot.slane %v9398, %v9411
          %v9413 = vcombine.low %v9405, %v9412
          %v9414 = vcombine.low %v9350, %v9354
          %v9415 = vcombine.low %v9358, %v9362
          %v9417 = vunpack.c.l.s4 1983009808
          %v9418 = vunpack.c.0.s8 %v9417
          %v9419 = vlaneseq
          %v9420 = vshrl.u32 %v9419, 7
          %v9421 = vsub.s32 %v9418, %v9420
          %v9422 = vrot.slane %v9414, %v9421
          %v9424 = vunpack.c.l.s4 1983009808
          %v9425 = vunpack.c.0.s8 %v9424
          %v9426 = vlaneseq
          %v9427 = vshrl.u32 %v9426, 7
          %v9428 = vsub.s32 %v9425, %v9427
          %v9429 = vrot.slane %v9415, %v9428
          %v9430 = vcombine.low %v9422, %v9429
          %v9435 = vadd.f32 %v9291, %v9379
          %v9436 = vadd.f32 %v9292, %v9396
          %v9437 = vadd.f32 %v9293, %v9413
          %v9438 = vadd.f32 %v9294, %v9430
          %v9439 = vmax.f32 %v9435, 0.0
          %v9440 = vmax.f32 %v9436, 0.0
          %v9441 = vmax.f32 %v9437, 0.0
          %v9442 = vmax.f32 %v9438, 0.0
          %9443 = vst [vmem:[%s325] sm:$0xff] %v9439
          %9444 = vst [vmem:[%s325 + $0x8] sm:$0xff] %v9440
          %9445 = vst [vmem:[%s325 + $0x10] sm:$0xff] %v9441
          %9446 = vst [vmem:[%s325 + $0x18] sm:$0xff] %v9442
        $region60: #{tpu_custom_call.1} parent=35 // pred_fallthru
          _
        %s9447 = sand.u32 %s151, 1
        %s9448 = scalar_lea.sflag [#allocation4], %s9447
        %s9449 = sand.u32 %s151, 1
        %s9450 = smul.addr %s9449, 32
        %s9451 = scalar_lea.vmem [#allocation10], %s9450
        // Predicated region
        $region61: #{tpu_custom_call.1} parent=35 // pred_check
          %p9452 = pneg %p161
        $region62: #{tpu_custom_call.1} parent=35 // pred_check_branch
          %9454 = sbr.rel (%p9452) target = $region64
        $region63: #{tpu_custom_call.1} parent=35 // pred_region
          %s9455 = smul.u32 16, %s29
          %s9457 = ssub.s32 512, 512
          %9458 = vsyncadd %s9448, %s9457
          %s9459 = smul.addr %s9455, 32
          %s9460 = scalar_lea.hbm %s4, %s9459
          %s9462 = sshll.u32 %s9451, 4
          %s9463 = int_to_ptr.vmem [resolvable:$true] %s9462
          %9465 = dma.vmem_to_hbm [thread:$0]  %s9463, 512, %s9460, %s9448
        $region64: #{tpu_custom_call.1} parent=35 // pred_fallthru
          _
      $region36: #{tpu_custom_call.1} parent=5 // pred_fallthru
        _
      %p9466 = scmp.le.s32.totalorder 2, %s20
      // Predicated region
      $region65: #{tpu_custom_call.1} parent=5 // pred_check
        %p9467 = pneg %p9466
      $region66: #{tpu_custom_call.1} parent=5 // pred_check_branch
        %9469 = sbr.rel (%p9467) target = $region68
      $region67: #{tpu_custom_call.1} parent=5 // pred_region
        %s9470 = ssub.s32 %s20, 2
        // Predicated region
        $region69: #{tpu_custom_call.1} parent=67 // pred_check
          %p9471 = pneg %p167
        $region70: #{tpu_custom_call.1} parent=67 // pred_check_branch
          %9473 = sbr.rel (%p9471) target = $region72
        $region71: #{tpu_custom_call.1} parent=67 // pred_region
          %s9474 = sand.u32 %s152, 1
          %s9475 = scalar_lea.sflag [#allocation4], %s9474
          %s9476 = sand.u32 %s152, 1
          %s9477 = smul.addr %s9476, 32
          %s9478 = scalar_lea.vmem [#allocation10], %s9477
          %9479 = dma.done %s9475, 512
        $region72: #{tpu_custom_call.1} parent=67 // pred_fallthru
          _
      $region68: #{tpu_custom_call.1} parent=5 // pred_fallthru
        _
    $region6: #{tpu_custom_call.1} parent=1 // loop_footer
      %s24 = sadd.s32 1, %s20
    $region7: #{tpu_custom_call.1} parent=1 // loop_footer_branch
      %19 = sbr.rel target = $region3
    $region8: #{tpu_custom_call.1} parent=1 // loop_exit
      _
    %9480 = vsyncpa [#allocation3], 1
    %s9481 = scalar_lea.sflag [#allocation3], 1
    %9482 = vsyncpa %s9481, 1
    %9483 = vsyncpa [#allocation6], 1
    %s9484 = scalar_lea.sflag [#allocation6], 1
    %9485 = vsyncpa %s9484, 1
    %9486 = vsyncpa [#allocation9], 1
    %s9487 = scalar_lea.sflag [#allocation9], 1
    %9488 = vsyncpa %s9487, 1
    %9489 = vsyncpa [#allocation4], 1
    %s9490 = scalar_lea.sflag [#allocation4], 1
    %9491 = vsyncpa %s9490, 1

</llo_original>
